<compile_context>
chip_gen: v7x
topology: tpu7x:2x2x1
jax: 0.10.0
libtpu: 0.0.40
codegen_flags: <defaults>
</compile_context>

<pallas_src>
import jax
import jax.numpy as jnp
from jax import lax
from jax.experimental import pallas as pl
from jax.experimental.pallas import tpu as pltpu


# ----------------------------- shared math helpers -----------------------------

def _layernorm(x, gamma, beta, eps=1e-5):
    """Single-pass LayerNorm over the last axis (matches torch.nn.LayerNorm, eps=1e-5)."""
    n = x.shape[-1]
    s1 = jnp.sum(x, axis=-1, keepdims=True)
    s2 = jnp.sum(x * x, axis=-1, keepdims=True)
    mu = s1 * (1.0 / n)
    var = s2 * (1.0 / n) - mu * mu
    inv = lax.rsqrt(var + eps)
    return (x - mu) * inv * gamma + beta


# ----------------------------- Pallas kernel -----------------------------------

def dest_mlp_kernel(hm_ref, tgt_ref, plm_ref, agm_ref, w1t_ref, w2_ref, vecs_ref, out_ref):
    """One grid step = (scene, agent-tile).

    hm_ref  : (1, P, H)   f32   map_feature @ W1[:H] + b1, precomputed per scene (resident)
    tgt_ref : (1, TA, H)  bf16  last-valid agent features for this agent tile
    plm_ref : (1, 4, P)   f32   rows: [map_type_mask, map_type[:,3], any(:4), any(:3)]
    agm_ref : (1, TA, 4)  f32   cols: [veh, ped, cyc, dist_valid]
    w1t/w2  : (H, H)      bf16  weight matrices (agent half of W1, W2)
    vecs_ref: (8, H)      f32   rows: g1, be1, b2, g2, be2, w3, b3(broadcast), 0
    out_ref : (1, TA, P)  f32   fully-masked logits (lane-dense)
    """
    TA = tgt_ref.shape[1]
    P = hm_ref.shape[1]
    H = hm_ref.shape[2]
    inv_h = jnp.float32(1.0 / H)
    eps = jnp.float32(1e-5)
    neg_inf = jnp.float32(-jnp.inf)

    g1, be1 = vecs_ref[0, :], vecs_ref[1, :]
    b2, g2, be2 = vecs_ref[2, :], vecs_ref[3, :], vecs_ref[4, :]
    w3 = vecs_ref[5, :]
    b3 = vecs_ref[6, 0]

    hm = hm_ref[0]                                                        # [P, H]  f32
    t = tgt_ref[0]                                                        # [TA, H] bf16

    # layer 1, agent half (bf16 MXU, f32 acc); map half (hm) already computed per scene
    ht = jnp.dot(t, w1t_ref[...], preferred_element_type=jnp.float32)     # [TA, H]

    # LN1 statistics without touching the [TA, P, H] intermediate:
    #   sum_H(ht+hm) = rowsum(ht) + rowsum(hm)
    #   sum_H((ht+hm)^2) = ssq(ht) + ssq(hm) + 2 * ht @ hm^T   (one small f32 MXU matmul)
    sum_m = jnp.sum(hm, axis=-1)                                          # [P]
    ssq_m = jnp.sum(hm * hm, axis=-1)                                     # [P]
    sum_t = jnp.sum(ht, axis=-1, keepdims=True)                           # [TA, 1]
    ssq_t = jnp.sum(ht * ht, axis=-1, keepdims=True)                      # [TA, 1]
    cross = jnp.einsum("ah,ph->ap", ht, hm,
                       preferred_element_type=jnp.float32)                # [TA, P]
    mu1 = (sum_t + sum_m[None, :]) * inv_h                                # [TA, P]
    ex2 = (ssq_t + ssq_m[None, :] + 2.0 * cross) * inv_h
    inv1 = lax.rsqrt(ex2 - mu1 * mu1 + eps)

    # single normalize + ReLU pass over the big intermediate
    h = ht[:, None, :] + hm[None, :, :]                                   # [TA, P, H] f32
    h = jnp.maximum((h - mu1[..., None]) * inv1[..., None] * g1 + be1, 0.0)

    # layer 2: ONE [TA*P, H] @ [H, H] bf16 matmul, f32 accumulation
    h2 = jnp.dot(h.astype(jnp.bfloat16).reshape(TA * P, H), w2_ref[...],
                 preferred_element_type=jnp.float32).reshape(TA, P, H)
    y = h2 + b2
    mu2 = jnp.sum(y, axis=-1, keepdims=True) * inv_h
    ex22 = jnp.sum(y * y, axis=-1, keepdims=True) * inv_h
    inv2 = lax.rsqrt(ex22 - mu2 * mu2 + eps)
    z = jnp.maximum((y - mu2) * inv2 * g2 + be2, 0.0)

    # layer 3: Linear(H -> 1) as a lane reduction -> lane-dense [TA, P]
    logits = jnp.sum(z * w3, axis=-1) + b3

    # fused masked_fill epilogue (same order as the PyTorch module)
    pm = plm_ref[0]                                                       # [4, P]
    ag = agm_ref[0]                                                       # [TA, 4]
    attn = (ag[:, 0:1] * pm[1:2, :]        # vehicle    & map_type[:, 3]
            + ag[:, 1:2] * pm[2:3, :]      # pedestrian & any(map_type[:, :4])
            + ag[:, 2:3] * pm[3:4, :])     # cyclist    & any(map_type[:, :3])
    masked = (attn + pm[0:1, :]) > 0.0     # attn_mask | map_type_mask
    logits = jnp.where(masked, neg_inf, logits)
    logits = jnp.where(ag[:, 3:4] > 0.0, logits, 0.0)                     # ~dist_valid -> 0
    # masked_fill((logits == -inf).all(-1), 0); padded pl columns are always -inf so they
    # never spoil the all(-inf) check for the real columns.
    any_unmasked = jnp.max(jnp.where(logits == neg_inf, 0.0, 1.0), axis=-1, keepdims=True)
    logits = jnp.where(any_unmasked > 0.0, logits, 0.0)

    out_ref[0] = logits


# --------------------------- tiling / VMEM heuristics ----------------------------

def _vmem_limit_bytes():
    """Scoped VMEM limit derived from the physical capacity of the current generation."""
    phys = 128 * 1024 * 1024
    try:
        info = pltpu.get_tpu_info()
        phys = int(getattr(info, "vmem_capacity_bytes", phys) or phys)
    except Exception:
        pass
    # ~3/4 of physical (<=48 MiB on v7x's 64 MiB), capped at 96 MiB on 128 MiB parts.
    return min((phys * 3) // 4, 96 * 1024 * 1024)


def _choose_agent_tile(A_pad, P_pad, H, vmem_limit):
    """Largest multiple-of-8 agent tile dividing A_pad whose live [TA, P, H] intermediates
    (plus double-buffered blocks) fit the VMEM budget."""
    fixed = (2 * P_pad * H * 4          # hm block, f32, double-buffered (resident per scene)
             + 2 * 2 * H * H * 2        # w1t + w2, bf16, double-buffered
             + 2 * 8 * H * 4            # packed vectors
             + 2 * 4 * P_pad * 4)       # per-pl mask rows
    budget = max(vmem_limit - fixed, 1 << 20)
    # ~3.5 f32 copies of [P_pad, H] live per agent row (h, h_bf16, h2/y, z) + in/out blocks.
    per_agent = 14 * P_pad * H + 2 * (2 * H + 4 * P_pad + 16)
    ta = 8
    for cand in range(8, min(A_pad, 512) + 1, 8):
        if A_pad % cand == 0 and cand * per_agent <= budget:
            ta = cand
    return ta


# ------------------------------- pallas wrapper ----------------------------------

def dest_mlp_pallas(map_feature, tgt, pl_rows, ag_rows, params):
    """Fused MLP + masked_fill.

    map_feature: [S, P, H] f32, tgt: [S, A, H] f32,
    pl_rows: [S, 4, P] f32, ag_rows: [S, A, 4] f32  ->  logits [S, A, P] f32.
    """
    S, P, H = map_feature.shape
    A = tgt.shape[1]
    w1m, w1t, w2, vecs, b1 = params

    P_pad = ((P + 127) // 128) * 128       # lane-dense output stores (multiple of 128)
    A_pad = ((A + 7) // 8) * 8             # sublane-aligned agent tiles

    vmem_limit = _vmem_limit_bytes()
    TA = _choose_agent_tile(A_pad, P_pad, H, vmem_limit)

    # Hoisted per-scene map half of layer 1 (bf16 MXU operands, f32 acc) with b1 folded in.
    map_p = jnp.pad(map_feature, ((0, 0), (0, P_pad - P), (0, 0)))
    hm = jnp.einsum("spk,kh->sph", map_p.astype(jnp.bfloat16), w1m,
                    preferred_element_type=jnp.float32) + b1              # [S, P_pad, H] f32

    tgt_bf = jnp.pad(tgt, ((0, 0), (0, A_pad - A), (0, 0))).astype(jnp.bfloat16)
    plr = jnp.pad(pl_rows, ((0, 0), (0, 0), (0, P_pad - P)))
    if P_pad > P:
        plr = plr.at[:, 0, P:].set(1.0)    # padded pl columns: map_type_mask = True -> -inf
    agr = jnp.pad(ag_rows, ((0, 0), (0, A_pad - A), (0, 0)))

    const2 = lambda s, a: (0, 0)
    flops = 2 * S * A_pad * P_pad * H * (H + 2) + 2 * S * A_pad * H * H
    bytes_accessed = (S * P_pad * H * 4 + S * A_pad * H * 2
                      + S * 4 * P_pad * 4 + S * A_pad * 4 * 4
                      + 2 * H * H * 2 + 8 * H * 4
                      + S * A_pad * P_pad * 4)

    out = pl.pallas_call(
        dest_mlp_kernel,
        out_shape=jax.ShapeDtypeStruct((S, A_pad, P_pad), jnp.float32),
        grid=(S, A_pad // TA),
        in_specs=[
            pl.BlockSpec((1, P_pad, H), lambda s, a: (s, 0, 0)),   # hm (resident across agent tiles)
            pl.BlockSpec((1, TA, H), lambda s, a: (s, a, 0)),      # agent-feature tile
            pl.BlockSpec((1, 4, P_pad), lambda s, a: (s, 0, 0)),   # per-pl mask rows
            pl.BlockSpec((1, TA, 4), lambda s, a: (s, a, 0)),      # per-agent mask cols
            pl.BlockSpec((H, H), const2),                          # W1[H:]  (agent half)
            pl.BlockSpec((H, H), const2),                          # W2
            pl.BlockSpec((8, H), const2),                          # packed LN/w3/b3 vectors
        ],
        out_specs=pl.BlockSpec((1, TA, P_pad), lambda s, a: (s, a, 0)),
        compiler_params=pltpu.CompilerParams(
            dimension_semantics=("parallel", "parallel"),
            vmem_limit_bytes=vmem_limit),
        cost_estimate=pl.CostEstimate(
            flops=int(flops),
            transcendentals=int(2 * S * A_pad * P_pad),
            bytes_accessed=int(bytes_accessed)),
    )(hm, tgt_bf, plr, agr, w1t, w2, vecs)

    return out[:, :A, :P]


# ------------------------------ module wrapper ----------------------------------

def init_params(key, hidden_dim):
    """Canonical f32 params of MLP([2H, H, H, 1], use_layernorm=True, end_layer_activation=False):
    Linear -> LayerNorm -> ReLU, Linear -> LayerNorm -> ReLU, Linear."""
    H = hidden_dim
    ks = jax.random.split(key, 3)
    scale = 0.05
    return dict(
        w1=scale * jax.random.normal(ks[0], (2 * H, H), jnp.float32),
        w2=scale * jax.random.normal(ks[1], (H, H), jnp.float32),
        w3=scale * jax.random.normal(ks[2], (H, 1), jnp.float32),
        b1=jnp.zeros((H,), jnp.float32), b2=jnp.zeros((H,), jnp.float32),
        b3=jnp.zeros((), jnp.float32),
        g1=jnp.ones((H,), jnp.float32), be1=jnp.zeros((H,), jnp.float32),
        g2=jnp.ones((H,), jnp.float32), be2=jnp.zeros((H,), jnp.float32),
    )


def pack_params(p):
    """Kernel layout: bf16 weight matrices + one (8, H) f32 slab of small vectors + f32 b1
    (b1 is folded into the hoisted hm in the wrapper). W1 split matches
    torch.cat([src=map, tgt=agent], dim=-1) @ W1."""
    H = p["w2"].shape[0]
    w1m = p["w1"][:H].astype(jnp.bfloat16)
    w1t = p["w1"][H:].astype(jnp.bfloat16)
    w2 = p["w2"].astype(jnp.bfloat16)
    vecs = jnp.stack(
        [p["g1"], p["be1"], p["b2"], p["g2"], p["be2"],
         p["w3"][:, 0], jnp.full((H,), p["b3"], jnp.float32),
         jnp.zeros((H,), jnp.float32)], axis=0)
    return (w1m, w1t, w2, vecs, p["b1"])


def temporal_aggregate_last_valid(feat, valid):
    """feat: [S, T, A, H], valid: [S, T, A] bool -> ([S, A, H], [S, A])."""
    T = feat.shape[1]
    score = valid.astype(jnp.int32) * jnp.arange(1, T + 1, dtype=jnp.int32)[None, :, None]
    last_idx = jnp.argmax(score, axis=1)                                              # [S, A]
    gathered = jnp.take_along_axis(feat, last_idx[:, None, :, None], axis=1)[:, 0]    # [S, A, H]
    return gathered, jnp.any(valid, axis=1)


def dest_predictor_forward(agent_type, map_type, agent_state,
                           agent_feature, agent_feature_valid,
                           map_feature, map_feature_valid, params):
    """DestPredictor.forward, mode='mlp', gru_as=None; detach_features is a no-op in JAX."""
    del agent_state  # unused in 'mlp' mode

    map_type_mask = ~(map_feature_valid & jnp.any(map_type[:, :, :5], axis=-1))       # [S, P]
    dist_valid = jnp.any(agent_feature_valid, axis=1)                                 # [S, A]

    # mask ingredients for the fused in-kernel masked_fill (tiny f32 slabs)
    pl_rows = jnp.stack(
        [map_type_mask,
         map_type[:, :, 3],
         jnp.any(map_type[:, :, :4], axis=-1),
         jnp.any(map_type[:, :, :3], axis=-1)], axis=1).astype(jnp.float32)           # [S, 4, P]
    ag_rows = jnp.concatenate(
        [agent_type.astype(jnp.float32),
         dist_valid[:, :, None].astype(jnp.float32)], axis=-1)                        # [S, A, 4]

    # TemporalAggregate('last_valid')
    tgt, _ = temporal_aggregate_last_valid(agent_feature, agent_feature_valid)        # [S, A, H]

    logits = dest_mlp_pallas(map_feature, tgt, pl_rows, ag_rows, params)              # [S, A, P]
    return logits, dist_valid  # DestCategorical(logits=..., valid=...)


# ------------------------------ pure-JAX reference -------------------------------

def _forward_ref(agent_type, map_type, agent_feature, agent_feature_valid,
                 map_feature, map_feature_valid, p):
    """Reference mirroring the kernel's numeric policy (bf16 matmul operands, f32 acc)."""
    bf = jnp.bfloat16
    H = map_feature.shape[-1]
    map_type_mask = ~(map_feature_valid & jnp.any(map_type[:, :, :5], axis=-1))
    attn_mask = ((agent_type[:, :, 0:1] & map_type[:, :, 3][:, None, :])
                 | (agent_type[:, :, 1:2] & jnp.any(map_type[:, :, :4], -1)[:, None, :])
                 | (agent_type[:, :, 2:3] & jnp.any(map_type[:, :, :3], -1)[:, None, :]))
    dist_valid = jnp.any(agent_feature_valid, axis=1)
    tgt, _ = temporal_aggregate_last_valid(agent_feature, agent_feature_valid)

    hm = jnp.einsum("spk,kh->sph", map_feature.astype(bf), p["w1"][:H].astype(bf),
                    preferred_element_type=jnp.float32)
    ht = jnp.einsum("sak,kh->sah", tgt.astype(bf), p["w1"][H:].astype(bf),
                    preferred_element_type=jnp.float32)
    h = ht[:, :, None, :] + hm[:, None, :, :] + p["b1"]
    h = jnp.maximum(_layernorm(h, p["g1"], p["be1"]), 0.0)
    h = jnp.einsum("sapk,kh->saph", h.astype(bf), p["w2"].astype(bf),
                   preferred_element_type=jnp.float32) + p["b2"]
    h = jnp.maximum(_layernorm(h, p["g2"], p["be2"]), 0.0)
    logits = jnp.einsum("saph,h->sap", h, p["w3"][:, 0]) + p["b3"]

    neg_inf = jnp.float32(-jnp.inf)
    logits = jnp.where(map_type_mask[:, None, :], neg_inf, logits)
    logits = jnp.where(attn_mask, neg_inf, logits)
    logits = jnp.where(~dist_valid[:, :, None], 0.0, logits)
    all_inf = jnp.all(logits == neg_inf, axis=-1, keepdims=True)
    logits = jnp.where(all_inf, 0.0, logits)
    return logits, dist_valid


# ----------------------------------- main -----------------------------------------

if __name__ == "__main__":
    key = jax.random.PRNGKey(0)
    n_scene, n_agent, n_pl, n_step_hist, hidden_dim = 2, 4, 16, 8, 32

    ks = jax.random.split(key, 8)
    agent_type = jax.nn.one_hot(
        jax.random.randint(ks[0], (n_scene, n_agent), 0, 3), 3).astype(bool)
    map_type = jax.nn.one_hot(
        jax.random.randint(ks[1], (n_scene, n_pl), 0, 11), 11).astype(bool)
    agent_state = jax.random.normal(ks[2], (n_scene, n_step_hist, n_agent, 4), jnp.float32)
    agent_feature = jax.random.normal(
        ks[3], (n_scene, n_step_hist, n_agent, hidden_dim), jnp.float32)
    agent_feature_valid = jax.random.bernoulli(ks[4], 0.8, (n_scene, n_step_hist, n_agent))
    map_feature = jax.random.normal(ks[5], (n_scene, n_pl, hidden_dim), jnp.float32)
    map_feature_valid = jax.random.bernoulli(ks[6], 0.9, (n_scene, n_pl))

    p = init_params(ks[7], hidden_dim)
    kernel_params = pack_params(p)

    logits, dist_valid = jax.jit(dest_predictor_forward)(
        agent_type, map_type, agent_state,
        agent_feature, agent_feature_valid,
        map_feature, map_feature_valid, kernel_params)
    jax.block_until_ready(logits)

    ref_logits, ref_valid = _forward_ref(
        agent_type, map_type, agent_feature, agent_feature_valid,
        map_feature, map_feature_valid, p)

    assert logits.shape == (n_scene, n_agent, n_pl)
    assert dist_valid.shape == (n_scene, n_agent)
    assert bool(jnp.array_equal(dist_valid, ref_valid))
    # -inf pattern must match exactly; finite entries to 1e-3
    same_inf = bool(jnp.array_equal(jnp.isneginf(logits), jnp.isneginf(ref_logits)))
    finite = jnp.isfinite(ref_logits)
    close = bool(jnp.allclose(jnp.where(finite, logits, 0.0),
                              jnp.where(finite, ref_logits, 0.0),
                              atol=1e-3, rtol=1e-3))
    assert same_inf and close, "Pallas DestPredictor mismatch vs JAX reference"

    print("KERNEL_OK")
</pallas_src>

<mosaic_0001>
module attributes {stable_mosaic.version = 11 : i64} {
  func.func @dest_mlp_kernel(%arg0: i32, %arg1: i32, %arg2: memref<1x128x32xf32, #tpu.memory_space<vmem>>, %arg3: memref<1x8x32xbf16, #tpu.memory_space<vmem>>, %arg4: memref<1x4x128xf32, #tpu.memory_space<vmem>>, %arg5: memref<1x8x4xf32, #tpu.memory_space<vmem>>, %arg6: memref<32x32xbf16, #tpu.memory_space<vmem>>, %arg7: memref<32x32xbf16, #tpu.memory_space<vmem>>, %arg8: memref<8x32xf32, #tpu.memory_space<vmem>>, %arg9: memref<1x8x128xf32, #tpu.memory_space<vmem>>) attributes {dimension_semantics = [#tpu.dimension_semantics<parallel>, #tpu.dimension_semantics<parallel>], iteration_bounds = array<i64: 2, 1>, scalar_prefetch = 0 : i64, scratch_operands = 0 : i64, tpu.core_type = #tpu.core_type<tc>, window_params = [{transform_indices = @transform_0, window_bounds = array<i64: 1, 128, 32>}, {transform_indices = @transform_1, window_bounds = array<i64: 1, 8, 32>}, {transform_indices = @transform_2, window_bounds = array<i64: 1, 4, 128>}, {transform_indices = @transform_3, window_bounds = array<i64: 1, 8, 4>}, {pipeline_mode = #tpu.pipeline_mode<synchronous>, transform_indices = @transform_4, window_bounds = array<i64: 32, 32>}, {pipeline_mode = #tpu.pipeline_mode<synchronous>, transform_indices = @transform_5, window_bounds = array<i64: 32, 32>}, {pipeline_mode = #tpu.pipeline_mode<synchronous>, transform_indices = @transform_6, window_bounds = array<i64: 8, 32>}, {transform_indices = @transform_7, window_bounds = array<i64: 1, 8, 128>}]} {
    %c0 = arith.constant 0 : index
    %c0_0 = arith.constant 0 : index
    %0 = vector.load %arg8[%c0, %c0_0] : memref<8x32xf32, #tpu.memory_space<vmem>>, vector<1x32xf32>
    %1 = vector.shape_cast %0 : vector<1x32xf32> to vector<32xf32>
    %c1 = arith.constant 1 : index
    %c0_1 = arith.constant 0 : index
    %2 = vector.load %arg8[%c1, %c0_1] : memref<8x32xf32, #tpu.memory_space<vmem>>, vector<1x32xf32>
    %3 = vector.shape_cast %2 : vector<1x32xf32> to vector<32xf32>
    %c2 = arith.constant 2 : index
    %c0_2 = arith.constant 0 : index
    %4 = vector.load %arg8[%c2, %c0_2] : memref<8x32xf32, #tpu.memory_space<vmem>>, vector<1x32xf32>
    %5 = vector.shape_cast %4 : vector<1x32xf32> to vector<32xf32>
    %c3 = arith.constant 3 : index
    %c0_3 = arith.constant 0 : index
    %6 = vector.load %arg8[%c3, %c0_3] : memref<8x32xf32, #tpu.memory_space<vmem>>, vector<1x32xf32>
    %7 = vector.shape_cast %6 : vector<1x32xf32> to vector<32xf32>
    %c4 = arith.constant 4 : index
    %c0_4 = arith.constant 0 : index
    %8 = vector.load %arg8[%c4, %c0_4] : memref<8x32xf32, #tpu.memory_space<vmem>>, vector<1x32xf32>
    %9 = vector.shape_cast %8 : vector<1x32xf32> to vector<32xf32>
    %c5 = arith.constant 5 : index
    %c0_5 = arith.constant 0 : index
    %10 = vector.load %arg8[%c5, %c0_5] : memref<8x32xf32, #tpu.memory_space<vmem>>, vector<1x32xf32>
    %11 = vector.shape_cast %10 : vector<1x32xf32> to vector<32xf32>
    %c6 = arith.constant 6 : index
    %c0_6 = arith.constant 0 : index
    %12 = vector.load %arg8[%c6, %c0_6] : memref<8x32xf32, #tpu.memory_space<vmem>>, vector<1x1xf32>
    %13 = vector.extract %12[0, 0] : f32 from vector<1x1xf32>
    %c0_7 = arith.constant 0 : index
    %c0_8 = arith.constant 0 : index
    %c0_9 = arith.constant 0 : index
    %14 = vector.load %arg2[%c0_7, %c0_8, %c0_9] : memref<1x128x32xf32, #tpu.memory_space<vmem>>, vector<1x128x32xf32>
    %15 = vector.shape_cast %14 : vector<1x128x32xf32> to vector<128x32xf32>
    %c0_10 = arith.constant 0 : index
    %c0_11 = arith.constant 0 : index
    %c0_12 = arith.constant 0 : index
    %16 = vector.load %arg3[%c0_10, %c0_11, %c0_12] : memref<1x8x32xbf16, #tpu.memory_space<vmem>>, vector<1x8x32xbf16>
    %17 = vector.shape_cast %16 : vector<1x8x32xbf16> to vector<8x32xbf16>
    %c0_13 = arith.constant 0 : index
    %c0_14 = arith.constant 0 : index
    %18 = vector.load %arg6[%c0_13, %c0_14] : memref<32x32xbf16, #tpu.memory_space<vmem>>, vector<32x32xbf16>
    %cst = arith.constant dense<0.000000e+00> : vector<8x32xf32>
    %19 = tpu.matmul %17, %18, %cst {dimension_numbers = #tpu.dot_dimension_numbers<[1], [0], [0], [1], [0, 0, 1, 1], [], []>} : vector<8x32xbf16>, vector<32x32xbf16>, vector<8x32xf32> -> vector<8x32xf32>
    %cst_15 = arith.constant dense<0.000000e+00> : vector<128xf32>
    %20 = vector.multi_reduction <add>, %15, %cst_15 [1] : vector<128x32xf32> to vector<128xf32>
    %21 = arith.mulf %15, %15 : vector<128x32xf32>
    %cst_16 = arith.constant dense<0.000000e+00> : vector<128xf32>
    %22 = vector.multi_reduction <add>, %21, %cst_16 [1] : vector<128x32xf32> to vector<128xf32>
    %cst_17 = arith.constant dense<0.000000e+00> : vector<8xf32>
    %23 = vector.multi_reduction <add>, %19, %cst_17 [1] : vector<8x32xf32> to vector<8xf32>
    %24 = vector.shape_cast %23 : vector<8xf32> to vector<8x1xf32>
    %25 = arith.mulf %19, %19 : vector<8x32xf32>
    %cst_18 = arith.constant dense<0.000000e+00> : vector<8xf32>
    %26 = vector.multi_reduction <add>, %25, %cst_18 [1] : vector<8x32xf32> to vector<8xf32>
    %27 = vector.shape_cast %26 : vector<8xf32> to vector<8x1xf32>
    "tpu.trace_start"() <{level = 10 : i32, message = "ah,ph->ap"}> : () -> ()
    %cst_19 = arith.constant dense<0.000000e+00> : vector<8x128xf32>
    %28 = tpu.matmul %19, %15, %cst_19 {dimension_numbers = #tpu.dot_dimension_numbers<[1], [1], [0], [0], [0, 0, 1, 0], [], []>} : vector<8x32xf32>, vector<128x32xf32>, vector<8x128xf32> -> vector<8x128xf32>
    "tpu.trace_stop"() : () -> ()
    %29 = vector.shape_cast %20 : vector<128xf32> to vector<1x128xf32>
    %30 = vector.broadcast %24 : vector<8x1xf32> to vector<8x128xf32>
    %31 = vector.broadcast %29 : vector<1x128xf32> to vector<8x128xf32>
    %32 = arith.addf %30, %31 : vector<8x128xf32>
    %cst_20 = arith.constant 3.125000e-02 : f32
    %33 = vector.broadcast %cst_20 : f32 to vector<8x128xf32>
    %34 = arith.mulf %32, %33 : vector<8x128xf32>
    %35 = vector.shape_cast %22 : vector<128xf32> to vector<1x128xf32>
    %36 = vector.broadcast %27 : vector<8x1xf32> to vector<8x128xf32>
    %37 = vector.broadcast %35 : vector<1x128xf32> to vector<8x128xf32>
    %38 = arith.addf %36, %37 : vector<8x128xf32>
    %cst_21 = arith.constant 2.000000e+00 : f32
    %39 = vector.broadcast %cst_21 : f32 to vector<8x128xf32>
    %40 = arith.mulf %39, %28 : vector<8x128xf32>
    %41 = arith.addf %38, %40 : vector<8x128xf32>
    %cst_22 = arith.constant 3.125000e-02 : f32
    %42 = vector.broadcast %cst_22 : f32 to vector<8x128xf32>
    %43 = arith.mulf %41, %42 : vector<8x128xf32>
    %44 = arith.mulf %34, %34 : vector<8x128xf32>
    %45 = arith.subf %43, %44 : vector<8x128xf32>
    %cst_23 = arith.constant 9.99999974E-6 : f32
    %46 = vector.broadcast %cst_23 : f32 to vector<8x128xf32>
    %47 = arith.addf %45, %46 : vector<8x128xf32>
    %48 = math.rsqrt %47 : vector<8x128xf32>
    %49 = vector.shape_cast %19 : vector<8x32xf32> to vector<8x1x32xf32>
    %50 = vector.shape_cast %15 : vector<128x32xf32> to vector<1x128x32xf32>
    %51 = vector.broadcast %49 : vector<8x1x32xf32> to vector<8x128x32xf32>
    %52 = vector.broadcast %50 : vector<1x128x32xf32> to vector<8x128x32xf32>
    %53 = arith.addf %51, %52 : vector<8x128x32xf32>
    %54 = vector.shape_cast %34 : vector<8x128xf32> to vector<8x128x1xf32>
    %55 = vector.broadcast %54 : vector<8x128x1xf32> to vector<8x128x32xf32>
    %56 = arith.subf %53, %55 : vector<8x128x32xf32>
    %57 = vector.shape_cast %48 : vector<8x128xf32> to vector<8x128x1xf32>
    %58 = vector.broadcast %57 : vector<8x128x1xf32> to vector<8x128x32xf32>
    %59 = arith.mulf %56, %58 : vector<8x128x32xf32>
    %60 = vector.shape_cast %1 : vector<32xf32> to vector<1x1x32xf32>
    %61 = vector.broadcast %60 : vector<1x1x32xf32> to vector<8x128x32xf32>
    %62 = arith.mulf %59, %61 : vector<8x128x32xf32>
    %63 = vector.shape_cast %3 : vector<32xf32> to vector<1x1x32xf32>
    %64 = vector.broadcast %63 : vector<1x1x32xf32> to vector<8x128x32xf32>
    %65 = arith.addf %62, %64 : vector<8x128x32xf32>
    %cst_24 = arith.constant 0.000000e+00 : f32
    %66 = vector.broadcast %cst_24 : f32 to vector<8x128x32xf32>
    %67 = arith.maximumf %65, %66 : vector<8x128x32xf32>
    %68 = arith.truncf %67 : vector<8x128x32xf32> to vector<8x128x32xbf16>
    %69 = vector.shape_cast %68 : vector<8x128x32xbf16> to vector<1024x32xbf16>
    %c0_25 = arith.constant 0 : index
    %c0_26 = arith.constant 0 : index
    %70 = vector.load %arg7[%c0_25, %c0_26] : memref<32x32xbf16, #tpu.memory_space<vmem>>, vector<32x32xbf16>
    %cst_27 = arith.constant dense<0.000000e+00> : vector<1024x32xf32>
    %71 = tpu.matmul %69, %70, %cst_27 {dimension_numbers = #tpu.dot_dimension_numbers<[1], [0], [0], [1], [0, 0, 1, 1], [], []>} : vector<1024x32xbf16>, vector<32x32xbf16>, vector<1024x32xf32> -> vector<1024x32xf32>
    %72 = vector.shape_cast %71 : vector<1024x32xf32> to vector<8x128x32xf32>
    %73 = vector.shape_cast %5 : vector<32xf32> to vector<1x1x32xf32>
    %74 = vector.broadcast %73 : vector<1x1x32xf32> to vector<8x128x32xf32>
    %75 = arith.addf %72, %74 : vector<8x128x32xf32>
    %cst_28 = arith.constant dense<0.000000e+00> : vector<8x128xf32>
    %76 = vector.multi_reduction <add>, %75, %cst_28 [2] : vector<8x128x32xf32> to vector<8x128xf32>
    %77 = vector.shape_cast %76 : vector<8x128xf32> to vector<8x128x1xf32>
    %cst_29 = arith.constant 3.125000e-02 : f32
    %78 = vector.broadcast %cst_29 : f32 to vector<8x128x1xf32>
    %79 = arith.mulf %77, %78 : vector<8x128x1xf32>
    %80 = arith.mulf %75, %75 : vector<8x128x32xf32>
    %cst_30 = arith.constant dense<0.000000e+00> : vector<8x128xf32>
    %81 = vector.multi_reduction <add>, %80, %cst_30 [2] : vector<8x128x32xf32> to vector<8x128xf32>
    %82 = vector.shape_cast %81 : vector<8x128xf32> to vector<8x128x1xf32>
    %cst_31 = arith.constant 3.125000e-02 : f32
    %83 = vector.broadcast %cst_31 : f32 to vector<8x128x1xf32>
    %84 = arith.mulf %82, %83 : vector<8x128x1xf32>
    %85 = arith.mulf %79, %79 : vector<8x128x1xf32>
    %86 = arith.subf %84, %85 : vector<8x128x1xf32>
    %cst_32 = arith.constant 9.99999974E-6 : f32
    %87 = vector.broadcast %cst_32 : f32 to vector<8x128x1xf32>
    %88 = arith.addf %86, %87 : vector<8x128x1xf32>
    %89 = math.rsqrt %88 : vector<8x128x1xf32>
    %90 = vector.broadcast %79 : vector<8x128x1xf32> to vector<8x128x32xf32>
    %91 = arith.subf %75, %90 : vector<8x128x32xf32>
    %92 = vector.broadcast %89 : vector<8x128x1xf32> to vector<8x128x32xf32>
    %93 = arith.mulf %91, %92 : vector<8x128x32xf32>
    %94 = vector.shape_cast %7 : vector<32xf32> to vector<1x1x32xf32>
    %95 = vector.broadcast %94 : vector<1x1x32xf32> to vector<8x128x32xf32>
    %96 = arith.mulf %93, %95 : vector<8x128x32xf32>
    %97 = vector.shape_cast %9 : vector<32xf32> to vector<1x1x32xf32>
    %98 = vector.broadcast %97 : vector<1x1x32xf32> to vector<8x128x32xf32>
    %99 = arith.addf %96, %98 : vector<8x128x32xf32>
    %cst_33 = arith.constant 0.000000e+00 : f32
    %100 = vector.broadcast %cst_33 : f32 to vector<8x128x32xf32>
    %101 = arith.maximumf %99, %100 : vector<8x128x32xf32>
    %102 = vector.shape_cast %11 : vector<32xf32> to vector<1x1x32xf32>
    %103 = vector.broadcast %102 : vector<1x1x32xf32> to vector<8x128x32xf32>
    %104 = arith.mulf %101, %103 : vector<8x128x32xf32>
    %cst_34 = arith.constant dense<0.000000e+00> : vector<8x128xf32>
    %105 = vector.multi_reduction <add>, %104, %cst_34 [2] : vector<8x128x32xf32> to vector<8x128xf32>
    %106 = vector.broadcast %13 : f32 to vector<8x128xf32>
    %107 = arith.addf %105, %106 : vector<8x128xf32>
    %c0_35 = arith.constant 0 : index
    %c0_36 = arith.constant 0 : index
    %c0_37 = arith.constant 0 : index
    %108 = vector.load %arg4[%c0_35, %c0_36, %c0_37] : memref<1x4x128xf32, #tpu.memory_space<vmem>>, vector<1x4x128xf32>
    %109 = vector.shape_cast %108 : vector<1x4x128xf32> to vector<4x128xf32>
    %c0_38 = arith.constant 0 : index
    %c0_39 = arith.constant 0 : index
    %c0_40 = arith.constant 0 : index
    %110 = vector.load %arg5[%c0_38, %c0_39, %c0_40] : memref<1x8x4xf32, #tpu.memory_space<vmem>>, vector<1x8x4xf32>
    %111 = vector.shape_cast %110 : vector<1x8x4xf32> to vector<8x4xf32>
    %112 = vector.extract_strided_slice %111 {offsets = [0, 0], sizes = [8, 1], strides = [1, 1]} : vector<8x4xf32> to vector<8x1xf32>
    %113 = vector.extract_strided_slice %109 {offsets = [1, 0], sizes = [1, 128], strides = [1, 1]} : vector<4x128xf32> to vector<1x128xf32>
    %114 = vector.broadcast %112 : vector<8x1xf32> to vector<8x128xf32>
    %115 = vector.broadcast %113 : vector<1x128xf32> to vector<8x128xf32>
    %116 = arith.mulf %114, %115 : vector<8x128xf32>
    %117 = vector.extract_strided_slice %111 {offsets = [0, 1], sizes = [8, 1], strides = [1, 1]} : vector<8x4xf32> to vector<8x1xf32>
    %118 = vector.extract_strided_slice %109 {offsets = [2, 0], sizes = [1, 128], strides = [1, 1]} : vector<4x128xf32> to vector<1x128xf32>
    %119 = vector.broadcast %117 : vector<8x1xf32> to vector<8x128xf32>
    %120 = vector.broadcast %118 : vector<1x128xf32> to vector<8x128xf32>
    %121 = arith.mulf %119, %120 : vector<8x128xf32>
    %122 = arith.addf %116, %121 : vector<8x128xf32>
    %123 = vector.extract_strided_slice %111 {offsets = [0, 2], sizes = [8, 1], strides = [1, 1]} : vector<8x4xf32> to vector<8x1xf32>
    %124 = vector.extract_strided_slice %109 {offsets = [3, 0], sizes = [1, 128], strides = [1, 1]} : vector<4x128xf32> to vector<1x128xf32>
    %125 = vector.broadcast %123 : vector<8x1xf32> to vector<8x128xf32>
    %126 = vector.broadcast %124 : vector<1x128xf32> to vector<8x128xf32>
    %127 = arith.mulf %125, %126 : vector<8x128xf32>
    %128 = arith.addf %122, %127 : vector<8x128xf32>
    %129 = vector.extract_strided_slice %109 {offsets = [0, 0], sizes = [1, 128], strides = [1, 1]} : vector<4x128xf32> to vector<1x128xf32>
    %130 = vector.broadcast %129 : vector<1x128xf32> to vector<8x128xf32>
    %131 = arith.addf %128, %130 : vector<8x128xf32>
    %cst_41 = arith.constant 0.000000e+00 : f32
    %132 = vector.broadcast %cst_41 : f32 to vector<8x128xf32>
    %133 = arith.cmpf ogt, %131, %132 : vector<8x128xf32>
    %cst_42 = arith.constant 0xFF800000 : f32
    %134 = vector.broadcast %cst_42 : f32 to vector<8x128xf32>
    %135 = arith.select %133, %134, %107 : vector<8x128xi1>, vector<8x128xf32>
    %136 = vector.extract_strided_slice %111 {offsets = [0, 3], sizes = [8, 1], strides = [1, 1]} : vector<8x4xf32> to vector<8x1xf32>
    %cst_43 = arith.constant 0.000000e+00 : f32
    %137 = vector.broadcast %cst_43 : f32 to vector<8x1xf32>
    %138 = arith.cmpf ogt, %136, %137 : vector<8x1xf32>
    %cst_44 = arith.constant 0.000000e+00 : f32
    %139 = vector.shape_cast %138 : vector<8x1xi1> to vector<8x1xi1>
    %140 = vector.broadcast %139 : vector<8x1xi1> to vector<8x128xi1>
    %141 = vector.broadcast %cst_44 : f32 to vector<8x128xf32>
    %142 = arith.select %140, %135, %141 : vector<8x128xi1>, vector<8x128xf32>
    %cst_45 = arith.constant 0xFF800000 : f32
    %143 = vector.broadcast %cst_45 : f32 to vector<8x128xf32>
    %144 = arith.cmpf oeq, %142, %143 : vector<8x128xf32>
    %cst_46 = arith.constant 0.000000e+00 : f32
    %cst_47 = arith.constant 1.000000e+00 : f32
    %145 = vector.broadcast %cst_46 : f32 to vector<8x128xf32>
    %146 = vector.broadcast %cst_47 : f32 to vector<8x128xf32>
    %147 = arith.select %144, %145, %146 : vector<8x128xi1>, vector<8x128xf32>
    %cst_48 = arith.constant dense<0xFF800000> : vector<8xf32>
    %148 = vector.multi_reduction <maximumf>, %147, %cst_48 [1] : vector<8x128xf32> to vector<8xf32>
    %149 = vector.shape_cast %148 : vector<8xf32> to vector<8x1xf32>
    %cst_49 = arith.constant 0.000000e+00 : f32
    %150 = vector.broadcast %cst_49 : f32 to vector<8x1xf32>
    %151 = arith.cmpf ogt, %149, %150 : vector<8x1xf32>
    %cst_50 = arith.constant 0.000000e+00 : f32
    %152 = vector.shape_cast %151 : vector<8x1xi1> to vector<8x1xi1>
    %153 = vector.broadcast %152 : vector<8x1xi1> to vector<8x128xi1>
    %154 = vector.broadcast %cst_50 : f32 to vector<8x128xf32>
    %155 = arith.select %153, %142, %154 : vector<8x128xi1>, vector<8x128xf32>
    %c0_51 = arith.constant 0 : index
    %c0_52 = arith.constant 0 : index
    %c0_53 = arith.constant 0 : index
    %156 = vector.load %arg9[%c0_51, %c0_52, %c0_53] : memref<1x8x128xf32, #tpu.memory_space<vmem>>, vector<1x8x128xf32>
    %157 = vector.shape_cast %156 : vector<1x8x128xf32> to vector<8x128xf32>
    %158 = vector.shape_cast %155 : vector<8x128xf32> to vector<1x8x128xf32>
    tpu.vector_store %arg9[%c0_51, %c0_52, %c0_53], %158 {strides = array<i32>} : memref<1x8x128xf32, #tpu.memory_space<vmem>>, vector<1x8x128xf32>,
    return
  }
  func.func @transform_0(%arg0: i32, %arg1: i32) -> (i32, i32, i32) {
    %c0_i32 = arith.constant 0 : i32
    %c0_i32_0 = arith.constant 0 : i32
    %c0_i32_1 = arith.constant 0 : i32
    return %arg0, %c0_i32, %c0_i32_0 : i32, i32, i32
  }
  func.func @transform_1(%arg0: i32, %arg1: i32) -> (i32, i32, i32) {
    %c0_i32 = arith.constant 0 : i32
    %c0_i32_0 = arith.constant 0 : i32
    return %arg0, %arg1, %c0_i32 : i32, i32, i32
  }
  func.func @transform_2(%arg0: i32, %arg1: i32) -> (i32, i32, i32) {
    %c0_i32 = arith.constant 0 : i32
    %c0_i32_0 = arith.constant 0 : i32
    %c0_i32_1 = arith.constant 0 : i32
    return %arg0, %c0_i32, %c0_i32_0 : i32, i32, i32
  }
  func.func @transform_3(%arg0: i32, %arg1: i32) -> (i32, i32, i32) {
    %c0_i32 = arith.constant 0 : i32
    %c0_i32_0 = arith.constant 0 : i32
    return %arg0, %arg1, %c0_i32 : i32, i32, i32
  }
  func.func @transform_4(%arg0: i32, %arg1: i32) -> (i32, i32) {
    %c0_i32 = arith.constant 0 : i32
    %c0_i32_0 = arith.constant 0 : i32
    %c0_i32_1 = arith.constant 0 : i32
    return %c0_i32, %c0_i32_0 : i32, i32
  }
  func.func @transform_5(%arg0: i32, %arg1: i32) -> (i32, i32) {
    %c0_i32 = arith.constant 0 : i32
    %c0_i32_0 = arith.constant 0 : i32
    %c0_i32_1 = arith.constant 0 : i32
    return %c0_i32, %c0_i32_0 : i32, i32
  }
  func.func @transform_6(%arg0: i32, %arg1: i32) -> (i32, i32) {
    %c0_i32 = arith.constant 0 : i32
    %c0_i32_0 = arith.constant 0 : i32
    %c0_i32_1 = arith.constant 0 : i32
    return %c0_i32, %c0_i32_0 : i32, i32
  }
  func.func @transform_7(%arg0: i32, %arg1: i32) -> (i32, i32, i32) {
    %c0_i32 = arith.constant 0 : i32
    %c0_i32_0 = arith.constant 0 : i32
    return %arg0, %arg1, %c0_i32 : i32, i32, i32
  }
}

</mosaic_0001>

<llo_original>
// kernel: squeeze.0
$region0: #{squeeze.0}
  #allocation0 [shape = 's32[1]{0}', space=sflag, size = 0x4, scoped, tag = 'scoped memory for squeeze.0']
  %s0 = inlined_call_operand.vmem [shape: pred[2,16], index: 0, kind: input, shape index: {}]
  %s1 = inlined_call_operand.vmem [shape: pred[2,1,16], index: 1, kind: output, shape index: {}]
  // Predicated region
  $region2: #{squeeze.0} parent=0 // pred_check
    _
  $region3: #{squeeze.0} parent=0 // pred_check_branch
    %3 = sbr.rel (0) target = $region5
  $region4: #{squeeze.0} parent=0 // pred_region
    _
  $region5: #{squeeze.0} parent=0 // pred_fallthru
    _
  %v4 = vld [vmem:[%s0] ss:$0 sm:$0xff]
  %v6 = vshra.s32 %v4, 0
  %v7 = vand.u32 %v6, 255
  %v8 = vpack.c.b16 0, %v7
  %v9 = vpack.c.b8 0, %v8
  %11 = vst [vmem:[%s1] sm:$0x1] %v9
  %v12 = vld [vmem:[%s0] ss:$0 sm:$0xff]
  %v14 = vshra.s32 %v12, 8
  %v15 = vand.u32 %v14, 255
  %s16 = scalar_lea.vmem %s1, 1
  %v17 = vpack.c.b16 0, %v15
  %v18 = vpack.c.b8 0, %v17
  %20 = vst [vmem:[%s16] sm:$0x1] %v18

// kernel: dest_predictor_forward.1
$region0: #{dest_predictor_forward.1}
  #allocation0 [shape = 'u32[]', space=smem, size = 0x4, offset = 0x4, fixed_abs, tag = 'smem constant byte address 0x4 - core index']
  #allocation1 [shape = 'u32[144,128]{1,0:T(1,128)}', space=vmem, size = 0x12000, scoped, tag = 'internal scratch']
  %s0 = inlined_call_operand.hbm [shape: f32[2,128,32], index: 0, kind: input, shape index: {}]
  %s1 = inlined_call_operand.hbm [shape: bf16[2,8,32], index: 1, kind: input, shape index: {}]
  %s2 = inlined_call_operand.hbm [shape: f32[2,4,128], index: 2, kind: input, shape index: {}]
  %s3 = inlined_call_operand.hbm [shape: f32[2,8,4], index: 3, kind: input, shape index: {}]
  %s4 = inlined_call_operand.hbm [shape: bf16[32,32], index: 4, kind: input, shape index: {}]
  %s5 = inlined_call_operand.hbm [shape: bf16[32,32], index: 5, kind: input, shape index: {}]
  %s6 = inlined_call_operand.hbm [shape: f32[8,32], index: 6, kind: input, shape index: {}]
  %s7 = inlined_call_operand.hbm [shape: f32[2,8,128], index: 7, kind: output, shape index: {}]
  %s8 = sld [smem:[#allocation0]]
  $region89: #{dest_predictor_forward.1} parent=0
    _
  %s10 = ssub.s32 1, %s8
  %s11 = scalar_select 0, %s10, %s8
  $region1: #{dest_predictor_forward.1} parent=0
    #allocation2 [shape = 'u8[131072]{0}', space=vmem, size = 0x20000, scoped, tag = 'input window, operand 0']
    #allocation3 [shape = 's32[2]{0}', space=sflag, size = 0x8, scoped, tag = 'scoped memory for dest_predictor_forward.1']
    #allocation4 [shape = 's32[2]{0}', space=sflag, size = 0x8, scoped, tag = 'scoped memory for dest_predictor_forward.1']
    #allocation5 [shape = 'u8[4096]{0}', space=vmem, size = 0x1000, scoped, tag = 'input window, operand 1']
    #allocation6 [shape = 's32[2]{0}', space=sflag, size = 0x8, scoped, tag = 'scoped memory for dest_predictor_forward.1']
    #allocation7 [shape = 'u8[4096]{0}', space=vmem, size = 0x1000, scoped, tag = 'input window, operand 2']
    #allocation8 [shape = 'u8[8192]{0}', space=vmem, size = 0x2000, scoped, tag = 'input window, operand 3']
    #allocation9 [shape = 's32[2]{0}', space=sflag, size = 0x8, scoped, tag = 'scoped memory for dest_predictor_forward.1']
    #allocation10 [shape = 'u8[8192]{0}', space=vmem, size = 0x2000, scoped, tag = 'input window, operand 4, single buffered']
    #allocation11 [shape = 'u8[8192]{0}', space=vmem, size = 0x2000, scoped, tag = 'input window, operand 5, single buffered']
    #allocation12 [shape = 's32[1]{0}', space=sflag, size = 0x4, scoped, tag = 'scoped memory for dest_predictor_forward.1']
    #allocation13 [shape = 'u8[4096]{0}', space=vmem, size = 0x1000, scoped, tag = 'input window, operand 6, single buffered']
    #allocation14 [shape = 'u8[8192]{0}', space=vmem, size = 0x2000, scoped, tag = 'output window, operand 0']
    %12 = vsyncpa [#allocation3], 0
    %s13 = scalar_lea.sflag [#allocation3], 1
    %14 = vsyncpa %s13, 0
    %15 = vsyncpa [#allocation6], 0
    %s16 = scalar_lea.sflag [#allocation6], 1
    %17 = vsyncpa %s16, 0
    %18 = vsyncpa [#allocation9], 0
    %s19 = scalar_lea.sflag [#allocation9], 1
    %20 = vsyncpa %s19, 0
    %21 = vsyncpa [#allocation12], 0
    %22 = vsyncpa [#allocation4], 0
    %s23 = scalar_lea.sflag [#allocation4], 1
    %24 = vsyncpa %s23, 0
    loop: start=0, step=1, limit=4
    $region2: #{dest_predictor_forward.1} parent=1 // loop_pre_header
      _
    $region3: #{dest_predictor_forward.1} parent=1 // loop_header
      %s26 = sphi 0, %s30
      %p27 = scmp.ge.s32.totalorder %s26, 4
      %s33 = sphi 0, %s45
      %s34 = sphi 0, %s41
      %s35 = sphi 0, %s33
      %s36 = sphi 0, %s34
      %s37 = sphi 0, %s35
      %s38 = sphi 0, %s36
      %s48 = sphi 0, %s50
      %s51 = sphi 0, %s48
      %s52 = sphi 0, %s51
      %s68 = sphi 0, %s52
      %s76 = sphi 0, %s78
      %s79 = sphi 0, %s76
      %s80 = sphi 0, %s79
      %s96 = sphi 0, %s80
      %s102 = sphi 0, %s104
      %s105 = sphi 0, %s102
      %s106 = sphi 0, %s105
      %s122 = sphi 0, %s106
      %s130 = sphi 0, %s132
      %s133 = sphi 0, %s130
      %s134 = sphi 0, %s133
      %s150 = sphi 0, %s134
      %s154 = sphi 0, %s154
      %s156 = sphi 0, %s154
      %s157 = sphi 0, %s156
      %s171 = sphi 0, %s157
      %s175 = sphi 0, %s175
      %s177 = sphi 0, %s175
      %s178 = sphi 0, %s177
      %s192 = sphi 0, %s178
      %s196 = sphi 0, %s196
      %s198 = sphi 0, %s196
      %s199 = sphi 0, %s198
      %s213 = sphi 0, %s199
      %s221 = sphi 0, %s223
      %s224 = sphi 0, %s221
      %s225 = sphi 0, %s224
      %s241 = sphi 0, %s225
    $region4: #{dest_predictor_forward.1} parent=1 // loop_header_branch
      %29 = sbr.rel (%p27) target = $region8
    $region5: #{dest_predictor_forward.1} parent=1 // loop_body
      %s31 = ssub.s32 %s26, 1
      %s32 = ssub.s32 %s26, 2
      %s39 = sadd.s32 1, %s34
      %p40 = scmp.ge.s32.totalorder %s39, 1
      %s41 = scalar_select %p40, 0, %s39
      %s42 = sadd.s32 1, %s33
      %s43 = scalar_select %p40, %s42, %s33
      %p44 = scmp.ge.s32.totalorder %s43, 2
      %s45 = scalar_select %p44, 0, %s43
      %s46 = ssub.s32 %s33, %s45
      %p47 = scmp.eq.s32.totalorder %s46, 0
      %s49 = sadd.s32 %s48, 1
      %s50 = scalar_select %p47, %s48, %s49
      %p53 = pneg %p47
      %p54 = scmp.eq.s32.totalorder %s26, 1
      %p55 = por %p53, %p54
      %p56 = scmp.ne.s32.totalorder %s48, %s51
      %p57 = scmp.eq.s32.totalorder %s26, 0
      %p58 = por %p56, %p57
      %p59 = scmp.ne.s32.totalorder %s48, %s51
      %p60 = scmp.eq.s32.totalorder %s31, 1
      %p61 = por %p59, %p60
      %p62 = scmp.ne.s32.totalorder %s51, %s52
      %p63 = scmp.eq.s32.totalorder %s31, 0
      %p64 = por %p62, %p63
      %p65 = scmp.ne.s32.totalorder %s51, %s52
      %p66 = scmp.eq.s32.totalorder %s32, 1
      %p67 = por %p65, %p66
      %p69 = scmp.ne.s32.totalorder %s52, %s68
      %p70 = scmp.eq.s32.totalorder %s32, 0
      %p71 = por %p69, %p70
      %s72 = ssub.s32 %s33, %s45
      %s73 = ssub.s32 %s34, %s41
      %s74 = sor.u32 %s72, %s73
      %p75 = scmp.eq.s32.totalorder %s74, 0
      %s77 = sadd.s32 %s76, 1
      %s78 = scalar_select %p75, %s76, %s77
      %p81 = pneg %p75
      %p82 = scmp.eq.s32.totalorder %s26, 1
      %p83 = por %p81, %p82
      %p84 = scmp.ne.s32.totalorder %s76, %s79
      %p85 = scmp.eq.s32.totalorder %s26, 0
      %p86 = por %p84, %p85
      %p87 = scmp.ne.s32.totalorder %s76, %s79
      %p88 = scmp.eq.s32.totalorder %s31, 1
      %p89 = por %p87, %p88
      %p90 = scmp.ne.s32.totalorder %s79, %s80
      %p91 = scmp.eq.s32.totalorder %s31, 0
      %p92 = por %p90, %p91
      %p93 = scmp.ne.s32.totalorder %s79, %s80
      %p94 = scmp.eq.s32.totalorder %s32, 1
      %p95 = por %p93, %p94
      %p97 = scmp.ne.s32.totalorder %s80, %s96
      %p98 = scmp.eq.s32.totalorder %s32, 0
      %p99 = por %p97, %p98
      %s100 = ssub.s32 %s33, %s45
      %p101 = scmp.eq.s32.totalorder %s100, 0
      %s103 = sadd.s32 %s102, 1
      %s104 = scalar_select %p101, %s102, %s103
      %p107 = pneg %p101
      %p108 = scmp.eq.s32.totalorder %s26, 1
      %p109 = por %p107, %p108
      %p110 = scmp.ne.s32.totalorder %s102, %s105
      %p111 = scmp.eq.s32.totalorder %s26, 0
      %p112 = por %p110, %p111
      %p113 = scmp.ne.s32.totalorder %s102, %s105
      %p114 = scmp.eq.s32.totalorder %s31, 1
      %p115 = por %p113, %p114
      %p116 = scmp.ne.s32.totalorder %s105, %s106
      %p117 = scmp.eq.s32.totalorder %s31, 0
      %p118 = por %p116, %p117
      %p119 = scmp.ne.s32.totalorder %s105, %s106
      %p120 = scmp.eq.s32.totalorder %s32, 1
      %p121 = por %p119, %p120
      %p123 = scmp.ne.s32.totalorder %s106, %s122
      %p124 = scmp.eq.s32.totalorder %s32, 0
      %p125 = por %p123, %p124
      %s126 = ssub.s32 %s33, %s45
      %s127 = ssub.s32 %s34, %s41
      %s128 = sor.u32 %s126, %s127
      %p129 = scmp.eq.s32.totalorder %s128, 0
      %s131 = sadd.s32 %s130, 1
      %s132 = scalar_select %p129, %s130, %s131
      %p135 = pneg %p129
      %p136 = scmp.eq.s32.totalorder %s26, 1
      %p137 = por %p135, %p136
      %p138 = scmp.ne.s32.totalorder %s130, %s133
      %p139 = scmp.eq.s32.totalorder %s26, 0
      %p140 = por %p138, %p139
      %p141 = scmp.ne.s32.totalorder %s130, %s133
      %p142 = scmp.eq.s32.totalorder %s31, 1
      %p143 = por %p141, %p142
      %p144 = scmp.ne.s32.totalorder %s133, %s134
      %p145 = scmp.eq.s32.totalorder %s31, 0
      %p146 = por %p144, %p145
      %p147 = scmp.ne.s32.totalorder %s133, %s134
      %p148 = scmp.eq.s32.totalorder %s32, 1
      %p149 = por %p147, %p148
      %p151 = scmp.ne.s32.totalorder %s134, %s150
      %p152 = scmp.eq.s32.totalorder %s32, 0
      %p153 = por %p151, %p152
      %s155 = sadd.s32 %s154, 1
      %p158 = scmp.eq.s32.totalorder %s26, 1
      %p159 = scmp.ne.s32.totalorder %s154, %s156
      %p160 = scmp.eq.s32.totalorder %s26, 0
      %p161 = por %p159, %p160
      %p162 = scmp.ne.s32.totalorder %s154, %s156
      %p163 = scmp.eq.s32.totalorder %s31, 1
      %p164 = por %p162, %p163
      %p165 = scmp.ne.s32.totalorder %s156, %s157
      %p166 = scmp.eq.s32.totalorder %s31, 0
      %p167 = por %p165, %p166
      %p168 = scmp.ne.s32.totalorder %s156, %s157
      %p169 = scmp.eq.s32.totalorder %s32, 1
      %p170 = por %p168, %p169
      %p172 = scmp.ne.s32.totalorder %s157, %s171
      %p173 = scmp.eq.s32.totalorder %s32, 0
      %p174 = por %p172, %p173
      %s176 = sadd.s32 %s175, 1
      %p179 = scmp.eq.s32.totalorder %s26, 1
      %p180 = scmp.ne.s32.totalorder %s175, %s177
      %p181 = scmp.eq.s32.totalorder %s26, 0
      %p182 = por %p180, %p181
      %p183 = scmp.ne.s32.totalorder %s175, %s177
      %p184 = scmp.eq.s32.totalorder %s31, 1
      %p185 = por %p183, %p184
      %p186 = scmp.ne.s32.totalorder %s177, %s178
      %p187 = scmp.eq.s32.totalorder %s31, 0
      %p188 = por %p186, %p187
      %p189 = scmp.ne.s32.totalorder %s177, %s178
      %p190 = scmp.eq.s32.totalorder %s32, 1
      %p191 = por %p189, %p190
      %p193 = scmp.ne.s32.totalorder %s178, %s192
      %p194 = scmp.eq.s32.totalorder %s32, 0
      %p195 = por %p193, %p194
      %s197 = sadd.s32 %s196, 1
      %p200 = scmp.eq.s32.totalorder %s26, 1
      %p201 = scmp.ne.s32.totalorder %s196, %s198
      %p202 = scmp.eq.s32.totalorder %s26, 0
      %p203 = por %p201, %p202
      %p204 = scmp.ne.s32.totalorder %s196, %s198
      %p205 = scmp.eq.s32.totalorder %s31, 1
      %p206 = por %p204, %p205
      %p207 = scmp.ne.s32.totalorder %s198, %s199
      %p208 = scmp.eq.s32.totalorder %s31, 0
      %p209 = por %p207, %p208
      %p210 = scmp.ne.s32.totalorder %s198, %s199
      %p211 = scmp.eq.s32.totalorder %s32, 1
      %p212 = por %p210, %p211
      %p214 = scmp.ne.s32.totalorder %s199, %s213
      %p215 = scmp.eq.s32.totalorder %s32, 0
      %p216 = por %p214, %p215
      %s217 = ssub.s32 %s33, %s45
      %s218 = ssub.s32 %s34, %s41
      %s219 = sor.u32 %s217, %s218
      %p220 = scmp.eq.s32.totalorder %s219, 0
      %s222 = sadd.s32 %s221, 1
      %s223 = scalar_select %p220, %s221, %s222
      %p226 = pneg %p220
      %p227 = scmp.eq.s32.totalorder %s26, 1
      %p228 = por %p226, %p227
      %p229 = scmp.ne.s32.totalorder %s221, %s224
      %p230 = scmp.eq.s32.totalorder %s26, 0
      %p231 = por %p229, %p230
      %p232 = scmp.ne.s32.totalorder %s221, %s224
      %p233 = scmp.eq.s32.totalorder %s31, 1
      %p234 = por %p232, %p233
      %p235 = scmp.ne.s32.totalorder %s224, %s225
      %p236 = scmp.eq.s32.totalorder %s31, 0
      %p237 = por %p235, %p236
      %p238 = scmp.ne.s32.totalorder %s224, %s225
      %p239 = scmp.eq.s32.totalorder %s32, 1
      %p240 = por %p238, %p239
      %p242 = scmp.ne.s32.totalorder %s225, %s241
      %p243 = scmp.eq.s32.totalorder %s32, 0
      %p244 = por %p242, %p243
      %p245 = scmp.le.s32.totalorder 1, %s26
      %p246 = scmp.lt.s32.totalorder %s26, 3
      %p247 = pnand %p245, %p246
      %p248 = pneg %p247
      // Predicated region
      $region9: #{dest_predictor_forward.1} parent=5 // pred_check
        _
      $region10: #{dest_predictor_forward.1} parent=5 // pred_check_branch
        %250 = sbr.rel (%p247) target = $region12
      $region11: #{dest_predictor_forward.1} parent=5 // pred_region
        %s251 = ssub.s32 %s26, 1
        // Predicated region
        $region13: #{dest_predictor_forward.1} parent=11 // pred_check
          %p252 = pneg %p167
        $region14: #{dest_predictor_forward.1} parent=11 // pred_check_branch
          %254 = sbr.rel (%p252) target = $region16
        $region15: #{dest_predictor_forward.1} parent=11 // pred_region
          %s256 = ssub.s32 256, 256
          %257 = vsyncadd [#allocation9], %s256
          %s258 = sshll.u32 [#allocation10], 4
          %s259 = int_to_ptr.vmem [resolvable:$true] %s258
          %264 = dma.hbm_to_vmem [thread:$0]  %s4, 256, %s259, [#allocation9], 64, 64, 4
        $region16: #{dest_predictor_forward.1} parent=11 // pred_fallthru
          _
        // Predicated region
        $region17: #{dest_predictor_forward.1} parent=11 // pred_check
          %p265 = pneg %p188
        $region18: #{dest_predictor_forward.1} parent=11 // pred_check_branch
          %267 = sbr.rel (%p265) target = $region20
        $region19: #{dest_predictor_forward.1} parent=11 // pred_region
          %s269 = ssub.s32 256, 256
          %270 = vsyncadd [#allocation12], %s269
          %s271 = sshll.u32 [#allocation11], 4
          %s272 = int_to_ptr.vmem [resolvable:$true] %s271
          %277 = dma.hbm_to_vmem [thread:$0]  %s5, 256, %s272, [#allocation12], 64, 64, 4
        $region20: #{dest_predictor_forward.1} parent=11 // pred_fallthru
          _
        // Predicated region
        $region21: #{dest_predictor_forward.1} parent=11 // pred_check
          %p278 = pneg %p209
        $region22: #{dest_predictor_forward.1} parent=11 // pred_check_branch
          %280 = sbr.rel (%p278) target = $region24
        $region23: #{dest_predictor_forward.1} parent=11 // pred_region
          %s282 = ssub.s32 128, 128
          %283 = vsyncadd [#allocation12], %s282
          %s285 = sshll.u32 [#allocation13], 4
          %s286 = int_to_ptr.vmem [resolvable:$true] %s285
          %288 = dma.hbm_to_vmem [thread:$0]  %s6, 128, %s286, [#allocation12]
        $region24: #{dest_predictor_forward.1} parent=11 // pred_fallthru
          _
      $region12: #{dest_predictor_forward.1} parent=5 // pred_fallthru
        _
      %p289 = scmp.lt.s32.totalorder %s26, 2
      // Predicated region
      $region25: #{dest_predictor_forward.1} parent=5 // pred_check
        %p290 = pneg %p289
      $region26: #{dest_predictor_forward.1} parent=5 // pred_check_branch
        %292 = sbr.rel (%p290) target = $region28
      $region27: #{dest_predictor_forward.1} parent=5 // pred_region
        // Predicated region
        $region29: #{dest_predictor_forward.1} parent=27 // pred_check
          %p293 = pneg %p58
        $region30: #{dest_predictor_forward.1} parent=27 // pred_check_branch
          %295 = sbr.rel (%p293) target = $region32
        $region31: #{dest_predictor_forward.1} parent=27 // pred_region
          %s296 = sand.u32 %s48, 1
          %s297 = scalar_lea.sflag [#allocation3], %s296
          %s298 = sand.u32 %s48, 1
          %s299 = smul.addr %s298, 128
          %s300 = scalar_lea.vmem [#allocation2], %s299
          %s302 = ssub.s32 2048, 2048
          %303 = vsyncadd %s297, %s302
          %s304 = smul.addr %s33, 16
          %s305 = smul.addr %s304, 128
          %s306 = scalar_lea.hbm %s0, %s305
          %s307 = sshll.u32 %s300, 4
          %s308 = int_to_ptr.vmem [resolvable:$true] %s307
          %313 = dma.hbm_to_vmem [thread:$0]  %s306, 2048, %s308, %s297, 128, 128, 8
        $region32: #{dest_predictor_forward.1} parent=27 // pred_fallthru
          _
        // Predicated region
        $region33: #{dest_predictor_forward.1} parent=27 // pred_check
          %p314 = pneg %p86
        $region34: #{dest_predictor_forward.1} parent=27 // pred_check_branch
          %316 = sbr.rel (%p314) target = $region36
        $region35: #{dest_predictor_forward.1} parent=27 // pred_region
          %s317 = sand.u32 %s26, 1
          %s318 = scalar_lea.sflag [#allocation6], %s317
          %s319 = sand.u32 %s76, 1
          %s320 = smul.addr %s319, 4
          %s321 = scalar_lea.vmem [#allocation5], %s320
          %s323 = ssub.s32 64, 64
          %324 = vsyncadd %s318, %s323
          %s325 = sadd.s32 %s34, %s33
          %s326 = smul.addr %s325, 64
          %s327 = scalar_lea.hbm %s1, %s326
          %s329 = sshll.u32 %s321, 4
          %s330 = int_to_ptr.vmem [resolvable:$true] %s329
          %332 = dma.hbm_to_vmem [thread:$0]  %s327, 64, %s330, %s318
        $region36: #{dest_predictor_forward.1} parent=27 // pred_fallthru
          _
        // Predicated region
        $region37: #{dest_predictor_forward.1} parent=27 // pred_check
          %p333 = pneg %p112
        $region38: #{dest_predictor_forward.1} parent=27 // pred_check_branch
          %335 = sbr.rel (%p333) target = $region40
        $region39: #{dest_predictor_forward.1} parent=27 // pred_region
          %s336 = sand.u32 %s26, 1
          %s337 = scalar_lea.sflag [#allocation6], %s336
          %s338 = sand.u32 %s102, 1
          %s339 = smul.addr %s338, 4
          %s340 = scalar_lea.vmem [#allocation7], %s339
          %s342 = ssub.s32 64, 64
          %343 = vsyncadd %s337, %s342
          %s344 = smul.addr %s33, 64
          %s345 = scalar_lea.hbm %s2, %s344
          %s347 = sshll.u32 %s340, 4
          %s348 = int_to_ptr.vmem [resolvable:$true] %s347
          %350 = dma.hbm_to_vmem [thread:$0]  %s345, 64, %s348, %s337
        $region40: #{dest_predictor_forward.1} parent=27 // pred_fallthru
          _
        // Predicated region
        $region41: #{dest_predictor_forward.1} parent=27 // pred_check
          %p351 = pneg %p140
        $region42: #{dest_predictor_forward.1} parent=27 // pred_check_branch
          %353 = sbr.rel (%p351) target = $region44
        $region43: #{dest_predictor_forward.1} parent=27 // pred_region
          %s354 = sand.u32 %s26, 1
          %s355 = scalar_lea.sflag [#allocation9], %s354
          %s356 = sand.u32 %s130, 1
          %s357 = smul.addr %s356, 8
          %s358 = scalar_lea.vmem [#allocation8], %s357
          %s360 = ssub.s32 128, 128
          %361 = vsyncadd %s355, %s360
          %s362 = sadd.s32 %s34, %s33
          %s363 = smul.addr %s362, 128
          %s364 = scalar_lea.hbm %s3, %s363
          %s366 = sshll.u32 %s358, 4
          %s367 = int_to_ptr.vmem [resolvable:$true] %s366
          %369 = dma.hbm_to_vmem [thread:$0]  %s364, 128, %s367, %s355
        $region44: #{dest_predictor_forward.1} parent=27 // pred_fallthru
          _
      $region28: #{dest_predictor_forward.1} parent=5 // pred_fallthru
        _
      %p370 = scmp.le.s32.totalorder 1, %s26
      %p371 = scmp.lt.s32.totalorder %s26, 3
      %p372 = pnand %p370, %p371
      %p373 = pneg %p372
      // Predicated region
      $region45: #{dest_predictor_forward.1} parent=5 // pred_check
        _
      $region46: #{dest_predictor_forward.1} parent=5 // pred_check_branch
        %375 = sbr.rel (%p372) target = $region48
      $region47: #{dest_predictor_forward.1} parent=5 // pred_region
        %s376 = ssub.s32 %s26, 1
        %s377 = sand.u32 %s51, 1
        %s378 = scalar_lea.sflag [#allocation3], %s377
        %s379 = sand.u32 %s51, 1
        %s380 = smul.addr %s379, 128
        %s381 = scalar_lea.vmem [#allocation2], %s380
        // Predicated region
        $region49: #{dest_predictor_forward.1} parent=47 // pred_check
          %p382 = pneg %p64
        $region50: #{dest_predictor_forward.1} parent=47 // pred_check_branch
          %384 = sbr.rel (%p382) target = $region52
        $region51: #{dest_predictor_forward.1} parent=47 // pred_region
          %385 = dma.done %s378, 2048
        $region52: #{dest_predictor_forward.1} parent=47 // pred_fallthru
          _
        %s386 = sand.u32 %s31, 1
        %s387 = scalar_lea.sflag [#allocation6], %s386
        %s388 = sand.u32 %s79, 1
        %s389 = smul.addr %s388, 4
        %s390 = scalar_lea.vmem [#allocation5], %s389
        // Predicated region
        $region53: #{dest_predictor_forward.1} parent=47 // pred_check
          %p391 = pneg %p92
        $region54: #{dest_predictor_forward.1} parent=47 // pred_check_branch
          %393 = sbr.rel (%p391) target = $region56
        $region55: #{dest_predictor_forward.1} parent=47 // pred_region
          %394 = dma.done %s387, 64
        $region56: #{dest_predictor_forward.1} parent=47 // pred_fallthru
          _
        %s395 = sand.u32 %s31, 1
        %s396 = scalar_lea.sflag [#allocation6], %s395
        %s397 = sand.u32 %s105, 1
        %s398 = smul.addr %s397, 4
        %s399 = scalar_lea.vmem [#allocation7], %s398
        // Predicated region
        $region57: #{dest_predictor_forward.1} parent=47 // pred_check
          %p400 = pneg %p118
        $region58: #{dest_predictor_forward.1} parent=47 // pred_check_branch
          %402 = sbr.rel (%p400) target = $region60
        $region59: #{dest_predictor_forward.1} parent=47 // pred_region
          %403 = dma.done %s396, 64
        $region60: #{dest_predictor_forward.1} parent=47 // pred_fallthru
          _
        %s404 = sand.u32 %s31, 1
        %s405 = scalar_lea.sflag [#allocation9], %s404
        %s406 = sand.u32 %s133, 1
        %s407 = smul.addr %s406, 8
        %s408 = scalar_lea.vmem [#allocation8], %s407
        // Predicated region
        $region61: #{dest_predictor_forward.1} parent=47 // pred_check
          %p409 = pneg %p146
        $region62: #{dest_predictor_forward.1} parent=47 // pred_check_branch
          %411 = sbr.rel (%p409) target = $region64
        $region63: #{dest_predictor_forward.1} parent=47 // pred_region
          %412 = dma.done %s405, 128
        $region64: #{dest_predictor_forward.1} parent=47 // pred_fallthru
          _
        // Predicated region
        $region65: #{dest_predictor_forward.1} parent=47 // pred_check
          %p413 = pneg %p167
        $region66: #{dest_predictor_forward.1} parent=47 // pred_check_branch
          %415 = sbr.rel (%p413) target = $region68
        $region67: #{dest_predictor_forward.1} parent=47 // pred_region
          %416 = dma.done [#allocation9], 256
        $region68: #{dest_predictor_forward.1} parent=47 // pred_fallthru
          _
        // Predicated region
        $region69: #{dest_predictor_forward.1} parent=47 // pred_check
          %p417 = pneg %p188
        $region70: #{dest_predictor_forward.1} parent=47 // pred_check_branch
          %419 = sbr.rel (%p417) target = $region72
        $region71: #{dest_predictor_forward.1} parent=47 // pred_region
          %420 = dma.done [#allocation12], 256
        $region72: #{dest_predictor_forward.1} parent=47 // pred_fallthru
          _
        // Predicated region
        $region73: #{dest_predictor_forward.1} parent=47 // pred_check
          %p421 = pneg %p209
        $region74: #{dest_predictor_forward.1} parent=47 // pred_check_branch
          %423 = sbr.rel (%p421) target = $region76
        $region75: #{dest_predictor_forward.1} parent=47 // pred_region
          %424 = dma.done [#allocation12], 128
        $region76: #{dest_predictor_forward.1} parent=47 // pred_fallthru
          _
        %s425 = sand.u32 %s51, 1
        %s426 = scalar_lea.sflag [#allocation3], %s425
        %s427 = sand.u32 %s51, 1
        %s428 = smul.addr %s427, 128
        %s429 = scalar_lea.vmem [#allocation2], %s428
        %p430 = pneg %p64
        %p431 = pneg %p61
        %s432 = sand.u32 %s31, 1
        %s433 = scalar_lea.sflag [#allocation6], %s432
        %s434 = sand.u32 %s79, 1
        %s435 = smul.addr %s434, 4
        %s436 = scalar_lea.vmem [#allocation5], %s435
        %p437 = pneg %p92
        %p438 = pneg %p89
        %s439 = sand.u32 %s31, 1
        %s440 = scalar_lea.sflag [#allocation6], %s439
        %s441 = sand.u32 %s105, 1
        %s442 = smul.addr %s441, 4
        %s443 = scalar_lea.vmem [#allocation7], %s442
        %p444 = pneg %p118
        %p445 = pneg %p115
        %s446 = sand.u32 %s31, 1
        %s447 = scalar_lea.sflag [#allocation9], %s446
        %s448 = sand.u32 %s133, 1
        %s449 = smul.addr %s448, 8
        %s450 = scalar_lea.vmem [#allocation8], %s449
        %p451 = pneg %p146
        %p452 = pneg %p143
        %p453 = pneg %p167
        %p454 = pneg %p164
        %p455 = pneg %p188
        %p456 = pneg %p185
        %p457 = pneg %p209
        %p458 = pneg %p206
        %p459 = pneg %p237
        %p460 = pneg %p234
        %s461 = sand.u32 %s224, 1
        %s462 = scalar_lea.sflag [#allocation4], %s461
        %s463 = sand.u32 %s224, 1
        %s464 = smul.addr %s463, 8
        %s465 = scalar_lea.vmem [#allocation14], %s464
        %v467 = vld [vmem:[#allocation13] sm:$0x1]
        %v468 = vld [vmem:[#allocation13 + $0x1] sm:$0x1]
        %v469 = vld [vmem:[#allocation13 + $0x2] sm:$0x1]
        %v470 = vld [vmem:[#allocation13 + $0x3] sm:$0x1]
        %v471 = vld [vmem:[#allocation13 + $0x4] sm:$0x1]
        %v472 = vld [vmem:[#allocation13 + $0x5] sm:$0x1]
        %v473 = vld [vmem:[#allocation13 + $0x6] sm:$0x1]
        %s474 = vtos %v473
        %v475 = vld [vmem:[%s381] sm:$0xff]
        %v476 = vld [vmem:[%s381 + $0x8] sm:$0xff]
        %v477 = vld [vmem:[%s381 + $0x10] sm:$0xff]
        %v478 = vld [vmem:[%s381 + $0x18] sm:$0xff]
        %v479 = vld [vmem:[%s381 + $0x20] sm:$0xff]
        %v480 = vld [vmem:[%s381 + $0x28] sm:$0xff]
        %v481 = vld [vmem:[%s381 + $0x30] sm:$0xff]
        %v482 = vld [vmem:[%s381 + $0x38] sm:$0xff]
        %v483 = vld [vmem:[%s381 + $0x40] sm:$0xff]
        %v484 = vld [vmem:[%s381 + $0x48] sm:$0xff]
        %v485 = vld [vmem:[%s381 + $0x50] sm:$0xff]
        %v486 = vld [vmem:[%s381 + $0x58] sm:$0xff]
        %v487 = vld [vmem:[%s381 + $0x60] sm:$0xff]
        %v488 = vld [vmem:[%s381 + $0x68] sm:$0xff]
        %v489 = vld [vmem:[%s381 + $0x70] sm:$0xff]
        %v490 = vld [vmem:[%s381 + $0x78] sm:$0xff]
        %v491 = vld [vmem:[%s390] sm:$0xf]
        %v492 = vld [vmem:[#allocation10] sm:$0xf]
        %v493 = vld [vmem:[#allocation10 + $0x4] sm:$0xf]
        %v494 = vld [vmem:[#allocation10 + $0x8] sm:$0xf]
        %v495 = vld [vmem:[#allocation10 + $0xc] sm:$0xf]
        %v500 = vunpack.c.l.b16 %v492
        %v501 = vunpack.c.l.b16 %v493
        %v502 = vunpack.c.l.b16 %v494
        %v503 = vunpack.c.l.b16 %v495
        %v504 = vpack.c.b16 %v501, %v500
        %v505 = vpack.c.b16 %v503, %v502
        %vm508 = vcmask 261120
        %v510 = vsel %vm508, %v491, 0
        %512 = vmatprep.subr.bf16.mxu0 0
        %513 = vmatpush1.bf16.msra.mxu0 %v504
        %514 = vmatprep.subr.bf16.mxu0 0
        %515 = vmatpush1.bf16.msra.mxu0 %v505
        %516 = vmatprep.subr.bf16.mxu0 0
        %517 = vmatpush1.bf16.msra.mxu0 0
        %518 = vmatprep.subr.bf16.mxu0 0
        %519 = vmatpush1.bf16.msra.mxu0 0
        %520 = vmatprep.subr.bf16.mxu0 0
        %521 = vmatpush1.bf16.msra.mxu0 0
        %522 = vmatprep.subr.bf16.mxu0 0
        %523 = vmatpush1.bf16.msra.mxu0 0
        %524 = vmatprep.subr.bf16.mxu0 0
        %525 = vmatpush1.bf16.msra.mxu0 0
        %526 = vmatprep.subr.bf16.mxu0 0
        %527 = vmatpush1.bf16.msra.mxu0 0
        %528 = vmatprep.subr.bf16.mxu0 0
        %529 = vmatpush1.bf16.msra.mxu0 0
        %530 = vmatprep.subr.bf16.mxu0 0
        %531 = vmatpush1.bf16.msra.mxu0 0
        %532 = vmatprep.subr.bf16.mxu0 0
        %533 = vmatpush1.bf16.msra.mxu0 0
        %534 = vmatprep.subr.bf16.mxu0 0
        %535 = vmatpush1.bf16.msra.mxu0 0
        %536 = vmatprep.subr.bf16.mxu0 0
        %537 = vmatpush1.bf16.msra.mxu0 0
        %538 = vmatprep.subr.bf16.mxu0 0
        %539 = vmatpush1.bf16.msra.mxu0 0
        %540 = vmatprep.subr.bf16.mxu0 0
        %541 = vmatpush1.bf16.msra.mxu0 0
        %542 = vmatprep.subr.bf16.mxu0 0
        %543 = vmatpush1.bf16.msra.mxu0 0
        %544 = vmatprep.mubr.bf16.mxu0 0
        %545 = vmatmul.mubr.bf16.gmra.mrb[0].mxu0 %v510
        %v546 = vpop.f32.mrb[0].mxu0
        %v547 = vadd.f32 0.0, %v546
        %v548 = vpop.f32.mrb[0].mxu0
        %v549 = vpop.f32.mrb[0].mxu0
        %v550 = vpop.f32.mrb[0].mxu0
        %551 = vdwg.mxu0
        %v552 = vsel %vm508, %v475, 0.0
        %553 = vadd.xlane.f32.xlu0 %v552
        %v554 = vpop.xlane.xlu0 %553
        %v555 = vsel %vm508, %v476, 0.0
        %556 = vadd.xlane.f32.xlu0 %v555
        %v557 = vpop.xlane.xlu0 %556
        %v558 = vsel %vm508, %v477, 0.0
        %559 = vadd.xlane.f32.xlu0 %v558
        %v560 = vpop.xlane.xlu0 %559
        %v561 = vsel %vm508, %v478, 0.0
        %562 = vadd.xlane.f32.xlu0 %v561
        %v563 = vpop.xlane.xlu0 %562
        %v564 = vsel %vm508, %v479, 0.0
        %565 = vadd.xlane.f32.xlu0 %v564
        %v566 = vpop.xlane.xlu0 %565
        %v567 = vsel %vm508, %v480, 0.0
        %568 = vadd.xlane.f32.xlu0 %v567
        %v569 = vpop.xlane.xlu0 %568
        %v570 = vsel %vm508, %v481, 0.0
        %571 = vadd.xlane.f32.xlu0 %v570
        %v572 = vpop.xlane.xlu0 %571
        %v573 = vsel %vm508, %v482, 0.0
        %574 = vadd.xlane.f32.xlu0 %v573
        %v575 = vpop.xlane.xlu0 %574
        %v576 = vsel %vm508, %v483, 0.0
        %577 = vadd.xlane.f32.xlu0 %v576
        %v578 = vpop.xlane.xlu0 %577
        %v579 = vsel %vm508, %v484, 0.0
        %580 = vadd.xlane.f32.xlu0 %v579
        %v581 = vpop.xlane.xlu0 %580
        %v582 = vsel %vm508, %v485, 0.0
        %583 = vadd.xlane.f32.xlu0 %v582
        %v584 = vpop.xlane.xlu0 %583
        %v585 = vsel %vm508, %v486, 0.0
        %586 = vadd.xlane.f32.xlu0 %v585
        %v587 = vpop.xlane.xlu0 %586
        %v588 = vsel %vm508, %v487, 0.0
        %589 = vadd.xlane.f32.xlu0 %v588
        %v590 = vpop.xlane.xlu0 %589
        %v591 = vsel %vm508, %v488, 0.0
        %592 = vadd.xlane.f32.xlu0 %v591
        %v593 = vpop.xlane.xlu0 %592
        %v594 = vsel %vm508, %v489, 0.0
        %595 = vadd.xlane.f32.xlu0 %v594
        %v596 = vpop.xlane.xlu0 %595
        %v597 = vsel %vm508, %v490, 0.0
        %598 = vadd.xlane.f32.xlu0 %v597
        %v599 = vpop.xlane.xlu0 %598
        %v600 = vmul.f32 %v475, %v475
        %v601 = vmul.f32 %v476, %v476
        %v602 = vmul.f32 %v477, %v477
        %v603 = vmul.f32 %v478, %v478
        %v604 = vmul.f32 %v479, %v479
        %v605 = vmul.f32 %v480, %v480
        %v606 = vmul.f32 %v481, %v481
        %v607 = vmul.f32 %v482, %v482
        %v608 = vmul.f32 %v483, %v483
        %v609 = vmul.f32 %v484, %v484
        %v610 = vmul.f32 %v485, %v485
        %v611 = vmul.f32 %v486, %v486
        %v612 = vmul.f32 %v487, %v487
        %v613 = vmul.f32 %v488, %v488
        %v614 = vmul.f32 %v489, %v489
        %v615 = vmul.f32 %v490, %v490
        %v616 = vsel %vm508, %v600, 0.0
        %617 = vadd.xlane.f32.xlu0 %v616
        %v618 = vpop.xlane.xlu0 %617
        %v619 = vsel %vm508, %v601, 0.0
        %620 = vadd.xlane.f32.xlu0 %v619
        %v621 = vpop.xlane.xlu0 %620
        %v622 = vsel %vm508, %v602, 0.0
        %623 = vadd.xlane.f32.xlu0 %v622
        %v624 = vpop.xlane.xlu0 %623
        %v625 = vsel %vm508, %v603, 0.0
        %626 = vadd.xlane.f32.xlu0 %v625
        %v627 = vpop.xlane.xlu0 %626
        %v628 = vsel %vm508, %v604, 0.0
        %629 = vadd.xlane.f32.xlu0 %v628
        %v630 = vpop.xlane.xlu0 %629
        %v631 = vsel %vm508, %v605, 0.0
        %632 = vadd.xlane.f32.xlu0 %v631
        %v633 = vpop.xlane.xlu0 %632
        %v634 = vsel %vm508, %v606, 0.0
        %635 = vadd.xlane.f32.xlu0 %v634
        %v636 = vpop.xlane.xlu0 %635
        %v637 = vsel %vm508, %v607, 0.0
        %638 = vadd.xlane.f32.xlu0 %v637
        %v639 = vpop.xlane.xlu0 %638
        %v640 = vsel %vm508, %v608, 0.0
        %641 = vadd.xlane.f32.xlu0 %v640
        %v642 = vpop.xlane.xlu0 %641
        %v643 = vsel %vm508, %v609, 0.0
        %644 = vadd.xlane.f32.xlu0 %v643
        %v645 = vpop.xlane.xlu0 %644
        %v646 = vsel %vm508, %v610, 0.0
        %647 = vadd.xlane.f32.xlu0 %v646
        %v648 = vpop.xlane.xlu0 %647
        %v649 = vsel %vm508, %v611, 0.0
        %650 = vadd.xlane.f32.xlu0 %v649
        %v651 = vpop.xlane.xlu0 %650
        %v652 = vsel %vm508, %v612, 0.0
        %653 = vadd.xlane.f32.xlu0 %v652
        %v654 = vpop.xlane.xlu0 %653
        %v655 = vsel %vm508, %v613, 0.0
        %656 = vadd.xlane.f32.xlu0 %v655
        %v657 = vpop.xlane.xlu0 %656
        %v658 = vsel %vm508, %v614, 0.0
        %659 = vadd.xlane.f32.xlu0 %v658
        %v660 = vpop.xlane.xlu0 %659
        %v661 = vsel %vm508, %v615, 0.0
        %662 = vadd.xlane.f32.xlu0 %v661
        %v663 = vpop.xlane.xlu0 %662
        %v664 = vsel %vm508, %v547, 0.0
        %665 = vadd.xlane.f32.xlu0 %v664
        %v666 = vpop.xlane.xlu0 %665
        %v667 = vmul.f32 %v547, %v547
        %v668 = vsel %vm508, %v667, 0.0
        %669 = vadd.xlane.f32.xlu0 %v668
        %v670 = vpop.xlane.xlu0 %669
        %v672 = vsel %vm508, %v547, 0
        %v675 = vsel %vm508, %v475, 0
        %v678 = vsel %vm508, %v476, 0
        %v681 = vsel %vm508, %v477, 0
        %v684 = vsel %vm508, %v478, 0
        %v687 = vsel %vm508, %v479, 0
        %v690 = vsel %vm508, %v480, 0
        %v693 = vsel %vm508, %v481, 0
        %v696 = vsel %vm508, %v482, 0
        %v699 = vsel %vm508, %v483, 0
        %v702 = vsel %vm508, %v484, 0
        %v705 = vsel %vm508, %v485, 0
        %v708 = vsel %vm508, %v486, 0
        %v711 = vsel %vm508, %v487, 0
        %v714 = vsel %vm508, %v488, 0
        %v717 = vsel %vm508, %v489, 0
        %v720 = vsel %vm508, %v490, 0
        %722 = vmatprep.subr.mxu0 0.0
        %723 = vmatpush1.xpose.msra.mxu0 %v675
        %724 = vmatprep.subr.mxu0 0.0
        %725 = vmatpush1.xpose.msra.mxu0 %v678
        %726 = vmatprep.subr.mxu0 0.0
        %727 = vmatpush1.xpose.msra.mxu0 %v681
        %728 = vmatprep.subr.mxu0 0.0
        %729 = vmatpush1.xpose.msra.mxu0 %v684
        %730 = vmatprep.subr.mxu0 0.0
        %731 = vmatpush1.xpose.msra.mxu0 %v687
        %732 = vmatprep.subr.mxu0 0.0
        %733 = vmatpush1.xpose.msra.mxu0 %v690
        %734 = vmatprep.subr.mxu0 0.0
        %735 = vmatpush1.xpose.msra.mxu0 %v693
        %736 = vmatprep.subr.mxu0 0.0
        %737 = vmatpush1.xpose.msra.mxu0 %v696
        %738 = vmatprep.subr.mxu0 0.0
        %739 = vmatpush1.xpose.msra.mxu0 %v699
        %740 = vmatprep.subr.mxu0 0.0
        %741 = vmatpush1.xpose.msra.mxu0 %v702
        %742 = vmatprep.subr.mxu0 0.0
        %743 = vmatpush1.xpose.msra.mxu0 %v705
        %744 = vmatprep.subr.mxu0 0.0
        %745 = vmatpush1.xpose.msra.mxu0 %v708
        %746 = vmatprep.subr.mxu0 0.0
        %747 = vmatpush1.xpose.msra.mxu0 %v711
        %748 = vmatprep.subr.mxu0 0.0
        %749 = vmatpush1.xpose.msra.mxu0 %v714
        %750 = vmatprep.subr.mxu0 0.0
        %751 = vmatpush1.xpose.msra.mxu0 %v717
        %752 = vmatprep.subr.mxu0 0.0
        %753 = vmatpush1.xpose.msra.mxu0 %v720
        %754 = vmatprep.subr.mxu0 0.0
        %755 = vmatpush1.xpose.msra.mxu0 0.0
        %756 = vmatprep.subr.mxu0 0.0
        %757 = vmatpush1.xpose.msra.mxu0 0.0
        %758 = vmatprep.subr.mxu0 0.0
        %759 = vmatpush1.xpose.msra.mxu0 0.0
        %760 = vmatprep.subr.mxu0 0.0
        %761 = vmatpush1.xpose.msra.mxu0 0.0
        %762 = vmatprep.subr.mxu0 0.0
        %763 = vmatpush1.xpose.msra.mxu0 0.0
        %764 = vmatprep.subr.mxu0 0.0
        %765 = vmatpush1.xpose.msra.mxu0 0.0
        %766 = vmatprep.subr.mxu0 0.0
        %767 = vmatpush1.xpose.msra.mxu0 0.0
        %768 = vmatprep.subr.mxu0 0.0
        %769 = vmatpush1.xpose.msra.mxu0 0.0
        %770 = vmatprep.subr.mxu0 0.0
        %771 = vmatpush1.xpose.msra.mxu0 0.0
        %772 = vmatprep.subr.mxu0 0.0
        %773 = vmatpush1.xpose.msra.mxu0 0.0
        %774 = vmatprep.subr.mxu0 0.0
        %775 = vmatpush1.xpose.msra.mxu0 0.0
        %776 = vmatprep.subr.mxu0 0.0
        %777 = vmatpush1.xpose.msra.mxu0 0.0
        %778 = vmatprep.subr.mxu0 0.0
        %779 = vmatpush1.xpose.msra.mxu0 0.0
        %780 = vmatprep.subr.mxu0 0.0
        %781 = vmatpush1.xpose.msra.mxu0 0.0
        %782 = vmatprep.subr.mxu0 0.0
        %783 = vmatpush1.xpose.msra.mxu0 0.0
        %784 = vmatprep.subr.mxu0 0.0
        %785 = vmatpush1.xpose.msra.mxu0 0.0
        %786 = vmatprep.mubr.f32.mxu0 0.0
        %787 = vmatmul.mubr.f32.gmra.mrb[0].mxu0 %v672
        %v788 = vpop.f32.mrb[0].mxu0
        %v789 = vadd.f32 0.0, %v788
        %v790 = vpop.f32.mrb[0].mxu0
        %791 = vdwg.mxu0
        %v808 = vlaneseq
        %v809 = vand.u32 %v808, 127
        %v810 = vlaneseq
        %v811 = vshrl.u32 %v810, 7
        %v812 = vsub.s32 %v809, %v811
        %v813 = vrot.slane %v554, %v812
        %v814 = vadd.s32 %v809, 4294967288
        %v815 = vlaneseq
        %v816 = vshrl.u32 %v815, 7
        %v817 = vsub.s32 %v814, %v816
        %v818 = vrot.slane %v557, %v817
        %vm819 = vcmask 130112
        %v820 = vsel %vm819, %v818, %v813
        %v821 = vadd.s32 %v809, 4294967280
        %v822 = vlaneseq
        %v823 = vshrl.u32 %v822, 7
        %v824 = vsub.s32 %v821, %v823
        %v825 = vrot.slane %v560, %v824
        %vm826 = vcmask 195712
        %v827 = vsel %vm826, %v825, %v820
        %v828 = vadd.s32 %v809, 4294967272
        %v829 = vlaneseq
        %v830 = vshrl.u32 %v829, 7
        %v831 = vsub.s32 %v828, %v830
        %v832 = vrot.slane %v563, %v831
        %vm833 = vcmask 261312
        %v834 = vsel %vm833, %v832, %v827
        %v835 = vadd.s32 %v809, 4294967264
        %v836 = vlaneseq
        %v837 = vshrl.u32 %v836, 7
        %v838 = vsub.s32 %v835, %v837
        %v839 = vrot.slane %v566, %v838
        %vm840 = vcmask 326912
        %v841 = vsel %vm840, %v839, %v834
        %v842 = vadd.s32 %v809, 4294967256
        %v843 = vlaneseq
        %v844 = vshrl.u32 %v843, 7
        %v845 = vsub.s32 %v842, %v844
        %v846 = vrot.slane %v569, %v845
        %vm847 = vcmask 392512
        %v848 = vsel %vm847, %v846, %v841
        %v849 = vadd.s32 %v809, 4294967248
        %v850 = vlaneseq
        %v851 = vshrl.u32 %v850, 7
        %v852 = vsub.s32 %v849, %v851
        %v853 = vrot.slane %v572, %v852
        %vm854 = vcmask 458112
        %v855 = vsel %vm854, %v853, %v848
        %v856 = vadd.s32 %v809, 4294967240
        %v857 = vlaneseq
        %v858 = vshrl.u32 %v857, 7
        %v859 = vsub.s32 %v856, %v858
        %v860 = vrot.slane %v575, %v859
        %vm861 = vcmask 523712
        %v862 = vsel %vm861, %v860, %v855
        %v863 = vadd.s32 %v809, 4294967232
        %v864 = vlaneseq
        %v865 = vshrl.u32 %v864, 7
        %v866 = vsub.s32 %v863, %v865
        %v867 = vrot.slane %v578, %v866
        %vm868 = vcmask 589312
        %v869 = vsel %vm868, %v867, %v862
        %v870 = vadd.s32 %v809, 4294967224
        %v871 = vlaneseq
        %v872 = vshrl.u32 %v871, 7
        %v873 = vsub.s32 %v870, %v872
        %v874 = vrot.slane %v581, %v873
        %vm875 = vcmask 654912
        %v876 = vsel %vm875, %v874, %v869
        %v877 = vadd.s32 %v809, 4294967216
        %v878 = vlaneseq
        %v879 = vshrl.u32 %v878, 7
        %v880 = vsub.s32 %v877, %v879
        %v881 = vrot.slane %v584, %v880
        %vm882 = vcmask 720512
        %v883 = vsel %vm882, %v881, %v876
        %v884 = vadd.s32 %v809, 4294967208
        %v885 = vlaneseq
        %v886 = vshrl.u32 %v885, 7
        %v887 = vsub.s32 %v884, %v886
        %v888 = vrot.slane %v587, %v887
        %vm889 = vcmask 786112
        %v890 = vsel %vm889, %v888, %v883
        %v891 = vadd.s32 %v809, 4294967200
        %v892 = vlaneseq
        %v893 = vshrl.u32 %v892, 7
        %v894 = vsub.s32 %v891, %v893
        %v895 = vrot.slane %v590, %v894
        %vm896 = vcmask 851712
        %v897 = vsel %vm896, %v895, %v890
        %v898 = vadd.s32 %v809, 4294967192
        %v899 = vlaneseq
        %v900 = vshrl.u32 %v899, 7
        %v901 = vsub.s32 %v898, %v900
        %v902 = vrot.slane %v593, %v901
        %vm903 = vcmask 917312
        %v904 = vsel %vm903, %v902, %v897
        %v905 = vadd.s32 %v809, 4294967184
        %v906 = vlaneseq
        %v907 = vshrl.u32 %v906, 7
        %v908 = vsub.s32 %v905, %v907
        %v909 = vrot.slane %v596, %v908
        %vm910 = vcmask 982912
        %v911 = vsel %vm910, %v909, %v904
        %v912 = vadd.s32 %v809, 4294967176
        %v913 = vlaneseq
        %v914 = vshrl.u32 %v913, 7
        %v915 = vsub.s32 %v912, %v914
        %v916 = vrot.slane %v599, %v915
        %vm917 = vcmask 1048512
        %v918 = vsel %vm917, %v916, %v911
        %vm919 = vcmask 1041409
        %vm920 = vcmask 1042434
        %v921 = vsel %vm920, %v918, %v918
        %vm922 = vcmask 1043459
        %v923 = vsel %vm922, %v918, %v921
        %vm924 = vcmask 1044484
        %v925 = vsel %vm924, %v918, %v923
        %vm926 = vcmask 1045509
        %v927 = vsel %vm926, %v918, %v925
        %vm928 = vcmask 1046534
        %v929 = vsel %vm928, %v918, %v927
        %vm930 = vcmask 1047559
        %v931 = vsel %vm930, %v918, %v929
        %v933 = vadd.f32 %v666, %v931
        %v934 = vmul.f32 %v933, 0.03125
        %v951 = vlaneseq
        %v952 = vshrl.u32 %v951, 7
        %v953 = vsub.s32 %v809, %v952
        %v954 = vrot.slane %v618, %v953
        %v955 = vlaneseq
        %v956 = vshrl.u32 %v955, 7
        %v957 = vsub.s32 %v814, %v956
        %v958 = vrot.slane %v621, %v957
        %v959 = vsel %vm819, %v958, %v954
        %v960 = vlaneseq
        %v961 = vshrl.u32 %v960, 7
        %v962 = vsub.s32 %v821, %v961
        %v963 = vrot.slane %v624, %v962
        %v964 = vsel %vm826, %v963, %v959
        %v965 = vlaneseq
        %v966 = vshrl.u32 %v965, 7
        %v967 = vsub.s32 %v828, %v966
        %v968 = vrot.slane %v627, %v967
        %v969 = vsel %vm833, %v968, %v964
        %v970 = vlaneseq
        %v971 = vshrl.u32 %v970, 7
        %v972 = vsub.s32 %v835, %v971
        %v973 = vrot.slane %v630, %v972
        %v974 = vsel %vm840, %v973, %v969
        %v975 = vlaneseq
        %v976 = vshrl.u32 %v975, 7
        %v977 = vsub.s32 %v842, %v976
        %v978 = vrot.slane %v633, %v977
        %v979 = vsel %vm847, %v978, %v974
        %v980 = vlaneseq
        %v981 = vshrl.u32 %v980, 7
        %v982 = vsub.s32 %v849, %v981
        %v983 = vrot.slane %v636, %v982
        %v984 = vsel %vm854, %v983, %v979
        %v985 = vlaneseq
        %v986 = vshrl.u32 %v985, 7
        %v987 = vsub.s32 %v856, %v986
        %v988 = vrot.slane %v639, %v987
        %v989 = vsel %vm861, %v988, %v984
        %v990 = vlaneseq
        %v991 = vshrl.u32 %v990, 7
        %v992 = vsub.s32 %v863, %v991
        %v993 = vrot.slane %v642, %v992
        %v994 = vsel %vm868, %v993, %v989
        %v995 = vlaneseq
        %v996 = vshrl.u32 %v995, 7
        %v997 = vsub.s32 %v870, %v996
        %v998 = vrot.slane %v645, %v997
        %v999 = vsel %vm875, %v998, %v994
        %v1000 = vlaneseq
        %v1001 = vshrl.u32 %v1000, 7
        %v1002 = vsub.s32 %v877, %v1001
        %v1003 = vrot.slane %v648, %v1002
        %v1004 = vsel %vm882, %v1003, %v999
        %v1005 = vlaneseq
        %v1006 = vshrl.u32 %v1005, 7
        %v1007 = vsub.s32 %v884, %v1006
        %v1008 = vrot.slane %v651, %v1007
        %v1009 = vsel %vm889, %v1008, %v1004
        %v1010 = vlaneseq
        %v1011 = vshrl.u32 %v1010, 7
        %v1012 = vsub.s32 %v891, %v1011
        %v1013 = vrot.slane %v654, %v1012
        %v1014 = vsel %vm896, %v1013, %v1009
        %v1015 = vlaneseq
        %v1016 = vshrl.u32 %v1015, 7
        %v1017 = vsub.s32 %v898, %v1016
        %v1018 = vrot.slane %v657, %v1017
        %v1019 = vsel %vm903, %v1018, %v1014
        %v1020 = vlaneseq
        %v1021 = vshrl.u32 %v1020, 7
        %v1022 = vsub.s32 %v905, %v1021
        %v1023 = vrot.slane %v660, %v1022
        %v1024 = vsel %vm910, %v1023, %v1019
        %v1025 = vlaneseq
        %v1026 = vshrl.u32 %v1025, 7
        %v1027 = vsub.s32 %v912, %v1026
        %v1028 = vrot.slane %v663, %v1027
        %v1029 = vsel %vm917, %v1028, %v1024
        %v1030 = vsel %vm920, %v1029, %v1029
        %v1031 = vsel %vm922, %v1029, %v1030
        %v1032 = vsel %vm924, %v1029, %v1031
        %v1033 = vsel %vm926, %v1029, %v1032
        %v1034 = vsel %vm928, %v1029, %v1033
        %v1035 = vsel %vm930, %v1029, %v1034
        %v1037 = vadd.f32 %v670, %v1035
        %v1038 = vmul.f32 %v789, 2.0
        %v1039 = vadd.f32 %v1037, %v1038
        %v1040 = vmul.f32 %v1039, 0.03125
        %v1041 = vmul.f32 %v934, %v934
        %v1042 = vsub.f32 %v1040, %v1041
        %v1043 = vadd.f32 %v1042, 1e-05
        %v1044 = vrsqrt.pop %v1043
        %v1045 = vcombine.high %v547, %v547
        %v1047 = vunpack.c.l.s4 1966171168
        %v1048 = vunpack.c.0.s8 %v1047
        %v1049 = vlaneseq
        %v1050 = vshrl.u32 %v1049, 7
        %v1051 = vsub.s32 %v1048, %v1050
        %v1052 = vrot.slane %v547, %v1051
        %v1054 = vunpack.c.l.s4 1966171168
        %v1055 = vunpack.c.0.s8 %v1054
        %v1056 = vlaneseq
        %v1057 = vshrl.u32 %v1056, 7
        %v1058 = vsub.s32 %v1055, %v1057
        %v1059 = vrot.slane %v1045, %v1058
        %v1060 = vcombine.high %v1052, %v1052
        %v1061 = vcombine.high %v1059, %v1059
        %v1063 = vunpack.c.l.s4 1966171168
        %v1064 = vunpack.c.0.s8 %v1063
        %v1065 = vlaneseq
        %v1066 = vshrl.u32 %v1065, 7
        %v1067 = vsub.s32 %v1064, %v1066
        %v1068 = vrot.slane %v1052, %v1067
        %v1070 = vunpack.c.l.s4 1966171168
        %v1071 = vunpack.c.0.s8 %v1070
        %v1072 = vlaneseq
        %v1073 = vshrl.u32 %v1072, 7
        %v1074 = vsub.s32 %v1071, %v1073
        %v1075 = vrot.slane %v1059, %v1074
        %v1077 = vunpack.c.l.s4 1966171168
        %v1078 = vunpack.c.0.s8 %v1077
        %v1079 = vlaneseq
        %v1080 = vshrl.u32 %v1079, 7
        %v1081 = vsub.s32 %v1078, %v1080
        %v1082 = vrot.slane %v1060, %v1081
        %v1084 = vunpack.c.l.s4 1966171168
        %v1085 = vunpack.c.0.s8 %v1084
        %v1086 = vlaneseq
        %v1087 = vshrl.u32 %v1086, 7
        %v1088 = vsub.s32 %v1085, %v1087
        %v1089 = vrot.slane %v1061, %v1088
        %v1090 = vcombine.high %v1068, %v1068
        %v1091 = vcombine.high %v1075, %v1075
        %v1092 = vcombine.high %v1082, %v1082
        %v1093 = vcombine.high %v1089, %v1089
        %v1094 = vlaneseq
        %v1095 = vshrl.u32 %v1094, 7
        %v1096 = vsub.s32 0, %v1095
        %v1097 = vrot.slane %v1068, %v1096
        %v1098 = vlaneseq
        %v1099 = vshrl.u32 %v1098, 7
        %v1100 = vsub.s32 0, %v1099
        %v1101 = vrot.slane %v1082, %v1100
        %v1102 = vlaneseq
        %v1103 = vshrl.u32 %v1102, 7
        %v1104 = vsub.s32 0, %v1103
        %v1105 = vrot.slane %v1090, %v1104
        %v1106 = vlaneseq
        %v1107 = vshrl.u32 %v1106, 7
        %v1108 = vsub.s32 0, %v1107
        %v1109 = vrot.slane %v1092, %v1108
        %v1110 = vlaneseq
        %v1111 = vshrl.u32 %v1110, 7
        %v1112 = vsub.s32 0, %v1111
        %v1113 = vrot.slane %v1075, %v1112
        %v1114 = vlaneseq
        %v1115 = vshrl.u32 %v1114, 7
        %v1116 = vsub.s32 0, %v1115
        %v1117 = vrot.slane %v1089, %v1116
        %v1118 = vlaneseq
        %v1119 = vshrl.u32 %v1118, 7
        %v1120 = vsub.s32 0, %v1119
        %v1121 = vrot.slane %v1091, %v1120
        %v1122 = vlaneseq
        %v1123 = vshrl.u32 %v1122, 7
        %v1124 = vsub.s32 0, %v1123
        %v1125 = vrot.slane %v1093, %v1124
        %v1134 = vadd.f32 %v1097, %v475
        %v1135 = vadd.f32 %v1097, %v476
        %v1136 = vadd.f32 %v1097, %v477
        %v1137 = vadd.f32 %v1097, %v478
        %v1138 = vadd.f32 %v1097, %v479
        %v1139 = vadd.f32 %v1097, %v480
        %v1140 = vadd.f32 %v1097, %v481
        %v1141 = vadd.f32 %v1097, %v482
        %v1142 = vadd.f32 %v1097, %v483
        %v1143 = vadd.f32 %v1097, %v484
        %v1144 = vadd.f32 %v1097, %v485
        %v1145 = vadd.f32 %v1097, %v486
        %v1146 = vadd.f32 %v1097, %v487
        %v1147 = vadd.f32 %v1097, %v488
        %v1148 = vadd.f32 %v1097, %v489
        %v1149 = vadd.f32 %v1097, %v490
        %v1150 = vadd.f32 %v1101, %v475
        %v1151 = vadd.f32 %v1101, %v476
        %v1152 = vadd.f32 %v1101, %v477
        %v1153 = vadd.f32 %v1101, %v478
        %v1154 = vadd.f32 %v1101, %v479
        %v1155 = vadd.f32 %v1101, %v480
        %v1156 = vadd.f32 %v1101, %v481
        %v1157 = vadd.f32 %v1101, %v482
        %v1158 = vadd.f32 %v1101, %v483
        %v1159 = vadd.f32 %v1101, %v484
        %v1160 = vadd.f32 %v1101, %v485
        %v1161 = vadd.f32 %v1101, %v486
        %v1162 = vadd.f32 %v1101, %v487
        %v1163 = vadd.f32 %v1101, %v488
        %v1164 = vadd.f32 %v1101, %v489
        %v1165 = vadd.f32 %v1101, %v490
        %v1166 = vadd.f32 %v1105, %v475
        %v1167 = vadd.f32 %v1105, %v476
        %v1168 = vadd.f32 %v1105, %v477
        %v1169 = vadd.f32 %v1105, %v478
        %v1170 = vadd.f32 %v1105, %v479
        %v1171 = vadd.f32 %v1105, %v480
        %v1172 = vadd.f32 %v1105, %v481
        %v1173 = vadd.f32 %v1105, %v482
        %v1174 = vadd.f32 %v1105, %v483
        %v1175 = vadd.f32 %v1105, %v484
        %v1176 = vadd.f32 %v1105, %v485
        %v1177 = vadd.f32 %v1105, %v486
        %v1178 = vadd.f32 %v1105, %v487
        %v1179 = vadd.f32 %v1105, %v488
        %v1180 = vadd.f32 %v1105, %v489
        %v1181 = vadd.f32 %v1105, %v490
        %v1182 = vadd.f32 %v1109, %v475
        %v1183 = vadd.f32 %v1109, %v476
        %v1184 = vadd.f32 %v1109, %v477
        %v1185 = vadd.f32 %v1109, %v478
        %v1186 = vadd.f32 %v1109, %v479
        %v1187 = vadd.f32 %v1109, %v480
        %v1188 = vadd.f32 %v1109, %v481
        %v1189 = vadd.f32 %v1109, %v482
        %v1190 = vadd.f32 %v1109, %v483
        %v1191 = vadd.f32 %v1109, %v484
        %v1192 = vadd.f32 %v1109, %v485
        %v1193 = vadd.f32 %v1109, %v486
        %v1194 = vadd.f32 %v1109, %v487
        %v1195 = vadd.f32 %v1109, %v488
        %v1196 = vadd.f32 %v1109, %v489
        %v1197 = vadd.f32 %v1109, %v490
        %v1198 = vadd.f32 %v1113, %v475
        %v1199 = vadd.f32 %v1113, %v476
        %v1200 = vadd.f32 %v1113, %v477
        %v1201 = vadd.f32 %v1113, %v478
        %v1202 = vadd.f32 %v1113, %v479
        %v1203 = vadd.f32 %v1113, %v480
        %v1204 = vadd.f32 %v1113, %v481
        %v1205 = vadd.f32 %v1113, %v482
        %v1206 = vadd.f32 %v1113, %v483
        %v1207 = vadd.f32 %v1113, %v484
        %v1208 = vadd.f32 %v1113, %v485
        %v1209 = vadd.f32 %v1113, %v486
        %v1210 = vadd.f32 %v1113, %v487
        %v1211 = vadd.f32 %v1113, %v488
        %v1212 = vadd.f32 %v1113, %v489
        %v1213 = vadd.f32 %v1113, %v490
        %v1214 = vadd.f32 %v1117, %v475
        %v1215 = vadd.f32 %v1117, %v476
        %v1216 = vadd.f32 %v1117, %v477
        %v1217 = vadd.f32 %v1117, %v478
        %v1218 = vadd.f32 %v1117, %v479
        %v1219 = vadd.f32 %v1117, %v480
        %v1220 = vadd.f32 %v1117, %v481
        %v1221 = vadd.f32 %v1117, %v482
        %v1222 = vadd.f32 %v1117, %v483
        %v1223 = vadd.f32 %v1117, %v484
        %v1224 = vadd.f32 %v1117, %v485
        %v1225 = vadd.f32 %v1117, %v486
        %v1226 = vadd.f32 %v1117, %v487
        %v1227 = vadd.f32 %v1117, %v488
        %v1228 = vadd.f32 %v1117, %v489
        %v1229 = vadd.f32 %v1117, %v490
        %v1230 = vadd.f32 %v1121, %v475
        %v1231 = vadd.f32 %v1121, %v476
        %v1232 = vadd.f32 %v1121, %v477
        %v1233 = vadd.f32 %v1121, %v478
        %v1234 = vadd.f32 %v1121, %v479
        %v1235 = vadd.f32 %v1121, %v480
        %v1236 = vadd.f32 %v1121, %v481
        %v1237 = vadd.f32 %v1121, %v482
        %v1238 = vadd.f32 %v1121, %v483
        %v1239 = vadd.f32 %v1121, %v484
        %v1240 = vadd.f32 %v1121, %v485
        %v1241 = vadd.f32 %v1121, %v486
        %v1242 = vadd.f32 %v1121, %v487
        %v1243 = vadd.f32 %v1121, %v488
        %v1244 = vadd.f32 %v1121, %v489
        %v1245 = vadd.f32 %v1121, %v490
        %v1246 = vadd.f32 %v1125, %v475
        %v1247 = vadd.f32 %v1125, %v476
        %v1248 = vadd.f32 %v1125, %v477
        %v1249 = vadd.f32 %v1125, %v478
        %v1250 = vadd.f32 %v1125, %v479
        %v1251 = vadd.f32 %v1125, %v480
        %v1252 = vadd.f32 %v1125, %v481
        %v1253 = vadd.f32 %v1125, %v482
        %v1254 = vadd.f32 %v1125, %v483
        %v1255 = vadd.f32 %v1125, %v484
        %v1256 = vadd.f32 %v1125, %v485
        %v1257 = vadd.f32 %v1125, %v486
        %v1258 = vadd.f32 %v1125, %v487
        %v1259 = vadd.f32 %v1125, %v488
        %v1260 = vadd.f32 %v1125, %v489
        %v1261 = vadd.f32 %v1125, %v490
        %v1262 = vlaneseq
        %v1263 = vshrl.u32 %v1262, 7
        %v1264 = vsub.s32 0, %v1263
        %v1265 = vrot.slane %v934, %v1264
        %1267 = vbcast.lane.b32.xlu0 %v1265, 256
        %v1268 = vpop.permute.xlu0 %1267
        %s1270 = sor.u32 256, 8
        %1271 = vbcast.lane.b32.xlu0 %v1265, %s1270
        %v1272 = vpop.permute.xlu0 %1271
        %s1274 = sor.u32 256, 16
        %1275 = vbcast.lane.b32.xlu0 %v1265, %s1274
        %v1276 = vpop.permute.xlu0 %1275
        %s1278 = sor.u32 256, 24
        %1279 = vbcast.lane.b32.xlu0 %v1265, %s1278
        %v1280 = vpop.permute.xlu0 %1279
        %s1282 = sor.u32 256, 32
        %1283 = vbcast.lane.b32.xlu0 %v1265, %s1282
        %v1284 = vpop.permute.xlu0 %1283
        %s1286 = sor.u32 256, 40
        %1287 = vbcast.lane.b32.xlu0 %v1265, %s1286
        %v1288 = vpop.permute.xlu0 %1287
        %s1290 = sor.u32 256, 48
        %1291 = vbcast.lane.b32.xlu0 %v1265, %s1290
        %v1292 = vpop.permute.xlu0 %1291
        %s1294 = sor.u32 256, 56
        %1295 = vbcast.lane.b32.xlu0 %v1265, %s1294
        %v1296 = vpop.permute.xlu0 %1295
        %s1298 = sor.u32 256, 64
        %1299 = vbcast.lane.b32.xlu0 %v1265, %s1298
        %v1300 = vpop.permute.xlu0 %1299
        %s1302 = sor.u32 256, 72
        %1303 = vbcast.lane.b32.xlu0 %v1265, %s1302
        %v1304 = vpop.permute.xlu0 %1303
        %s1306 = sor.u32 256, 80
        %1307 = vbcast.lane.b32.xlu0 %v1265, %s1306
        %v1308 = vpop.permute.xlu0 %1307
        %s1310 = sor.u32 256, 88
        %1311 = vbcast.lane.b32.xlu0 %v1265, %s1310
        %v1312 = vpop.permute.xlu0 %1311
        %s1314 = sor.u32 256, 96
        %1315 = vbcast.lane.b32.xlu0 %v1265, %s1314
        %v1316 = vpop.permute.xlu0 %1315
        %s1318 = sor.u32 256, 104
        %1319 = vbcast.lane.b32.xlu0 %v1265, %s1318
        %v1320 = vpop.permute.xlu0 %1319
        %s1322 = sor.u32 256, 112
        %1323 = vbcast.lane.b32.xlu0 %v1265, %s1322
        %v1324 = vpop.permute.xlu0 %1323
        %s1326 = sor.u32 256, 120
        %1327 = vbcast.lane.b32.xlu0 %v1265, %s1326
        %v1328 = vpop.permute.xlu0 %1327
        %v1329 = vlaneseq
        %v1330 = vshrl.u32 %v1329, 7
        %v1331 = vsub.s32 1, %v1330
        %v1332 = vrot.slane %v934, %v1331
        %1334 = vbcast.lane.b32.xlu0 %v1332, 256
        %v1335 = vpop.permute.xlu0 %1334
        %s1337 = sor.u32 256, 8
        %1338 = vbcast.lane.b32.xlu0 %v1332, %s1337
        %v1339 = vpop.permute.xlu0 %1338
        %s1341 = sor.u32 256, 16
        %1342 = vbcast.lane.b32.xlu0 %v1332, %s1341
        %v1343 = vpop.permute.xlu0 %1342
        %s1345 = sor.u32 256, 24
        %1346 = vbcast.lane.b32.xlu0 %v1332, %s1345
        %v1347 = vpop.permute.xlu0 %1346
        %s1349 = sor.u32 256, 32
        %1350 = vbcast.lane.b32.xlu0 %v1332, %s1349
        %v1351 = vpop.permute.xlu0 %1350
        %s1353 = sor.u32 256, 40
        %1354 = vbcast.lane.b32.xlu0 %v1332, %s1353
        %v1355 = vpop.permute.xlu0 %1354
        %s1357 = sor.u32 256, 48
        %1358 = vbcast.lane.b32.xlu0 %v1332, %s1357
        %v1359 = vpop.permute.xlu0 %1358
        %s1361 = sor.u32 256, 56
        %1362 = vbcast.lane.b32.xlu0 %v1332, %s1361
        %v1363 = vpop.permute.xlu0 %1362
        %s1365 = sor.u32 256, 64
        %1366 = vbcast.lane.b32.xlu0 %v1332, %s1365
        %v1367 = vpop.permute.xlu0 %1366
        %s1369 = sor.u32 256, 72
        %1370 = vbcast.lane.b32.xlu0 %v1332, %s1369
        %v1371 = vpop.permute.xlu0 %1370
        %s1373 = sor.u32 256, 80
        %1374 = vbcast.lane.b32.xlu0 %v1332, %s1373
        %v1375 = vpop.permute.xlu0 %1374
        %s1377 = sor.u32 256, 88
        %1378 = vbcast.lane.b32.xlu0 %v1332, %s1377
        %v1379 = vpop.permute.xlu0 %1378
        %s1381 = sor.u32 256, 96
        %1382 = vbcast.lane.b32.xlu0 %v1332, %s1381
        %v1383 = vpop.permute.xlu0 %1382
        %s1385 = sor.u32 256, 104
        %1386 = vbcast.lane.b32.xlu0 %v1332, %s1385
        %v1387 = vpop.permute.xlu0 %1386
        %s1389 = sor.u32 256, 112
        %1390 = vbcast.lane.b32.xlu0 %v1332, %s1389
        %v1391 = vpop.permute.xlu0 %1390
        %s1393 = sor.u32 256, 120
        %1394 = vbcast.lane.b32.xlu0 %v1332, %s1393
        %v1395 = vpop.permute.xlu0 %1394
        %v1396 = vlaneseq
        %v1397 = vshrl.u32 %v1396, 7
        %v1398 = vsub.s32 2, %v1397
        %v1399 = vrot.slane %v934, %v1398
        %1401 = vbcast.lane.b32.xlu0 %v1399, 256
        %v1402 = vpop.permute.xlu0 %1401
        %s1404 = sor.u32 256, 8
        %1405 = vbcast.lane.b32.xlu0 %v1399, %s1404
        %v1406 = vpop.permute.xlu0 %1405
        %s1408 = sor.u32 256, 16
        %1409 = vbcast.lane.b32.xlu0 %v1399, %s1408
        %v1410 = vpop.permute.xlu0 %1409
        %s1412 = sor.u32 256, 24
        %1413 = vbcast.lane.b32.xlu0 %v1399, %s1412
        %v1414 = vpop.permute.xlu0 %1413
        %s1416 = sor.u32 256, 32
        %1417 = vbcast.lane.b32.xlu0 %v1399, %s1416
        %v1418 = vpop.permute.xlu0 %1417
        %s1420 = sor.u32 256, 40
        %1421 = vbcast.lane.b32.xlu0 %v1399, %s1420
        %v1422 = vpop.permute.xlu0 %1421
        %s1424 = sor.u32 256, 48
        %1425 = vbcast.lane.b32.xlu0 %v1399, %s1424
        %v1426 = vpop.permute.xlu0 %1425
        %s1428 = sor.u32 256, 56
        %1429 = vbcast.lane.b32.xlu0 %v1399, %s1428
        %v1430 = vpop.permute.xlu0 %1429
        %s1432 = sor.u32 256, 64
        %1433 = vbcast.lane.b32.xlu0 %v1399, %s1432
        %v1434 = vpop.permute.xlu0 %1433
        %s1436 = sor.u32 256, 72
        %1437 = vbcast.lane.b32.xlu0 %v1399, %s1436
        %v1438 = vpop.permute.xlu0 %1437
        %s1440 = sor.u32 256, 80
        %1441 = vbcast.lane.b32.xlu0 %v1399, %s1440
        %v1442 = vpop.permute.xlu0 %1441
        %s1444 = sor.u32 256, 88
        %1445 = vbcast.lane.b32.xlu0 %v1399, %s1444
        %v1446 = vpop.permute.xlu0 %1445
        %s1448 = sor.u32 256, 96
        %1449 = vbcast.lane.b32.xlu0 %v1399, %s1448
        %v1450 = vpop.permute.xlu0 %1449
        %s1452 = sor.u32 256, 104
        %1453 = vbcast.lane.b32.xlu0 %v1399, %s1452
        %v1454 = vpop.permute.xlu0 %1453
        %s1456 = sor.u32 256, 112
        %1457 = vbcast.lane.b32.xlu0 %v1399, %s1456
        %v1458 = vpop.permute.xlu0 %1457
        %s1460 = sor.u32 256, 120
        %1461 = vbcast.lane.b32.xlu0 %v1399, %s1460
        %v1462 = vpop.permute.xlu0 %1461
        %v1463 = vlaneseq
        %v1464 = vshrl.u32 %v1463, 7
        %v1465 = vsub.s32 3, %v1464
        %v1466 = vrot.slane %v934, %v1465
        %1468 = vbcast.lane.b32.xlu0 %v1466, 256
        %v1469 = vpop.permute.xlu0 %1468
        %s1471 = sor.u32 256, 8
        %1472 = vbcast.lane.b32.xlu0 %v1466, %s1471
        %v1473 = vpop.permute.xlu0 %1472
        %s1475 = sor.u32 256, 16
        %1476 = vbcast.lane.b32.xlu0 %v1466, %s1475
        %v1477 = vpop.permute.xlu0 %1476
        %s1479 = sor.u32 256, 24
        %1480 = vbcast.lane.b32.xlu0 %v1466, %s1479
        %v1481 = vpop.permute.xlu0 %1480
        %s1483 = sor.u32 256, 32
        %1484 = vbcast.lane.b32.xlu0 %v1466, %s1483
        %v1485 = vpop.permute.xlu0 %1484
        %s1487 = sor.u32 256, 40
        %1488 = vbcast.lane.b32.xlu0 %v1466, %s1487
        %v1489 = vpop.permute.xlu0 %1488
        %s1491 = sor.u32 256, 48
        %1492 = vbcast.lane.b32.xlu0 %v1466, %s1491
        %v1493 = vpop.permute.xlu0 %1492
        %s1495 = sor.u32 256, 56
        %1496 = vbcast.lane.b32.xlu0 %v1466, %s1495
        %v1497 = vpop.permute.xlu0 %1496
        %s1499 = sor.u32 256, 64
        %1500 = vbcast.lane.b32.xlu0 %v1466, %s1499
        %v1501 = vpop.permute.xlu0 %1500
        %s1503 = sor.u32 256, 72
        %1504 = vbcast.lane.b32.xlu0 %v1466, %s1503
        %v1505 = vpop.permute.xlu0 %1504
        %s1507 = sor.u32 256, 80
        %1508 = vbcast.lane.b32.xlu0 %v1466, %s1507
        %v1509 = vpop.permute.xlu0 %1508
        %s1511 = sor.u32 256, 88
        %1512 = vbcast.lane.b32.xlu0 %v1466, %s1511
        %v1513 = vpop.permute.xlu0 %1512
        %s1515 = sor.u32 256, 96
        %1516 = vbcast.lane.b32.xlu0 %v1466, %s1515
        %v1517 = vpop.permute.xlu0 %1516
        %s1519 = sor.u32 256, 104
        %1520 = vbcast.lane.b32.xlu0 %v1466, %s1519
        %v1521 = vpop.permute.xlu0 %1520
        %s1523 = sor.u32 256, 112
        %1524 = vbcast.lane.b32.xlu0 %v1466, %s1523
        %v1525 = vpop.permute.xlu0 %1524
        %s1527 = sor.u32 256, 120
        %1528 = vbcast.lane.b32.xlu0 %v1466, %s1527
        %v1529 = vpop.permute.xlu0 %1528
        %v1530 = vlaneseq
        %v1531 = vshrl.u32 %v1530, 7
        %v1532 = vsub.s32 4, %v1531
        %v1533 = vrot.slane %v934, %v1532
        %1535 = vbcast.lane.b32.xlu0 %v1533, 256
        %v1536 = vpop.permute.xlu0 %1535
        %s1538 = sor.u32 256, 8
        %1539 = vbcast.lane.b32.xlu0 %v1533, %s1538
        %v1540 = vpop.permute.xlu0 %1539
        %s1542 = sor.u32 256, 16
        %1543 = vbcast.lane.b32.xlu0 %v1533, %s1542
        %v1544 = vpop.permute.xlu0 %1543
        %s1546 = sor.u32 256, 24
        %1547 = vbcast.lane.b32.xlu0 %v1533, %s1546
        %v1548 = vpop.permute.xlu0 %1547
        %s1550 = sor.u32 256, 32
        %1551 = vbcast.lane.b32.xlu0 %v1533, %s1550
        %v1552 = vpop.permute.xlu0 %1551
        %s1554 = sor.u32 256, 40
        %1555 = vbcast.lane.b32.xlu0 %v1533, %s1554
        %v1556 = vpop.permute.xlu0 %1555
        %s1558 = sor.u32 256, 48
        %1559 = vbcast.lane.b32.xlu0 %v1533, %s1558
        %v1560 = vpop.permute.xlu0 %1559
        %s1562 = sor.u32 256, 56
        %1563 = vbcast.lane.b32.xlu0 %v1533, %s1562
        %v1564 = vpop.permute.xlu0 %1563
        %s1566 = sor.u32 256, 64
        %1567 = vbcast.lane.b32.xlu0 %v1533, %s1566
        %v1568 = vpop.permute.xlu0 %1567
        %s1570 = sor.u32 256, 72
        %1571 = vbcast.lane.b32.xlu0 %v1533, %s1570
        %v1572 = vpop.permute.xlu0 %1571
        %s1574 = sor.u32 256, 80
        %1575 = vbcast.lane.b32.xlu0 %v1533, %s1574
        %v1576 = vpop.permute.xlu0 %1575
        %s1578 = sor.u32 256, 88
        %1579 = vbcast.lane.b32.xlu0 %v1533, %s1578
        %v1580 = vpop.permute.xlu0 %1579
        %s1582 = sor.u32 256, 96
        %1583 = vbcast.lane.b32.xlu0 %v1533, %s1582
        %v1584 = vpop.permute.xlu0 %1583
        %s1586 = sor.u32 256, 104
        %1587 = vbcast.lane.b32.xlu0 %v1533, %s1586
        %v1588 = vpop.permute.xlu0 %1587
        %s1590 = sor.u32 256, 112
        %1591 = vbcast.lane.b32.xlu0 %v1533, %s1590
        %v1592 = vpop.permute.xlu0 %1591
        %s1594 = sor.u32 256, 120
        %1595 = vbcast.lane.b32.xlu0 %v1533, %s1594
        %v1596 = vpop.permute.xlu0 %1595
        %v1597 = vlaneseq
        %v1598 = vshrl.u32 %v1597, 7
        %v1599 = vsub.s32 5, %v1598
        %v1600 = vrot.slane %v934, %v1599
        %1602 = vbcast.lane.b32.xlu0 %v1600, 256
        %v1603 = vpop.permute.xlu0 %1602
        %s1605 = sor.u32 256, 8
        %1606 = vbcast.lane.b32.xlu0 %v1600, %s1605
        %v1607 = vpop.permute.xlu0 %1606
        %s1609 = sor.u32 256, 16
        %1610 = vbcast.lane.b32.xlu0 %v1600, %s1609
        %v1611 = vpop.permute.xlu0 %1610
        %s1613 = sor.u32 256, 24
        %1614 = vbcast.lane.b32.xlu0 %v1600, %s1613
        %v1615 = vpop.permute.xlu0 %1614
        %s1617 = sor.u32 256, 32
        %1618 = vbcast.lane.b32.xlu0 %v1600, %s1617
        %v1619 = vpop.permute.xlu0 %1618
        %s1621 = sor.u32 256, 40
        %1622 = vbcast.lane.b32.xlu0 %v1600, %s1621
        %v1623 = vpop.permute.xlu0 %1622
        %s1625 = sor.u32 256, 48
        %1626 = vbcast.lane.b32.xlu0 %v1600, %s1625
        %v1627 = vpop.permute.xlu0 %1626
        %s1629 = sor.u32 256, 56
        %1630 = vbcast.lane.b32.xlu0 %v1600, %s1629
        %v1631 = vpop.permute.xlu0 %1630
        %s1633 = sor.u32 256, 64
        %1634 = vbcast.lane.b32.xlu0 %v1600, %s1633
        %v1635 = vpop.permute.xlu0 %1634
        %s1637 = sor.u32 256, 72
        %1638 = vbcast.lane.b32.xlu0 %v1600, %s1637
        %v1639 = vpop.permute.xlu0 %1638
        %s1641 = sor.u32 256, 80
        %1642 = vbcast.lane.b32.xlu0 %v1600, %s1641
        %v1643 = vpop.permute.xlu0 %1642
        %s1645 = sor.u32 256, 88
        %1646 = vbcast.lane.b32.xlu0 %v1600, %s1645
        %v1647 = vpop.permute.xlu0 %1646
        %s1649 = sor.u32 256, 96
        %1650 = vbcast.lane.b32.xlu0 %v1600, %s1649
        %v1651 = vpop.permute.xlu0 %1650
        %s1653 = sor.u32 256, 104
        %1654 = vbcast.lane.b32.xlu0 %v1600, %s1653
        %v1655 = vpop.permute.xlu0 %1654
        %s1657 = sor.u32 256, 112
        %1658 = vbcast.lane.b32.xlu0 %v1600, %s1657
        %v1659 = vpop.permute.xlu0 %1658
        %s1661 = sor.u32 256, 120
        %1662 = vbcast.lane.b32.xlu0 %v1600, %s1661
        %v1663 = vpop.permute.xlu0 %1662
        %v1664 = vlaneseq
        %v1665 = vshrl.u32 %v1664, 7
        %v1666 = vsub.s32 6, %v1665
        %v1667 = vrot.slane %v934, %v1666
        %1669 = vbcast.lane.b32.xlu0 %v1667, 256
        %v1670 = vpop.permute.xlu0 %1669
        %s1672 = sor.u32 256, 8
        %1673 = vbcast.lane.b32.xlu0 %v1667, %s1672
        %v1674 = vpop.permute.xlu0 %1673
        %s1676 = sor.u32 256, 16
        %1677 = vbcast.lane.b32.xlu0 %v1667, %s1676
        %v1678 = vpop.permute.xlu0 %1677
        %s1680 = sor.u32 256, 24
        %1681 = vbcast.lane.b32.xlu0 %v1667, %s1680
        %v1682 = vpop.permute.xlu0 %1681
        %s1684 = sor.u32 256, 32
        %1685 = vbcast.lane.b32.xlu0 %v1667, %s1684
        %v1686 = vpop.permute.xlu0 %1685
        %s1688 = sor.u32 256, 40
        %1689 = vbcast.lane.b32.xlu0 %v1667, %s1688
        %v1690 = vpop.permute.xlu0 %1689
        %s1692 = sor.u32 256, 48
        %1693 = vbcast.lane.b32.xlu0 %v1667, %s1692
        %v1694 = vpop.permute.xlu0 %1693
        %s1696 = sor.u32 256, 56
        %1697 = vbcast.lane.b32.xlu0 %v1667, %s1696
        %v1698 = vpop.permute.xlu0 %1697
        %s1700 = sor.u32 256, 64
        %1701 = vbcast.lane.b32.xlu0 %v1667, %s1700
        %v1702 = vpop.permute.xlu0 %1701
        %s1704 = sor.u32 256, 72
        %1705 = vbcast.lane.b32.xlu0 %v1667, %s1704
        %v1706 = vpop.permute.xlu0 %1705
        %s1708 = sor.u32 256, 80
        %1709 = vbcast.lane.b32.xlu0 %v1667, %s1708
        %v1710 = vpop.permute.xlu0 %1709
        %s1712 = sor.u32 256, 88
        %1713 = vbcast.lane.b32.xlu0 %v1667, %s1712
        %v1714 = vpop.permute.xlu0 %1713
        %s1716 = sor.u32 256, 96
        %1717 = vbcast.lane.b32.xlu0 %v1667, %s1716
        %v1718 = vpop.permute.xlu0 %1717
        %s1720 = sor.u32 256, 104
        %1721 = vbcast.lane.b32.xlu0 %v1667, %s1720
        %v1722 = vpop.permute.xlu0 %1721
        %s1724 = sor.u32 256, 112
        %1725 = vbcast.lane.b32.xlu0 %v1667, %s1724
        %v1726 = vpop.permute.xlu0 %1725
        %s1728 = sor.u32 256, 120
        %1729 = vbcast.lane.b32.xlu0 %v1667, %s1728
        %v1730 = vpop.permute.xlu0 %1729
        %v1731 = vlaneseq
        %v1732 = vshrl.u32 %v1731, 7
        %v1733 = vsub.s32 7, %v1732
        %v1734 = vrot.slane %v934, %v1733
        %1736 = vbcast.lane.b32.xlu0 %v1734, 256
        %v1737 = vpop.permute.xlu0 %1736
        %s1739 = sor.u32 256, 8
        %1740 = vbcast.lane.b32.xlu0 %v1734, %s1739
        %v1741 = vpop.permute.xlu0 %1740
        %s1743 = sor.u32 256, 16
        %1744 = vbcast.lane.b32.xlu0 %v1734, %s1743
        %v1745 = vpop.permute.xlu0 %1744
        %s1747 = sor.u32 256, 24
        %1748 = vbcast.lane.b32.xlu0 %v1734, %s1747
        %v1749 = vpop.permute.xlu0 %1748
        %s1751 = sor.u32 256, 32
        %1752 = vbcast.lane.b32.xlu0 %v1734, %s1751
        %v1753 = vpop.permute.xlu0 %1752
        %s1755 = sor.u32 256, 40
        %1756 = vbcast.lane.b32.xlu0 %v1734, %s1755
        %v1757 = vpop.permute.xlu0 %1756
        %s1759 = sor.u32 256, 48
        %1760 = vbcast.lane.b32.xlu0 %v1734, %s1759
        %v1761 = vpop.permute.xlu0 %1760
        %s1763 = sor.u32 256, 56
        %1764 = vbcast.lane.b32.xlu0 %v1734, %s1763
        %v1765 = vpop.permute.xlu0 %1764
        %s1767 = sor.u32 256, 64
        %1768 = vbcast.lane.b32.xlu0 %v1734, %s1767
        %v1769 = vpop.permute.xlu0 %1768
        %s1771 = sor.u32 256, 72
        %1772 = vbcast.lane.b32.xlu0 %v1734, %s1771
        %v1773 = vpop.permute.xlu0 %1772
        %s1775 = sor.u32 256, 80
        %1776 = vbcast.lane.b32.xlu0 %v1734, %s1775
        %v1777 = vpop.permute.xlu0 %1776
        %s1779 = sor.u32 256, 88
        %1780 = vbcast.lane.b32.xlu0 %v1734, %s1779
        %v1781 = vpop.permute.xlu0 %1780
        %s1783 = sor.u32 256, 96
        %1784 = vbcast.lane.b32.xlu0 %v1734, %s1783
        %v1785 = vpop.permute.xlu0 %1784
        %s1787 = sor.u32 256, 104
        %1788 = vbcast.lane.b32.xlu0 %v1734, %s1787
        %v1789 = vpop.permute.xlu0 %1788
        %s1791 = sor.u32 256, 112
        %1792 = vbcast.lane.b32.xlu0 %v1734, %s1791
        %v1793 = vpop.permute.xlu0 %1792
        %s1795 = sor.u32 256, 120
        %1796 = vbcast.lane.b32.xlu0 %v1734, %s1795
        %v1797 = vpop.permute.xlu0 %1796
        %v1798 = vsub.f32 %v1134, %v1268
        %v1799 = vsub.f32 %v1135, %v1272
        %v1800 = vsub.f32 %v1136, %v1276
        %v1801 = vsub.f32 %v1137, %v1280
        %v1802 = vsub.f32 %v1138, %v1284
        %v1803 = vsub.f32 %v1139, %v1288
        %v1804 = vsub.f32 %v1140, %v1292
        %v1805 = vsub.f32 %v1141, %v1296
        %v1806 = vsub.f32 %v1142, %v1300
        %v1807 = vsub.f32 %v1143, %v1304
        %v1808 = vsub.f32 %v1144, %v1308
        %v1809 = vsub.f32 %v1145, %v1312
        %v1810 = vsub.f32 %v1146, %v1316
        %v1811 = vsub.f32 %v1147, %v1320
        %v1812 = vsub.f32 %v1148, %v1324
        %v1813 = vsub.f32 %v1149, %v1328
        %v1814 = vsub.f32 %v1150, %v1335
        %v1815 = vsub.f32 %v1151, %v1339
        %v1816 = vsub.f32 %v1152, %v1343
        %v1817 = vsub.f32 %v1153, %v1347
        %v1818 = vsub.f32 %v1154, %v1351
        %v1819 = vsub.f32 %v1155, %v1355
        %v1820 = vsub.f32 %v1156, %v1359
        %v1821 = vsub.f32 %v1157, %v1363
        %v1822 = vsub.f32 %v1158, %v1367
        %v1823 = vsub.f32 %v1159, %v1371
        %v1824 = vsub.f32 %v1160, %v1375
        %v1825 = vsub.f32 %v1161, %v1379
        %v1826 = vsub.f32 %v1162, %v1383
        %v1827 = vsub.f32 %v1163, %v1387
        %v1828 = vsub.f32 %v1164, %v1391
        %v1829 = vsub.f32 %v1165, %v1395
        %v1830 = vsub.f32 %v1166, %v1402
        %v1831 = vsub.f32 %v1167, %v1406
        %v1832 = vsub.f32 %v1168, %v1410
        %v1833 = vsub.f32 %v1169, %v1414
        %v1834 = vsub.f32 %v1170, %v1418
        %v1835 = vsub.f32 %v1171, %v1422
        %v1836 = vsub.f32 %v1172, %v1426
        %v1837 = vsub.f32 %v1173, %v1430
        %v1838 = vsub.f32 %v1174, %v1434
        %v1839 = vsub.f32 %v1175, %v1438
        %v1840 = vsub.f32 %v1176, %v1442
        %v1841 = vsub.f32 %v1177, %v1446
        %v1842 = vsub.f32 %v1178, %v1450
        %v1843 = vsub.f32 %v1179, %v1454
        %v1844 = vsub.f32 %v1180, %v1458
        %v1845 = vsub.f32 %v1181, %v1462
        %v1846 = vsub.f32 %v1182, %v1469
        %v1847 = vsub.f32 %v1183, %v1473
        %v1848 = vsub.f32 %v1184, %v1477
        %v1849 = vsub.f32 %v1185, %v1481
        %v1850 = vsub.f32 %v1186, %v1485
        %v1851 = vsub.f32 %v1187, %v1489
        %v1852 = vsub.f32 %v1188, %v1493
        %v1853 = vsub.f32 %v1189, %v1497
        %v1854 = vsub.f32 %v1190, %v1501
        %v1855 = vsub.f32 %v1191, %v1505
        %v1856 = vsub.f32 %v1192, %v1509
        %v1857 = vsub.f32 %v1193, %v1513
        %v1858 = vsub.f32 %v1194, %v1517
        %v1859 = vsub.f32 %v1195, %v1521
        %v1860 = vsub.f32 %v1196, %v1525
        %v1861 = vsub.f32 %v1197, %v1529
        %v1862 = vsub.f32 %v1198, %v1536
        %v1863 = vsub.f32 %v1199, %v1540
        %v1864 = vsub.f32 %v1200, %v1544
        %v1865 = vsub.f32 %v1201, %v1548
        %v1866 = vsub.f32 %v1202, %v1552
        %v1867 = vsub.f32 %v1203, %v1556
        %v1868 = vsub.f32 %v1204, %v1560
        %v1869 = vsub.f32 %v1205, %v1564
        %v1870 = vsub.f32 %v1206, %v1568
        %v1871 = vsub.f32 %v1207, %v1572
        %v1872 = vsub.f32 %v1208, %v1576
        %v1873 = vsub.f32 %v1209, %v1580
        %v1874 = vsub.f32 %v1210, %v1584
        %v1875 = vsub.f32 %v1211, %v1588
        %v1876 = vsub.f32 %v1212, %v1592
        %v1877 = vsub.f32 %v1213, %v1596
        %v1878 = vsub.f32 %v1214, %v1603
        %v1879 = vsub.f32 %v1215, %v1607
        %v1880 = vsub.f32 %v1216, %v1611
        %v1881 = vsub.f32 %v1217, %v1615
        %v1882 = vsub.f32 %v1218, %v1619
        %v1883 = vsub.f32 %v1219, %v1623
        %v1884 = vsub.f32 %v1220, %v1627
        %v1885 = vsub.f32 %v1221, %v1631
        %v1886 = vsub.f32 %v1222, %v1635
        %v1887 = vsub.f32 %v1223, %v1639
        %v1888 = vsub.f32 %v1224, %v1643
        %v1889 = vsub.f32 %v1225, %v1647
        %v1890 = vsub.f32 %v1226, %v1651
        %v1891 = vsub.f32 %v1227, %v1655
        %v1892 = vsub.f32 %v1228, %v1659
        %v1893 = vsub.f32 %v1229, %v1663
        %v1894 = vsub.f32 %v1230, %v1670
        %v1895 = vsub.f32 %v1231, %v1674
        %v1896 = vsub.f32 %v1232, %v1678
        %v1897 = vsub.f32 %v1233, %v1682
        %v1898 = vsub.f32 %v1234, %v1686
        %v1899 = vsub.f32 %v1235, %v1690
        %v1900 = vsub.f32 %v1236, %v1694
        %v1901 = vsub.f32 %v1237, %v1698
        %v1902 = vsub.f32 %v1238, %v1702
        %v1903 = vsub.f32 %v1239, %v1706
        %v1904 = vsub.f32 %v1240, %v1710
        %v1905 = vsub.f32 %v1241, %v1714
        %v1906 = vsub.f32 %v1242, %v1718
        %v1907 = vsub.f32 %v1243, %v1722
        %v1908 = vsub.f32 %v1244, %v1726
        %v1909 = vsub.f32 %v1245, %v1730
        %v1910 = vsub.f32 %v1246, %v1737
        %v1911 = vsub.f32 %v1247, %v1741
        %v1912 = vsub.f32 %v1248, %v1745
        %v1913 = vsub.f32 %v1249, %v1749
        %v1914 = vsub.f32 %v1250, %v1753
        %v1915 = vsub.f32 %v1251, %v1757
        %v1916 = vsub.f32 %v1252, %v1761
        %v1917 = vsub.f32 %v1253, %v1765
        %v1918 = vsub.f32 %v1254, %v1769
        %v1919 = vsub.f32 %v1255, %v1773
        %v1920 = vsub.f32 %v1256, %v1777
        %v1921 = vsub.f32 %v1257, %v1781
        %v1922 = vsub.f32 %v1258, %v1785
        %v1923 = vsub.f32 %v1259, %v1789
        %v1924 = vsub.f32 %v1260, %v1793
        %v1925 = vsub.f32 %v1261, %v1797
        %v1926 = vlaneseq
        %v1927 = vshrl.u32 %v1926, 7
        %v1928 = vsub.s32 0, %v1927
        %v1929 = vrot.slane %v1044, %v1928
        %1931 = vbcast.lane.b32.xlu0 %v1929, 256
        %v1932 = vpop.permute.xlu0 %1931
        %s1934 = sor.u32 256, 8
        %1935 = vbcast.lane.b32.xlu0 %v1929, %s1934
        %v1936 = vpop.permute.xlu0 %1935
        %s1938 = sor.u32 256, 16
        %1939 = vbcast.lane.b32.xlu0 %v1929, %s1938
        %v1940 = vpop.permute.xlu0 %1939
        %s1942 = sor.u32 256, 24
        %1943 = vbcast.lane.b32.xlu0 %v1929, %s1942
        %v1944 = vpop.permute.xlu0 %1943
        %s1946 = sor.u32 256, 32
        %1947 = vbcast.lane.b32.xlu0 %v1929, %s1946
        %v1948 = vpop.permute.xlu0 %1947
        %s1950 = sor.u32 256, 40
        %1951 = vbcast.lane.b32.xlu0 %v1929, %s1950
        %v1952 = vpop.permute.xlu0 %1951
        %s1954 = sor.u32 256, 48
        %1955 = vbcast.lane.b32.xlu0 %v1929, %s1954
        %v1956 = vpop.permute.xlu0 %1955
        %s1958 = sor.u32 256, 56
        %1959 = vbcast.lane.b32.xlu0 %v1929, %s1958
        %v1960 = vpop.permute.xlu0 %1959
        %s1962 = sor.u32 256, 64
        %1963 = vbcast.lane.b32.xlu0 %v1929, %s1962
        %v1964 = vpop.permute.xlu0 %1963
        %s1966 = sor.u32 256, 72
        %1967 = vbcast.lane.b32.xlu0 %v1929, %s1966
        %v1968 = vpop.permute.xlu0 %1967
        %s1970 = sor.u32 256, 80
        %1971 = vbcast.lane.b32.xlu0 %v1929, %s1970
        %v1972 = vpop.permute.xlu0 %1971
        %s1974 = sor.u32 256, 88
        %1975 = vbcast.lane.b32.xlu0 %v1929, %s1974
        %v1976 = vpop.permute.xlu0 %1975
        %s1978 = sor.u32 256, 96
        %1979 = vbcast.lane.b32.xlu0 %v1929, %s1978
        %v1980 = vpop.permute.xlu0 %1979
        %s1982 = sor.u32 256, 104
        %1983 = vbcast.lane.b32.xlu0 %v1929, %s1982
        %v1984 = vpop.permute.xlu0 %1983
        %s1986 = sor.u32 256, 112
        %1987 = vbcast.lane.b32.xlu0 %v1929, %s1986
        %v1988 = vpop.permute.xlu0 %1987
        %s1990 = sor.u32 256, 120
        %1991 = vbcast.lane.b32.xlu0 %v1929, %s1990
        %v1992 = vpop.permute.xlu0 %1991
        %v1993 = vlaneseq
        %v1994 = vshrl.u32 %v1993, 7
        %v1995 = vsub.s32 1, %v1994
        %v1996 = vrot.slane %v1044, %v1995
        %1998 = vbcast.lane.b32.xlu0 %v1996, 256
        %v1999 = vpop.permute.xlu0 %1998
        %s2001 = sor.u32 256, 8
        %2002 = vbcast.lane.b32.xlu0 %v1996, %s2001
        %v2003 = vpop.permute.xlu0 %2002
        %s2005 = sor.u32 256, 16
        %2006 = vbcast.lane.b32.xlu0 %v1996, %s2005
        %v2007 = vpop.permute.xlu0 %2006
        %s2009 = sor.u32 256, 24
        %2010 = vbcast.lane.b32.xlu0 %v1996, %s2009
        %v2011 = vpop.permute.xlu0 %2010
        %s2013 = sor.u32 256, 32
        %2014 = vbcast.lane.b32.xlu0 %v1996, %s2013
        %v2015 = vpop.permute.xlu0 %2014
        %s2017 = sor.u32 256, 40
        %2018 = vbcast.lane.b32.xlu0 %v1996, %s2017
        %v2019 = vpop.permute.xlu0 %2018
        %s2021 = sor.u32 256, 48
        %2022 = vbcast.lane.b32.xlu0 %v1996, %s2021
        %v2023 = vpop.permute.xlu0 %2022
        %s2025 = sor.u32 256, 56
        %2026 = vbcast.lane.b32.xlu0 %v1996, %s2025
        %v2027 = vpop.permute.xlu0 %2026
        %s2029 = sor.u32 256, 64
        %2030 = vbcast.lane.b32.xlu0 %v1996, %s2029
        %v2031 = vpop.permute.xlu0 %2030
        %s2033 = sor.u32 256, 72
        %2034 = vbcast.lane.b32.xlu0 %v1996, %s2033
        %v2035 = vpop.permute.xlu0 %2034
        %s2037 = sor.u32 256, 80
        %2038 = vbcast.lane.b32.xlu0 %v1996, %s2037
        %v2039 = vpop.permute.xlu0 %2038
        %s2041 = sor.u32 256, 88
        %2042 = vbcast.lane.b32.xlu0 %v1996, %s2041
        %v2043 = vpop.permute.xlu0 %2042
        %s2045 = sor.u32 256, 96
        %2046 = vbcast.lane.b32.xlu0 %v1996, %s2045
        %v2047 = vpop.permute.xlu0 %2046
        %s2049 = sor.u32 256, 104
        %2050 = vbcast.lane.b32.xlu0 %v1996, %s2049
        %v2051 = vpop.permute.xlu0 %2050
        %s2053 = sor.u32 256, 112
        %2054 = vbcast.lane.b32.xlu0 %v1996, %s2053
        %v2055 = vpop.permute.xlu0 %2054
        %s2057 = sor.u32 256, 120
        %2058 = vbcast.lane.b32.xlu0 %v1996, %s2057
        %v2059 = vpop.permute.xlu0 %2058
        %v2060 = vlaneseq
        %v2061 = vshrl.u32 %v2060, 7
        %v2062 = vsub.s32 2, %v2061
        %v2063 = vrot.slane %v1044, %v2062
        %2065 = vbcast.lane.b32.xlu0 %v2063, 256
        %v2066 = vpop.permute.xlu0 %2065
        %s2068 = sor.u32 256, 8
        %2069 = vbcast.lane.b32.xlu0 %v2063, %s2068
        %v2070 = vpop.permute.xlu0 %2069
        %s2072 = sor.u32 256, 16
        %2073 = vbcast.lane.b32.xlu0 %v2063, %s2072
        %v2074 = vpop.permute.xlu0 %2073
        %s2076 = sor.u32 256, 24
        %2077 = vbcast.lane.b32.xlu0 %v2063, %s2076
        %v2078 = vpop.permute.xlu0 %2077
        %s2080 = sor.u32 256, 32
        %2081 = vbcast.lane.b32.xlu0 %v2063, %s2080
        %v2082 = vpop.permute.xlu0 %2081
        %s2084 = sor.u32 256, 40
        %2085 = vbcast.lane.b32.xlu0 %v2063, %s2084
        %v2086 = vpop.permute.xlu0 %2085
        %s2088 = sor.u32 256, 48
        %2089 = vbcast.lane.b32.xlu0 %v2063, %s2088
        %v2090 = vpop.permute.xlu0 %2089
        %s2092 = sor.u32 256, 56
        %2093 = vbcast.lane.b32.xlu0 %v2063, %s2092
        %v2094 = vpop.permute.xlu0 %2093
        %s2096 = sor.u32 256, 64
        %2097 = vbcast.lane.b32.xlu0 %v2063, %s2096
        %v2098 = vpop.permute.xlu0 %2097
        %s2100 = sor.u32 256, 72
        %2101 = vbcast.lane.b32.xlu0 %v2063, %s2100
        %v2102 = vpop.permute.xlu0 %2101
        %s2104 = sor.u32 256, 80
        %2105 = vbcast.lane.b32.xlu0 %v2063, %s2104
        %v2106 = vpop.permute.xlu0 %2105
        %s2108 = sor.u32 256, 88
        %2109 = vbcast.lane.b32.xlu0 %v2063, %s2108
        %v2110 = vpop.permute.xlu0 %2109
        %s2112 = sor.u32 256, 96
        %2113 = vbcast.lane.b32.xlu0 %v2063, %s2112
        %v2114 = vpop.permute.xlu0 %2113
        %s2116 = sor.u32 256, 104
        %2117 = vbcast.lane.b32.xlu0 %v2063, %s2116
        %v2118 = vpop.permute.xlu0 %2117
        %s2120 = sor.u32 256, 112
        %2121 = vbcast.lane.b32.xlu0 %v2063, %s2120
        %v2122 = vpop.permute.xlu0 %2121
        %s2124 = sor.u32 256, 120
        %2125 = vbcast.lane.b32.xlu0 %v2063, %s2124
        %v2126 = vpop.permute.xlu0 %2125
        %v2127 = vlaneseq
        %v2128 = vshrl.u32 %v2127, 7
        %v2129 = vsub.s32 3, %v2128
        %v2130 = vrot.slane %v1044, %v2129
        %2132 = vbcast.lane.b32.xlu0 %v2130, 256
        %v2133 = vpop.permute.xlu0 %2132
        %s2135 = sor.u32 256, 8
        %2136 = vbcast.lane.b32.xlu0 %v2130, %s2135
        %v2137 = vpop.permute.xlu0 %2136
        %s2139 = sor.u32 256, 16
        %2140 = vbcast.lane.b32.xlu0 %v2130, %s2139
        %v2141 = vpop.permute.xlu0 %2140
        %s2143 = sor.u32 256, 24
        %2144 = vbcast.lane.b32.xlu0 %v2130, %s2143
        %v2145 = vpop.permute.xlu0 %2144
        %s2147 = sor.u32 256, 32
        %2148 = vbcast.lane.b32.xlu0 %v2130, %s2147
        %v2149 = vpop.permute.xlu0 %2148
        %s2151 = sor.u32 256, 40
        %2152 = vbcast.lane.b32.xlu0 %v2130, %s2151
        %v2153 = vpop.permute.xlu0 %2152
        %s2155 = sor.u32 256, 48
        %2156 = vbcast.lane.b32.xlu0 %v2130, %s2155
        %v2157 = vpop.permute.xlu0 %2156
        %s2159 = sor.u32 256, 56
        %2160 = vbcast.lane.b32.xlu0 %v2130, %s2159
        %v2161 = vpop.permute.xlu0 %2160
        %s2163 = sor.u32 256, 64
        %2164 = vbcast.lane.b32.xlu0 %v2130, %s2163
        %v2165 = vpop.permute.xlu0 %2164
        %s2167 = sor.u32 256, 72
        %2168 = vbcast.lane.b32.xlu0 %v2130, %s2167
        %v2169 = vpop.permute.xlu0 %2168
        %s2171 = sor.u32 256, 80
        %2172 = vbcast.lane.b32.xlu0 %v2130, %s2171
        %v2173 = vpop.permute.xlu0 %2172
        %s2175 = sor.u32 256, 88
        %2176 = vbcast.lane.b32.xlu0 %v2130, %s2175
        %v2177 = vpop.permute.xlu0 %2176
        %s2179 = sor.u32 256, 96
        %2180 = vbcast.lane.b32.xlu0 %v2130, %s2179
        %v2181 = vpop.permute.xlu0 %2180
        %s2183 = sor.u32 256, 104
        %2184 = vbcast.lane.b32.xlu0 %v2130, %s2183
        %v2185 = vpop.permute.xlu0 %2184
        %s2187 = sor.u32 256, 112
        %2188 = vbcast.lane.b32.xlu0 %v2130, %s2187
        %v2189 = vpop.permute.xlu0 %2188
        %s2191 = sor.u32 256, 120
        %2192 = vbcast.lane.b32.xlu0 %v2130, %s2191
        %v2193 = vpop.permute.xlu0 %2192
        %v2194 = vlaneseq
        %v2195 = vshrl.u32 %v2194, 7
        %v2196 = vsub.s32 4, %v2195
        %v2197 = vrot.slane %v1044, %v2196
        %2199 = vbcast.lane.b32.xlu0 %v2197, 256
        %v2200 = vpop.permute.xlu0 %2199
        %s2202 = sor.u32 256, 8
        %2203 = vbcast.lane.b32.xlu0 %v2197, %s2202
        %v2204 = vpop.permute.xlu0 %2203
        %s2206 = sor.u32 256, 16
        %2207 = vbcast.lane.b32.xlu0 %v2197, %s2206
        %v2208 = vpop.permute.xlu0 %2207
        %s2210 = sor.u32 256, 24
        %2211 = vbcast.lane.b32.xlu0 %v2197, %s2210
        %v2212 = vpop.permute.xlu0 %2211
        %s2214 = sor.u32 256, 32
        %2215 = vbcast.lane.b32.xlu0 %v2197, %s2214
        %v2216 = vpop.permute.xlu0 %2215
        %s2218 = sor.u32 256, 40
        %2219 = vbcast.lane.b32.xlu0 %v2197, %s2218
        %v2220 = vpop.permute.xlu0 %2219
        %s2222 = sor.u32 256, 48
        %2223 = vbcast.lane.b32.xlu0 %v2197, %s2222
        %v2224 = vpop.permute.xlu0 %2223
        %s2226 = sor.u32 256, 56
        %2227 = vbcast.lane.b32.xlu0 %v2197, %s2226
        %v2228 = vpop.permute.xlu0 %2227
        %s2230 = sor.u32 256, 64
        %2231 = vbcast.lane.b32.xlu0 %v2197, %s2230
        %v2232 = vpop.permute.xlu0 %2231
        %s2234 = sor.u32 256, 72
        %2235 = vbcast.lane.b32.xlu0 %v2197, %s2234
        %v2236 = vpop.permute.xlu0 %2235
        %s2238 = sor.u32 256, 80
        %2239 = vbcast.lane.b32.xlu0 %v2197, %s2238
        %v2240 = vpop.permute.xlu0 %2239
        %s2242 = sor.u32 256, 88
        %2243 = vbcast.lane.b32.xlu0 %v2197, %s2242
        %v2244 = vpop.permute.xlu0 %2243
        %s2246 = sor.u32 256, 96
        %2247 = vbcast.lane.b32.xlu0 %v2197, %s2246
        %v2248 = vpop.permute.xlu0 %2247
        %s2250 = sor.u32 256, 104
        %2251 = vbcast.lane.b32.xlu0 %v2197, %s2250
        %v2252 = vpop.permute.xlu0 %2251
        %s2254 = sor.u32 256, 112
        %2255 = vbcast.lane.b32.xlu0 %v2197, %s2254
        %v2256 = vpop.permute.xlu0 %2255
        %s2258 = sor.u32 256, 120
        %2259 = vbcast.lane.b32.xlu0 %v2197, %s2258
        %v2260 = vpop.permute.xlu0 %2259
        %v2261 = vlaneseq
        %v2262 = vshrl.u32 %v2261, 7
        %v2263 = vsub.s32 5, %v2262
        %v2264 = vrot.slane %v1044, %v2263
        %2266 = vbcast.lane.b32.xlu0 %v2264, 256
        %v2267 = vpop.permute.xlu0 %2266
        %s2269 = sor.u32 256, 8
        %2270 = vbcast.lane.b32.xlu0 %v2264, %s2269
        %v2271 = vpop.permute.xlu0 %2270
        %s2273 = sor.u32 256, 16
        %2274 = vbcast.lane.b32.xlu0 %v2264, %s2273
        %v2275 = vpop.permute.xlu0 %2274
        %s2277 = sor.u32 256, 24
        %2278 = vbcast.lane.b32.xlu0 %v2264, %s2277
        %v2279 = vpop.permute.xlu0 %2278
        %s2281 = sor.u32 256, 32
        %2282 = vbcast.lane.b32.xlu0 %v2264, %s2281
        %v2283 = vpop.permute.xlu0 %2282
        %s2285 = sor.u32 256, 40
        %2286 = vbcast.lane.b32.xlu0 %v2264, %s2285
        %v2287 = vpop.permute.xlu0 %2286
        %s2289 = sor.u32 256, 48
        %2290 = vbcast.lane.b32.xlu0 %v2264, %s2289
        %v2291 = vpop.permute.xlu0 %2290
        %s2293 = sor.u32 256, 56
        %2294 = vbcast.lane.b32.xlu0 %v2264, %s2293
        %v2295 = vpop.permute.xlu0 %2294
        %s2297 = sor.u32 256, 64
        %2298 = vbcast.lane.b32.xlu0 %v2264, %s2297
        %v2299 = vpop.permute.xlu0 %2298
        %s2301 = sor.u32 256, 72
        %2302 = vbcast.lane.b32.xlu0 %v2264, %s2301
        %v2303 = vpop.permute.xlu0 %2302
        %s2305 = sor.u32 256, 80
        %2306 = vbcast.lane.b32.xlu0 %v2264, %s2305
        %v2307 = vpop.permute.xlu0 %2306
        %s2309 = sor.u32 256, 88
        %2310 = vbcast.lane.b32.xlu0 %v2264, %s2309
        %v2311 = vpop.permute.xlu0 %2310
        %s2313 = sor.u32 256, 96
        %2314 = vbcast.lane.b32.xlu0 %v2264, %s2313
        %v2315 = vpop.permute.xlu0 %2314
        %s2317 = sor.u32 256, 104
        %2318 = vbcast.lane.b32.xlu0 %v2264, %s2317
        %v2319 = vpop.permute.xlu0 %2318
        %s2321 = sor.u32 256, 112
        %2322 = vbcast.lane.b32.xlu0 %v2264, %s2321
        %v2323 = vpop.permute.xlu0 %2322
        %s2325 = sor.u32 256, 120
        %2326 = vbcast.lane.b32.xlu0 %v2264, %s2325
        %v2327 = vpop.permute.xlu0 %2326
        %v2328 = vlaneseq
        %v2329 = vshrl.u32 %v2328, 7
        %v2330 = vsub.s32 6, %v2329
        %v2331 = vrot.slane %v1044, %v2330
        %2333 = vbcast.lane.b32.xlu0 %v2331, 256
        %v2334 = vpop.permute.xlu0 %2333
        %s2336 = sor.u32 256, 8
        %2337 = vbcast.lane.b32.xlu0 %v2331, %s2336
        %v2338 = vpop.permute.xlu0 %2337
        %s2340 = sor.u32 256, 16
        %2341 = vbcast.lane.b32.xlu0 %v2331, %s2340
        %v2342 = vpop.permute.xlu0 %2341
        %s2344 = sor.u32 256, 24
        %2345 = vbcast.lane.b32.xlu0 %v2331, %s2344
        %v2346 = vpop.permute.xlu0 %2345
        %s2348 = sor.u32 256, 32
        %2349 = vbcast.lane.b32.xlu0 %v2331, %s2348
        %v2350 = vpop.permute.xlu0 %2349
        %s2352 = sor.u32 256, 40
        %2353 = vbcast.lane.b32.xlu0 %v2331, %s2352
        %v2354 = vpop.permute.xlu0 %2353
        %s2356 = sor.u32 256, 48
        %2357 = vbcast.lane.b32.xlu0 %v2331, %s2356
        %v2358 = vpop.permute.xlu0 %2357
        %s2360 = sor.u32 256, 56
        %2361 = vbcast.lane.b32.xlu0 %v2331, %s2360
        %v2362 = vpop.permute.xlu0 %2361
        %s2364 = sor.u32 256, 64
        %2365 = vbcast.lane.b32.xlu0 %v2331, %s2364
        %v2366 = vpop.permute.xlu0 %2365
        %s2368 = sor.u32 256, 72
        %2369 = vbcast.lane.b32.xlu0 %v2331, %s2368
        %v2370 = vpop.permute.xlu0 %2369
        %s2372 = sor.u32 256, 80
        %2373 = vbcast.lane.b32.xlu0 %v2331, %s2372
        %v2374 = vpop.permute.xlu0 %2373
        %s2376 = sor.u32 256, 88
        %2377 = vbcast.lane.b32.xlu0 %v2331, %s2376
        %v2378 = vpop.permute.xlu0 %2377
        %s2380 = sor.u32 256, 96
        %2381 = vbcast.lane.b32.xlu0 %v2331, %s2380
        %v2382 = vpop.permute.xlu0 %2381
        %s2384 = sor.u32 256, 104
        %2385 = vbcast.lane.b32.xlu0 %v2331, %s2384
        %v2386 = vpop.permute.xlu0 %2385
        %s2388 = sor.u32 256, 112
        %2389 = vbcast.lane.b32.xlu0 %v2331, %s2388
        %v2390 = vpop.permute.xlu0 %2389
        %s2392 = sor.u32 256, 120
        %2393 = vbcast.lane.b32.xlu0 %v2331, %s2392
        %v2394 = vpop.permute.xlu0 %2393
        %v2395 = vlaneseq
        %v2396 = vshrl.u32 %v2395, 7
        %v2397 = vsub.s32 7, %v2396
        %v2398 = vrot.slane %v1044, %v2397
        %2400 = vbcast.lane.b32.xlu0 %v2398, 256
        %v2401 = vpop.permute.xlu0 %2400
        %s2403 = sor.u32 256, 8
        %2404 = vbcast.lane.b32.xlu0 %v2398, %s2403
        %v2405 = vpop.permute.xlu0 %2404
        %s2407 = sor.u32 256, 16
        %2408 = vbcast.lane.b32.xlu0 %v2398, %s2407
        %v2409 = vpop.permute.xlu0 %2408
        %s2411 = sor.u32 256, 24
        %2412 = vbcast.lane.b32.xlu0 %v2398, %s2411
        %v2413 = vpop.permute.xlu0 %2412
        %s2415 = sor.u32 256, 32
        %2416 = vbcast.lane.b32.xlu0 %v2398, %s2415
        %v2417 = vpop.permute.xlu0 %2416
        %s2419 = sor.u32 256, 40
        %2420 = vbcast.lane.b32.xlu0 %v2398, %s2419
        %v2421 = vpop.permute.xlu0 %2420
        %s2423 = sor.u32 256, 48
        %2424 = vbcast.lane.b32.xlu0 %v2398, %s2423
        %v2425 = vpop.permute.xlu0 %2424
        %s2427 = sor.u32 256, 56
        %2428 = vbcast.lane.b32.xlu0 %v2398, %s2427
        %v2429 = vpop.permute.xlu0 %2428
        %s2431 = sor.u32 256, 64
        %2432 = vbcast.lane.b32.xlu0 %v2398, %s2431
        %v2433 = vpop.permute.xlu0 %2432
        %s2435 = sor.u32 256, 72
        %2436 = vbcast.lane.b32.xlu0 %v2398, %s2435
        %v2437 = vpop.permute.xlu0 %2436
        %s2439 = sor.u32 256, 80
        %2440 = vbcast.lane.b32.xlu0 %v2398, %s2439
        %v2441 = vpop.permute.xlu0 %2440
        %s2443 = sor.u32 256, 88
        %2444 = vbcast.lane.b32.xlu0 %v2398, %s2443
        %v2445 = vpop.permute.xlu0 %2444
        %s2447 = sor.u32 256, 96
        %2448 = vbcast.lane.b32.xlu0 %v2398, %s2447
        %v2449 = vpop.permute.xlu0 %2448
        %s2451 = sor.u32 256, 104
        %2452 = vbcast.lane.b32.xlu0 %v2398, %s2451
        %v2453 = vpop.permute.xlu0 %2452
        %s2455 = sor.u32 256, 112
        %2456 = vbcast.lane.b32.xlu0 %v2398, %s2455
        %v2457 = vpop.permute.xlu0 %2456
        %s2459 = sor.u32 256, 120
        %2460 = vbcast.lane.b32.xlu0 %v2398, %s2459
        %v2461 = vpop.permute.xlu0 %2460
        %v2462 = vmul.f32 %v1798, %v1932
        %v2463 = vmul.f32 %v1799, %v1936
        %v2464 = vmul.f32 %v1800, %v1940
        %v2465 = vmul.f32 %v1801, %v1944
        %v2466 = vmul.f32 %v1802, %v1948
        %v2467 = vmul.f32 %v1803, %v1952
        %v2468 = vmul.f32 %v1804, %v1956
        %v2469 = vmul.f32 %v1805, %v1960
        %v2470 = vmul.f32 %v1806, %v1964
        %v2471 = vmul.f32 %v1807, %v1968
        %v2472 = vmul.f32 %v1808, %v1972
        %v2473 = vmul.f32 %v1809, %v1976
        %v2474 = vmul.f32 %v1810, %v1980
        %v2475 = vmul.f32 %v1811, %v1984
        %v2476 = vmul.f32 %v1812, %v1988
        %v2477 = vmul.f32 %v1813, %v1992
        %v2478 = vmul.f32 %v1814, %v1999
        %v2479 = vmul.f32 %v1815, %v2003
        %v2480 = vmul.f32 %v1816, %v2007
        %v2481 = vmul.f32 %v1817, %v2011
        %v2482 = vmul.f32 %v1818, %v2015
        %v2483 = vmul.f32 %v1819, %v2019
        %v2484 = vmul.f32 %v1820, %v2023
        %v2485 = vmul.f32 %v1821, %v2027
        %v2486 = vmul.f32 %v1822, %v2031
        %v2487 = vmul.f32 %v1823, %v2035
        %v2488 = vmul.f32 %v1824, %v2039
        %v2489 = vmul.f32 %v1825, %v2043
        %v2490 = vmul.f32 %v1826, %v2047
        %v2491 = vmul.f32 %v1827, %v2051
        %v2492 = vmul.f32 %v1828, %v2055
        %v2493 = vmul.f32 %v1829, %v2059
        %v2494 = vmul.f32 %v1830, %v2066
        %v2495 = vmul.f32 %v1831, %v2070
        %v2496 = vmul.f32 %v1832, %v2074
        %v2497 = vmul.f32 %v1833, %v2078
        %v2498 = vmul.f32 %v1834, %v2082
        %v2499 = vmul.f32 %v1835, %v2086
        %v2500 = vmul.f32 %v1836, %v2090
        %v2501 = vmul.f32 %v1837, %v2094
        %v2502 = vmul.f32 %v1838, %v2098
        %v2503 = vmul.f32 %v1839, %v2102
        %v2504 = vmul.f32 %v1840, %v2106
        %v2505 = vmul.f32 %v1841, %v2110
        %v2506 = vmul.f32 %v1842, %v2114
        %v2507 = vmul.f32 %v1843, %v2118
        %v2508 = vmul.f32 %v1844, %v2122
        %v2509 = vmul.f32 %v1845, %v2126
        %v2510 = vmul.f32 %v1846, %v2133
        %v2511 = vmul.f32 %v1847, %v2137
        %v2512 = vmul.f32 %v1848, %v2141
        %v2513 = vmul.f32 %v1849, %v2145
        %v2514 = vmul.f32 %v1850, %v2149
        %v2515 = vmul.f32 %v1851, %v2153
        %v2516 = vmul.f32 %v1852, %v2157
        %v2517 = vmul.f32 %v1853, %v2161
        %v2518 = vmul.f32 %v1854, %v2165
        %v2519 = vmul.f32 %v1855, %v2169
        %v2520 = vmul.f32 %v1856, %v2173
        %v2521 = vmul.f32 %v1857, %v2177
        %v2522 = vmul.f32 %v1858, %v2181
        %v2523 = vmul.f32 %v1859, %v2185
        %v2524 = vmul.f32 %v1860, %v2189
        %v2525 = vmul.f32 %v1861, %v2193
        %v2526 = vmul.f32 %v1862, %v2200
        %v2527 = vmul.f32 %v1863, %v2204
        %v2528 = vmul.f32 %v1864, %v2208
        %v2529 = vmul.f32 %v1865, %v2212
        %v2530 = vmul.f32 %v1866, %v2216
        %v2531 = vmul.f32 %v1867, %v2220
        %v2532 = vmul.f32 %v1868, %v2224
        %v2533 = vmul.f32 %v1869, %v2228
        %v2534 = vmul.f32 %v1870, %v2232
        %v2535 = vmul.f32 %v1871, %v2236
        %v2536 = vmul.f32 %v1872, %v2240
        %v2537 = vmul.f32 %v1873, %v2244
        %v2538 = vmul.f32 %v1874, %v2248
        %v2539 = vmul.f32 %v1875, %v2252
        %v2540 = vmul.f32 %v1876, %v2256
        %v2541 = vmul.f32 %v1877, %v2260
        %v2542 = vmul.f32 %v1878, %v2267
        %v2543 = vmul.f32 %v1879, %v2271
        %v2544 = vmul.f32 %v1880, %v2275
        %v2545 = vmul.f32 %v1881, %v2279
        %v2546 = vmul.f32 %v1882, %v2283
        %v2547 = vmul.f32 %v1883, %v2287
        %v2548 = vmul.f32 %v1884, %v2291
        %v2549 = vmul.f32 %v1885, %v2295
        %v2550 = vmul.f32 %v1886, %v2299
        %v2551 = vmul.f32 %v1887, %v2303
        %v2552 = vmul.f32 %v1888, %v2307
        %v2553 = vmul.f32 %v1889, %v2311
        %v2554 = vmul.f32 %v1890, %v2315
        %v2555 = vmul.f32 %v1891, %v2319
        %v2556 = vmul.f32 %v1892, %v2323
        %v2557 = vmul.f32 %v1893, %v2327
        %v2558 = vmul.f32 %v1894, %v2334
        %v2559 = vmul.f32 %v1895, %v2338
        %v2560 = vmul.f32 %v1896, %v2342
        %v2561 = vmul.f32 %v1897, %v2346
        %v2562 = vmul.f32 %v1898, %v2350
        %v2563 = vmul.f32 %v1899, %v2354
        %v2564 = vmul.f32 %v1900, %v2358
        %v2565 = vmul.f32 %v1901, %v2362
        %v2566 = vmul.f32 %v1902, %v2366
        %v2567 = vmul.f32 %v1903, %v2370
        %v2568 = vmul.f32 %v1904, %v2374
        %v2569 = vmul.f32 %v1905, %v2378
        %v2570 = vmul.f32 %v1906, %v2382
        %v2571 = vmul.f32 %v1907, %v2386
        %v2572 = vmul.f32 %v1908, %v2390
        %v2573 = vmul.f32 %v1909, %v2394
        %v2574 = vmul.f32 %v1910, %v2401
        %v2575 = vmul.f32 %v1911, %v2405
        %v2576 = vmul.f32 %v1912, %v2409
        %v2577 = vmul.f32 %v1913, %v2413
        %v2578 = vmul.f32 %v1914, %v2417
        %v2579 = vmul.f32 %v1915, %v2421
        %v2580 = vmul.f32 %v1916, %v2425
        %v2581 = vmul.f32 %v1917, %v2429
        %v2582 = vmul.f32 %v1918, %v2433
        %v2583 = vmul.f32 %v1919, %v2437
        %v2584 = vmul.f32 %v1920, %v2441
        %v2585 = vmul.f32 %v1921, %v2445
        %v2586 = vmul.f32 %v1922, %v2449
        %v2587 = vmul.f32 %v1923, %v2453
        %v2588 = vmul.f32 %v1924, %v2457
        %v2589 = vmul.f32 %v1925, %v2461
        %v2590 = vlaneseq
        %v2591 = vshrl.u32 %v2590, 7
        %v2592 = vsub.s32 0, %v2591
        %v2593 = vrot.slane %v467, %v2592
        %v2594 = vmul.f32 %v2462, %v2593
        %v2595 = vmul.f32 %v2463, %v2593
        %v2596 = vmul.f32 %v2464, %v2593
        %v2597 = vmul.f32 %v2465, %v2593
        %v2598 = vmul.f32 %v2466, %v2593
        %v2599 = vmul.f32 %v2467, %v2593
        %v2600 = vmul.f32 %v2468, %v2593
        %v2601 = vmul.f32 %v2469, %v2593
        %v2602 = vmul.f32 %v2470, %v2593
        %v2603 = vmul.f32 %v2471, %v2593
        %v2604 = vmul.f32 %v2472, %v2593
        %v2605 = vmul.f32 %v2473, %v2593
        %v2606 = vmul.f32 %v2474, %v2593
        %v2607 = vmul.f32 %v2475, %v2593
        %v2608 = vmul.f32 %v2476, %v2593
        %v2609 = vmul.f32 %v2477, %v2593
        %v2610 = vmul.f32 %v2478, %v2593
        %v2611 = vmul.f32 %v2479, %v2593
        %v2612 = vmul.f32 %v2480, %v2593
        %v2613 = vmul.f32 %v2481, %v2593
        %v2614 = vmul.f32 %v2482, %v2593
        %v2615 = vmul.f32 %v2483, %v2593
        %v2616 = vmul.f32 %v2484, %v2593
        %v2617 = vmul.f32 %v2485, %v2593
        %v2618 = vmul.f32 %v2486, %v2593
        %v2619 = vmul.f32 %v2487, %v2593
        %v2620 = vmul.f32 %v2488, %v2593
        %v2621 = vmul.f32 %v2489, %v2593
        %v2622 = vmul.f32 %v2490, %v2593
        %v2623 = vmul.f32 %v2491, %v2593
        %v2624 = vmul.f32 %v2492, %v2593
        %v2625 = vmul.f32 %v2493, %v2593
        %v2626 = vmul.f32 %v2494, %v2593
        %v2627 = vmul.f32 %v2495, %v2593
        %v2628 = vmul.f32 %v2496, %v2593
        %v2629 = vmul.f32 %v2497, %v2593
        %v2630 = vmul.f32 %v2498, %v2593
        %v2631 = vmul.f32 %v2499, %v2593
        %v2632 = vmul.f32 %v2500, %v2593
        %v2633 = vmul.f32 %v2501, %v2593
        %v2634 = vmul.f32 %v2502, %v2593
        %v2635 = vmul.f32 %v2503, %v2593
        %v2636 = vmul.f32 %v2504, %v2593
        %v2637 = vmul.f32 %v2505, %v2593
        %v2638 = vmul.f32 %v2506, %v2593
        %v2639 = vmul.f32 %v2507, %v2593
        %v2640 = vmul.f32 %v2508, %v2593
        %v2641 = vmul.f32 %v2509, %v2593
        %v2642 = vmul.f32 %v2510, %v2593
        %v2643 = vmul.f32 %v2511, %v2593
        %v2644 = vmul.f32 %v2512, %v2593
        %v2645 = vmul.f32 %v2513, %v2593
        %v2646 = vmul.f32 %v2514, %v2593
        %v2647 = vmul.f32 %v2515, %v2593
        %v2648 = vmul.f32 %v2516, %v2593
        %v2649 = vmul.f32 %v2517, %v2593
        %v2650 = vmul.f32 %v2518, %v2593
        %v2651 = vmul.f32 %v2519, %v2593
        %v2652 = vmul.f32 %v2520, %v2593
        %v2653 = vmul.f32 %v2521, %v2593
        %v2654 = vmul.f32 %v2522, %v2593
        %v2655 = vmul.f32 %v2523, %v2593
        %v2656 = vmul.f32 %v2524, %v2593
        %v2657 = vmul.f32 %v2525, %v2593
        %v2658 = vmul.f32 %v2526, %v2593
        %v2659 = vmul.f32 %v2527, %v2593
        %v2660 = vmul.f32 %v2528, %v2593
        %v2661 = vmul.f32 %v2529, %v2593
        %v2662 = vmul.f32 %v2530, %v2593
        %v2663 = vmul.f32 %v2531, %v2593
        %v2664 = vmul.f32 %v2532, %v2593
        %v2665 = vmul.f32 %v2533, %v2593
        %v2666 = vmul.f32 %v2534, %v2593
        %v2667 = vmul.f32 %v2535, %v2593
        %v2668 = vmul.f32 %v2536, %v2593
        %v2669 = vmul.f32 %v2537, %v2593
        %v2670 = vmul.f32 %v2538, %v2593
        %v2671 = vmul.f32 %v2539, %v2593
        %v2672 = vmul.f32 %v2540, %v2593
        %v2673 = vmul.f32 %v2541, %v2593
        %v2674 = vmul.f32 %v2542, %v2593
        %v2675 = vmul.f32 %v2543, %v2593
        %v2676 = vmul.f32 %v2544, %v2593
        %v2677 = vmul.f32 %v2545, %v2593
        %v2678 = vmul.f32 %v2546, %v2593
        %v2679 = vmul.f32 %v2547, %v2593
        %v2680 = vmul.f32 %v2548, %v2593
        %v2681 = vmul.f32 %v2549, %v2593
        %v2682 = vmul.f32 %v2550, %v2593
        %v2683 = vmul.f32 %v2551, %v2593
        %v2684 = vmul.f32 %v2552, %v2593
        %v2685 = vmul.f32 %v2553, %v2593
        %v2686 = vmul.f32 %v2554, %v2593
        %v2687 = vmul.f32 %v2555, %v2593
        %v2688 = vmul.f32 %v2556, %v2593
        %v2689 = vmul.f32 %v2557, %v2593
        %v2690 = vmul.f32 %v2558, %v2593
        %v2691 = vmul.f32 %v2559, %v2593
        %v2692 = vmul.f32 %v2560, %v2593
        %v2693 = vmul.f32 %v2561, %v2593
        %v2694 = vmul.f32 %v2562, %v2593
        %v2695 = vmul.f32 %v2563, %v2593
        %v2696 = vmul.f32 %v2564, %v2593
        %v2697 = vmul.f32 %v2565, %v2593
        %v2698 = vmul.f32 %v2566, %v2593
        %v2699 = vmul.f32 %v2567, %v2593
        %v2700 = vmul.f32 %v2568, %v2593
        %v2701 = vmul.f32 %v2569, %v2593
        %v2702 = vmul.f32 %v2570, %v2593
        %v2703 = vmul.f32 %v2571, %v2593
        %v2704 = vmul.f32 %v2572, %v2593
        %v2705 = vmul.f32 %v2573, %v2593
        %v2706 = vmul.f32 %v2574, %v2593
        %v2707 = vmul.f32 %v2575, %v2593
        %v2708 = vmul.f32 %v2576, %v2593
        %v2709 = vmul.f32 %v2577, %v2593
        %v2710 = vmul.f32 %v2578, %v2593
        %v2711 = vmul.f32 %v2579, %v2593
        %v2712 = vmul.f32 %v2580, %v2593
        %v2713 = vmul.f32 %v2581, %v2593
        %v2714 = vmul.f32 %v2582, %v2593
        %v2715 = vmul.f32 %v2583, %v2593
        %v2716 = vmul.f32 %v2584, %v2593
        %v2717 = vmul.f32 %v2585, %v2593
        %v2718 = vmul.f32 %v2586, %v2593
        %v2719 = vmul.f32 %v2587, %v2593
        %v2720 = vmul.f32 %v2588, %v2593
        %v2721 = vmul.f32 %v2589, %v2593
        %v2722 = vlaneseq
        %v2723 = vshrl.u32 %v2722, 7
        %v2724 = vsub.s32 0, %v2723
        %v2725 = vrot.slane %v468, %v2724
        %v2726 = vadd.f32 %v2594, %v2725
        %v2727 = vadd.f32 %v2595, %v2725
        %v2728 = vadd.f32 %v2596, %v2725
        %v2729 = vadd.f32 %v2597, %v2725
        %v2730 = vadd.f32 %v2598, %v2725
        %v2731 = vadd.f32 %v2599, %v2725
        %v2732 = vadd.f32 %v2600, %v2725
        %v2733 = vadd.f32 %v2601, %v2725
        %v2734 = vadd.f32 %v2602, %v2725
        %v2735 = vadd.f32 %v2603, %v2725
        %v2736 = vadd.f32 %v2604, %v2725
        %v2737 = vadd.f32 %v2605, %v2725
        %v2738 = vadd.f32 %v2606, %v2725
        %v2739 = vadd.f32 %v2607, %v2725
        %v2740 = vadd.f32 %v2608, %v2725
        %v2741 = vadd.f32 %v2609, %v2725
        %v2742 = vadd.f32 %v2610, %v2725
        %v2743 = vadd.f32 %v2611, %v2725
        %v2744 = vadd.f32 %v2612, %v2725
        %v2745 = vadd.f32 %v2613, %v2725
        %v2746 = vadd.f32 %v2614, %v2725
        %v2747 = vadd.f32 %v2615, %v2725
        %v2748 = vadd.f32 %v2616, %v2725
        %v2749 = vadd.f32 %v2617, %v2725
        %v2750 = vadd.f32 %v2618, %v2725
        %v2751 = vadd.f32 %v2619, %v2725
        %v2752 = vadd.f32 %v2620, %v2725
        %v2753 = vadd.f32 %v2621, %v2725
        %v2754 = vadd.f32 %v2622, %v2725
        %v2755 = vadd.f32 %v2623, %v2725
        %v2756 = vadd.f32 %v2624, %v2725
        %v2757 = vadd.f32 %v2625, %v2725
        %v2758 = vadd.f32 %v2626, %v2725
        %v2759 = vadd.f32 %v2627, %v2725
        %v2760 = vadd.f32 %v2628, %v2725
        %v2761 = vadd.f32 %v2629, %v2725
        %v2762 = vadd.f32 %v2630, %v2725
        %v2763 = vadd.f32 %v2631, %v2725
        %v2764 = vadd.f32 %v2632, %v2725
        %v2765 = vadd.f32 %v2633, %v2725
        %v2766 = vadd.f32 %v2634, %v2725
        %v2767 = vadd.f32 %v2635, %v2725
        %v2768 = vadd.f32 %v2636, %v2725
        %v2769 = vadd.f32 %v2637, %v2725
        %v2770 = vadd.f32 %v2638, %v2725
        %v2771 = vadd.f32 %v2639, %v2725
        %v2772 = vadd.f32 %v2640, %v2725
        %v2773 = vadd.f32 %v2641, %v2725
        %v2774 = vadd.f32 %v2642, %v2725
        %v2775 = vadd.f32 %v2643, %v2725
        %v2776 = vadd.f32 %v2644, %v2725
        %v2777 = vadd.f32 %v2645, %v2725
        %v2778 = vadd.f32 %v2646, %v2725
        %v2779 = vadd.f32 %v2647, %v2725
        %v2780 = vadd.f32 %v2648, %v2725
        %v2781 = vadd.f32 %v2649, %v2725
        %v2782 = vadd.f32 %v2650, %v2725
        %v2783 = vadd.f32 %v2651, %v2725
        %v2784 = vadd.f32 %v2652, %v2725
        %v2785 = vadd.f32 %v2653, %v2725
        %v2786 = vadd.f32 %v2654, %v2725
        %v2787 = vadd.f32 %v2655, %v2725
        %v2788 = vadd.f32 %v2656, %v2725
        %v2789 = vadd.f32 %v2657, %v2725
        %v2790 = vadd.f32 %v2658, %v2725
        %v2791 = vadd.f32 %v2659, %v2725
        %v2792 = vadd.f32 %v2660, %v2725
        %v2793 = vadd.f32 %v2661, %v2725
        %v2794 = vadd.f32 %v2662, %v2725
        %v2795 = vadd.f32 %v2663, %v2725
        %v2796 = vadd.f32 %v2664, %v2725
        %v2797 = vadd.f32 %v2665, %v2725
        %v2798 = vadd.f32 %v2666, %v2725
        %v2799 = vadd.f32 %v2667, %v2725
        %v2800 = vadd.f32 %v2668, %v2725
        %v2801 = vadd.f32 %v2669, %v2725
        %v2802 = vadd.f32 %v2670, %v2725
        %v2803 = vadd.f32 %v2671, %v2725
        %v2804 = vadd.f32 %v2672, %v2725
        %v2805 = vadd.f32 %v2673, %v2725
        %v2806 = vadd.f32 %v2674, %v2725
        %v2807 = vadd.f32 %v2675, %v2725
        %v2808 = vadd.f32 %v2676, %v2725
        %v2809 = vadd.f32 %v2677, %v2725
        %v2810 = vadd.f32 %v2678, %v2725
        %v2811 = vadd.f32 %v2679, %v2725
        %v2812 = vadd.f32 %v2680, %v2725
        %v2813 = vadd.f32 %v2681, %v2725
        %v2814 = vadd.f32 %v2682, %v2725
        %v2815 = vadd.f32 %v2683, %v2725
        %v2816 = vadd.f32 %v2684, %v2725
        %v2817 = vadd.f32 %v2685, %v2725
        %v2818 = vadd.f32 %v2686, %v2725
        %v2819 = vadd.f32 %v2687, %v2725
        %v2820 = vadd.f32 %v2688, %v2725
        %v2821 = vadd.f32 %v2689, %v2725
        %v2822 = vadd.f32 %v2690, %v2725
        %v2823 = vadd.f32 %v2691, %v2725
        %v2824 = vadd.f32 %v2692, %v2725
        %v2825 = vadd.f32 %v2693, %v2725
        %v2826 = vadd.f32 %v2694, %v2725
        %v2827 = vadd.f32 %v2695, %v2725
        %v2828 = vadd.f32 %v2696, %v2725
        %v2829 = vadd.f32 %v2697, %v2725
        %v2830 = vadd.f32 %v2698, %v2725
        %v2831 = vadd.f32 %v2699, %v2725
        %v2832 = vadd.f32 %v2700, %v2725
        %v2833 = vadd.f32 %v2701, %v2725
        %v2834 = vadd.f32 %v2702, %v2725
        %v2835 = vadd.f32 %v2703, %v2725
        %v2836 = vadd.f32 %v2704, %v2725
        %v2837 = vadd.f32 %v2705, %v2725
        %v2838 = vadd.f32 %v2706, %v2725
        %v2839 = vadd.f32 %v2707, %v2725
        %v2840 = vadd.f32 %v2708, %v2725
        %v2841 = vadd.f32 %v2709, %v2725
        %v2842 = vadd.f32 %v2710, %v2725
        %v2843 = vadd.f32 %v2711, %v2725
        %v2844 = vadd.f32 %v2712, %v2725
        %v2845 = vadd.f32 %v2713, %v2725
        %v2846 = vadd.f32 %v2714, %v2725
        %v2847 = vadd.f32 %v2715, %v2725
        %v2848 = vadd.f32 %v2716, %v2725
        %v2849 = vadd.f32 %v2717, %v2725
        %v2850 = vadd.f32 %v2718, %v2725
        %v2851 = vadd.f32 %v2719, %v2725
        %v2852 = vadd.f32 %v2720, %v2725
        %v2853 = vadd.f32 %v2721, %v2725
        %v2854 = vmax.f32 %v2726, 0.0
        %v2855 = vmax.f32 %v2727, 0.0
        %v2856 = vmax.f32 %v2728, 0.0
        %v2857 = vmax.f32 %v2729, 0.0
        %v2858 = vmax.f32 %v2730, 0.0
        %v2859 = vmax.f32 %v2731, 0.0
        %v2860 = vmax.f32 %v2732, 0.0
        %v2861 = vmax.f32 %v2733, 0.0
        %v2862 = vmax.f32 %v2734, 0.0
        %v2863 = vmax.f32 %v2735, 0.0
        %v2864 = vmax.f32 %v2736, 0.0
        %v2865 = vmax.f32 %v2737, 0.0
        %v2866 = vmax.f32 %v2738, 0.0
        %v2867 = vmax.f32 %v2739, 0.0
        %v2868 = vmax.f32 %v2740, 0.0
        %v2869 = vmax.f32 %v2741, 0.0
        %v2870 = vmax.f32 %v2742, 0.0
        %v2871 = vmax.f32 %v2743, 0.0
        %v2872 = vmax.f32 %v2744, 0.0
        %v2873 = vmax.f32 %v2745, 0.0
        %v2874 = vmax.f32 %v2746, 0.0
        %v2875 = vmax.f32 %v2747, 0.0
        %v2876 = vmax.f32 %v2748, 0.0
        %v2877 = vmax.f32 %v2749, 0.0
        %v2878 = vmax.f32 %v2750, 0.0
        %v2879 = vmax.f32 %v2751, 0.0
        %v2880 = vmax.f32 %v2752, 0.0
        %v2881 = vmax.f32 %v2753, 0.0
        %v2882 = vmax.f32 %v2754, 0.0
        %v2883 = vmax.f32 %v2755, 0.0
        %v2884 = vmax.f32 %v2756, 0.0
        %v2885 = vmax.f32 %v2757, 0.0
        %v2886 = vmax.f32 %v2758, 0.0
        %v2887 = vmax.f32 %v2759, 0.0
        %v2888 = vmax.f32 %v2760, 0.0
        %v2889 = vmax.f32 %v2761, 0.0
        %v2890 = vmax.f32 %v2762, 0.0
        %v2891 = vmax.f32 %v2763, 0.0
        %v2892 = vmax.f32 %v2764, 0.0
        %v2893 = vmax.f32 %v2765, 0.0
        %v2894 = vmax.f32 %v2766, 0.0
        %v2895 = vmax.f32 %v2767, 0.0
        %v2896 = vmax.f32 %v2768, 0.0
        %v2897 = vmax.f32 %v2769, 0.0
        %v2898 = vmax.f32 %v2770, 0.0
        %v2899 = vmax.f32 %v2771, 0.0
        %v2900 = vmax.f32 %v2772, 0.0
        %v2901 = vmax.f32 %v2773, 0.0
        %v2902 = vmax.f32 %v2774, 0.0
        %v2903 = vmax.f32 %v2775, 0.0
        %v2904 = vmax.f32 %v2776, 0.0
        %v2905 = vmax.f32 %v2777, 0.0
        %v2906 = vmax.f32 %v2778, 0.0
        %v2907 = vmax.f32 %v2779, 0.0
        %v2908 = vmax.f32 %v2780, 0.0
        %v2909 = vmax.f32 %v2781, 0.0
        %v2910 = vmax.f32 %v2782, 0.0
        %v2911 = vmax.f32 %v2783, 0.0
        %v2912 = vmax.f32 %v2784, 0.0
        %v2913 = vmax.f32 %v2785, 0.0
        %v2914 = vmax.f32 %v2786, 0.0
        %v2915 = vmax.f32 %v2787, 0.0
        %v2916 = vmax.f32 %v2788, 0.0
        %v2917 = vmax.f32 %v2789, 0.0
        %v2918 = vmax.f32 %v2790, 0.0
        %v2919 = vmax.f32 %v2791, 0.0
        %v2920 = vmax.f32 %v2792, 0.0
        %v2921 = vmax.f32 %v2793, 0.0
        %v2922 = vmax.f32 %v2794, 0.0
        %v2923 = vmax.f32 %v2795, 0.0
        %v2924 = vmax.f32 %v2796, 0.0
        %v2925 = vmax.f32 %v2797, 0.0
        %v2926 = vmax.f32 %v2798, 0.0
        %v2927 = vmax.f32 %v2799, 0.0
        %v2928 = vmax.f32 %v2800, 0.0
        %v2929 = vmax.f32 %v2801, 0.0
        %v2930 = vmax.f32 %v2802, 0.0
        %v2931 = vmax.f32 %v2803, 0.0
        %v2932 = vmax.f32 %v2804, 0.0
        %v2933 = vmax.f32 %v2805, 0.0
        %v2934 = vmax.f32 %v2806, 0.0
        %v2935 = vmax.f32 %v2807, 0.0
        %v2936 = vmax.f32 %v2808, 0.0
        %v2937 = vmax.f32 %v2809, 0.0
        %v2938 = vmax.f32 %v2810, 0.0
        %v2939 = vmax.f32 %v2811, 0.0
        %v2940 = vmax.f32 %v2812, 0.0
        %v2941 = vmax.f32 %v2813, 0.0
        %v2942 = vmax.f32 %v2814, 0.0
        %v2943 = vmax.f32 %v2815, 0.0
        %v2944 = vmax.f32 %v2816, 0.0
        %v2945 = vmax.f32 %v2817, 0.0
        %v2946 = vmax.f32 %v2818, 0.0
        %v2947 = vmax.f32 %v2819, 0.0
        %v2948 = vmax.f32 %v2820, 0.0
        %v2949 = vmax.f32 %v2821, 0.0
        %v2950 = vmax.f32 %v2822, 0.0
        %v2951 = vmax.f32 %v2823, 0.0
        %v2952 = vmax.f32 %v2824, 0.0
        %v2953 = vmax.f32 %v2825, 0.0
        %v2954 = vmax.f32 %v2826, 0.0
        %v2955 = vmax.f32 %v2827, 0.0
        %v2956 = vmax.f32 %v2828, 0.0
        %v2957 = vmax.f32 %v2829, 0.0
        %v2958 = vmax.f32 %v2830, 0.0
        %v2959 = vmax.f32 %v2831, 0.0
        %v2960 = vmax.f32 %v2832, 0.0
        %v2961 = vmax.f32 %v2833, 0.0
        %v2962 = vmax.f32 %v2834, 0.0
        %v2963 = vmax.f32 %v2835, 0.0
        %v2964 = vmax.f32 %v2836, 0.0
        %v2965 = vmax.f32 %v2837, 0.0
        %v2966 = vmax.f32 %v2838, 0.0
        %v2967 = vmax.f32 %v2839, 0.0
        %v2968 = vmax.f32 %v2840, 0.0
        %v2969 = vmax.f32 %v2841, 0.0
        %v2970 = vmax.f32 %v2842, 0.0
        %v2971 = vmax.f32 %v2843, 0.0
        %v2972 = vmax.f32 %v2844, 0.0
        %v2973 = vmax.f32 %v2845, 0.0
        %v2974 = vmax.f32 %v2846, 0.0
        %v2975 = vmax.f32 %v2847, 0.0
        %v2976 = vmax.f32 %v2848, 0.0
        %v2977 = vmax.f32 %v2849, 0.0
        %v2978 = vmax.f32 %v2850, 0.0
        %v2979 = vmax.f32 %v2851, 0.0
        %v2980 = vmax.f32 %v2852, 0.0
        %v2981 = vmax.f32 %v2853, 0.0
        %v2982 = vpack.c.bf16 %v2855, %v2854
        %v2983 = vpack.c.bf16 %v2857, %v2856
        %v2984 = vpack.c.bf16 %v2859, %v2858
        %v2985 = vpack.c.bf16 %v2861, %v2860
        %v2986 = vpack.c.bf16 %v2863, %v2862
        %v2987 = vpack.c.bf16 %v2865, %v2864
        %v2988 = vpack.c.bf16 %v2867, %v2866
        %v2989 = vpack.c.bf16 %v2869, %v2868
        %v2990 = vpack.c.bf16 %v2871, %v2870
        %v2991 = vpack.c.bf16 %v2873, %v2872
        %v2992 = vpack.c.bf16 %v2875, %v2874
        %v2993 = vpack.c.bf16 %v2877, %v2876
        %v2994 = vpack.c.bf16 %v2879, %v2878
        %v2995 = vpack.c.bf16 %v2881, %v2880
        %v2996 = vpack.c.bf16 %v2883, %v2882
        %v2997 = vpack.c.bf16 %v2885, %v2884
        %v2998 = vpack.c.bf16 %v2887, %v2886
        %v2999 = vpack.c.bf16 %v2889, %v2888
        %v3000 = vpack.c.bf16 %v2891, %v2890
        %v3001 = vpack.c.bf16 %v2893, %v2892
        %v3002 = vpack.c.bf16 %v2895, %v2894
        %v3003 = vpack.c.bf16 %v2897, %v2896
        %v3004 = vpack.c.bf16 %v2899, %v2898
        %v3005 = vpack.c.bf16 %v2901, %v2900
        %v3006 = vpack.c.bf16 %v2903, %v2902
        %v3007 = vpack.c.bf16 %v2905, %v2904
        %v3008 = vpack.c.bf16 %v2907, %v2906
        %v3009 = vpack.c.bf16 %v2909, %v2908
        %v3010 = vpack.c.bf16 %v2911, %v2910
        %v3011 = vpack.c.bf16 %v2913, %v2912
        %v3012 = vpack.c.bf16 %v2915, %v2914
        %v3013 = vpack.c.bf16 %v2917, %v2916
        %v3014 = vpack.c.bf16 %v2919, %v2918
        %v3015 = vpack.c.bf16 %v2921, %v2920
        %v3016 = vpack.c.bf16 %v2923, %v2922
        %v3017 = vpack.c.bf16 %v2925, %v2924
        %v3018 = vpack.c.bf16 %v2927, %v2926
        %v3019 = vpack.c.bf16 %v2929, %v2928
        %v3020 = vpack.c.bf16 %v2931, %v2930
        %v3021 = vpack.c.bf16 %v2933, %v2932
        %v3022 = vpack.c.bf16 %v2935, %v2934
        %v3023 = vpack.c.bf16 %v2937, %v2936
        %v3024 = vpack.c.bf16 %v2939, %v2938
        %v3025 = vpack.c.bf16 %v2941, %v2940
        %v3026 = vpack.c.bf16 %v2943, %v2942
        %v3027 = vpack.c.bf16 %v2945, %v2944
        %v3028 = vpack.c.bf16 %v2947, %v2946
        %v3029 = vpack.c.bf16 %v2949, %v2948
        %v3030 = vpack.c.bf16 %v2951, %v2950
        %v3031 = vpack.c.bf16 %v2953, %v2952
        %v3032 = vpack.c.bf16 %v2955, %v2954
        %v3033 = vpack.c.bf16 %v2957, %v2956
        %v3034 = vpack.c.bf16 %v2959, %v2958
        %v3035 = vpack.c.bf16 %v2961, %v2960
        %v3036 = vpack.c.bf16 %v2963, %v2962
        %v3037 = vpack.c.bf16 %v2965, %v2964
        %v3038 = vpack.c.bf16 %v2967, %v2966
        %v3039 = vpack.c.bf16 %v2969, %v2968
        %v3040 = vpack.c.bf16 %v2971, %v2970
        %v3041 = vpack.c.bf16 %v2973, %v2972
        %v3042 = vpack.c.bf16 %v2975, %v2974
        %v3043 = vpack.c.bf16 %v2977, %v2976
        %v3044 = vpack.c.bf16 %v2979, %v2978
        %v3045 = vpack.c.bf16 %v2981, %v2980
        %v3046 = vld [vmem:[#allocation11] sm:$0xf]
        %v3047 = vld [vmem:[#allocation11 + $0x4] sm:$0xf]
        %v3048 = vld [vmem:[#allocation11 + $0x8] sm:$0xf]
        %v3049 = vld [vmem:[#allocation11 + $0xc] sm:$0xf]
        %v3054 = vunpack.c.l.b16 %v3046
        %v3055 = vunpack.c.l.b16 %v3047
        %v3056 = vunpack.c.l.b16 %v3048
        %v3057 = vunpack.c.l.b16 %v3049
        %v3058 = vpack.c.b16 %v3055, %v3054
        %v3059 = vpack.c.b16 %v3057, %v3056
        %v3063 = vsel %vm508, %v2982, 0
        %v3066 = vsel %vm508, %v2983, 0
        %v3069 = vsel %vm508, %v2984, 0
        %v3072 = vsel %vm508, %v2985, 0
        %v3075 = vsel %vm508, %v2986, 0
        %v3078 = vsel %vm508, %v2987, 0
        %v3081 = vsel %vm508, %v2988, 0
        %v3084 = vsel %vm508, %v2989, 0
        %v3087 = vsel %vm508, %v2990, 0
        %v3090 = vsel %vm508, %v2991, 0
        %v3093 = vsel %vm508, %v2992, 0
        %v3096 = vsel %vm508, %v2993, 0
        %v3099 = vsel %vm508, %v2994, 0
        %v3102 = vsel %vm508, %v2995, 0
        %v3105 = vsel %vm508, %v2996, 0
        %v3108 = vsel %vm508, %v2997, 0
        %v3111 = vsel %vm508, %v2998, 0
        %v3114 = vsel %vm508, %v2999, 0
        %v3117 = vsel %vm508, %v3000, 0
        %v3120 = vsel %vm508, %v3001, 0
        %v3123 = vsel %vm508, %v3002, 0
        %v3126 = vsel %vm508, %v3003, 0
        %v3129 = vsel %vm508, %v3004, 0
        %v3132 = vsel %vm508, %v3005, 0
        %v3135 = vsel %vm508, %v3006, 0
        %v3138 = vsel %vm508, %v3007, 0
        %v3141 = vsel %vm508, %v3008, 0
        %v3144 = vsel %vm508, %v3009, 0
        %v3147 = vsel %vm508, %v3010, 0
        %v3150 = vsel %vm508, %v3011, 0
        %v3153 = vsel %vm508, %v3012, 0
        %v3156 = vsel %vm508, %v3013, 0
        %v3159 = vsel %vm508, %v3014, 0
        %v3162 = vsel %vm508, %v3015, 0
        %v3165 = vsel %vm508, %v3016, 0
        %v3168 = vsel %vm508, %v3017, 0
        %v3171 = vsel %vm508, %v3018, 0
        %v3174 = vsel %vm508, %v3019, 0
        %v3177 = vsel %vm508, %v3020, 0
        %v3180 = vsel %vm508, %v3021, 0
        %v3183 = vsel %vm508, %v3022, 0
        %v3186 = vsel %vm508, %v3023, 0
        %v3189 = vsel %vm508, %v3024, 0
        %v3192 = vsel %vm508, %v3025, 0
        %v3195 = vsel %vm508, %v3026, 0
        %v3198 = vsel %vm508, %v3027, 0
        %v3201 = vsel %vm508, %v3028, 0
        %v3204 = vsel %vm508, %v3029, 0
        %v3207 = vsel %vm508, %v3030, 0
        %v3210 = vsel %vm508, %v3031, 0
        %v3213 = vsel %vm508, %v3032, 0
        %v3216 = vsel %vm508, %v3033, 0
        %v3219 = vsel %vm508, %v3034, 0
        %v3222 = vsel %vm508, %v3035, 0
        %v3225 = vsel %vm508, %v3036, 0
        %v3228 = vsel %vm508, %v3037, 0
        %v3231 = vsel %vm508, %v3038, 0
        %v3234 = vsel %vm508, %v3039, 0
        %v3237 = vsel %vm508, %v3040, 0
        %v3240 = vsel %vm508, %v3041, 0
        %v3243 = vsel %vm508, %v3042, 0
        %v3246 = vsel %vm508, %v3043, 0
        %v3249 = vsel %vm508, %v3044, 0
        %v3252 = vsel %vm508, %v3045, 0
        %3254 = vmatprep.subr.bf16.mxu0 0
        %3255 = vmatpush1.bf16.msra.mxu0 %v3058
        %3256 = vmatprep.subr.bf16.mxu0 0
        %3257 = vmatpush1.bf16.msra.mxu0 %v3059
        %3258 = vmatprep.subr.bf16.mxu0 0
        %3259 = vmatpush1.bf16.msra.mxu0 0
        %3260 = vmatprep.subr.bf16.mxu0 0
        %3261 = vmatpush1.bf16.msra.mxu0 0
        %3262 = vmatprep.subr.bf16.mxu0 0
        %3263 = vmatpush1.bf16.msra.mxu0 0
        %3264 = vmatprep.subr.bf16.mxu0 0
        %3265 = vmatpush1.bf16.msra.mxu0 0
        %3266 = vmatprep.subr.bf16.mxu0 0
        %3267 = vmatpush1.bf16.msra.mxu0 0
        %3268 = vmatprep.subr.bf16.mxu0 0
        %3269 = vmatpush1.bf16.msra.mxu0 0
        %3270 = vmatprep.subr.bf16.mxu0 0
        %3271 = vmatpush1.bf16.msra.mxu0 0
        %3272 = vmatprep.subr.bf16.mxu0 0
        %3273 = vmatpush1.bf16.msra.mxu0 0
        %3274 = vmatprep.subr.bf16.mxu0 0
        %3275 = vmatpush1.bf16.msra.mxu0 0
        %3276 = vmatprep.subr.bf16.mxu0 0
        %3277 = vmatpush1.bf16.msra.mxu0 0
        %3278 = vmatprep.subr.bf16.mxu0 0
        %3279 = vmatpush1.bf16.msra.mxu0 0
        %3280 = vmatprep.subr.bf16.mxu0 0
        %3281 = vmatpush1.bf16.msra.mxu0 0
        %3282 = vmatprep.subr.bf16.mxu0 0
        %3283 = vmatpush1.bf16.msra.mxu0 0
        %3284 = vmatprep.subr.bf16.mxu0 0
        %3285 = vmatpush1.bf16.msra.mxu0 0
        %3286 = vmatprep.mubr.bf16.mxu0 0
        %3287 = vmatmul.mubr.bf16.gmra.mrb[0].mxu0 %v3063
        %v3288 = vpop.f32.mrb[0].mxu0
        %v3289 = vadd.f32 0.0, %v3288
        %v3290 = vpop.f32.mrb[0].mxu0
        %v3291 = vpop.f32.mrb[0].mxu0
        %v3292 = vadd.f32 0.0, %v3291
        %v3293 = vpop.f32.mrb[0].mxu0
        %3294 = vmatprep.mubr.bf16.mxu0 0
        %3295 = vmatmul.mubr.bf16.gmra.mrb[0].mxu0 %v3066
        %v3296 = vpop.f32.mrb[0].mxu0
        %v3297 = vadd.f32 0.0, %v3296
        %v3298 = vpop.f32.mrb[0].mxu0
        %v3299 = vpop.f32.mrb[0].mxu0
        %v3300 = vadd.f32 0.0, %v3299
        %v3301 = vpop.f32.mrb[0].mxu0
        %3302 = vmatprep.mubr.bf16.mxu0 0
        %3303 = vmatmul.mubr.bf16.gmra.mrb[0].mxu0 %v3069
        %v3304 = vpop.f32.mrb[0].mxu0
        %v3305 = vadd.f32 0.0, %v3304
        %v3306 = vpop.f32.mrb[0].mxu0
        %v3307 = vpop.f32.mrb[0].mxu0
        %v3308 = vadd.f32 0.0, %v3307
        %v3309 = vpop.f32.mrb[0].mxu0
        %3310 = vmatprep.mubr.bf16.mxu0 0
        %3311 = vmatmul.mubr.bf16.gmra.mrb[0].mxu0 %v3072
        %v3312 = vpop.f32.mrb[0].mxu0
        %v3313 = vadd.f32 0.0, %v3312
        %v3314 = vpop.f32.mrb[0].mxu0
        %v3315 = vpop.f32.mrb[0].mxu0
        %v3316 = vadd.f32 0.0, %v3315
        %v3317 = vpop.f32.mrb[0].mxu0
        %3318 = vmatprep.mubr.bf16.mxu0 0
        %3319 = vmatmul.mubr.bf16.gmra.mrb[0].mxu0 %v3075
        %v3320 = vpop.f32.mrb[0].mxu0
        %v3321 = vadd.f32 0.0, %v3320
        %v3322 = vpop.f32.mrb[0].mxu0
        %v3323 = vpop.f32.mrb[0].mxu0
        %v3324 = vadd.f32 0.0, %v3323
        %v3325 = vpop.f32.mrb[0].mxu0
        %3326 = vmatprep.mubr.bf16.mxu0 0
        %3327 = vmatmul.mubr.bf16.gmra.mrb[0].mxu0 %v3078
        %v3328 = vpop.f32.mrb[0].mxu0
        %v3329 = vadd.f32 0.0, %v3328
        %v3330 = vpop.f32.mrb[0].mxu0
        %v3331 = vpop.f32.mrb[0].mxu0
        %v3332 = vadd.f32 0.0, %v3331
        %v3333 = vpop.f32.mrb[0].mxu0
        %3334 = vmatprep.mubr.bf16.mxu0 0
        %3335 = vmatmul.mubr.bf16.gmra.mrb[0].mxu0 %v3081
        %v3336 = vpop.f32.mrb[0].mxu0
        %v3337 = vadd.f32 0.0, %v3336
        %v3338 = vpop.f32.mrb[0].mxu0
        %v3339 = vpop.f32.mrb[0].mxu0
        %v3340 = vadd.f32 0.0, %v3339
        %v3341 = vpop.f32.mrb[0].mxu0
        %3342 = vmatprep.mubr.bf16.mxu0 0
        %3343 = vmatmul.mubr.bf16.gmra.mrb[0].mxu0 %v3084
        %v3344 = vpop.f32.mrb[0].mxu0
        %v3345 = vadd.f32 0.0, %v3344
        %v3346 = vpop.f32.mrb[0].mxu0
        %v3347 = vpop.f32.mrb[0].mxu0
        %v3348 = vadd.f32 0.0, %v3347
        %v3349 = vpop.f32.mrb[0].mxu0
        %3350 = vmatprep.mubr.bf16.mxu0 0
        %3351 = vmatmul.mubr.bf16.gmra.mrb[0].mxu0 %v3087
        %v3352 = vpop.f32.mrb[0].mxu0
        %v3353 = vadd.f32 0.0, %v3352
        %v3354 = vpop.f32.mrb[0].mxu0
        %v3355 = vpop.f32.mrb[0].mxu0
        %v3356 = vadd.f32 0.0, %v3355
        %v3357 = vpop.f32.mrb[0].mxu0
        %3358 = vmatprep.mubr.bf16.mxu0 0
        %3359 = vmatmul.mubr.bf16.gmra.mrb[0].mxu0 %v3090
        %v3360 = vpop.f32.mrb[0].mxu0
        %v3361 = vadd.f32 0.0, %v3360
        %v3362 = vpop.f32.mrb[0].mxu0
        %v3363 = vpop.f32.mrb[0].mxu0
        %v3364 = vadd.f32 0.0, %v3363
        %v3365 = vpop.f32.mrb[0].mxu0
        %3366 = vmatprep.mubr.bf16.mxu0 0
        %3367 = vmatmul.mubr.bf16.gmra.mrb[0].mxu0 %v3093
        %v3368 = vpop.f32.mrb[0].mxu0
        %v3369 = vadd.f32 0.0, %v3368
        %v3370 = vpop.f32.mrb[0].mxu0
        %v3371 = vpop.f32.mrb[0].mxu0
        %v3372 = vadd.f32 0.0, %v3371
        %v3373 = vpop.f32.mrb[0].mxu0
        %3374 = vmatprep.mubr.bf16.mxu0 0
        %3375 = vmatmul.mubr.bf16.gmra.mrb[0].mxu0 %v3096
        %v3376 = vpop.f32.mrb[0].mxu0
        %v3377 = vadd.f32 0.0, %v3376
        %v3378 = vpop.f32.mrb[0].mxu0
        %v3379 = vpop.f32.mrb[0].mxu0
        %v3380 = vadd.f32 0.0, %v3379
        %v3381 = vpop.f32.mrb[0].mxu0
        %3382 = vmatprep.mubr.bf16.mxu0 0
        %3383 = vmatmul.mubr.bf16.gmra.mrb[0].mxu0 %v3099
        %v3384 = vpop.f32.mrb[0].mxu0
        %v3385 = vadd.f32 0.0, %v3384
        %v3386 = vpop.f32.mrb[0].mxu0
        %v3387 = vpop.f32.mrb[0].mxu0
        %v3388 = vadd.f32 0.0, %v3387
        %v3389 = vpop.f32.mrb[0].mxu0
        %3390 = vmatprep.mubr.bf16.mxu0 0
        %3391 = vmatmul.mubr.bf16.gmra.mrb[0].mxu0 %v3102
        %v3392 = vpop.f32.mrb[0].mxu0
        %v3393 = vadd.f32 0.0, %v3392
        %v3394 = vpop.f32.mrb[0].mxu0
        %v3395 = vpop.f32.mrb[0].mxu0
        %v3396 = vadd.f32 0.0, %v3395
        %v3397 = vpop.f32.mrb[0].mxu0
        %3398 = vmatprep.mubr.bf16.mxu0 0
        %3399 = vmatmul.mubr.bf16.gmra.mrb[0].mxu0 %v3105
        %v3400 = vpop.f32.mrb[0].mxu0
        %v3401 = vadd.f32 0.0, %v3400
        %v3402 = vpop.f32.mrb[0].mxu0
        %v3403 = vpop.f32.mrb[0].mxu0
        %v3404 = vadd.f32 0.0, %v3403
        %v3405 = vpop.f32.mrb[0].mxu0
        %3406 = vmatprep.mubr.bf16.mxu0 0
        %3407 = vmatmul.mubr.bf16.gmra.mrb[0].mxu0 %v3108
        %v3408 = vpop.f32.mrb[0].mxu0
        %v3409 = vadd.f32 0.0, %v3408
        %v3410 = vpop.f32.mrb[0].mxu0
        %v3411 = vpop.f32.mrb[0].mxu0
        %v3412 = vadd.f32 0.0, %v3411
        %v3413 = vpop.f32.mrb[0].mxu0
        %3414 = vmatprep.mubr.bf16.mxu0 0
        %3415 = vmatmul.mubr.bf16.gmra.mrb[0].mxu0 %v3111
        %v3416 = vpop.f32.mrb[0].mxu0
        %v3417 = vadd.f32 0.0, %v3416
        %v3418 = vpop.f32.mrb[0].mxu0
        %v3419 = vpop.f32.mrb[0].mxu0
        %v3420 = vadd.f32 0.0, %v3419
        %v3421 = vpop.f32.mrb[0].mxu0
        %3422 = vmatprep.mubr.bf16.mxu0 0
        %3423 = vmatmul.mubr.bf16.gmra.mrb[0].mxu0 %v3114
        %v3424 = vpop.f32.mrb[0].mxu0
        %v3425 = vadd.f32 0.0, %v3424
        %v3426 = vpop.f32.mrb[0].mxu0
        %v3427 = vpop.f32.mrb[0].mxu0
        %v3428 = vadd.f32 0.0, %v3427
        %v3429 = vpop.f32.mrb[0].mxu0
        %3430 = vmatprep.mubr.bf16.mxu0 0
        %3431 = vmatmul.mubr.bf16.gmra.mrb[0].mxu0 %v3117
        %v3432 = vpop.f32.mrb[0].mxu0
        %v3433 = vadd.f32 0.0, %v3432
        %v3434 = vpop.f32.mrb[0].mxu0
        %v3435 = vpop.f32.mrb[0].mxu0
        %v3436 = vadd.f32 0.0, %v3435
        %v3437 = vpop.f32.mrb[0].mxu0
        %3438 = vmatprep.mubr.bf16.mxu0 0
        %3439 = vmatmul.mubr.bf16.gmra.mrb[0].mxu0 %v3120
        %v3440 = vpop.f32.mrb[0].mxu0
        %v3441 = vadd.f32 0.0, %v3440
        %v3442 = vpop.f32.mrb[0].mxu0
        %v3443 = vpop.f32.mrb[0].mxu0
        %v3444 = vadd.f32 0.0, %v3443
        %v3445 = vpop.f32.mrb[0].mxu0
        %3446 = vmatprep.mubr.bf16.mxu0 0
        %3447 = vmatmul.mubr.bf16.gmra.mrb[0].mxu0 %v3123
        %v3448 = vpop.f32.mrb[0].mxu0
        %v3449 = vadd.f32 0.0, %v3448
        %v3450 = vpop.f32.mrb[0].mxu0
        %v3451 = vpop.f32.mrb[0].mxu0
        %v3452 = vadd.f32 0.0, %v3451
        %v3453 = vpop.f32.mrb[0].mxu0
        %3454 = vmatprep.mubr.bf16.mxu0 0
        %3455 = vmatmul.mubr.bf16.gmra.mrb[0].mxu0 %v3126
        %v3456 = vpop.f32.mrb[0].mxu0
        %v3457 = vadd.f32 0.0, %v3456
        %v3458 = vpop.f32.mrb[0].mxu0
        %v3459 = vpop.f32.mrb[0].mxu0
        %v3460 = vadd.f32 0.0, %v3459
        %v3461 = vpop.f32.mrb[0].mxu0
        %3462 = vmatprep.mubr.bf16.mxu0 0
        %3463 = vmatmul.mubr.bf16.gmra.mrb[0].mxu0 %v3129
        %v3464 = vpop.f32.mrb[0].mxu0
        %v3465 = vadd.f32 0.0, %v3464
        %v3466 = vpop.f32.mrb[0].mxu0
        %v3467 = vpop.f32.mrb[0].mxu0
        %v3468 = vadd.f32 0.0, %v3467
        %v3469 = vpop.f32.mrb[0].mxu0
        %3470 = vmatprep.mubr.bf16.mxu0 0
        %3471 = vmatmul.mubr.bf16.gmra.mrb[0].mxu0 %v3132
        %v3472 = vpop.f32.mrb[0].mxu0
        %v3473 = vadd.f32 0.0, %v3472
        %v3474 = vpop.f32.mrb[0].mxu0
        %v3475 = vpop.f32.mrb[0].mxu0
        %v3476 = vadd.f32 0.0, %v3475
        %v3477 = vpop.f32.mrb[0].mxu0
        %3478 = vmatprep.mubr.bf16.mxu0 0
        %3479 = vmatmul.mubr.bf16.gmra.mrb[0].mxu0 %v3135
        %v3480 = vpop.f32.mrb[0].mxu0
        %v3481 = vadd.f32 0.0, %v3480
        %v3482 = vpop.f32.mrb[0].mxu0
        %v3483 = vpop.f32.mrb[0].mxu0
        %v3484 = vadd.f32 0.0, %v3483
        %v3485 = vpop.f32.mrb[0].mxu0
        %3486 = vmatprep.mubr.bf16.mxu0 0
        %3487 = vmatmul.mubr.bf16.gmra.mrb[0].mxu0 %v3138
        %v3488 = vpop.f32.mrb[0].mxu0
        %v3489 = vadd.f32 0.0, %v3488
        %v3490 = vpop.f32.mrb[0].mxu0
        %v3491 = vpop.f32.mrb[0].mxu0
        %v3492 = vadd.f32 0.0, %v3491
        %v3493 = vpop.f32.mrb[0].mxu0
        %3494 = vmatprep.mubr.bf16.mxu0 0
        %3495 = vmatmul.mubr.bf16.gmra.mrb[0].mxu0 %v3141
        %v3496 = vpop.f32.mrb[0].mxu0
        %v3497 = vadd.f32 0.0, %v3496
        %v3498 = vpop.f32.mrb[0].mxu0
        %v3499 = vpop.f32.mrb[0].mxu0
        %v3500 = vadd.f32 0.0, %v3499
        %v3501 = vpop.f32.mrb[0].mxu0
        %3502 = vmatprep.mubr.bf16.mxu0 0
        %3503 = vmatmul.mubr.bf16.gmra.mrb[0].mxu0 %v3144
        %v3504 = vpop.f32.mrb[0].mxu0
        %v3505 = vadd.f32 0.0, %v3504
        %v3506 = vpop.f32.mrb[0].mxu0
        %v3507 = vpop.f32.mrb[0].mxu0
        %v3508 = vadd.f32 0.0, %v3507
        %v3509 = vpop.f32.mrb[0].mxu0
        %3510 = vmatprep.mubr.bf16.mxu0 0
        %3511 = vmatmul.mubr.bf16.gmra.mrb[0].mxu0 %v3147
        %v3512 = vpop.f32.mrb[0].mxu0
        %v3513 = vadd.f32 0.0, %v3512
        %v3514 = vpop.f32.mrb[0].mxu0
        %v3515 = vpop.f32.mrb[0].mxu0
        %v3516 = vadd.f32 0.0, %v3515
        %v3517 = vpop.f32.mrb[0].mxu0
        %3518 = vmatprep.mubr.bf16.mxu0 0
        %3519 = vmatmul.mubr.bf16.gmra.mrb[0].mxu0 %v3150
        %v3520 = vpop.f32.mrb[0].mxu0
        %v3521 = vadd.f32 0.0, %v3520
        %v3522 = vpop.f32.mrb[0].mxu0
        %v3523 = vpop.f32.mrb[0].mxu0
        %v3524 = vadd.f32 0.0, %v3523
        %v3525 = vpop.f32.mrb[0].mxu0
        %3526 = vmatprep.mubr.bf16.mxu0 0
        %3527 = vmatmul.mubr.bf16.gmra.mrb[0].mxu0 %v3153
        %v3528 = vpop.f32.mrb[0].mxu0
        %v3529 = vadd.f32 0.0, %v3528
        %v3530 = vpop.f32.mrb[0].mxu0
        %v3531 = vpop.f32.mrb[0].mxu0
        %v3532 = vadd.f32 0.0, %v3531
        %v3533 = vpop.f32.mrb[0].mxu0
        %3534 = vmatprep.mubr.bf16.mxu0 0
        %3535 = vmatmul.mubr.bf16.gmra.mrb[0].mxu0 %v3156
        %v3536 = vpop.f32.mrb[0].mxu0
        %v3537 = vadd.f32 0.0, %v3536
        %v3538 = vpop.f32.mrb[0].mxu0
        %v3539 = vpop.f32.mrb[0].mxu0
        %v3540 = vadd.f32 0.0, %v3539
        %v3541 = vpop.f32.mrb[0].mxu0
        %3542 = vmatprep.mubr.bf16.mxu0 0
        %3543 = vmatmul.mubr.bf16.gmra.mrb[0].mxu0 %v3159
        %v3544 = vpop.f32.mrb[0].mxu0
        %v3545 = vadd.f32 0.0, %v3544
        %v3546 = vpop.f32.mrb[0].mxu0
        %v3547 = vpop.f32.mrb[0].mxu0
        %v3548 = vadd.f32 0.0, %v3547
        %v3549 = vpop.f32.mrb[0].mxu0
        %3550 = vmatprep.mubr.bf16.mxu0 0
        %3551 = vmatmul.mubr.bf16.gmra.mrb[0].mxu0 %v3162
        %v3552 = vpop.f32.mrb[0].mxu0
        %v3553 = vadd.f32 0.0, %v3552
        %v3554 = vpop.f32.mrb[0].mxu0
        %v3555 = vpop.f32.mrb[0].mxu0
        %v3556 = vadd.f32 0.0, %v3555
        %v3557 = vpop.f32.mrb[0].mxu0
        %3558 = vmatprep.mubr.bf16.mxu0 0
        %3559 = vmatmul.mubr.bf16.gmra.mrb[0].mxu0 %v3165
        %v3560 = vpop.f32.mrb[0].mxu0
        %v3561 = vadd.f32 0.0, %v3560
        %v3562 = vpop.f32.mrb[0].mxu0
        %v3563 = vpop.f32.mrb[0].mxu0
        %v3564 = vadd.f32 0.0, %v3563
        %v3565 = vpop.f32.mrb[0].mxu0
        %3566 = vmatprep.mubr.bf16.mxu0 0
        %3567 = vmatmul.mubr.bf16.gmra.mrb[0].mxu0 %v3168
        %v3568 = vpop.f32.mrb[0].mxu0
        %v3569 = vadd.f32 0.0, %v3568
        %v3570 = vpop.f32.mrb[0].mxu0
        %v3571 = vpop.f32.mrb[0].mxu0
        %v3572 = vadd.f32 0.0, %v3571
        %v3573 = vpop.f32.mrb[0].mxu0
        %3574 = vmatprep.mubr.bf16.mxu0 0
        %3575 = vmatmul.mubr.bf16.gmra.mrb[0].mxu0 %v3171
        %v3576 = vpop.f32.mrb[0].mxu0
        %v3577 = vadd.f32 0.0, %v3576
        %v3578 = vpop.f32.mrb[0].mxu0
        %v3579 = vpop.f32.mrb[0].mxu0
        %v3580 = vadd.f32 0.0, %v3579
        %v3581 = vpop.f32.mrb[0].mxu0
        %3582 = vmatprep.mubr.bf16.mxu0 0
        %3583 = vmatmul.mubr.bf16.gmra.mrb[0].mxu0 %v3174
        %v3584 = vpop.f32.mrb[0].mxu0
        %v3585 = vadd.f32 0.0, %v3584
        %v3586 = vpop.f32.mrb[0].mxu0
        %v3587 = vpop.f32.mrb[0].mxu0
        %v3588 = vadd.f32 0.0, %v3587
        %v3589 = vpop.f32.mrb[0].mxu0
        %3590 = vmatprep.mubr.bf16.mxu0 0
        %3591 = vmatmul.mubr.bf16.gmra.mrb[0].mxu0 %v3177
        %v3592 = vpop.f32.mrb[0].mxu0
        %v3593 = vadd.f32 0.0, %v3592
        %v3594 = vpop.f32.mrb[0].mxu0
        %v3595 = vpop.f32.mrb[0].mxu0
        %v3596 = vadd.f32 0.0, %v3595
        %v3597 = vpop.f32.mrb[0].mxu0
        %3598 = vmatprep.mubr.bf16.mxu0 0
        %3599 = vmatmul.mubr.bf16.gmra.mrb[0].mxu0 %v3180
        %v3600 = vpop.f32.mrb[0].mxu0
        %v3601 = vadd.f32 0.0, %v3600
        %v3602 = vpop.f32.mrb[0].mxu0
        %v3603 = vpop.f32.mrb[0].mxu0
        %v3604 = vadd.f32 0.0, %v3603
        %v3605 = vpop.f32.mrb[0].mxu0
        %3606 = vmatprep.mubr.bf16.mxu0 0
        %3607 = vmatmul.mubr.bf16.gmra.mrb[0].mxu0 %v3183
        %v3608 = vpop.f32.mrb[0].mxu0
        %v3609 = vadd.f32 0.0, %v3608
        %v3610 = vpop.f32.mrb[0].mxu0
        %v3611 = vpop.f32.mrb[0].mxu0
        %v3612 = vadd.f32 0.0, %v3611
        %v3613 = vpop.f32.mrb[0].mxu0
        %3614 = vmatprep.mubr.bf16.mxu0 0
        %3615 = vmatmul.mubr.bf16.gmra.mrb[0].mxu0 %v3186
        %v3616 = vpop.f32.mrb[0].mxu0
        %v3617 = vadd.f32 0.0, %v3616
        %v3618 = vpop.f32.mrb[0].mxu0
        %v3619 = vpop.f32.mrb[0].mxu0
        %v3620 = vadd.f32 0.0, %v3619
        %v3621 = vpop.f32.mrb[0].mxu0
        %3622 = vmatprep.mubr.bf16.mxu0 0
        %3623 = vmatmul.mubr.bf16.gmra.mrb[0].mxu0 %v3189
        %v3624 = vpop.f32.mrb[0].mxu0
        %v3625 = vadd.f32 0.0, %v3624
        %v3626 = vpop.f32.mrb[0].mxu0
        %v3627 = vpop.f32.mrb[0].mxu0
        %v3628 = vadd.f32 0.0, %v3627
        %v3629 = vpop.f32.mrb[0].mxu0
        %3630 = vmatprep.mubr.bf16.mxu0 0
        %3631 = vmatmul.mubr.bf16.gmra.mrb[0].mxu0 %v3192
        %v3632 = vpop.f32.mrb[0].mxu0
        %v3633 = vadd.f32 0.0, %v3632
        %v3634 = vpop.f32.mrb[0].mxu0
        %v3635 = vpop.f32.mrb[0].mxu0
        %v3636 = vadd.f32 0.0, %v3635
        %v3637 = vpop.f32.mrb[0].mxu0
        %3638 = vmatprep.mubr.bf16.mxu0 0
        %3639 = vmatmul.mubr.bf16.gmra.mrb[0].mxu0 %v3195
        %v3640 = vpop.f32.mrb[0].mxu0
        %v3641 = vadd.f32 0.0, %v3640
        %v3642 = vpop.f32.mrb[0].mxu0
        %v3643 = vpop.f32.mrb[0].mxu0
        %v3644 = vadd.f32 0.0, %v3643
        %v3645 = vpop.f32.mrb[0].mxu0
        %3646 = vmatprep.mubr.bf16.mxu0 0
        %3647 = vmatmul.mubr.bf16.gmra.mrb[0].mxu0 %v3198
        %v3648 = vpop.f32.mrb[0].mxu0
        %v3649 = vadd.f32 0.0, %v3648
        %v3650 = vpop.f32.mrb[0].mxu0
        %v3651 = vpop.f32.mrb[0].mxu0
        %v3652 = vadd.f32 0.0, %v3651
        %v3653 = vpop.f32.mrb[0].mxu0
        %3654 = vmatprep.mubr.bf16.mxu0 0
        %3655 = vmatmul.mubr.bf16.gmra.mrb[0].mxu0 %v3201
        %v3656 = vpop.f32.mrb[0].mxu0
        %v3657 = vadd.f32 0.0, %v3656
        %v3658 = vpop.f32.mrb[0].mxu0
        %v3659 = vpop.f32.mrb[0].mxu0
        %v3660 = vadd.f32 0.0, %v3659
        %v3661 = vpop.f32.mrb[0].mxu0
        %3662 = vmatprep.mubr.bf16.mxu0 0
        %3663 = vmatmul.mubr.bf16.gmra.mrb[0].mxu0 %v3204
        %v3664 = vpop.f32.mrb[0].mxu0
        %v3665 = vadd.f32 0.0, %v3664
        %v3666 = vpop.f32.mrb[0].mxu0
        %v3667 = vpop.f32.mrb[0].mxu0
        %v3668 = vadd.f32 0.0, %v3667
        %v3669 = vpop.f32.mrb[0].mxu0
        %3670 = vmatprep.mubr.bf16.mxu0 0
        %3671 = vmatmul.mubr.bf16.gmra.mrb[0].mxu0 %v3207
        %v3672 = vpop.f32.mrb[0].mxu0
        %v3673 = vadd.f32 0.0, %v3672
        %v3674 = vpop.f32.mrb[0].mxu0
        %v3675 = vpop.f32.mrb[0].mxu0
        %v3676 = vadd.f32 0.0, %v3675
        %v3677 = vpop.f32.mrb[0].mxu0
        %3678 = vmatprep.mubr.bf16.mxu0 0
        %3679 = vmatmul.mubr.bf16.gmra.mrb[0].mxu0 %v3210
        %v3680 = vpop.f32.mrb[0].mxu0
        %v3681 = vadd.f32 0.0, %v3680
        %v3682 = vpop.f32.mrb[0].mxu0
        %v3683 = vpop.f32.mrb[0].mxu0
        %v3684 = vadd.f32 0.0, %v3683
        %v3685 = vpop.f32.mrb[0].mxu0
        %3686 = vmatprep.mubr.bf16.mxu0 0
        %3687 = vmatmul.mubr.bf16.gmra.mrb[0].mxu0 %v3213
        %v3688 = vpop.f32.mrb[0].mxu0
        %v3689 = vadd.f32 0.0, %v3688
        %v3690 = vpop.f32.mrb[0].mxu0
        %v3691 = vpop.f32.mrb[0].mxu0
        %v3692 = vadd.f32 0.0, %v3691
        %v3693 = vpop.f32.mrb[0].mxu0
        %3694 = vmatprep.mubr.bf16.mxu0 0
        %3695 = vmatmul.mubr.bf16.gmra.mrb[0].mxu0 %v3216
        %v3696 = vpop.f32.mrb[0].mxu0
        %v3697 = vadd.f32 0.0, %v3696
        %v3698 = vpop.f32.mrb[0].mxu0
        %v3699 = vpop.f32.mrb[0].mxu0
        %v3700 = vadd.f32 0.0, %v3699
        %v3701 = vpop.f32.mrb[0].mxu0
        %3702 = vmatprep.mubr.bf16.mxu0 0
        %3703 = vmatmul.mubr.bf16.gmra.mrb[0].mxu0 %v3219
        %v3704 = vpop.f32.mrb[0].mxu0
        %v3705 = vadd.f32 0.0, %v3704
        %v3706 = vpop.f32.mrb[0].mxu0
        %v3707 = vpop.f32.mrb[0].mxu0
        %v3708 = vadd.f32 0.0, %v3707
        %v3709 = vpop.f32.mrb[0].mxu0
        %3710 = vmatprep.mubr.bf16.mxu0 0
        %3711 = vmatmul.mubr.bf16.gmra.mrb[0].mxu0 %v3222
        %v3712 = vpop.f32.mrb[0].mxu0
        %v3713 = vadd.f32 0.0, %v3712
        %v3714 = vpop.f32.mrb[0].mxu0
        %v3715 = vpop.f32.mrb[0].mxu0
        %v3716 = vadd.f32 0.0, %v3715
        %v3717 = vpop.f32.mrb[0].mxu0
        %3718 = vmatprep.mubr.bf16.mxu0 0
        %3719 = vmatmul.mubr.bf16.gmra.mrb[0].mxu0 %v3225
        %v3720 = vpop.f32.mrb[0].mxu0
        %v3721 = vadd.f32 0.0, %v3720
        %v3722 = vpop.f32.mrb[0].mxu0
        %v3723 = vpop.f32.mrb[0].mxu0
        %v3724 = vadd.f32 0.0, %v3723
        %v3725 = vpop.f32.mrb[0].mxu0
        %3726 = vmatprep.mubr.bf16.mxu0 0
        %3727 = vmatmul.mubr.bf16.gmra.mrb[0].mxu0 %v3228
        %v3728 = vpop.f32.mrb[0].mxu0
        %v3729 = vadd.f32 0.0, %v3728
        %v3730 = vpop.f32.mrb[0].mxu0
        %v3731 = vpop.f32.mrb[0].mxu0
        %v3732 = vadd.f32 0.0, %v3731
        %v3733 = vpop.f32.mrb[0].mxu0
        %3734 = vmatprep.mubr.bf16.mxu0 0
        %3735 = vmatmul.mubr.bf16.gmra.mrb[0].mxu0 %v3231
        %v3736 = vpop.f32.mrb[0].mxu0
        %v3737 = vadd.f32 0.0, %v3736
        %v3738 = vpop.f32.mrb[0].mxu0
        %v3739 = vpop.f32.mrb[0].mxu0
        %v3740 = vadd.f32 0.0, %v3739
        %v3741 = vpop.f32.mrb[0].mxu0
        %3742 = vmatprep.mubr.bf16.mxu0 0
        %3743 = vmatmul.mubr.bf16.gmra.mrb[0].mxu0 %v3234
        %v3744 = vpop.f32.mrb[0].mxu0
        %v3745 = vadd.f32 0.0, %v3744
        %v3746 = vpop.f32.mrb[0].mxu0
        %v3747 = vpop.f32.mrb[0].mxu0
        %v3748 = vadd.f32 0.0, %v3747
        %v3749 = vpop.f32.mrb[0].mxu0
        %3750 = vmatprep.mubr.bf16.mxu0 0
        %3751 = vmatmul.mubr.bf16.gmra.mrb[0].mxu0 %v3237
        %v3752 = vpop.f32.mrb[0].mxu0
        %v3753 = vadd.f32 0.0, %v3752
        %v3754 = vpop.f32.mrb[0].mxu0
        %v3755 = vpop.f32.mrb[0].mxu0
        %v3756 = vadd.f32 0.0, %v3755
        %v3757 = vpop.f32.mrb[0].mxu0
        %3758 = vmatprep.mubr.bf16.mxu0 0
        %3759 = vmatmul.mubr.bf16.gmra.mrb[0].mxu0 %v3240
        %v3760 = vpop.f32.mrb[0].mxu0
        %v3761 = vadd.f32 0.0, %v3760
        %v3762 = vpop.f32.mrb[0].mxu0
        %v3763 = vpop.f32.mrb[0].mxu0
        %v3764 = vadd.f32 0.0, %v3763
        %v3765 = vpop.f32.mrb[0].mxu0
        %3766 = vmatprep.mubr.bf16.mxu0 0
        %3767 = vmatmul.mubr.bf16.gmra.mrb[0].mxu0 %v3243
        %v3768 = vpop.f32.mrb[0].mxu0
        %v3769 = vadd.f32 0.0, %v3768
        %v3770 = vpop.f32.mrb[0].mxu0
        %v3771 = vpop.f32.mrb[0].mxu0
        %v3772 = vadd.f32 0.0, %v3771
        %v3773 = vpop.f32.mrb[0].mxu0
        %3774 = vmatprep.mubr.bf16.mxu0 0
        %3775 = vmatmul.mubr.bf16.gmra.mrb[0].mxu0 %v3246
        %v3776 = vpop.f32.mrb[0].mxu0
        %v3777 = vadd.f32 0.0, %v3776
        %v3778 = vpop.f32.mrb[0].mxu0
        %v3779 = vpop.f32.mrb[0].mxu0
        %v3780 = vadd.f32 0.0, %v3779
        %v3781 = vpop.f32.mrb[0].mxu0
        %3782 = vmatprep.mubr.bf16.mxu0 0
        %3783 = vmatmul.mubr.bf16.gmra.mrb[0].mxu0 %v3249
        %v3784 = vpop.f32.mrb[0].mxu0
        %v3785 = vadd.f32 0.0, %v3784
        %v3786 = vpop.f32.mrb[0].mxu0
        %v3787 = vpop.f32.mrb[0].mxu0
        %v3788 = vadd.f32 0.0, %v3787
        %v3789 = vpop.f32.mrb[0].mxu0
        %3790 = vmatprep.mubr.bf16.mxu0 0
        %3791 = vmatmul.mubr.bf16.gmra.mrb[0].mxu0 %v3252
        %v3792 = vpop.f32.mrb[0].mxu0
        %v3793 = vadd.f32 0.0, %v3792
        %v3794 = vpop.f32.mrb[0].mxu0
        %v3795 = vpop.f32.mrb[0].mxu0
        %v3796 = vadd.f32 0.0, %v3795
        %v3797 = vpop.f32.mrb[0].mxu0
        %3798 = vdwg.mxu0
        %v3799 = vlaneseq
        %v3800 = vshrl.u32 %v3799, 7
        %v3801 = vsub.s32 0, %v3800
        %v3802 = vrot.slane %v469, %v3801
        %v3803 = vadd.f32 %v3289, %v3802
        %v3804 = vadd.f32 %v3292, %v3802
        %v3805 = vadd.f32 %v3297, %v3802
        %v3806 = vadd.f32 %v3300, %v3802
        %v3807 = vadd.f32 %v3305, %v3802
        %v3808 = vadd.f32 %v3308, %v3802
        %v3809 = vadd.f32 %v3313, %v3802
        %v3810 = vadd.f32 %v3316, %v3802
        %v3811 = vadd.f32 %v3321, %v3802
        %v3812 = vadd.f32 %v3324, %v3802
        %v3813 = vadd.f32 %v3329, %v3802
        %v3814 = vadd.f32 %v3332, %v3802
        %v3815 = vadd.f32 %v3337, %v3802
        %v3816 = vadd.f32 %v3340, %v3802
        %v3817 = vadd.f32 %v3345, %v3802
        %v3818 = vadd.f32 %v3348, %v3802
        %v3819 = vadd.f32 %v3353, %v3802
        %v3820 = vadd.f32 %v3356, %v3802
        %v3821 = vadd.f32 %v3361, %v3802
        %v3822 = vadd.f32 %v3364, %v3802
        %v3823 = vadd.f32 %v3369, %v3802
        %v3824 = vadd.f32 %v3372, %v3802
        %v3825 = vadd.f32 %v3377, %v3802
        %v3826 = vadd.f32 %v3380, %v3802
        %v3827 = vadd.f32 %v3385, %v3802
        %v3828 = vadd.f32 %v3388, %v3802
        %v3829 = vadd.f32 %v3393, %v3802
        %v3830 = vadd.f32 %v3396, %v3802
        %v3831 = vadd.f32 %v3401, %v3802
        %v3832 = vadd.f32 %v3404, %v3802
        %v3833 = vadd.f32 %v3409, %v3802
        %v3834 = vadd.f32 %v3412, %v3802
        %v3835 = vadd.f32 %v3417, %v3802
        %v3836 = vadd.f32 %v3420, %v3802
        %v3837 = vadd.f32 %v3425, %v3802
        %v3838 = vadd.f32 %v3428, %v3802
        %v3839 = vadd.f32 %v3433, %v3802
        %v3840 = vadd.f32 %v3436, %v3802
        %v3841 = vadd.f32 %v3441, %v3802
        %v3842 = vadd.f32 %v3444, %v3802
        %v3843 = vadd.f32 %v3449, %v3802
        %v3844 = vadd.f32 %v3452, %v3802
        %v3845 = vadd.f32 %v3457, %v3802
        %v3846 = vadd.f32 %v3460, %v3802
        %v3847 = vadd.f32 %v3465, %v3802
        %v3848 = vadd.f32 %v3468, %v3802
        %v3849 = vadd.f32 %v3473, %v3802
        %v3850 = vadd.f32 %v3476, %v3802
        %v3851 = vadd.f32 %v3481, %v3802
        %v3852 = vadd.f32 %v3484, %v3802
        %v3853 = vadd.f32 %v3489, %v3802
        %v3854 = vadd.f32 %v3492, %v3802
        %v3855 = vadd.f32 %v3497, %v3802
        %v3856 = vadd.f32 %v3500, %v3802
        %v3857 = vadd.f32 %v3505, %v3802
        %v3858 = vadd.f32 %v3508, %v3802
        %v3859 = vadd.f32 %v3513, %v3802
        %v3860 = vadd.f32 %v3516, %v3802
        %v3861 = vadd.f32 %v3521, %v3802
        %v3862 = vadd.f32 %v3524, %v3802
        %v3863 = vadd.f32 %v3529, %v3802
        %v3864 = vadd.f32 %v3532, %v3802
        %v3865 = vadd.f32 %v3537, %v3802
        %v3866 = vadd.f32 %v3540, %v3802
        %v3867 = vadd.f32 %v3545, %v3802
        %v3868 = vadd.f32 %v3548, %v3802
        %v3869 = vadd.f32 %v3553, %v3802
        %v3870 = vadd.f32 %v3556, %v3802
        %v3871 = vadd.f32 %v3561, %v3802
        %v3872 = vadd.f32 %v3564, %v3802
        %v3873 = vadd.f32 %v3569, %v3802
        %v3874 = vadd.f32 %v3572, %v3802
        %v3875 = vadd.f32 %v3577, %v3802
        %v3876 = vadd.f32 %v3580, %v3802
        %v3877 = vadd.f32 %v3585, %v3802
        %v3878 = vadd.f32 %v3588, %v3802
        %v3879 = vadd.f32 %v3593, %v3802
        %v3880 = vadd.f32 %v3596, %v3802
        %v3881 = vadd.f32 %v3601, %v3802
        %v3882 = vadd.f32 %v3604, %v3802
        %v3883 = vadd.f32 %v3609, %v3802
        %v3884 = vadd.f32 %v3612, %v3802
        %v3885 = vadd.f32 %v3617, %v3802
        %v3886 = vadd.f32 %v3620, %v3802
        %v3887 = vadd.f32 %v3625, %v3802
        %v3888 = vadd.f32 %v3628, %v3802
        %v3889 = vadd.f32 %v3633, %v3802
        %v3890 = vadd.f32 %v3636, %v3802
        %v3891 = vadd.f32 %v3641, %v3802
        %v3892 = vadd.f32 %v3644, %v3802
        %v3893 = vadd.f32 %v3649, %v3802
        %v3894 = vadd.f32 %v3652, %v3802
        %v3895 = vadd.f32 %v3657, %v3802
        %v3896 = vadd.f32 %v3660, %v3802
        %v3897 = vadd.f32 %v3665, %v3802
        %v3898 = vadd.f32 %v3668, %v3802
        %v3899 = vadd.f32 %v3673, %v3802
        %v3900 = vadd.f32 %v3676, %v3802
        %v3901 = vadd.f32 %v3681, %v3802
        %v3902 = vadd.f32 %v3684, %v3802
        %v3903 = vadd.f32 %v3689, %v3802
        %v3904 = vadd.f32 %v3692, %v3802
        %v3905 = vadd.f32 %v3697, %v3802
        %v3906 = vadd.f32 %v3700, %v3802
        %v3907 = vadd.f32 %v3705, %v3802
        %v3908 = vadd.f32 %v3708, %v3802
        %v3909 = vadd.f32 %v3713, %v3802
        %v3910 = vadd.f32 %v3716, %v3802
        %v3911 = vadd.f32 %v3721, %v3802
        %v3912 = vadd.f32 %v3724, %v3802
        %v3913 = vadd.f32 %v3729, %v3802
        %v3914 = vadd.f32 %v3732, %v3802
        %v3915 = vadd.f32 %v3737, %v3802
        %v3916 = vadd.f32 %v3740, %v3802
        %v3917 = vadd.f32 %v3745, %v3802
        %v3918 = vadd.f32 %v3748, %v3802
        %v3919 = vadd.f32 %v3753, %v3802
        %v3920 = vadd.f32 %v3756, %v3802
        %v3921 = vadd.f32 %v3761, %v3802
        %v3922 = vadd.f32 %v3764, %v3802
        %v3923 = vadd.f32 %v3769, %v3802
        %v3924 = vadd.f32 %v3772, %v3802
        %v3925 = vadd.f32 %v3777, %v3802
        %v3926 = vadd.f32 %v3780, %v3802
        %v3927 = vadd.f32 %v3785, %v3802
        %v3928 = vadd.f32 %v3788, %v3802
        %v3929 = vadd.f32 %v3793, %v3802
        %v3930 = vadd.f32 %v3796, %v3802
        %v3931 = vsel %vm508, %v3803, 0.0
        %3932 = vadd.xlane.f32.xlu0 %v3931
        %v3933 = vpop.xlane.xlu0 %3932
        %v3934 = vsel %vm508, %v3804, 0.0
        %3935 = vadd.xlane.f32.xlu0 %v3934
        %v3936 = vpop.xlane.xlu0 %3935
        %v3937 = vsel %vm508, %v3805, 0.0
        %3938 = vadd.xlane.f32.xlu0 %v3937
        %v3939 = vpop.xlane.xlu0 %3938
        %v3940 = vsel %vm508, %v3806, 0.0
        %3941 = vadd.xlane.f32.xlu0 %v3940
        %v3942 = vpop.xlane.xlu0 %3941
        %v3943 = vsel %vm508, %v3807, 0.0
        %3944 = vadd.xlane.f32.xlu0 %v3943
        %v3945 = vpop.xlane.xlu0 %3944
        %v3946 = vsel %vm508, %v3808, 0.0
        %3947 = vadd.xlane.f32.xlu0 %v3946
        %v3948 = vpop.xlane.xlu0 %3947
        %v3949 = vsel %vm508, %v3809, 0.0
        %3950 = vadd.xlane.f32.xlu0 %v3949
        %v3951 = vpop.xlane.xlu0 %3950
        %v3952 = vsel %vm508, %v3810, 0.0
        %3953 = vadd.xlane.f32.xlu0 %v3952
        %v3954 = vpop.xlane.xlu0 %3953
        %v3955 = vsel %vm508, %v3811, 0.0
        %3956 = vadd.xlane.f32.xlu0 %v3955
        %v3957 = vpop.xlane.xlu0 %3956
        %v3958 = vsel %vm508, %v3812, 0.0
        %3959 = vadd.xlane.f32.xlu0 %v3958
        %v3960 = vpop.xlane.xlu0 %3959
        %v3961 = vsel %vm508, %v3813, 0.0
        %3962 = vadd.xlane.f32.xlu0 %v3961
        %v3963 = vpop.xlane.xlu0 %3962
        %v3964 = vsel %vm508, %v3814, 0.0
        %3965 = vadd.xlane.f32.xlu0 %v3964
        %v3966 = vpop.xlane.xlu0 %3965
        %v3967 = vsel %vm508, %v3815, 0.0
        %3968 = vadd.xlane.f32.xlu0 %v3967
        %v3969 = vpop.xlane.xlu0 %3968
        %v3970 = vsel %vm508, %v3816, 0.0
        %3971 = vadd.xlane.f32.xlu0 %v3970
        %v3972 = vpop.xlane.xlu0 %3971
        %v3973 = vsel %vm508, %v3817, 0.0
        %3974 = vadd.xlane.f32.xlu0 %v3973
        %v3975 = vpop.xlane.xlu0 %3974
        %v3976 = vsel %vm508, %v3818, 0.0
        %3977 = vadd.xlane.f32.xlu0 %v3976
        %v3978 = vpop.xlane.xlu0 %3977
        %v3979 = vsel %vm508, %v3819, 0.0
        %3980 = vadd.xlane.f32.xlu0 %v3979
        %v3981 = vpop.xlane.xlu0 %3980
        %v3982 = vsel %vm508, %v3820, 0.0
        %3983 = vadd.xlane.f32.xlu0 %v3982
        %v3984 = vpop.xlane.xlu0 %3983
        %v3985 = vsel %vm508, %v3821, 0.0
        %3986 = vadd.xlane.f32.xlu0 %v3985
        %v3987 = vpop.xlane.xlu0 %3986
        %v3988 = vsel %vm508, %v3822, 0.0
        %3989 = vadd.xlane.f32.xlu0 %v3988
        %v3990 = vpop.xlane.xlu0 %3989
        %v3991 = vsel %vm508, %v3823, 0.0
        %3992 = vadd.xlane.f32.xlu0 %v3991
        %v3993 = vpop.xlane.xlu0 %3992
        %v3994 = vsel %vm508, %v3824, 0.0
        %3995 = vadd.xlane.f32.xlu0 %v3994
        %v3996 = vpop.xlane.xlu0 %3995
        %v3997 = vsel %vm508, %v3825, 0.0
        %3998 = vadd.xlane.f32.xlu0 %v3997
        %v3999 = vpop.xlane.xlu0 %3998
        %v4000 = vsel %vm508, %v3826, 0.0
        %4001 = vadd.xlane.f32.xlu0 %v4000
        %v4002 = vpop.xlane.xlu0 %4001
        %v4003 = vsel %vm508, %v3827, 0.0
        %4004 = vadd.xlane.f32.xlu0 %v4003
        %v4005 = vpop.xlane.xlu0 %4004
        %v4006 = vsel %vm508, %v3828, 0.0
        %4007 = vadd.xlane.f32.xlu0 %v4006
        %v4008 = vpop.xlane.xlu0 %4007
        %v4009 = vsel %vm508, %v3829, 0.0
        %4010 = vadd.xlane.f32.xlu0 %v4009
        %v4011 = vpop.xlane.xlu0 %4010
        %v4012 = vsel %vm508, %v3830, 0.0
        %4013 = vadd.xlane.f32.xlu0 %v4012
        %v4014 = vpop.xlane.xlu0 %4013
        %v4015 = vsel %vm508, %v3831, 0.0
        %4016 = vadd.xlane.f32.xlu0 %v4015
        %v4017 = vpop.xlane.xlu0 %4016
        %v4018 = vsel %vm508, %v3832, 0.0
        %4019 = vadd.xlane.f32.xlu0 %v4018
        %v4020 = vpop.xlane.xlu0 %4019
        %v4021 = vsel %vm508, %v3833, 0.0
        %4022 = vadd.xlane.f32.xlu0 %v4021
        %v4023 = vpop.xlane.xlu0 %4022
        %v4024 = vsel %vm508, %v3834, 0.0
        %4025 = vadd.xlane.f32.xlu0 %v4024
        %v4026 = vpop.xlane.xlu0 %4025
        %v4027 = vsel %vm508, %v3835, 0.0
        %4028 = vadd.xlane.f32.xlu0 %v4027
        %v4029 = vpop.xlane.xlu0 %4028
        %v4030 = vsel %vm508, %v3836, 0.0
        %4031 = vadd.xlane.f32.xlu0 %v4030
        %v4032 = vpop.xlane.xlu0 %4031
        %v4033 = vsel %vm508, %v3837, 0.0
        %4034 = vadd.xlane.f32.xlu0 %v4033
        %v4035 = vpop.xlane.xlu0 %4034
        %v4036 = vsel %vm508, %v3838, 0.0
        %4037 = vadd.xlane.f32.xlu0 %v4036
        %v4038 = vpop.xlane.xlu0 %4037
        %v4039 = vsel %vm508, %v3839, 0.0
        %4040 = vadd.xlane.f32.xlu0 %v4039
        %v4041 = vpop.xlane.xlu0 %4040
        %v4042 = vsel %vm508, %v3840, 0.0
        %4043 = vadd.xlane.f32.xlu0 %v4042
        %v4044 = vpop.xlane.xlu0 %4043
        %v4045 = vsel %vm508, %v3841, 0.0
        %4046 = vadd.xlane.f32.xlu0 %v4045
        %v4047 = vpop.xlane.xlu0 %4046
        %v4048 = vsel %vm508, %v3842, 0.0
        %4049 = vadd.xlane.f32.xlu0 %v4048
        %v4050 = vpop.xlane.xlu0 %4049
        %v4051 = vsel %vm508, %v3843, 0.0
        %4052 = vadd.xlane.f32.xlu0 %v4051
        %v4053 = vpop.xlane.xlu0 %4052
        %v4054 = vsel %vm508, %v3844, 0.0
        %4055 = vadd.xlane.f32.xlu0 %v4054
        %v4056 = vpop.xlane.xlu0 %4055
        %v4057 = vsel %vm508, %v3845, 0.0
        %4058 = vadd.xlane.f32.xlu0 %v4057
        %v4059 = vpop.xlane.xlu0 %4058
        %v4060 = vsel %vm508, %v3846, 0.0
        %4061 = vadd.xlane.f32.xlu0 %v4060
        %v4062 = vpop.xlane.xlu0 %4061
        %v4063 = vsel %vm508, %v3847, 0.0
        %4064 = vadd.xlane.f32.xlu0 %v4063
        %v4065 = vpop.xlane.xlu0 %4064
        %v4066 = vsel %vm508, %v3848, 0.0
        %4067 = vadd.xlane.f32.xlu0 %v4066
        %v4068 = vpop.xlane.xlu0 %4067
        %v4069 = vsel %vm508, %v3849, 0.0
        %4070 = vadd.xlane.f32.xlu0 %v4069
        %v4071 = vpop.xlane.xlu0 %4070
        %v4072 = vsel %vm508, %v3850, 0.0
        %4073 = vadd.xlane.f32.xlu0 %v4072
        %v4074 = vpop.xlane.xlu0 %4073
        %v4075 = vsel %vm508, %v3851, 0.0
        %4076 = vadd.xlane.f32.xlu0 %v4075
        %v4077 = vpop.xlane.xlu0 %4076
        %v4078 = vsel %vm508, %v3852, 0.0
        %4079 = vadd.xlane.f32.xlu0 %v4078
        %v4080 = vpop.xlane.xlu0 %4079
        %v4081 = vsel %vm508, %v3853, 0.0
        %4082 = vadd.xlane.f32.xlu0 %v4081
        %v4083 = vpop.xlane.xlu0 %4082
        %v4084 = vsel %vm508, %v3854, 0.0
        %4085 = vadd.xlane.f32.xlu0 %v4084
        %v4086 = vpop.xlane.xlu0 %4085
        %v4087 = vsel %vm508, %v3855, 0.0
        %4088 = vadd.xlane.f32.xlu0 %v4087
        %v4089 = vpop.xlane.xlu0 %4088
        %v4090 = vsel %vm508, %v3856, 0.0
        %4091 = vadd.xlane.f32.xlu0 %v4090
        %v4092 = vpop.xlane.xlu0 %4091
        %v4093 = vsel %vm508, %v3857, 0.0
        %4094 = vadd.xlane.f32.xlu0 %v4093
        %v4095 = vpop.xlane.xlu0 %4094
        %v4096 = vsel %vm508, %v3858, 0.0
        %4097 = vadd.xlane.f32.xlu0 %v4096
        %v4098 = vpop.xlane.xlu0 %4097
        %v4099 = vsel %vm508, %v3859, 0.0
        %4100 = vadd.xlane.f32.xlu0 %v4099
        %v4101 = vpop.xlane.xlu0 %4100
        %v4102 = vsel %vm508, %v3860, 0.0
        %4103 = vadd.xlane.f32.xlu0 %v4102
        %v4104 = vpop.xlane.xlu0 %4103
        %v4105 = vsel %vm508, %v3861, 0.0
        %4106 = vadd.xlane.f32.xlu0 %v4105
        %v4107 = vpop.xlane.xlu0 %4106
        %v4108 = vsel %vm508, %v3862, 0.0
        %4109 = vadd.xlane.f32.xlu0 %v4108
        %v4110 = vpop.xlane.xlu0 %4109
        %v4111 = vsel %vm508, %v3863, 0.0
        %4112 = vadd.xlane.f32.xlu0 %v4111
        %v4113 = vpop.xlane.xlu0 %4112
        %v4114 = vsel %vm508, %v3864, 0.0
        %4115 = vadd.xlane.f32.xlu0 %v4114
        %v4116 = vpop.xlane.xlu0 %4115
        %v4117 = vsel %vm508, %v3865, 0.0
        %4118 = vadd.xlane.f32.xlu0 %v4117
        %v4119 = vpop.xlane.xlu0 %4118
        %v4120 = vsel %vm508, %v3866, 0.0
        %4121 = vadd.xlane.f32.xlu0 %v4120
        %v4122 = vpop.xlane.xlu0 %4121
        %v4123 = vsel %vm508, %v3867, 0.0
        %4124 = vadd.xlane.f32.xlu0 %v4123
        %v4125 = vpop.xlane.xlu0 %4124
        %v4126 = vsel %vm508, %v3868, 0.0
        %4127 = vadd.xlane.f32.xlu0 %v4126
        %v4128 = vpop.xlane.xlu0 %4127
        %v4129 = vsel %vm508, %v3869, 0.0
        %4130 = vadd.xlane.f32.xlu0 %v4129
        %v4131 = vpop.xlane.xlu0 %4130
        %v4132 = vsel %vm508, %v3870, 0.0
        %4133 = vadd.xlane.f32.xlu0 %v4132
        %v4134 = vpop.xlane.xlu0 %4133
        %v4135 = vsel %vm508, %v3871, 0.0
        %4136 = vadd.xlane.f32.xlu0 %v4135
        %v4137 = vpop.xlane.xlu0 %4136
        %v4138 = vsel %vm508, %v3872, 0.0
        %4139 = vadd.xlane.f32.xlu0 %v4138
        %v4140 = vpop.xlane.xlu0 %4139
        %v4141 = vsel %vm508, %v3873, 0.0
        %4142 = vadd.xlane.f32.xlu0 %v4141
        %v4143 = vpop.xlane.xlu0 %4142
        %v4144 = vsel %vm508, %v3874, 0.0
        %4145 = vadd.xlane.f32.xlu0 %v4144
        %v4146 = vpop.xlane.xlu0 %4145
        %v4147 = vsel %vm508, %v3875, 0.0
        %4148 = vadd.xlane.f32.xlu0 %v4147
        %v4149 = vpop.xlane.xlu0 %4148
        %v4150 = vsel %vm508, %v3876, 0.0
        %4151 = vadd.xlane.f32.xlu0 %v4150
        %v4152 = vpop.xlane.xlu0 %4151
        %v4153 = vsel %vm508, %v3877, 0.0
        %4154 = vadd.xlane.f32.xlu0 %v4153
        %v4155 = vpop.xlane.xlu0 %4154
        %v4156 = vsel %vm508, %v3878, 0.0
        %4157 = vadd.xlane.f32.xlu0 %v4156
        %v4158 = vpop.xlane.xlu0 %4157
        %v4159 = vsel %vm508, %v3879, 0.0
        %4160 = vadd.xlane.f32.xlu0 %v4159
        %v4161 = vpop.xlane.xlu0 %4160
        %v4162 = vsel %vm508, %v3880, 0.0
        %4163 = vadd.xlane.f32.xlu0 %v4162
        %v4164 = vpop.xlane.xlu0 %4163
        %v4165 = vsel %vm508, %v3881, 0.0
        %4166 = vadd.xlane.f32.xlu0 %v4165
        %v4167 = vpop.xlane.xlu0 %4166
        %v4168 = vsel %vm508, %v3882, 0.0
        %4169 = vadd.xlane.f32.xlu0 %v4168
        %v4170 = vpop.xlane.xlu0 %4169
        %v4171 = vsel %vm508, %v3883, 0.0
        %4172 = vadd.xlane.f32.xlu0 %v4171
        %v4173 = vpop.xlane.xlu0 %4172
        %v4174 = vsel %vm508, %v3884, 0.0
        %4175 = vadd.xlane.f32.xlu0 %v4174
        %v4176 = vpop.xlane.xlu0 %4175
        %v4177 = vsel %vm508, %v3885, 0.0
        %4178 = vadd.xlane.f32.xlu0 %v4177
        %v4179 = vpop.xlane.xlu0 %4178
        %v4180 = vsel %vm508, %v3886, 0.0
        %4181 = vadd.xlane.f32.xlu0 %v4180
        %v4182 = vpop.xlane.xlu0 %4181
        %v4183 = vsel %vm508, %v3887, 0.0
        %4184 = vadd.xlane.f32.xlu0 %v4183
        %v4185 = vpop.xlane.xlu0 %4184
        %v4186 = vsel %vm508, %v3888, 0.0
        %4187 = vadd.xlane.f32.xlu0 %v4186
        %v4188 = vpop.xlane.xlu0 %4187
        %v4189 = vsel %vm508, %v3889, 0.0
        %4190 = vadd.xlane.f32.xlu0 %v4189
        %v4191 = vpop.xlane.xlu0 %4190
        %v4192 = vsel %vm508, %v3890, 0.0
        %4193 = vadd.xlane.f32.xlu0 %v4192
        %v4194 = vpop.xlane.xlu0 %4193
        %v4195 = vsel %vm508, %v3891, 0.0
        %4196 = vadd.xlane.f32.xlu0 %v4195
        %v4197 = vpop.xlane.xlu0 %4196
        %v4198 = vsel %vm508, %v3892, 0.0
        %4199 = vadd.xlane.f32.xlu0 %v4198
        %v4200 = vpop.xlane.xlu0 %4199
        %v4201 = vsel %vm508, %v3893, 0.0
        %4202 = vadd.xlane.f32.xlu0 %v4201
        %v4203 = vpop.xlane.xlu0 %4202
        %v4204 = vsel %vm508, %v3894, 0.0
        %4205 = vadd.xlane.f32.xlu0 %v4204
        %v4206 = vpop.xlane.xlu0 %4205
        %v4207 = vsel %vm508, %v3895, 0.0
        %4208 = vadd.xlane.f32.xlu0 %v4207
        %v4209 = vpop.xlane.xlu0 %4208
        %v4210 = vsel %vm508, %v3896, 0.0
        %4211 = vadd.xlane.f32.xlu0 %v4210
        %v4212 = vpop.xlane.xlu0 %4211
        %v4213 = vsel %vm508, %v3897, 0.0
        %4214 = vadd.xlane.f32.xlu0 %v4213
        %v4215 = vpop.xlane.xlu0 %4214
        %v4216 = vsel %vm508, %v3898, 0.0
        %4217 = vadd.xlane.f32.xlu0 %v4216
        %v4218 = vpop.xlane.xlu0 %4217
        %v4219 = vsel %vm508, %v3899, 0.0
        %4220 = vadd.xlane.f32.xlu0 %v4219
        %v4221 = vpop.xlane.xlu0 %4220
        %v4222 = vsel %vm508, %v3900, 0.0
        %4223 = vadd.xlane.f32.xlu0 %v4222
        %v4224 = vpop.xlane.xlu0 %4223
        %v4225 = vsel %vm508, %v3901, 0.0
        %4226 = vadd.xlane.f32.xlu0 %v4225
        %v4227 = vpop.xlane.xlu0 %4226
        %v4228 = vsel %vm508, %v3902, 0.0
        %4229 = vadd.xlane.f32.xlu0 %v4228
        %v4230 = vpop.xlane.xlu0 %4229
        %v4231 = vsel %vm508, %v3903, 0.0
        %4232 = vadd.xlane.f32.xlu0 %v4231
        %v4233 = vpop.xlane.xlu0 %4232
        %v4234 = vsel %vm508, %v3904, 0.0
        %4235 = vadd.xlane.f32.xlu0 %v4234
        %v4236 = vpop.xlane.xlu0 %4235
        %v4237 = vsel %vm508, %v3905, 0.0
        %4238 = vadd.xlane.f32.xlu0 %v4237
        %v4239 = vpop.xlane.xlu0 %4238
        %v4240 = vsel %vm508, %v3906, 0.0
        %4241 = vadd.xlane.f32.xlu0 %v4240
        %v4242 = vpop.xlane.xlu0 %4241
        %v4243 = vsel %vm508, %v3907, 0.0
        %4244 = vadd.xlane.f32.xlu0 %v4243
        %v4245 = vpop.xlane.xlu0 %4244
        %v4246 = vsel %vm508, %v3908, 0.0
        %4247 = vadd.xlane.f32.xlu0 %v4246
        %v4248 = vpop.xlane.xlu0 %4247
        %v4249 = vsel %vm508, %v3909, 0.0
        %4250 = vadd.xlane.f32.xlu0 %v4249
        %v4251 = vpop.xlane.xlu0 %4250
        %v4252 = vsel %vm508, %v3910, 0.0
        %4253 = vadd.xlane.f32.xlu0 %v4252
        %v4254 = vpop.xlane.xlu0 %4253
        %v4255 = vsel %vm508, %v3911, 0.0
        %4256 = vadd.xlane.f32.xlu0 %v4255
        %v4257 = vpop.xlane.xlu0 %4256
        %v4258 = vsel %vm508, %v3912, 0.0
        %4259 = vadd.xlane.f32.xlu0 %v4258
        %v4260 = vpop.xlane.xlu0 %4259
        %v4261 = vsel %vm508, %v3913, 0.0
        %4262 = vadd.xlane.f32.xlu0 %v4261
        %v4263 = vpop.xlane.xlu0 %4262
        %v4264 = vsel %vm508, %v3914, 0.0
        %4265 = vadd.xlane.f32.xlu0 %v4264
        %v4266 = vpop.xlane.xlu0 %4265
        %v4267 = vsel %vm508, %v3915, 0.0
        %4268 = vadd.xlane.f32.xlu0 %v4267
        %v4269 = vpop.xlane.xlu0 %4268
        %v4270 = vsel %vm508, %v3916, 0.0
        %4271 = vadd.xlane.f32.xlu0 %v4270
        %v4272 = vpop.xlane.xlu0 %4271
        %v4273 = vsel %vm508, %v3917, 0.0
        %4274 = vadd.xlane.f32.xlu0 %v4273
        %v4275 = vpop.xlane.xlu0 %4274
        %v4276 = vsel %vm508, %v3918, 0.0
        %4277 = vadd.xlane.f32.xlu0 %v4276
        %v4278 = vpop.xlane.xlu0 %4277
        %v4279 = vsel %vm508, %v3919, 0.0
        %4280 = vadd.xlane.f32.xlu0 %v4279
        %v4281 = vpop.xlane.xlu0 %4280
        %v4282 = vsel %vm508, %v3920, 0.0
        %4283 = vadd.xlane.f32.xlu0 %v4282
        %v4284 = vpop.xlane.xlu0 %4283
        %v4285 = vsel %vm508, %v3921, 0.0
        %4286 = vadd.xlane.f32.xlu0 %v4285
        %v4287 = vpop.xlane.xlu0 %4286
        %v4288 = vsel %vm508, %v3922, 0.0
        %4289 = vadd.xlane.f32.xlu0 %v4288
        %v4290 = vpop.xlane.xlu0 %4289
        %v4291 = vsel %vm508, %v3923, 0.0
        %4292 = vadd.xlane.f32.xlu0 %v4291
        %v4293 = vpop.xlane.xlu0 %4292
        %v4294 = vsel %vm508, %v3924, 0.0
        %4295 = vadd.xlane.f32.xlu0 %v4294
        %v4296 = vpop.xlane.xlu0 %4295
        %v4297 = vsel %vm508, %v3925, 0.0
        %4298 = vadd.xlane.f32.xlu0 %v4297
        %v4299 = vpop.xlane.xlu0 %4298
        %v4300 = vsel %vm508, %v3926, 0.0
        %4301 = vadd.xlane.f32.xlu0 %v4300
        %v4302 = vpop.xlane.xlu0 %4301
        %v4303 = vsel %vm508, %v3927, 0.0
        %4304 = vadd.xlane.f32.xlu0 %v4303
        %v4305 = vpop.xlane.xlu0 %4304
        %v4306 = vsel %vm508, %v3928, 0.0
        %4307 = vadd.xlane.f32.xlu0 %v4306
        %v4308 = vpop.xlane.xlu0 %4307
        %v4309 = vsel %vm508, %v3929, 0.0
        %4310 = vadd.xlane.f32.xlu0 %v4309
        %v4311 = vpop.xlane.xlu0 %4310
        %v4312 = vsel %vm508, %v3930, 0.0
        %4313 = vadd.xlane.f32.xlu0 %v4312
        %v4314 = vpop.xlane.xlu0 %4313
        %v4315 = vmul.f32 %v3933, 0.03125
        %v4316 = vmul.f32 %v3936, 0.03125
        %v4317 = vmul.f32 %v3939, 0.03125
        %v4318 = vmul.f32 %v3942, 0.03125
        %v4319 = vmul.f32 %v3945, 0.03125
        %v4320 = vmul.f32 %v3948, 0.03125
        %v4321 = vmul.f32 %v3951, 0.03125
        %v4322 = vmul.f32 %v3954, 0.03125
        %v4323 = vmul.f32 %v3957, 0.03125
        %v4324 = vmul.f32 %v3960, 0.03125
        %v4325 = vmul.f32 %v3963, 0.03125
        %v4326 = vmul.f32 %v3966, 0.03125
        %v4327 = vmul.f32 %v3969, 0.03125
        %v4328 = vmul.f32 %v3972, 0.03125
        %v4329 = vmul.f32 %v3975, 0.03125
        %v4330 = vmul.f32 %v3978, 0.03125
        %v4331 = vmul.f32 %v3981, 0.03125
        %v4332 = vmul.f32 %v3984, 0.03125
        %v4333 = vmul.f32 %v3987, 0.03125
        %v4334 = vmul.f32 %v3990, 0.03125
        %v4335 = vmul.f32 %v3993, 0.03125
        %v4336 = vmul.f32 %v3996, 0.03125
        %v4337 = vmul.f32 %v3999, 0.03125
        %v4338 = vmul.f32 %v4002, 0.03125
        %v4339 = vmul.f32 %v4005, 0.03125
        %v4340 = vmul.f32 %v4008, 0.03125
        %v4341 = vmul.f32 %v4011, 0.03125
        %v4342 = vmul.f32 %v4014, 0.03125
        %v4343 = vmul.f32 %v4017, 0.03125
        %v4344 = vmul.f32 %v4020, 0.03125
        %v4345 = vmul.f32 %v4023, 0.03125
        %v4346 = vmul.f32 %v4026, 0.03125
        %v4347 = vmul.f32 %v4029, 0.03125
        %v4348 = vmul.f32 %v4032, 0.03125
        %v4349 = vmul.f32 %v4035, 0.03125
        %v4350 = vmul.f32 %v4038, 0.03125
        %v4351 = vmul.f32 %v4041, 0.03125
        %v4352 = vmul.f32 %v4044, 0.03125
        %v4353 = vmul.f32 %v4047, 0.03125
        %v4354 = vmul.f32 %v4050, 0.03125
        %v4355 = vmul.f32 %v4053, 0.03125
        %v4356 = vmul.f32 %v4056, 0.03125
        %v4357 = vmul.f32 %v4059, 0.03125
        %v4358 = vmul.f32 %v4062, 0.03125
        %v4359 = vmul.f32 %v4065, 0.03125
        %v4360 = vmul.f32 %v4068, 0.03125
        %v4361 = vmul.f32 %v4071, 0.03125
        %v4362 = vmul.f32 %v4074, 0.03125
        %v4363 = vmul.f32 %v4077, 0.03125
        %v4364 = vmul.f32 %v4080, 0.03125
        %v4365 = vmul.f32 %v4083, 0.03125
        %v4366 = vmul.f32 %v4086, 0.03125
        %v4367 = vmul.f32 %v4089, 0.03125
        %v4368 = vmul.f32 %v4092, 0.03125
        %v4369 = vmul.f32 %v4095, 0.03125
        %v4370 = vmul.f32 %v4098, 0.03125
        %v4371 = vmul.f32 %v4101, 0.03125
        %v4372 = vmul.f32 %v4104, 0.03125
        %v4373 = vmul.f32 %v4107, 0.03125
        %v4374 = vmul.f32 %v4110, 0.03125
        %v4375 = vmul.f32 %v4113, 0.03125
        %v4376 = vmul.f32 %v4116, 0.03125
        %v4377 = vmul.f32 %v4119, 0.03125
        %v4378 = vmul.f32 %v4122, 0.03125
        %v4379 = vmul.f32 %v4125, 0.03125
        %v4380 = vmul.f32 %v4128, 0.03125
        %v4381 = vmul.f32 %v4131, 0.03125
        %v4382 = vmul.f32 %v4134, 0.03125
        %v4383 = vmul.f32 %v4137, 0.03125
        %v4384 = vmul.f32 %v4140, 0.03125
        %v4385 = vmul.f32 %v4143, 0.03125
        %v4386 = vmul.f32 %v4146, 0.03125
        %v4387 = vmul.f32 %v4149, 0.03125
        %v4388 = vmul.f32 %v4152, 0.03125
        %v4389 = vmul.f32 %v4155, 0.03125
        %v4390 = vmul.f32 %v4158, 0.03125
        %v4391 = vmul.f32 %v4161, 0.03125
        %v4392 = vmul.f32 %v4164, 0.03125
        %v4393 = vmul.f32 %v4167, 0.03125
        %v4394 = vmul.f32 %v4170, 0.03125
        %v4395 = vmul.f32 %v4173, 0.03125
        %v4396 = vmul.f32 %v4176, 0.03125
        %v4397 = vmul.f32 %v4179, 0.03125
        %v4398 = vmul.f32 %v4182, 0.03125
        %v4399 = vmul.f32 %v4185, 0.03125
        %v4400 = vmul.f32 %v4188, 0.03125
        %v4401 = vmul.f32 %v4191, 0.03125
        %v4402 = vmul.f32 %v4194, 0.03125
        %v4403 = vmul.f32 %v4197, 0.03125
        %v4404 = vmul.f32 %v4200, 0.03125
        %v4405 = vmul.f32 %v4203, 0.03125
        %v4406 = vmul.f32 %v4206, 0.03125
        %v4407 = vmul.f32 %v4209, 0.03125
        %v4408 = vmul.f32 %v4212, 0.03125
        %v4409 = vmul.f32 %v4215, 0.03125
        %v4410 = vmul.f32 %v4218, 0.03125
        %v4411 = vmul.f32 %v4221, 0.03125
        %v4412 = vmul.f32 %v4224, 0.03125
        %v4413 = vmul.f32 %v4227, 0.03125
        %v4414 = vmul.f32 %v4230, 0.03125
        %v4415 = vmul.f32 %v4233, 0.03125
        %v4416 = vmul.f32 %v4236, 0.03125
        %v4417 = vmul.f32 %v4239, 0.03125
        %v4418 = vmul.f32 %v4242, 0.03125
        %v4419 = vmul.f32 %v4245, 0.03125
        %v4420 = vmul.f32 %v4248, 0.03125
        %v4421 = vmul.f32 %v4251, 0.03125
        %v4422 = vmul.f32 %v4254, 0.03125
        %v4423 = vmul.f32 %v4257, 0.03125
        %v4424 = vmul.f32 %v4260, 0.03125
        %v4425 = vmul.f32 %v4263, 0.03125
        %v4426 = vmul.f32 %v4266, 0.03125
        %v4427 = vmul.f32 %v4269, 0.03125
        %v4428 = vmul.f32 %v4272, 0.03125
        %v4429 = vmul.f32 %v4275, 0.03125
        %v4430 = vmul.f32 %v4278, 0.03125
        %v4431 = vmul.f32 %v4281, 0.03125
        %v4432 = vmul.f32 %v4284, 0.03125
        %v4433 = vmul.f32 %v4287, 0.03125
        %v4434 = vmul.f32 %v4290, 0.03125
        %v4435 = vmul.f32 %v4293, 0.03125
        %v4436 = vmul.f32 %v4296, 0.03125
        %v4437 = vmul.f32 %v4299, 0.03125
        %v4438 = vmul.f32 %v4302, 0.03125
        %v4439 = vmul.f32 %v4305, 0.03125
        %v4440 = vmul.f32 %v4308, 0.03125
        %v4441 = vmul.f32 %v4311, 0.03125
        %v4442 = vmul.f32 %v4314, 0.03125
        %v4443 = vmul.f32 %v3803, %v3803
        %v4444 = vmul.f32 %v3804, %v3804
        %v4445 = vmul.f32 %v3805, %v3805
        %v4446 = vmul.f32 %v3806, %v3806
        %v4447 = vmul.f32 %v3807, %v3807
        %v4448 = vmul.f32 %v3808, %v3808
        %v4449 = vmul.f32 %v3809, %v3809
        %v4450 = vmul.f32 %v3810, %v3810
        %v4451 = vmul.f32 %v3811, %v3811
        %v4452 = vmul.f32 %v3812, %v3812
        %v4453 = vmul.f32 %v3813, %v3813
        %v4454 = vmul.f32 %v3814, %v3814
        %v4455 = vmul.f32 %v3815, %v3815
        %v4456 = vmul.f32 %v3816, %v3816
        %v4457 = vmul.f32 %v3817, %v3817
        %v4458 = vmul.f32 %v3818, %v3818
        %v4459 = vmul.f32 %v3819, %v3819
        %v4460 = vmul.f32 %v3820, %v3820
        %v4461 = vmul.f32 %v3821, %v3821
        %v4462 = vmul.f32 %v3822, %v3822
        %v4463 = vmul.f32 %v3823, %v3823
        %v4464 = vmul.f32 %v3824, %v3824
        %v4465 = vmul.f32 %v3825, %v3825
        %v4466 = vmul.f32 %v3826, %v3826
        %v4467 = vmul.f32 %v3827, %v3827
        %v4468 = vmul.f32 %v3828, %v3828
        %v4469 = vmul.f32 %v3829, %v3829
        %v4470 = vmul.f32 %v3830, %v3830
        %v4471 = vmul.f32 %v3831, %v3831
        %v4472 = vmul.f32 %v3832, %v3832
        %v4473 = vmul.f32 %v3833, %v3833
        %v4474 = vmul.f32 %v3834, %v3834
        %v4475 = vmul.f32 %v3835, %v3835
        %v4476 = vmul.f32 %v3836, %v3836
        %v4477 = vmul.f32 %v3837, %v3837
        %v4478 = vmul.f32 %v3838, %v3838
        %v4479 = vmul.f32 %v3839, %v3839
        %v4480 = vmul.f32 %v3840, %v3840
        %v4481 = vmul.f32 %v3841, %v3841
        %v4482 = vmul.f32 %v3842, %v3842
        %v4483 = vmul.f32 %v3843, %v3843
        %v4484 = vmul.f32 %v3844, %v3844
        %v4485 = vmul.f32 %v3845, %v3845
        %v4486 = vmul.f32 %v3846, %v3846
        %v4487 = vmul.f32 %v3847, %v3847
        %v4488 = vmul.f32 %v3848, %v3848
        %v4489 = vmul.f32 %v3849, %v3849
        %v4490 = vmul.f32 %v3850, %v3850
        %v4491 = vmul.f32 %v3851, %v3851
        %v4492 = vmul.f32 %v3852, %v3852
        %v4493 = vmul.f32 %v3853, %v3853
        %v4494 = vmul.f32 %v3854, %v3854
        %v4495 = vmul.f32 %v3855, %v3855
        %v4496 = vmul.f32 %v3856, %v3856
        %v4497 = vmul.f32 %v3857, %v3857
        %v4498 = vmul.f32 %v3858, %v3858
        %v4499 = vmul.f32 %v3859, %v3859
        %v4500 = vmul.f32 %v3860, %v3860
        %v4501 = vmul.f32 %v3861, %v3861
        %v4502 = vmul.f32 %v3862, %v3862
        %v4503 = vmul.f32 %v3863, %v3863
        %v4504 = vmul.f32 %v3864, %v3864
        %v4505 = vmul.f32 %v3865, %v3865
        %v4506 = vmul.f32 %v3866, %v3866
        %v4507 = vmul.f32 %v3867, %v3867
        %v4508 = vmul.f32 %v3868, %v3868
        %v4509 = vmul.f32 %v3869, %v3869
        %v4510 = vmul.f32 %v3870, %v3870
        %v4511 = vmul.f32 %v3871, %v3871
        %v4512 = vmul.f32 %v3872, %v3872
        %v4513 = vmul.f32 %v3873, %v3873
        %v4514 = vmul.f32 %v3874, %v3874
        %v4515 = vmul.f32 %v3875, %v3875
        %v4516 = vmul.f32 %v3876, %v3876
        %v4517 = vmul.f32 %v3877, %v3877
        %v4518 = vmul.f32 %v3878, %v3878
        %v4519 = vmul.f32 %v3879, %v3879
        %v4520 = vmul.f32 %v3880, %v3880
        %v4521 = vmul.f32 %v3881, %v3881
        %v4522 = vmul.f32 %v3882, %v3882
        %v4523 = vmul.f32 %v3883, %v3883
        %v4524 = vmul.f32 %v3884, %v3884
        %v4525 = vmul.f32 %v3885, %v3885
        %v4526 = vmul.f32 %v3886, %v3886
        %v4527 = vmul.f32 %v3887, %v3887
        %v4528 = vmul.f32 %v3888, %v3888
        %v4529 = vmul.f32 %v3889, %v3889
        %v4530 = vmul.f32 %v3890, %v3890
        %v4531 = vmul.f32 %v3891, %v3891
        %v4532 = vmul.f32 %v3892, %v3892
        %v4533 = vmul.f32 %v3893, %v3893
        %v4534 = vmul.f32 %v3894, %v3894
        %v4535 = vmul.f32 %v3895, %v3895
        %v4536 = vmul.f32 %v3896, %v3896
        %v4537 = vmul.f32 %v3897, %v3897
        %v4538 = vmul.f32 %v3898, %v3898
        %v4539 = vmul.f32 %v3899, %v3899
        %v4540 = vmul.f32 %v3900, %v3900
        %v4541 = vmul.f32 %v3901, %v3901
        %v4542 = vmul.f32 %v3902, %v3902
        %v4543 = vmul.f32 %v3903, %v3903
        %v4544 = vmul.f32 %v3904, %v3904
        %v4545 = vmul.f32 %v3905, %v3905
        %v4546 = vmul.f32 %v3906, %v3906
        %v4547 = vmul.f32 %v3907, %v3907
        %v4548 = vmul.f32 %v3908, %v3908
        %v4549 = vmul.f32 %v3909, %v3909
        %v4550 = vmul.f32 %v3910, %v3910
        %v4551 = vmul.f32 %v3911, %v3911
        %v4552 = vmul.f32 %v3912, %v3912
        %v4553 = vmul.f32 %v3913, %v3913
        %v4554 = vmul.f32 %v3914, %v3914
        %v4555 = vmul.f32 %v3915, %v3915
        %v4556 = vmul.f32 %v3916, %v3916
        %v4557 = vmul.f32 %v3917, %v3917
        %v4558 = vmul.f32 %v3918, %v3918
        %v4559 = vmul.f32 %v3919, %v3919
        %v4560 = vmul.f32 %v3920, %v3920
        %v4561 = vmul.f32 %v3921, %v3921
        %v4562 = vmul.f32 %v3922, %v3922
        %v4563 = vmul.f32 %v3923, %v3923
        %v4564 = vmul.f32 %v3924, %v3924
        %v4565 = vmul.f32 %v3925, %v3925
        %v4566 = vmul.f32 %v3926, %v3926
        %v4567 = vmul.f32 %v3927, %v3927
        %v4568 = vmul.f32 %v3928, %v3928
        %v4569 = vmul.f32 %v3929, %v3929
        %v4570 = vmul.f32 %v3930, %v3930
        %v4571 = vsel %vm508, %v4443, 0.0
        %4572 = vadd.xlane.f32.xlu0 %v4571
        %v4573 = vpop.xlane.xlu0 %4572
        %v4574 = vsel %vm508, %v4444, 0.0
        %4575 = vadd.xlane.f32.xlu0 %v4574
        %v4576 = vpop.xlane.xlu0 %4575
        %v4577 = vsel %vm508, %v4445, 0.0
        %4578 = vadd.xlane.f32.xlu0 %v4577
        %v4579 = vpop.xlane.xlu0 %4578
        %v4580 = vsel %vm508, %v4446, 0.0
        %4581 = vadd.xlane.f32.xlu0 %v4580
        %v4582 = vpop.xlane.xlu0 %4581
        %v4583 = vsel %vm508, %v4447, 0.0
        %4584 = vadd.xlane.f32.xlu0 %v4583
        %v4585 = vpop.xlane.xlu0 %4584
        %v4586 = vsel %vm508, %v4448, 0.0
        %4587 = vadd.xlane.f32.xlu0 %v4586
        %v4588 = vpop.xlane.xlu0 %4587
        %v4589 = vsel %vm508, %v4449, 0.0
        %4590 = vadd.xlane.f32.xlu0 %v4589
        %v4591 = vpop.xlane.xlu0 %4590
        %v4592 = vsel %vm508, %v4450, 0.0
        %4593 = vadd.xlane.f32.xlu0 %v4592
        %v4594 = vpop.xlane.xlu0 %4593
        %v4595 = vsel %vm508, %v4451, 0.0
        %4596 = vadd.xlane.f32.xlu0 %v4595
        %v4597 = vpop.xlane.xlu0 %4596
        %v4598 = vsel %vm508, %v4452, 0.0
        %4599 = vadd.xlane.f32.xlu0 %v4598
        %v4600 = vpop.xlane.xlu0 %4599
        %v4601 = vsel %vm508, %v4453, 0.0
        %4602 = vadd.xlane.f32.xlu0 %v4601
        %v4603 = vpop.xlane.xlu0 %4602
        %v4604 = vsel %vm508, %v4454, 0.0
        %4605 = vadd.xlane.f32.xlu0 %v4604
        %v4606 = vpop.xlane.xlu0 %4605
        %v4607 = vsel %vm508, %v4455, 0.0
        %4608 = vadd.xlane.f32.xlu0 %v4607
        %v4609 = vpop.xlane.xlu0 %4608
        %v4610 = vsel %vm508, %v4456, 0.0
        %4611 = vadd.xlane.f32.xlu0 %v4610
        %v4612 = vpop.xlane.xlu0 %4611
        %v4613 = vsel %vm508, %v4457, 0.0
        %4614 = vadd.xlane.f32.xlu0 %v4613
        %v4615 = vpop.xlane.xlu0 %4614
        %v4616 = vsel %vm508, %v4458, 0.0
        %4617 = vadd.xlane.f32.xlu0 %v4616
        %v4618 = vpop.xlane.xlu0 %4617
        %v4619 = vsel %vm508, %v4459, 0.0
        %4620 = vadd.xlane.f32.xlu0 %v4619
        %v4621 = vpop.xlane.xlu0 %4620
        %v4622 = vsel %vm508, %v4460, 0.0
        %4623 = vadd.xlane.f32.xlu0 %v4622
        %v4624 = vpop.xlane.xlu0 %4623
        %v4625 = vsel %vm508, %v4461, 0.0
        %4626 = vadd.xlane.f32.xlu0 %v4625
        %v4627 = vpop.xlane.xlu0 %4626
        %v4628 = vsel %vm508, %v4462, 0.0
        %4629 = vadd.xlane.f32.xlu0 %v4628
        %v4630 = vpop.xlane.xlu0 %4629
        %v4631 = vsel %vm508, %v4463, 0.0
        %4632 = vadd.xlane.f32.xlu0 %v4631
        %v4633 = vpop.xlane.xlu0 %4632
        %v4634 = vsel %vm508, %v4464, 0.0
        %4635 = vadd.xlane.f32.xlu0 %v4634
        %v4636 = vpop.xlane.xlu0 %4635
        %v4637 = vsel %vm508, %v4465, 0.0
        %4638 = vadd.xlane.f32.xlu0 %v4637
        %v4639 = vpop.xlane.xlu0 %4638
        %v4640 = vsel %vm508, %v4466, 0.0
        %4641 = vadd.xlane.f32.xlu0 %v4640
        %v4642 = vpop.xlane.xlu0 %4641
        %v4643 = vsel %vm508, %v4467, 0.0
        %4644 = vadd.xlane.f32.xlu0 %v4643
        %v4645 = vpop.xlane.xlu0 %4644
        %v4646 = vsel %vm508, %v4468, 0.0
        %4647 = vadd.xlane.f32.xlu0 %v4646
        %v4648 = vpop.xlane.xlu0 %4647
        %v4649 = vsel %vm508, %v4469, 0.0
        %4650 = vadd.xlane.f32.xlu0 %v4649
        %v4651 = vpop.xlane.xlu0 %4650
        %v4652 = vsel %vm508, %v4470, 0.0
        %4653 = vadd.xlane.f32.xlu0 %v4652
        %v4654 = vpop.xlane.xlu0 %4653
        %v4655 = vsel %vm508, %v4471, 0.0
        %4656 = vadd.xlane.f32.xlu0 %v4655
        %v4657 = vpop.xlane.xlu0 %4656
        %v4658 = vsel %vm508, %v4472, 0.0
        %4659 = vadd.xlane.f32.xlu0 %v4658
        %v4660 = vpop.xlane.xlu0 %4659
        %v4661 = vsel %vm508, %v4473, 0.0
        %4662 = vadd.xlane.f32.xlu0 %v4661
        %v4663 = vpop.xlane.xlu0 %4662
        %v4664 = vsel %vm508, %v4474, 0.0
        %4665 = vadd.xlane.f32.xlu0 %v4664
        %v4666 = vpop.xlane.xlu0 %4665
        %v4667 = vsel %vm508, %v4475, 0.0
        %4668 = vadd.xlane.f32.xlu0 %v4667
        %v4669 = vpop.xlane.xlu0 %4668
        %v4670 = vsel %vm508, %v4476, 0.0
        %4671 = vadd.xlane.f32.xlu0 %v4670
        %v4672 = vpop.xlane.xlu0 %4671
        %v4673 = vsel %vm508, %v4477, 0.0
        %4674 = vadd.xlane.f32.xlu0 %v4673
        %v4675 = vpop.xlane.xlu0 %4674
        %v4676 = vsel %vm508, %v4478, 0.0
        %4677 = vadd.xlane.f32.xlu0 %v4676
        %v4678 = vpop.xlane.xlu0 %4677
        %v4679 = vsel %vm508, %v4479, 0.0
        %4680 = vadd.xlane.f32.xlu0 %v4679
        %v4681 = vpop.xlane.xlu0 %4680
        %v4682 = vsel %vm508, %v4480, 0.0
        %4683 = vadd.xlane.f32.xlu0 %v4682
        %v4684 = vpop.xlane.xlu0 %4683
        %v4685 = vsel %vm508, %v4481, 0.0
        %4686 = vadd.xlane.f32.xlu0 %v4685
        %v4687 = vpop.xlane.xlu0 %4686
        %v4688 = vsel %vm508, %v4482, 0.0
        %4689 = vadd.xlane.f32.xlu0 %v4688
        %v4690 = vpop.xlane.xlu0 %4689
        %v4691 = vsel %vm508, %v4483, 0.0
        %4692 = vadd.xlane.f32.xlu0 %v4691
        %v4693 = vpop.xlane.xlu0 %4692
        %v4694 = vsel %vm508, %v4484, 0.0
        %4695 = vadd.xlane.f32.xlu0 %v4694
        %v4696 = vpop.xlane.xlu0 %4695
        %v4697 = vsel %vm508, %v4485, 0.0
        %4698 = vadd.xlane.f32.xlu0 %v4697
        %v4699 = vpop.xlane.xlu0 %4698
        %v4700 = vsel %vm508, %v4486, 0.0
        %4701 = vadd.xlane.f32.xlu0 %v4700
        %v4702 = vpop.xlane.xlu0 %4701
        %v4703 = vsel %vm508, %v4487, 0.0
        %4704 = vadd.xlane.f32.xlu0 %v4703
        %v4705 = vpop.xlane.xlu0 %4704
        %v4706 = vsel %vm508, %v4488, 0.0
        %4707 = vadd.xlane.f32.xlu0 %v4706
        %v4708 = vpop.xlane.xlu0 %4707
        %v4709 = vsel %vm508, %v4489, 0.0
        %4710 = vadd.xlane.f32.xlu0 %v4709
        %v4711 = vpop.xlane.xlu0 %4710
        %v4712 = vsel %vm508, %v4490, 0.0
        %4713 = vadd.xlane.f32.xlu0 %v4712
        %v4714 = vpop.xlane.xlu0 %4713
        %v4715 = vsel %vm508, %v4491, 0.0
        %4716 = vadd.xlane.f32.xlu0 %v4715
        %v4717 = vpop.xlane.xlu0 %4716
        %v4718 = vsel %vm508, %v4492, 0.0
        %4719 = vadd.xlane.f32.xlu0 %v4718
        %v4720 = vpop.xlane.xlu0 %4719
        %v4721 = vsel %vm508, %v4493, 0.0
        %4722 = vadd.xlane.f32.xlu0 %v4721
        %v4723 = vpop.xlane.xlu0 %4722
        %v4724 = vsel %vm508, %v4494, 0.0
        %4725 = vadd.xlane.f32.xlu0 %v4724
        %v4726 = vpop.xlane.xlu0 %4725
        %v4727 = vsel %vm508, %v4495, 0.0
        %4728 = vadd.xlane.f32.xlu0 %v4727
        %v4729 = vpop.xlane.xlu0 %4728
        %v4730 = vsel %vm508, %v4496, 0.0
        %4731 = vadd.xlane.f32.xlu0 %v4730
        %v4732 = vpop.xlane.xlu0 %4731
        %v4733 = vsel %vm508, %v4497, 0.0
        %4734 = vadd.xlane.f32.xlu0 %v4733
        %v4735 = vpop.xlane.xlu0 %4734
        %v4736 = vsel %vm508, %v4498, 0.0
        %4737 = vadd.xlane.f32.xlu0 %v4736
        %v4738 = vpop.xlane.xlu0 %4737
        %v4739 = vsel %vm508, %v4499, 0.0
        %4740 = vadd.xlane.f32.xlu0 %v4739
        %v4741 = vpop.xlane.xlu0 %4740
        %v4742 = vsel %vm508, %v4500, 0.0
        %4743 = vadd.xlane.f32.xlu0 %v4742
        %v4744 = vpop.xlane.xlu0 %4743
        %v4745 = vsel %vm508, %v4501, 0.0
        %4746 = vadd.xlane.f32.xlu0 %v4745
        %v4747 = vpop.xlane.xlu0 %4746
        %v4748 = vsel %vm508, %v4502, 0.0
        %4749 = vadd.xlane.f32.xlu0 %v4748
        %v4750 = vpop.xlane.xlu0 %4749
        %v4751 = vsel %vm508, %v4503, 0.0
        %4752 = vadd.xlane.f32.xlu0 %v4751
        %v4753 = vpop.xlane.xlu0 %4752
        %v4754 = vsel %vm508, %v4504, 0.0
        %4755 = vadd.xlane.f32.xlu0 %v4754
        %v4756 = vpop.xlane.xlu0 %4755
        %v4757 = vsel %vm508, %v4505, 0.0
        %4758 = vadd.xlane.f32.xlu0 %v4757
        %v4759 = vpop.xlane.xlu0 %4758
        %v4760 = vsel %vm508, %v4506, 0.0
        %4761 = vadd.xlane.f32.xlu0 %v4760
        %v4762 = vpop.xlane.xlu0 %4761
        %v4763 = vsel %vm508, %v4507, 0.0
        %4764 = vadd.xlane.f32.xlu0 %v4763
        %v4765 = vpop.xlane.xlu0 %4764
        %v4766 = vsel %vm508, %v4508, 0.0
        %4767 = vadd.xlane.f32.xlu0 %v4766
        %v4768 = vpop.xlane.xlu0 %4767
        %v4769 = vsel %vm508, %v4509, 0.0
        %4770 = vadd.xlane.f32.xlu0 %v4769
        %v4771 = vpop.xlane.xlu0 %4770
        %v4772 = vsel %vm508, %v4510, 0.0
        %4773 = vadd.xlane.f32.xlu0 %v4772
        %v4774 = vpop.xlane.xlu0 %4773
        %v4775 = vsel %vm508, %v4511, 0.0
        %4776 = vadd.xlane.f32.xlu0 %v4775
        %v4777 = vpop.xlane.xlu0 %4776
        %v4778 = vsel %vm508, %v4512, 0.0
        %4779 = vadd.xlane.f32.xlu0 %v4778
        %v4780 = vpop.xlane.xlu0 %4779
        %v4781 = vsel %vm508, %v4513, 0.0
        %4782 = vadd.xlane.f32.xlu0 %v4781
        %v4783 = vpop.xlane.xlu0 %4782
        %v4784 = vsel %vm508, %v4514, 0.0
        %4785 = vadd.xlane.f32.xlu0 %v4784
        %v4786 = vpop.xlane.xlu0 %4785
        %v4787 = vsel %vm508, %v4515, 0.0
        %4788 = vadd.xlane.f32.xlu0 %v4787
        %v4789 = vpop.xlane.xlu0 %4788
        %v4790 = vsel %vm508, %v4516, 0.0
        %4791 = vadd.xlane.f32.xlu0 %v4790
        %v4792 = vpop.xlane.xlu0 %4791
        %v4793 = vsel %vm508, %v4517, 0.0
        %4794 = vadd.xlane.f32.xlu0 %v4793
        %v4795 = vpop.xlane.xlu0 %4794
        %v4796 = vsel %vm508, %v4518, 0.0
        %4797 = vadd.xlane.f32.xlu0 %v4796
        %v4798 = vpop.xlane.xlu0 %4797
        %v4799 = vsel %vm508, %v4519, 0.0
        %4800 = vadd.xlane.f32.xlu0 %v4799
        %v4801 = vpop.xlane.xlu0 %4800
        %v4802 = vsel %vm508, %v4520, 0.0
        %4803 = vadd.xlane.f32.xlu0 %v4802
        %v4804 = vpop.xlane.xlu0 %4803
        %v4805 = vsel %vm508, %v4521, 0.0
        %4806 = vadd.xlane.f32.xlu0 %v4805
        %v4807 = vpop.xlane.xlu0 %4806
        %v4808 = vsel %vm508, %v4522, 0.0
        %4809 = vadd.xlane.f32.xlu0 %v4808
        %v4810 = vpop.xlane.xlu0 %4809
        %v4811 = vsel %vm508, %v4523, 0.0
        %4812 = vadd.xlane.f32.xlu0 %v4811
        %v4813 = vpop.xlane.xlu0 %4812
        %v4814 = vsel %vm508, %v4524, 0.0
        %4815 = vadd.xlane.f32.xlu0 %v4814
        %v4816 = vpop.xlane.xlu0 %4815
        %v4817 = vsel %vm508, %v4525, 0.0
        %4818 = vadd.xlane.f32.xlu0 %v4817
        %v4819 = vpop.xlane.xlu0 %4818
        %v4820 = vsel %vm508, %v4526, 0.0
        %4821 = vadd.xlane.f32.xlu0 %v4820
        %v4822 = vpop.xlane.xlu0 %4821
        %v4823 = vsel %vm508, %v4527, 0.0
        %4824 = vadd.xlane.f32.xlu0 %v4823
        %v4825 = vpop.xlane.xlu0 %4824
        %v4826 = vsel %vm508, %v4528, 0.0
        %4827 = vadd.xlane.f32.xlu0 %v4826
        %v4828 = vpop.xlane.xlu0 %4827
        %v4829 = vsel %vm508, %v4529, 0.0
        %4830 = vadd.xlane.f32.xlu0 %v4829
        %v4831 = vpop.xlane.xlu0 %4830
        %v4832 = vsel %vm508, %v4530, 0.0
        %4833 = vadd.xlane.f32.xlu0 %v4832
        %v4834 = vpop.xlane.xlu0 %4833
        %v4835 = vsel %vm508, %v4531, 0.0
        %4836 = vadd.xlane.f32.xlu0 %v4835
        %v4837 = vpop.xlane.xlu0 %4836
        %v4838 = vsel %vm508, %v4532, 0.0
        %4839 = vadd.xlane.f32.xlu0 %v4838
        %v4840 = vpop.xlane.xlu0 %4839
        %v4841 = vsel %vm508, %v4533, 0.0
        %4842 = vadd.xlane.f32.xlu0 %v4841
        %v4843 = vpop.xlane.xlu0 %4842
        %v4844 = vsel %vm508, %v4534, 0.0
        %4845 = vadd.xlane.f32.xlu0 %v4844
        %v4846 = vpop.xlane.xlu0 %4845
        %v4847 = vsel %vm508, %v4535, 0.0
        %4848 = vadd.xlane.f32.xlu0 %v4847
        %v4849 = vpop.xlane.xlu0 %4848
        %v4850 = vsel %vm508, %v4536, 0.0
        %4851 = vadd.xlane.f32.xlu0 %v4850
        %v4852 = vpop.xlane.xlu0 %4851
        %v4853 = vsel %vm508, %v4537, 0.0
        %4854 = vadd.xlane.f32.xlu0 %v4853
        %v4855 = vpop.xlane.xlu0 %4854
        %v4856 = vsel %vm508, %v4538, 0.0
        %4857 = vadd.xlane.f32.xlu0 %v4856
        %v4858 = vpop.xlane.xlu0 %4857
        %v4859 = vsel %vm508, %v4539, 0.0
        %4860 = vadd.xlane.f32.xlu0 %v4859
        %v4861 = vpop.xlane.xlu0 %4860
        %v4862 = vsel %vm508, %v4540, 0.0
        %4863 = vadd.xlane.f32.xlu0 %v4862
        %v4864 = vpop.xlane.xlu0 %4863
        %v4865 = vsel %vm508, %v4541, 0.0
        %4866 = vadd.xlane.f32.xlu0 %v4865
        %v4867 = vpop.xlane.xlu0 %4866
        %v4868 = vsel %vm508, %v4542, 0.0
        %4869 = vadd.xlane.f32.xlu0 %v4868
        %v4870 = vpop.xlane.xlu0 %4869
        %v4871 = vsel %vm508, %v4543, 0.0
        %4872 = vadd.xlane.f32.xlu0 %v4871
        %v4873 = vpop.xlane.xlu0 %4872
        %v4874 = vsel %vm508, %v4544, 0.0
        %4875 = vadd.xlane.f32.xlu0 %v4874
        %v4876 = vpop.xlane.xlu0 %4875
        %v4877 = vsel %vm508, %v4545, 0.0
        %4878 = vadd.xlane.f32.xlu0 %v4877
        %v4879 = vpop.xlane.xlu0 %4878
        %v4880 = vsel %vm508, %v4546, 0.0
        %4881 = vadd.xlane.f32.xlu0 %v4880
        %v4882 = vpop.xlane.xlu0 %4881
        %v4883 = vsel %vm508, %v4547, 0.0
        %4884 = vadd.xlane.f32.xlu0 %v4883
        %v4885 = vpop.xlane.xlu0 %4884
        %v4886 = vsel %vm508, %v4548, 0.0
        %4887 = vadd.xlane.f32.xlu0 %v4886
        %v4888 = vpop.xlane.xlu0 %4887
        %v4889 = vsel %vm508, %v4549, 0.0
        %4890 = vadd.xlane.f32.xlu0 %v4889
        %v4891 = vpop.xlane.xlu0 %4890
        %v4892 = vsel %vm508, %v4550, 0.0
        %4893 = vadd.xlane.f32.xlu0 %v4892
        %v4894 = vpop.xlane.xlu0 %4893
        %v4895 = vsel %vm508, %v4551, 0.0
        %4896 = vadd.xlane.f32.xlu0 %v4895
        %v4897 = vpop.xlane.xlu0 %4896
        %v4898 = vsel %vm508, %v4552, 0.0
        %4899 = vadd.xlane.f32.xlu0 %v4898
        %v4900 = vpop.xlane.xlu0 %4899
        %v4901 = vsel %vm508, %v4553, 0.0
        %4902 = vadd.xlane.f32.xlu0 %v4901
        %v4903 = vpop.xlane.xlu0 %4902
        %v4904 = vsel %vm508, %v4554, 0.0
        %4905 = vadd.xlane.f32.xlu0 %v4904
        %v4906 = vpop.xlane.xlu0 %4905
        %v4907 = vsel %vm508, %v4555, 0.0
        %4908 = vadd.xlane.f32.xlu0 %v4907
        %v4909 = vpop.xlane.xlu0 %4908
        %v4910 = vsel %vm508, %v4556, 0.0
        %4911 = vadd.xlane.f32.xlu0 %v4910
        %v4912 = vpop.xlane.xlu0 %4911
        %v4913 = vsel %vm508, %v4557, 0.0
        %4914 = vadd.xlane.f32.xlu0 %v4913
        %v4915 = vpop.xlane.xlu0 %4914
        %v4916 = vsel %vm508, %v4558, 0.0
        %4917 = vadd.xlane.f32.xlu0 %v4916
        %v4918 = vpop.xlane.xlu0 %4917
        %v4919 = vsel %vm508, %v4559, 0.0
        %4920 = vadd.xlane.f32.xlu0 %v4919
        %v4921 = vpop.xlane.xlu0 %4920
        %v4922 = vsel %vm508, %v4560, 0.0
        %4923 = vadd.xlane.f32.xlu0 %v4922
        %v4924 = vpop.xlane.xlu0 %4923
        %v4925 = vsel %vm508, %v4561, 0.0
        %4926 = vadd.xlane.f32.xlu0 %v4925
        %v4927 = vpop.xlane.xlu0 %4926
        %v4928 = vsel %vm508, %v4562, 0.0
        %4929 = vadd.xlane.f32.xlu0 %v4928
        %v4930 = vpop.xlane.xlu0 %4929
        %v4931 = vsel %vm508, %v4563, 0.0
        %4932 = vadd.xlane.f32.xlu0 %v4931
        %v4933 = vpop.xlane.xlu0 %4932
        %v4934 = vsel %vm508, %v4564, 0.0
        %4935 = vadd.xlane.f32.xlu0 %v4934
        %v4936 = vpop.xlane.xlu0 %4935
        %v4937 = vsel %vm508, %v4565, 0.0
        %4938 = vadd.xlane.f32.xlu0 %v4937
        %v4939 = vpop.xlane.xlu0 %4938
        %v4940 = vsel %vm508, %v4566, 0.0
        %4941 = vadd.xlane.f32.xlu0 %v4940
        %v4942 = vpop.xlane.xlu0 %4941
        %v4943 = vsel %vm508, %v4567, 0.0
        %4944 = vadd.xlane.f32.xlu0 %v4943
        %v4945 = vpop.xlane.xlu0 %4944
        %v4946 = vsel %vm508, %v4568, 0.0
        %4947 = vadd.xlane.f32.xlu0 %v4946
        %v4948 = vpop.xlane.xlu0 %4947
        %v4949 = vsel %vm508, %v4569, 0.0
        %4950 = vadd.xlane.f32.xlu0 %v4949
        %v4951 = vpop.xlane.xlu0 %4950
        %v4952 = vsel %vm508, %v4570, 0.0
        %4953 = vadd.xlane.f32.xlu0 %v4952
        %v4954 = vpop.xlane.xlu0 %4953
        %v4955 = vmul.f32 %v4573, 0.03125
        %v4956 = vmul.f32 %v4576, 0.03125
        %v4957 = vmul.f32 %v4579, 0.03125
        %v4958 = vmul.f32 %v4582, 0.03125
        %v4959 = vmul.f32 %v4585, 0.03125
        %v4960 = vmul.f32 %v4588, 0.03125
        %v4961 = vmul.f32 %v4591, 0.03125
        %v4962 = vmul.f32 %v4594, 0.03125
        %v4963 = vmul.f32 %v4597, 0.03125
        %v4964 = vmul.f32 %v4600, 0.03125
        %v4965 = vmul.f32 %v4603, 0.03125
        %v4966 = vmul.f32 %v4606, 0.03125
        %v4967 = vmul.f32 %v4609, 0.03125
        %v4968 = vmul.f32 %v4612, 0.03125
        %v4969 = vmul.f32 %v4615, 0.03125
        %v4970 = vmul.f32 %v4618, 0.03125
        %v4971 = vmul.f32 %v4621, 0.03125
        %v4972 = vmul.f32 %v4624, 0.03125
        %v4973 = vmul.f32 %v4627, 0.03125
        %v4974 = vmul.f32 %v4630, 0.03125
        %v4975 = vmul.f32 %v4633, 0.03125
        %v4976 = vmul.f32 %v4636, 0.03125
        %v4977 = vmul.f32 %v4639, 0.03125
        %v4978 = vmul.f32 %v4642, 0.03125
        %v4979 = vmul.f32 %v4645, 0.03125
        %v4980 = vmul.f32 %v4648, 0.03125
        %v4981 = vmul.f32 %v4651, 0.03125
        %v4982 = vmul.f32 %v4654, 0.03125
        %v4983 = vmul.f32 %v4657, 0.03125
        %v4984 = vmul.f32 %v4660, 0.03125
        %v4985 = vmul.f32 %v4663, 0.03125
        %v4986 = vmul.f32 %v4666, 0.03125
        %v4987 = vmul.f32 %v4669, 0.03125
        %v4988 = vmul.f32 %v4672, 0.03125
        %v4989 = vmul.f32 %v4675, 0.03125
        %v4990 = vmul.f32 %v4678, 0.03125
        %v4991 = vmul.f32 %v4681, 0.03125
        %v4992 = vmul.f32 %v4684, 0.03125
        %v4993 = vmul.f32 %v4687, 0.03125
        %v4994 = vmul.f32 %v4690, 0.03125
        %v4995 = vmul.f32 %v4693, 0.03125
        %v4996 = vmul.f32 %v4696, 0.03125
        %v4997 = vmul.f32 %v4699, 0.03125
        %v4998 = vmul.f32 %v4702, 0.03125
        %v4999 = vmul.f32 %v4705, 0.03125
        %v5000 = vmul.f32 %v4708, 0.03125
        %v5001 = vmul.f32 %v4711, 0.03125
        %v5002 = vmul.f32 %v4714, 0.03125
        %v5003 = vmul.f32 %v4717, 0.03125
        %v5004 = vmul.f32 %v4720, 0.03125
        %v5005 = vmul.f32 %v4723, 0.03125
        %v5006 = vmul.f32 %v4726, 0.03125
        %v5007 = vmul.f32 %v4729, 0.03125
        %v5008 = vmul.f32 %v4732, 0.03125
        %v5009 = vmul.f32 %v4735, 0.03125
        %v5010 = vmul.f32 %v4738, 0.03125
        %v5011 = vmul.f32 %v4741, 0.03125
        %v5012 = vmul.f32 %v4744, 0.03125
        %v5013 = vmul.f32 %v4747, 0.03125
        %v5014 = vmul.f32 %v4750, 0.03125
        %v5015 = vmul.f32 %v4753, 0.03125
        %v5016 = vmul.f32 %v4756, 0.03125
        %v5017 = vmul.f32 %v4759, 0.03125
        %v5018 = vmul.f32 %v4762, 0.03125
        %v5019 = vmul.f32 %v4765, 0.03125
        %v5020 = vmul.f32 %v4768, 0.03125
        %v5021 = vmul.f32 %v4771, 0.03125
        %v5022 = vmul.f32 %v4774, 0.03125
        %v5023 = vmul.f32 %v4777, 0.03125
        %v5024 = vmul.f32 %v4780, 0.03125
        %v5025 = vmul.f32 %v4783, 0.03125
        %v5026 = vmul.f32 %v4786, 0.03125
        %v5027 = vmul.f32 %v4789, 0.03125
        %v5028 = vmul.f32 %v4792, 0.03125
        %v5029 = vmul.f32 %v4795, 0.03125
        %v5030 = vmul.f32 %v4798, 0.03125
        %v5031 = vmul.f32 %v4801, 0.03125
        %v5032 = vmul.f32 %v4804, 0.03125
        %v5033 = vmul.f32 %v4807, 0.03125
        %v5034 = vmul.f32 %v4810, 0.03125
        %v5035 = vmul.f32 %v4813, 0.03125
        %v5036 = vmul.f32 %v4816, 0.03125
        %v5037 = vmul.f32 %v4819, 0.03125
        %v5038 = vmul.f32 %v4822, 0.03125
        %v5039 = vmul.f32 %v4825, 0.03125
        %v5040 = vmul.f32 %v4828, 0.03125
        %v5041 = vmul.f32 %v4831, 0.03125
        %v5042 = vmul.f32 %v4834, 0.03125
        %v5043 = vmul.f32 %v4837, 0.03125
        %v5044 = vmul.f32 %v4840, 0.03125
        %v5045 = vmul.f32 %v4843, 0.03125
        %v5046 = vmul.f32 %v4846, 0.03125
        %v5047 = vmul.f32 %v4849, 0.03125
        %v5048 = vmul.f32 %v4852, 0.03125
        %v5049 = vmul.f32 %v4855, 0.03125
        %v5050 = vmul.f32 %v4858, 0.03125
        %v5051 = vmul.f32 %v4861, 0.03125
        %v5052 = vmul.f32 %v4864, 0.03125
        %v5053 = vmul.f32 %v4867, 0.03125
        %v5054 = vmul.f32 %v4870, 0.03125
        %v5055 = vmul.f32 %v4873, 0.03125
        %v5056 = vmul.f32 %v4876, 0.03125
        %v5057 = vmul.f32 %v4879, 0.03125
        %v5058 = vmul.f32 %v4882, 0.03125
        %v5059 = vmul.f32 %v4885, 0.03125
        %v5060 = vmul.f32 %v4888, 0.03125
        %v5061 = vmul.f32 %v4891, 0.03125
        %v5062 = vmul.f32 %v4894, 0.03125
        %v5063 = vmul.f32 %v4897, 0.03125
        %v5064 = vmul.f32 %v4900, 0.03125
        %v5065 = vmul.f32 %v4903, 0.03125
        %v5066 = vmul.f32 %v4906, 0.03125
        %v5067 = vmul.f32 %v4909, 0.03125
        %v5068 = vmul.f32 %v4912, 0.03125
        %v5069 = vmul.f32 %v4915, 0.03125
        %v5070 = vmul.f32 %v4918, 0.03125
        %v5071 = vmul.f32 %v4921, 0.03125
        %v5072 = vmul.f32 %v4924, 0.03125
        %v5073 = vmul.f32 %v4927, 0.03125
        %v5074 = vmul.f32 %v4930, 0.03125
        %v5075 = vmul.f32 %v4933, 0.03125
        %v5076 = vmul.f32 %v4936, 0.03125
        %v5077 = vmul.f32 %v4939, 0.03125
        %v5078 = vmul.f32 %v4942, 0.03125
        %v5079 = vmul.f32 %v4945, 0.03125
        %v5080 = vmul.f32 %v4948, 0.03125
        %v5081 = vmul.f32 %v4951, 0.03125
        %v5082 = vmul.f32 %v4954, 0.03125
        %v5083 = vmul.f32 %v4315, %v4315
        %v5084 = vmul.f32 %v4316, %v4316
        %v5085 = vmul.f32 %v4317, %v4317
        %v5086 = vmul.f32 %v4318, %v4318
        %v5087 = vmul.f32 %v4319, %v4319
        %v5088 = vmul.f32 %v4320, %v4320
        %v5089 = vmul.f32 %v4321, %v4321
        %v5090 = vmul.f32 %v4322, %v4322
        %v5091 = vmul.f32 %v4323, %v4323
        %v5092 = vmul.f32 %v4324, %v4324
        %v5093 = vmul.f32 %v4325, %v4325
        %v5094 = vmul.f32 %v4326, %v4326
        %v5095 = vmul.f32 %v4327, %v4327
        %v5096 = vmul.f32 %v4328, %v4328
        %v5097 = vmul.f32 %v4329, %v4329
        %v5098 = vmul.f32 %v4330, %v4330
        %v5099 = vmul.f32 %v4331, %v4331
        %v5100 = vmul.f32 %v4332, %v4332
        %v5101 = vmul.f32 %v4333, %v4333
        %v5102 = vmul.f32 %v4334, %v4334
        %v5103 = vmul.f32 %v4335, %v4335
        %v5104 = vmul.f32 %v4336, %v4336
        %v5105 = vmul.f32 %v4337, %v4337
        %v5106 = vmul.f32 %v4338, %v4338
        %v5107 = vmul.f32 %v4339, %v4339
        %v5108 = vmul.f32 %v4340, %v4340
        %v5109 = vmul.f32 %v4341, %v4341
        %v5110 = vmul.f32 %v4342, %v4342
        %v5111 = vmul.f32 %v4343, %v4343
        %v5112 = vmul.f32 %v4344, %v4344
        %v5113 = vmul.f32 %v4345, %v4345
        %v5114 = vmul.f32 %v4346, %v4346
        %v5115 = vmul.f32 %v4347, %v4347
        %v5116 = vmul.f32 %v4348, %v4348
        %v5117 = vmul.f32 %v4349, %v4349
        %v5118 = vmul.f32 %v4350, %v4350
        %v5119 = vmul.f32 %v4351, %v4351
        %v5120 = vmul.f32 %v4352, %v4352
        %v5121 = vmul.f32 %v4353, %v4353
        %v5122 = vmul.f32 %v4354, %v4354
        %v5123 = vmul.f32 %v4355, %v4355
        %v5124 = vmul.f32 %v4356, %v4356
        %v5125 = vmul.f32 %v4357, %v4357
        %v5126 = vmul.f32 %v4358, %v4358
        %v5127 = vmul.f32 %v4359, %v4359
        %v5128 = vmul.f32 %v4360, %v4360
        %v5129 = vmul.f32 %v4361, %v4361
        %v5130 = vmul.f32 %v4362, %v4362
        %v5131 = vmul.f32 %v4363, %v4363
        %v5132 = vmul.f32 %v4364, %v4364
        %v5133 = vmul.f32 %v4365, %v4365
        %v5134 = vmul.f32 %v4366, %v4366
        %v5135 = vmul.f32 %v4367, %v4367
        %v5136 = vmul.f32 %v4368, %v4368
        %v5137 = vmul.f32 %v4369, %v4369
        %v5138 = vmul.f32 %v4370, %v4370
        %v5139 = vmul.f32 %v4371, %v4371
        %v5140 = vmul.f32 %v4372, %v4372
        %v5141 = vmul.f32 %v4373, %v4373
        %v5142 = vmul.f32 %v4374, %v4374
        %v5143 = vmul.f32 %v4375, %v4375
        %v5144 = vmul.f32 %v4376, %v4376
        %v5145 = vmul.f32 %v4377, %v4377
        %v5146 = vmul.f32 %v4378, %v4378
        %v5147 = vmul.f32 %v4379, %v4379
        %v5148 = vmul.f32 %v4380, %v4380
        %v5149 = vmul.f32 %v4381, %v4381
        %v5150 = vmul.f32 %v4382, %v4382
        %v5151 = vmul.f32 %v4383, %v4383
        %v5152 = vmul.f32 %v4384, %v4384
        %v5153 = vmul.f32 %v4385, %v4385
        %v5154 = vmul.f32 %v4386, %v4386
        %v5155 = vmul.f32 %v4387, %v4387
        %v5156 = vmul.f32 %v4388, %v4388
        %v5157 = vmul.f32 %v4389, %v4389
        %v5158 = vmul.f32 %v4390, %v4390
        %v5159 = vmul.f32 %v4391, %v4391
        %v5160 = vmul.f32 %v4392, %v4392
        %v5161 = vmul.f32 %v4393, %v4393
        %v5162 = vmul.f32 %v4394, %v4394
        %v5163 = vmul.f32 %v4395, %v4395
        %v5164 = vmul.f32 %v4396, %v4396
        %v5165 = vmul.f32 %v4397, %v4397
        %v5166 = vmul.f32 %v4398, %v4398
        %v5167 = vmul.f32 %v4399, %v4399
        %v5168 = vmul.f32 %v4400, %v4400
        %v5169 = vmul.f32 %v4401, %v4401
        %v5170 = vmul.f32 %v4402, %v4402
        %v5171 = vmul.f32 %v4403, %v4403
        %v5172 = vmul.f32 %v4404, %v4404
        %v5173 = vmul.f32 %v4405, %v4405
        %v5174 = vmul.f32 %v4406, %v4406
        %v5175 = vmul.f32 %v4407, %v4407
        %v5176 = vmul.f32 %v4408, %v4408
        %v5177 = vmul.f32 %v4409, %v4409
        %v5178 = vmul.f32 %v4410, %v4410
        %v5179 = vmul.f32 %v4411, %v4411
        %v5180 = vmul.f32 %v4412, %v4412
        %v5181 = vmul.f32 %v4413, %v4413
        %v5182 = vmul.f32 %v4414, %v4414
        %v5183 = vmul.f32 %v4415, %v4415
        %v5184 = vmul.f32 %v4416, %v4416
        %v5185 = vmul.f32 %v4417, %v4417
        %v5186 = vmul.f32 %v4418, %v4418
        %v5187 = vmul.f32 %v4419, %v4419
        %v5188 = vmul.f32 %v4420, %v4420
        %v5189 = vmul.f32 %v4421, %v4421
        %v5190 = vmul.f32 %v4422, %v4422
        %v5191 = vmul.f32 %v4423, %v4423
        %v5192 = vmul.f32 %v4424, %v4424
        %v5193 = vmul.f32 %v4425, %v4425
        %v5194 = vmul.f32 %v4426, %v4426
        %v5195 = vmul.f32 %v4427, %v4427
        %v5196 = vmul.f32 %v4428, %v4428
        %v5197 = vmul.f32 %v4429, %v4429
        %v5198 = vmul.f32 %v4430, %v4430
        %v5199 = vmul.f32 %v4431, %v4431
        %v5200 = vmul.f32 %v4432, %v4432
        %v5201 = vmul.f32 %v4433, %v4433
        %v5202 = vmul.f32 %v4434, %v4434
        %v5203 = vmul.f32 %v4435, %v4435
        %v5204 = vmul.f32 %v4436, %v4436
        %v5205 = vmul.f32 %v4437, %v4437
        %v5206 = vmul.f32 %v4438, %v4438
        %v5207 = vmul.f32 %v4439, %v4439
        %v5208 = vmul.f32 %v4440, %v4440
        %v5209 = vmul.f32 %v4441, %v4441
        %v5210 = vmul.f32 %v4442, %v4442
        %v5211 = vsub.f32 %v4955, %v5083
        %v5212 = vsub.f32 %v4956, %v5084
        %v5213 = vsub.f32 %v4957, %v5085
        %v5214 = vsub.f32 %v4958, %v5086
        %v5215 = vsub.f32 %v4959, %v5087
        %v5216 = vsub.f32 %v4960, %v5088
        %v5217 = vsub.f32 %v4961, %v5089
        %v5218 = vsub.f32 %v4962, %v5090
        %v5219 = vsub.f32 %v4963, %v5091
        %v5220 = vsub.f32 %v4964, %v5092
        %v5221 = vsub.f32 %v4965, %v5093
        %v5222 = vsub.f32 %v4966, %v5094
        %v5223 = vsub.f32 %v4967, %v5095
        %v5224 = vsub.f32 %v4968, %v5096
        %v5225 = vsub.f32 %v4969, %v5097
        %v5226 = vsub.f32 %v4970, %v5098
        %v5227 = vsub.f32 %v4971, %v5099
        %v5228 = vsub.f32 %v4972, %v5100
        %v5229 = vsub.f32 %v4973, %v5101
        %v5230 = vsub.f32 %v4974, %v5102
        %v5231 = vsub.f32 %v4975, %v5103
        %v5232 = vsub.f32 %v4976, %v5104
        %v5233 = vsub.f32 %v4977, %v5105
        %v5234 = vsub.f32 %v4978, %v5106
        %v5235 = vsub.f32 %v4979, %v5107
        %v5236 = vsub.f32 %v4980, %v5108
        %v5237 = vsub.f32 %v4981, %v5109
        %v5238 = vsub.f32 %v4982, %v5110
        %v5239 = vsub.f32 %v4983, %v5111
        %v5240 = vsub.f32 %v4984, %v5112
        %v5241 = vsub.f32 %v4985, %v5113
        %v5242 = vsub.f32 %v4986, %v5114
        %v5243 = vsub.f32 %v4987, %v5115
        %v5244 = vsub.f32 %v4988, %v5116
        %v5245 = vsub.f32 %v4989, %v5117
        %v5246 = vsub.f32 %v4990, %v5118
        %v5247 = vsub.f32 %v4991, %v5119
        %v5248 = vsub.f32 %v4992, %v5120
        %v5249 = vsub.f32 %v4993, %v5121
        %v5250 = vsub.f32 %v4994, %v5122
        %v5251 = vsub.f32 %v4995, %v5123
        %v5252 = vsub.f32 %v4996, %v5124
        %v5253 = vsub.f32 %v4997, %v5125
        %v5254 = vsub.f32 %v4998, %v5126
        %v5255 = vsub.f32 %v4999, %v5127
        %v5256 = vsub.f32 %v5000, %v5128
        %v5257 = vsub.f32 %v5001, %v5129
        %v5258 = vsub.f32 %v5002, %v5130
        %v5259 = vsub.f32 %v5003, %v5131
        %v5260 = vsub.f32 %v5004, %v5132
        %v5261 = vsub.f32 %v5005, %v5133
        %v5262 = vsub.f32 %v5006, %v5134
        %v5263 = vsub.f32 %v5007, %v5135
        %v5264 = vsub.f32 %v5008, %v5136
        %v5265 = vsub.f32 %v5009, %v5137
        %v5266 = vsub.f32 %v5010, %v5138
        %v5267 = vsub.f32 %v5011, %v5139
        %v5268 = vsub.f32 %v5012, %v5140
        %v5269 = vsub.f32 %v5013, %v5141
        %v5270 = vsub.f32 %v5014, %v5142
        %v5271 = vsub.f32 %v5015, %v5143
        %v5272 = vsub.f32 %v5016, %v5144
        %v5273 = vsub.f32 %v5017, %v5145
        %v5274 = vsub.f32 %v5018, %v5146
        %v5275 = vsub.f32 %v5019, %v5147
        %v5276 = vsub.f32 %v5020, %v5148
        %v5277 = vsub.f32 %v5021, %v5149
        %v5278 = vsub.f32 %v5022, %v5150
        %v5279 = vsub.f32 %v5023, %v5151
        %v5280 = vsub.f32 %v5024, %v5152
        %v5281 = vsub.f32 %v5025, %v5153
        %v5282 = vsub.f32 %v5026, %v5154
        %v5283 = vsub.f32 %v5027, %v5155
        %v5284 = vsub.f32 %v5028, %v5156
        %v5285 = vsub.f32 %v5029, %v5157
        %v5286 = vsub.f32 %v5030, %v5158
        %v5287 = vsub.f32 %v5031, %v5159
        %v5288 = vsub.f32 %v5032, %v5160
        %v5289 = vsub.f32 %v5033, %v5161
        %v5290 = vsub.f32 %v5034, %v5162
        %v5291 = vsub.f32 %v5035, %v5163
        %v5292 = vsub.f32 %v5036, %v5164
        %v5293 = vsub.f32 %v5037, %v5165
        %v5294 = vsub.f32 %v5038, %v5166
        %v5295 = vsub.f32 %v5039, %v5167
        %v5296 = vsub.f32 %v5040, %v5168
        %v5297 = vsub.f32 %v5041, %v5169
        %v5298 = vsub.f32 %v5042, %v5170
        %v5299 = vsub.f32 %v5043, %v5171
        %v5300 = vsub.f32 %v5044, %v5172
        %v5301 = vsub.f32 %v5045, %v5173
        %v5302 = vsub.f32 %v5046, %v5174
        %v5303 = vsub.f32 %v5047, %v5175
        %v5304 = vsub.f32 %v5048, %v5176
        %v5305 = vsub.f32 %v5049, %v5177
        %v5306 = vsub.f32 %v5050, %v5178
        %v5307 = vsub.f32 %v5051, %v5179
        %v5308 = vsub.f32 %v5052, %v5180
        %v5309 = vsub.f32 %v5053, %v5181
        %v5310 = vsub.f32 %v5054, %v5182
        %v5311 = vsub.f32 %v5055, %v5183
        %v5312 = vsub.f32 %v5056, %v5184
        %v5313 = vsub.f32 %v5057, %v5185
        %v5314 = vsub.f32 %v5058, %v5186
        %v5315 = vsub.f32 %v5059, %v5187
        %v5316 = vsub.f32 %v5060, %v5188
        %v5317 = vsub.f32 %v5061, %v5189
        %v5318 = vsub.f32 %v5062, %v5190
        %v5319 = vsub.f32 %v5063, %v5191
        %v5320 = vsub.f32 %v5064, %v5192
        %v5321 = vsub.f32 %v5065, %v5193
        %v5322 = vsub.f32 %v5066, %v5194
        %v5323 = vsub.f32 %v5067, %v5195
        %v5324 = vsub.f32 %v5068, %v5196
        %v5325 = vsub.f32 %v5069, %v5197
        %v5326 = vsub.f32 %v5070, %v5198
        %v5327 = vsub.f32 %v5071, %v5199
        %v5328 = vsub.f32 %v5072, %v5200
        %v5329 = vsub.f32 %v5073, %v5201
        %v5330 = vsub.f32 %v5074, %v5202
        %v5331 = vsub.f32 %v5075, %v5203
        %v5332 = vsub.f32 %v5076, %v5204
        %v5333 = vsub.f32 %v5077, %v5205
        %v5334 = vsub.f32 %v5078, %v5206
        %v5335 = vsub.f32 %v5079, %v5207
        %v5336 = vsub.f32 %v5080, %v5208
        %v5337 = vsub.f32 %v5081, %v5209
        %v5338 = vsub.f32 %v5082, %v5210
        %v5339 = vadd.f32 %v5211, 1e-05
        %v5340 = vadd.f32 %v5212, 1e-05
        %v5341 = vadd.f32 %v5213, 1e-05
        %v5342 = vadd.f32 %v5214, 1e-05
        %v5343 = vadd.f32 %v5215, 1e-05
        %v5344 = vadd.f32 %v5216, 1e-05
        %v5345 = vadd.f32 %v5217, 1e-05
        %v5346 = vadd.f32 %v5218, 1e-05
        %v5347 = vadd.f32 %v5219, 1e-05
        %v5348 = vadd.f32 %v5220, 1e-05
        %v5349 = vadd.f32 %v5221, 1e-05
        %v5350 = vadd.f32 %v5222, 1e-05
        %v5351 = vadd.f32 %v5223, 1e-05
        %v5352 = vadd.f32 %v5224, 1e-05
        %v5353 = vadd.f32 %v5225, 1e-05
        %v5354 = vadd.f32 %v5226, 1e-05
        %v5355 = vadd.f32 %v5227, 1e-05
        %v5356 = vadd.f32 %v5228, 1e-05
        %v5357 = vadd.f32 %v5229, 1e-05
        %v5358 = vadd.f32 %v5230, 1e-05
        %v5359 = vadd.f32 %v5231, 1e-05
        %v5360 = vadd.f32 %v5232, 1e-05
        %v5361 = vadd.f32 %v5233, 1e-05
        %v5362 = vadd.f32 %v5234, 1e-05
        %v5363 = vadd.f32 %v5235, 1e-05
        %v5364 = vadd.f32 %v5236, 1e-05
        %v5365 = vadd.f32 %v5237, 1e-05
        %v5366 = vadd.f32 %v5238, 1e-05
        %v5367 = vadd.f32 %v5239, 1e-05
        %v5368 = vadd.f32 %v5240, 1e-05
        %v5369 = vadd.f32 %v5241, 1e-05
        %v5370 = vadd.f32 %v5242, 1e-05
        %v5371 = vadd.f32 %v5243, 1e-05
        %v5372 = vadd.f32 %v5244, 1e-05
        %v5373 = vadd.f32 %v5245, 1e-05
        %v5374 = vadd.f32 %v5246, 1e-05
        %v5375 = vadd.f32 %v5247, 1e-05
        %v5376 = vadd.f32 %v5248, 1e-05
        %v5377 = vadd.f32 %v5249, 1e-05
        %v5378 = vadd.f32 %v5250, 1e-05
        %v5379 = vadd.f32 %v5251, 1e-05
        %v5380 = vadd.f32 %v5252, 1e-05
        %v5381 = vadd.f32 %v5253, 1e-05
        %v5382 = vadd.f32 %v5254, 1e-05
        %v5383 = vadd.f32 %v5255, 1e-05
        %v5384 = vadd.f32 %v5256, 1e-05
        %v5385 = vadd.f32 %v5257, 1e-05
        %v5386 = vadd.f32 %v5258, 1e-05
        %v5387 = vadd.f32 %v5259, 1e-05
        %v5388 = vadd.f32 %v5260, 1e-05
        %v5389 = vadd.f32 %v5261, 1e-05
        %v5390 = vadd.f32 %v5262, 1e-05
        %v5391 = vadd.f32 %v5263, 1e-05
        %v5392 = vadd.f32 %v5264, 1e-05
        %v5393 = vadd.f32 %v5265, 1e-05
        %v5394 = vadd.f32 %v5266, 1e-05
        %v5395 = vadd.f32 %v5267, 1e-05
        %v5396 = vadd.f32 %v5268, 1e-05
        %v5397 = vadd.f32 %v5269, 1e-05
        %v5398 = vadd.f32 %v5270, 1e-05
        %v5399 = vadd.f32 %v5271, 1e-05
        %v5400 = vadd.f32 %v5272, 1e-05
        %v5401 = vadd.f32 %v5273, 1e-05
        %v5402 = vadd.f32 %v5274, 1e-05
        %v5403 = vadd.f32 %v5275, 1e-05
        %v5404 = vadd.f32 %v5276, 1e-05
        %v5405 = vadd.f32 %v5277, 1e-05
        %v5406 = vadd.f32 %v5278, 1e-05
        %v5407 = vadd.f32 %v5279, 1e-05
        %v5408 = vadd.f32 %v5280, 1e-05
        %v5409 = vadd.f32 %v5281, 1e-05
        %v5410 = vadd.f32 %v5282, 1e-05
        %v5411 = vadd.f32 %v5283, 1e-05
        %v5412 = vadd.f32 %v5284, 1e-05
        %v5413 = vadd.f32 %v5285, 1e-05
        %v5414 = vadd.f32 %v5286, 1e-05
        %v5415 = vadd.f32 %v5287, 1e-05
        %v5416 = vadd.f32 %v5288, 1e-05
        %v5417 = vadd.f32 %v5289, 1e-05
        %v5418 = vadd.f32 %v5290, 1e-05
        %v5419 = vadd.f32 %v5291, 1e-05
        %v5420 = vadd.f32 %v5292, 1e-05
        %v5421 = vadd.f32 %v5293, 1e-05
        %v5422 = vadd.f32 %v5294, 1e-05
        %v5423 = vadd.f32 %v5295, 1e-05
        %v5424 = vadd.f32 %v5296, 1e-05
        %v5425 = vadd.f32 %v5297, 1e-05
        %v5426 = vadd.f32 %v5298, 1e-05
        %v5427 = vadd.f32 %v5299, 1e-05
        %v5428 = vadd.f32 %v5300, 1e-05
        %v5429 = vadd.f32 %v5301, 1e-05
        %v5430 = vadd.f32 %v5302, 1e-05
        %v5431 = vadd.f32 %v5303, 1e-05
        %v5432 = vadd.f32 %v5304, 1e-05
        %v5433 = vadd.f32 %v5305, 1e-05
        %v5434 = vadd.f32 %v5306, 1e-05
        %v5435 = vadd.f32 %v5307, 1e-05
        %v5436 = vadd.f32 %v5308, 1e-05
        %v5437 = vadd.f32 %v5309, 1e-05
        %v5438 = vadd.f32 %v5310, 1e-05
        %v5439 = vadd.f32 %v5311, 1e-05
        %v5440 = vadd.f32 %v5312, 1e-05
        %v5441 = vadd.f32 %v5313, 1e-05
        %v5442 = vadd.f32 %v5314, 1e-05
        %v5443 = vadd.f32 %v5315, 1e-05
        %v5444 = vadd.f32 %v5316, 1e-05
        %v5445 = vadd.f32 %v5317, 1e-05
        %v5446 = vadd.f32 %v5318, 1e-05
        %v5447 = vadd.f32 %v5319, 1e-05
        %v5448 = vadd.f32 %v5320, 1e-05
        %v5449 = vadd.f32 %v5321, 1e-05
        %v5450 = vadd.f32 %v5322, 1e-05
        %v5451 = vadd.f32 %v5323, 1e-05
        %v5452 = vadd.f32 %v5324, 1e-05
        %v5453 = vadd.f32 %v5325, 1e-05
        %v5454 = vadd.f32 %v5326, 1e-05
        %v5455 = vadd.f32 %v5327, 1e-05
        %v5456 = vadd.f32 %v5328, 1e-05
        %v5457 = vadd.f32 %v5329, 1e-05
        %v5458 = vadd.f32 %v5330, 1e-05
        %v5459 = vadd.f32 %v5331, 1e-05
        %v5460 = vadd.f32 %v5332, 1e-05
        %v5461 = vadd.f32 %v5333, 1e-05
        %v5462 = vadd.f32 %v5334, 1e-05
        %v5463 = vadd.f32 %v5335, 1e-05
        %v5464 = vadd.f32 %v5336, 1e-05
        %v5465 = vadd.f32 %v5337, 1e-05
        %v5466 = vadd.f32 %v5338, 1e-05
        %v5467 = vrsqrt.pop %v5339
        %v5468 = vrsqrt.pop %v5340
        %v5469 = vrsqrt.pop %v5341
        %v5470 = vrsqrt.pop %v5342
        %v5471 = vrsqrt.pop %v5343
        %v5472 = vrsqrt.pop %v5344
        %v5473 = vrsqrt.pop %v5345
        %v5474 = vrsqrt.pop %v5346
        %v5475 = vrsqrt.pop %v5347
        %v5476 = vrsqrt.pop %v5348
        %v5477 = vrsqrt.pop %v5349
        %v5478 = vrsqrt.pop %v5350
        %v5479 = vrsqrt.pop %v5351
        %v5480 = vrsqrt.pop %v5352
        %v5481 = vrsqrt.pop %v5353
        %v5482 = vrsqrt.pop %v5354
        %v5483 = vrsqrt.pop %v5355
        %v5484 = vrsqrt.pop %v5356
        %v5485 = vrsqrt.pop %v5357
        %v5486 = vrsqrt.pop %v5358
        %v5487 = vrsqrt.pop %v5359
        %v5488 = vrsqrt.pop %v5360
        %v5489 = vrsqrt.pop %v5361
        %v5490 = vrsqrt.pop %v5362
        %v5491 = vrsqrt.pop %v5363
        %v5492 = vrsqrt.pop %v5364
        %v5493 = vrsqrt.pop %v5365
        %v5494 = vrsqrt.pop %v5366
        %v5495 = vrsqrt.pop %v5367
        %v5496 = vrsqrt.pop %v5368
        %v5497 = vrsqrt.pop %v5369
        %v5498 = vrsqrt.pop %v5370
        %v5499 = vrsqrt.pop %v5371
        %v5500 = vrsqrt.pop %v5372
        %v5501 = vrsqrt.pop %v5373
        %v5502 = vrsqrt.pop %v5374
        %v5503 = vrsqrt.pop %v5375
        %v5504 = vrsqrt.pop %v5376
        %v5505 = vrsqrt.pop %v5377
        %v5506 = vrsqrt.pop %v5378
        %v5507 = vrsqrt.pop %v5379
        %v5508 = vrsqrt.pop %v5380
        %v5509 = vrsqrt.pop %v5381
        %v5510 = vrsqrt.pop %v5382
        %v5511 = vrsqrt.pop %v5383
        %v5512 = vrsqrt.pop %v5384
        %v5513 = vrsqrt.pop %v5385
        %v5514 = vrsqrt.pop %v5386
        %v5515 = vrsqrt.pop %v5387
        %v5516 = vrsqrt.pop %v5388
        %v5517 = vrsqrt.pop %v5389
        %v5518 = vrsqrt.pop %v5390
        %v5519 = vrsqrt.pop %v5391
        %v5520 = vrsqrt.pop %v5392
        %v5521 = vrsqrt.pop %v5393
        %v5522 = vrsqrt.pop %v5394
        %v5523 = vrsqrt.pop %v5395
        %v5524 = vrsqrt.pop %v5396
        %v5525 = vrsqrt.pop %v5397
        %v5526 = vrsqrt.pop %v5398
        %v5527 = vrsqrt.pop %v5399
        %v5528 = vrsqrt.pop %v5400
        %v5529 = vrsqrt.pop %v5401
        %v5530 = vrsqrt.pop %v5402
        %v5531 = vrsqrt.pop %v5403
        %v5532 = vrsqrt.pop %v5404
        %v5533 = vrsqrt.pop %v5405
        %v5534 = vrsqrt.pop %v5406
        %v5535 = vrsqrt.pop %v5407
        %v5536 = vrsqrt.pop %v5408
        %v5537 = vrsqrt.pop %v5409
        %v5538 = vrsqrt.pop %v5410
        %v5539 = vrsqrt.pop %v5411
        %v5540 = vrsqrt.pop %v5412
        %v5541 = vrsqrt.pop %v5413
        %v5542 = vrsqrt.pop %v5414
        %v5543 = vrsqrt.pop %v5415
        %v5544 = vrsqrt.pop %v5416
        %v5545 = vrsqrt.pop %v5417
        %v5546 = vrsqrt.pop %v5418
        %v5547 = vrsqrt.pop %v5419
        %v5548 = vrsqrt.pop %v5420
        %v5549 = vrsqrt.pop %v5421
        %v5550 = vrsqrt.pop %v5422
        %v5551 = vrsqrt.pop %v5423
        %v5552 = vrsqrt.pop %v5424
        %v5553 = vrsqrt.pop %v5425
        %v5554 = vrsqrt.pop %v5426
        %v5555 = vrsqrt.pop %v5427
        %v5556 = vrsqrt.pop %v5428
        %v5557 = vrsqrt.pop %v5429
        %v5558 = vrsqrt.pop %v5430
        %v5559 = vrsqrt.pop %v5431
        %v5560 = vrsqrt.pop %v5432
        %v5561 = vrsqrt.pop %v5433
        %v5562 = vrsqrt.pop %v5434
        %v5563 = vrsqrt.pop %v5435
        %v5564 = vrsqrt.pop %v5436
        %v5565 = vrsqrt.pop %v5437
        %v5566 = vrsqrt.pop %v5438
        %v5567 = vrsqrt.pop %v5439
        %v5568 = vrsqrt.pop %v5440
        %v5569 = vrsqrt.pop %v5441
        %v5570 = vrsqrt.pop %v5442
        %v5571 = vrsqrt.pop %v5443
        %v5572 = vrsqrt.pop %v5444
        %v5573 = vrsqrt.pop %v5445
        %v5574 = vrsqrt.pop %v5446
        %v5575 = vrsqrt.pop %v5447
        %v5576 = vrsqrt.pop %v5448
        %v5577 = vrsqrt.pop %v5449
        %v5578 = vrsqrt.pop %v5450
        %v5579 = vrsqrt.pop %v5451
        %v5580 = vrsqrt.pop %v5452
        %v5581 = vrsqrt.pop %v5453
        %v5582 = vrsqrt.pop %v5454
        %v5583 = vrsqrt.pop %v5455
        %v5584 = vrsqrt.pop %v5456
        %v5585 = vrsqrt.pop %v5457
        %v5586 = vrsqrt.pop %v5458
        %v5587 = vrsqrt.pop %v5459
        %v5588 = vrsqrt.pop %v5460
        %v5589 = vrsqrt.pop %v5461
        %v5590 = vrsqrt.pop %v5462
        %v5591 = vrsqrt.pop %v5463
        %v5592 = vrsqrt.pop %v5464
        %v5593 = vrsqrt.pop %v5465
        %v5594 = vrsqrt.pop %v5466
        %v5595 = vsub.f32 %v3803, %v4315
        %v5596 = vsub.f32 %v3804, %v4316
        %v5597 = vsub.f32 %v3805, %v4317
        %v5598 = vsub.f32 %v3806, %v4318
        %v5599 = vsub.f32 %v3807, %v4319
        %v5600 = vsub.f32 %v3808, %v4320
        %v5601 = vsub.f32 %v3809, %v4321
        %v5602 = vsub.f32 %v3810, %v4322
        %v5603 = vsub.f32 %v3811, %v4323
        %v5604 = vsub.f32 %v3812, %v4324
        %v5605 = vsub.f32 %v3813, %v4325
        %v5606 = vsub.f32 %v3814, %v4326
        %v5607 = vsub.f32 %v3815, %v4327
        %v5608 = vsub.f32 %v3816, %v4328
        %v5609 = vsub.f32 %v3817, %v4329
        %v5610 = vsub.f32 %v3818, %v4330
        %v5611 = vsub.f32 %v3819, %v4331
        %v5612 = vsub.f32 %v3820, %v4332
        %v5613 = vsub.f32 %v3821, %v4333
        %v5614 = vsub.f32 %v3822, %v4334
        %v5615 = vsub.f32 %v3823, %v4335
        %v5616 = vsub.f32 %v3824, %v4336
        %v5617 = vsub.f32 %v3825, %v4337
        %v5618 = vsub.f32 %v3826, %v4338
        %v5619 = vsub.f32 %v3827, %v4339
        %v5620 = vsub.f32 %v3828, %v4340
        %v5621 = vsub.f32 %v3829, %v4341
        %v5622 = vsub.f32 %v3830, %v4342
        %v5623 = vsub.f32 %v3831, %v4343
        %v5624 = vsub.f32 %v3832, %v4344
        %v5625 = vsub.f32 %v3833, %v4345
        %v5626 = vsub.f32 %v3834, %v4346
        %v5627 = vsub.f32 %v3835, %v4347
        %v5628 = vsub.f32 %v3836, %v4348
        %v5629 = vsub.f32 %v3837, %v4349
        %v5630 = vsub.f32 %v3838, %v4350
        %v5631 = vsub.f32 %v3839, %v4351
        %v5632 = vsub.f32 %v3840, %v4352
        %v5633 = vsub.f32 %v3841, %v4353
        %v5634 = vsub.f32 %v3842, %v4354
        %v5635 = vsub.f32 %v3843, %v4355
        %v5636 = vsub.f32 %v3844, %v4356
        %v5637 = vsub.f32 %v3845, %v4357
        %v5638 = vsub.f32 %v3846, %v4358
        %v5639 = vsub.f32 %v3847, %v4359
        %v5640 = vsub.f32 %v3848, %v4360
        %v5641 = vsub.f32 %v3849, %v4361
        %v5642 = vsub.f32 %v3850, %v4362
        %v5643 = vsub.f32 %v3851, %v4363
        %v5644 = vsub.f32 %v3852, %v4364
        %v5645 = vsub.f32 %v3853, %v4365
        %v5646 = vsub.f32 %v3854, %v4366
        %v5647 = vsub.f32 %v3855, %v4367
        %v5648 = vsub.f32 %v3856, %v4368
        %v5649 = vsub.f32 %v3857, %v4369
        %v5650 = vsub.f32 %v3858, %v4370
        %v5651 = vsub.f32 %v3859, %v4371
        %v5652 = vsub.f32 %v3860, %v4372
        %v5653 = vsub.f32 %v3861, %v4373
        %v5654 = vsub.f32 %v3862, %v4374
        %v5655 = vsub.f32 %v3863, %v4375
        %v5656 = vsub.f32 %v3864, %v4376
        %v5657 = vsub.f32 %v3865, %v4377
        %v5658 = vsub.f32 %v3866, %v4378
        %v5659 = vsub.f32 %v3867, %v4379
        %v5660 = vsub.f32 %v3868, %v4380
        %v5661 = vsub.f32 %v3869, %v4381
        %v5662 = vsub.f32 %v3870, %v4382
        %v5663 = vsub.f32 %v3871, %v4383
        %v5664 = vsub.f32 %v3872, %v4384
        %v5665 = vsub.f32 %v3873, %v4385
        %v5666 = vsub.f32 %v3874, %v4386
        %v5667 = vsub.f32 %v3875, %v4387
        %v5668 = vsub.f32 %v3876, %v4388
        %v5669 = vsub.f32 %v3877, %v4389
        %v5670 = vsub.f32 %v3878, %v4390
        %v5671 = vsub.f32 %v3879, %v4391
        %v5672 = vsub.f32 %v3880, %v4392
        %v5673 = vsub.f32 %v3881, %v4393
        %v5674 = vsub.f32 %v3882, %v4394
        %v5675 = vsub.f32 %v3883, %v4395
        %v5676 = vsub.f32 %v3884, %v4396
        %v5677 = vsub.f32 %v3885, %v4397
        %v5678 = vsub.f32 %v3886, %v4398
        %v5679 = vsub.f32 %v3887, %v4399
        %v5680 = vsub.f32 %v3888, %v4400
        %v5681 = vsub.f32 %v3889, %v4401
        %v5682 = vsub.f32 %v3890, %v4402
        %v5683 = vsub.f32 %v3891, %v4403
        %v5684 = vsub.f32 %v3892, %v4404
        %v5685 = vsub.f32 %v3893, %v4405
        %v5686 = vsub.f32 %v3894, %v4406
        %v5687 = vsub.f32 %v3895, %v4407
        %v5688 = vsub.f32 %v3896, %v4408
        %v5689 = vsub.f32 %v3897, %v4409
        %v5690 = vsub.f32 %v3898, %v4410
        %v5691 = vsub.f32 %v3899, %v4411
        %v5692 = vsub.f32 %v3900, %v4412
        %v5693 = vsub.f32 %v3901, %v4413
        %v5694 = vsub.f32 %v3902, %v4414
        %v5695 = vsub.f32 %v3903, %v4415
        %v5696 = vsub.f32 %v3904, %v4416
        %v5697 = vsub.f32 %v3905, %v4417
        %v5698 = vsub.f32 %v3906, %v4418
        %v5699 = vsub.f32 %v3907, %v4419
        %v5700 = vsub.f32 %v3908, %v4420
        %v5701 = vsub.f32 %v3909, %v4421
        %v5702 = vsub.f32 %v3910, %v4422
        %v5703 = vsub.f32 %v3911, %v4423
        %v5704 = vsub.f32 %v3912, %v4424
        %v5705 = vsub.f32 %v3913, %v4425
        %v5706 = vsub.f32 %v3914, %v4426
        %v5707 = vsub.f32 %v3915, %v4427
        %v5708 = vsub.f32 %v3916, %v4428
        %v5709 = vsub.f32 %v3917, %v4429
        %v5710 = vsub.f32 %v3918, %v4430
        %v5711 = vsub.f32 %v3919, %v4431
        %v5712 = vsub.f32 %v3920, %v4432
        %v5713 = vsub.f32 %v3921, %v4433
        %v5714 = vsub.f32 %v3922, %v4434
        %v5715 = vsub.f32 %v3923, %v4435
        %v5716 = vsub.f32 %v3924, %v4436
        %v5717 = vsub.f32 %v3925, %v4437
        %v5718 = vsub.f32 %v3926, %v4438
        %v5719 = vsub.f32 %v3927, %v4439
        %v5720 = vsub.f32 %v3928, %v4440
        %v5721 = vsub.f32 %v3929, %v4441
        %v5722 = vsub.f32 %v3930, %v4442
        %v5723 = vmul.f32 %v5595, %v5467
        %v5724 = vmul.f32 %v5596, %v5468
        %v5725 = vmul.f32 %v5597, %v5469
        %v5726 = vmul.f32 %v5598, %v5470
        %v5727 = vmul.f32 %v5599, %v5471
        %v5728 = vmul.f32 %v5600, %v5472
        %v5729 = vmul.f32 %v5601, %v5473
        %v5730 = vmul.f32 %v5602, %v5474
        %v5731 = vmul.f32 %v5603, %v5475
        %v5732 = vmul.f32 %v5604, %v5476
        %v5733 = vmul.f32 %v5605, %v5477
        %v5734 = vmul.f32 %v5606, %v5478
        %v5735 = vmul.f32 %v5607, %v5479
        %v5736 = vmul.f32 %v5608, %v5480
        %v5737 = vmul.f32 %v5609, %v5481
        %v5738 = vmul.f32 %v5610, %v5482
        %v5739 = vmul.f32 %v5611, %v5483
        %v5740 = vmul.f32 %v5612, %v5484
        %v5741 = vmul.f32 %v5613, %v5485
        %v5742 = vmul.f32 %v5614, %v5486
        %v5743 = vmul.f32 %v5615, %v5487
        %v5744 = vmul.f32 %v5616, %v5488
        %v5745 = vmul.f32 %v5617, %v5489
        %v5746 = vmul.f32 %v5618, %v5490
        %v5747 = vmul.f32 %v5619, %v5491
        %v5748 = vmul.f32 %v5620, %v5492
        %v5749 = vmul.f32 %v5621, %v5493
        %v5750 = vmul.f32 %v5622, %v5494
        %v5751 = vmul.f32 %v5623, %v5495
        %v5752 = vmul.f32 %v5624, %v5496
        %v5753 = vmul.f32 %v5625, %v5497
        %v5754 = vmul.f32 %v5626, %v5498
        %v5755 = vmul.f32 %v5627, %v5499
        %v5756 = vmul.f32 %v5628, %v5500
        %v5757 = vmul.f32 %v5629, %v5501
        %v5758 = vmul.f32 %v5630, %v5502
        %v5759 = vmul.f32 %v5631, %v5503
        %v5760 = vmul.f32 %v5632, %v5504
        %v5761 = vmul.f32 %v5633, %v5505
        %v5762 = vmul.f32 %v5634, %v5506
        %v5763 = vmul.f32 %v5635, %v5507
        %v5764 = vmul.f32 %v5636, %v5508
        %v5765 = vmul.f32 %v5637, %v5509
        %v5766 = vmul.f32 %v5638, %v5510
        %v5767 = vmul.f32 %v5639, %v5511
        %v5768 = vmul.f32 %v5640, %v5512
        %v5769 = vmul.f32 %v5641, %v5513
        %v5770 = vmul.f32 %v5642, %v5514
        %v5771 = vmul.f32 %v5643, %v5515
        %v5772 = vmul.f32 %v5644, %v5516
        %v5773 = vmul.f32 %v5645, %v5517
        %v5774 = vmul.f32 %v5646, %v5518
        %v5775 = vmul.f32 %v5647, %v5519
        %v5776 = vmul.f32 %v5648, %v5520
        %v5777 = vmul.f32 %v5649, %v5521
        %v5778 = vmul.f32 %v5650, %v5522
        %v5779 = vmul.f32 %v5651, %v5523
        %v5780 = vmul.f32 %v5652, %v5524
        %v5781 = vmul.f32 %v5653, %v5525
        %v5782 = vmul.f32 %v5654, %v5526
        %v5783 = vmul.f32 %v5655, %v5527
        %v5784 = vmul.f32 %v5656, %v5528
        %v5785 = vmul.f32 %v5657, %v5529
        %v5786 = vmul.f32 %v5658, %v5530
        %v5787 = vmul.f32 %v5659, %v5531
        %v5788 = vmul.f32 %v5660, %v5532
        %v5789 = vmul.f32 %v5661, %v5533
        %v5790 = vmul.f32 %v5662, %v5534
        %v5791 = vmul.f32 %v5663, %v5535
        %v5792 = vmul.f32 %v5664, %v5536
        %v5793 = vmul.f32 %v5665, %v5537
        %v5794 = vmul.f32 %v5666, %v5538
        %v5795 = vmul.f32 %v5667, %v5539
        %v5796 = vmul.f32 %v5668, %v5540
        %v5797 = vmul.f32 %v5669, %v5541
        %v5798 = vmul.f32 %v5670, %v5542
        %v5799 = vmul.f32 %v5671, %v5543
        %v5800 = vmul.f32 %v5672, %v5544
        %v5801 = vmul.f32 %v5673, %v5545
        %v5802 = vmul.f32 %v5674, %v5546
        %v5803 = vmul.f32 %v5675, %v5547
        %v5804 = vmul.f32 %v5676, %v5548
        %v5805 = vmul.f32 %v5677, %v5549
        %v5806 = vmul.f32 %v5678, %v5550
        %v5807 = vmul.f32 %v5679, %v5551
        %v5808 = vmul.f32 %v5680, %v5552
        %v5809 = vmul.f32 %v5681, %v5553
        %v5810 = vmul.f32 %v5682, %v5554
        %v5811 = vmul.f32 %v5683, %v5555
        %v5812 = vmul.f32 %v5684, %v5556
        %v5813 = vmul.f32 %v5685, %v5557
        %v5814 = vmul.f32 %v5686, %v5558
        %v5815 = vmul.f32 %v5687, %v5559
        %v5816 = vmul.f32 %v5688, %v5560
        %v5817 = vmul.f32 %v5689, %v5561
        %v5818 = vmul.f32 %v5690, %v5562
        %v5819 = vmul.f32 %v5691, %v5563
        %v5820 = vmul.f32 %v5692, %v5564
        %v5821 = vmul.f32 %v5693, %v5565
        %v5822 = vmul.f32 %v5694, %v5566
        %v5823 = vmul.f32 %v5695, %v5567
        %v5824 = vmul.f32 %v5696, %v5568
        %v5825 = vmul.f32 %v5697, %v5569
        %v5826 = vmul.f32 %v5698, %v5570
        %v5827 = vmul.f32 %v5699, %v5571
        %v5828 = vmul.f32 %v5700, %v5572
        %v5829 = vmul.f32 %v5701, %v5573
        %v5830 = vmul.f32 %v5702, %v5574
        %v5831 = vmul.f32 %v5703, %v5575
        %v5832 = vmul.f32 %v5704, %v5576
        %v5833 = vmul.f32 %v5705, %v5577
        %v5834 = vmul.f32 %v5706, %v5578
        %v5835 = vmul.f32 %v5707, %v5579
        %v5836 = vmul.f32 %v5708, %v5580
        %v5837 = vmul.f32 %v5709, %v5581
        %v5838 = vmul.f32 %v5710, %v5582
        %v5839 = vmul.f32 %v5711, %v5583
        %v5840 = vmul.f32 %v5712, %v5584
        %v5841 = vmul.f32 %v5713, %v5585
        %v5842 = vmul.f32 %v5714, %v5586
        %v5843 = vmul.f32 %v5715, %v5587
        %v5844 = vmul.f32 %v5716, %v5588
        %v5845 = vmul.f32 %v5717, %v5589
        %v5846 = vmul.f32 %v5718, %v5590
        %v5847 = vmul.f32 %v5719, %v5591
        %v5848 = vmul.f32 %v5720, %v5592
        %v5849 = vmul.f32 %v5721, %v5593
        %v5850 = vmul.f32 %v5722, %v5594
        %v5851 = vlaneseq
        %v5852 = vshrl.u32 %v5851, 7
        %v5853 = vsub.s32 0, %v5852
        %v5854 = vrot.slane %v470, %v5853
        %v5855 = vmul.f32 %v5723, %v5854
        %v5856 = vmul.f32 %v5724, %v5854
        %v5857 = vmul.f32 %v5725, %v5854
        %v5858 = vmul.f32 %v5726, %v5854
        %v5859 = vmul.f32 %v5727, %v5854
        %v5860 = vmul.f32 %v5728, %v5854
        %v5861 = vmul.f32 %v5729, %v5854
        %v5862 = vmul.f32 %v5730, %v5854
        %v5863 = vmul.f32 %v5731, %v5854
        %v5864 = vmul.f32 %v5732, %v5854
        %v5865 = vmul.f32 %v5733, %v5854
        %v5866 = vmul.f32 %v5734, %v5854
        %v5867 = vmul.f32 %v5735, %v5854
        %v5868 = vmul.f32 %v5736, %v5854
        %v5869 = vmul.f32 %v5737, %v5854
        %v5870 = vmul.f32 %v5738, %v5854
        %v5871 = vmul.f32 %v5739, %v5854
        %v5872 = vmul.f32 %v5740, %v5854
        %v5873 = vmul.f32 %v5741, %v5854
        %v5874 = vmul.f32 %v5742, %v5854
        %v5875 = vmul.f32 %v5743, %v5854
        %v5876 = vmul.f32 %v5744, %v5854
        %v5877 = vmul.f32 %v5745, %v5854
        %v5878 = vmul.f32 %v5746, %v5854
        %v5879 = vmul.f32 %v5747, %v5854
        %v5880 = vmul.f32 %v5748, %v5854
        %v5881 = vmul.f32 %v5749, %v5854
        %v5882 = vmul.f32 %v5750, %v5854
        %v5883 = vmul.f32 %v5751, %v5854
        %v5884 = vmul.f32 %v5752, %v5854
        %v5885 = vmul.f32 %v5753, %v5854
        %v5886 = vmul.f32 %v5754, %v5854
        %v5887 = vmul.f32 %v5755, %v5854
        %v5888 = vmul.f32 %v5756, %v5854
        %v5889 = vmul.f32 %v5757, %v5854
        %v5890 = vmul.f32 %v5758, %v5854
        %v5891 = vmul.f32 %v5759, %v5854
        %v5892 = vmul.f32 %v5760, %v5854
        %v5893 = vmul.f32 %v5761, %v5854
        %v5894 = vmul.f32 %v5762, %v5854
        %v5895 = vmul.f32 %v5763, %v5854
        %v5896 = vmul.f32 %v5764, %v5854
        %v5897 = vmul.f32 %v5765, %v5854
        %v5898 = vmul.f32 %v5766, %v5854
        %v5899 = vmul.f32 %v5767, %v5854
        %v5900 = vmul.f32 %v5768, %v5854
        %v5901 = vmul.f32 %v5769, %v5854
        %v5902 = vmul.f32 %v5770, %v5854
        %v5903 = vmul.f32 %v5771, %v5854
        %v5904 = vmul.f32 %v5772, %v5854
        %v5905 = vmul.f32 %v5773, %v5854
        %v5906 = vmul.f32 %v5774, %v5854
        %v5907 = vmul.f32 %v5775, %v5854
        %v5908 = vmul.f32 %v5776, %v5854
        %v5909 = vmul.f32 %v5777, %v5854
        %v5910 = vmul.f32 %v5778, %v5854
        %v5911 = vmul.f32 %v5779, %v5854
        %v5912 = vmul.f32 %v5780, %v5854
        %v5913 = vmul.f32 %v5781, %v5854
        %v5914 = vmul.f32 %v5782, %v5854
        %v5915 = vmul.f32 %v5783, %v5854
        %v5916 = vmul.f32 %v5784, %v5854
        %v5917 = vmul.f32 %v5785, %v5854
        %v5918 = vmul.f32 %v5786, %v5854
        %v5919 = vmul.f32 %v5787, %v5854
        %v5920 = vmul.f32 %v5788, %v5854
        %v5921 = vmul.f32 %v5789, %v5854
        %v5922 = vmul.f32 %v5790, %v5854
        %v5923 = vmul.f32 %v5791, %v5854
        %v5924 = vmul.f32 %v5792, %v5854
        %v5925 = vmul.f32 %v5793, %v5854
        %v5926 = vmul.f32 %v5794, %v5854
        %v5927 = vmul.f32 %v5795, %v5854
        %v5928 = vmul.f32 %v5796, %v5854
        %v5929 = vmul.f32 %v5797, %v5854
        %v5930 = vmul.f32 %v5798, %v5854
        %v5931 = vmul.f32 %v5799, %v5854
        %v5932 = vmul.f32 %v5800, %v5854
        %v5933 = vmul.f32 %v5801, %v5854
        %v5934 = vmul.f32 %v5802, %v5854
        %v5935 = vmul.f32 %v5803, %v5854
        %v5936 = vmul.f32 %v5804, %v5854
        %v5937 = vmul.f32 %v5805, %v5854
        %v5938 = vmul.f32 %v5806, %v5854
        %v5939 = vmul.f32 %v5807, %v5854
        %v5940 = vmul.f32 %v5808, %v5854
        %v5941 = vmul.f32 %v5809, %v5854
        %v5942 = vmul.f32 %v5810, %v5854
        %v5943 = vmul.f32 %v5811, %v5854
        %v5944 = vmul.f32 %v5812, %v5854
        %v5945 = vmul.f32 %v5813, %v5854
        %v5946 = vmul.f32 %v5814, %v5854
        %v5947 = vmul.f32 %v5815, %v5854
        %v5948 = vmul.f32 %v5816, %v5854
        %v5949 = vmul.f32 %v5817, %v5854
        %v5950 = vmul.f32 %v5818, %v5854
        %v5951 = vmul.f32 %v5819, %v5854
        %v5952 = vmul.f32 %v5820, %v5854
        %v5953 = vmul.f32 %v5821, %v5854
        %v5954 = vmul.f32 %v5822, %v5854
        %v5955 = vmul.f32 %v5823, %v5854
        %v5956 = vmul.f32 %v5824, %v5854
        %v5957 = vmul.f32 %v5825, %v5854
        %v5958 = vmul.f32 %v5826, %v5854
        %v5959 = vmul.f32 %v5827, %v5854
        %v5960 = vmul.f32 %v5828, %v5854
        %v5961 = vmul.f32 %v5829, %v5854
        %v5962 = vmul.f32 %v5830, %v5854
        %v5963 = vmul.f32 %v5831, %v5854
        %v5964 = vmul.f32 %v5832, %v5854
        %v5965 = vmul.f32 %v5833, %v5854
        %v5966 = vmul.f32 %v5834, %v5854
        %v5967 = vmul.f32 %v5835, %v5854
        %v5968 = vmul.f32 %v5836, %v5854
        %v5969 = vmul.f32 %v5837, %v5854
        %v5970 = vmul.f32 %v5838, %v5854
        %v5971 = vmul.f32 %v5839, %v5854
        %v5972 = vmul.f32 %v5840, %v5854
        %v5973 = vmul.f32 %v5841, %v5854
        %v5974 = vmul.f32 %v5842, %v5854
        %v5975 = vmul.f32 %v5843, %v5854
        %v5976 = vmul.f32 %v5844, %v5854
        %v5977 = vmul.f32 %v5845, %v5854
        %v5978 = vmul.f32 %v5846, %v5854
        %v5979 = vmul.f32 %v5847, %v5854
        %v5980 = vmul.f32 %v5848, %v5854
        %v5981 = vmul.f32 %v5849, %v5854
        %v5982 = vmul.f32 %v5850, %v5854
        %v5983 = vlaneseq
        %v5984 = vshrl.u32 %v5983, 7
        %v5985 = vsub.s32 0, %v5984
        %v5986 = vrot.slane %v471, %v5985
        %v5987 = vadd.f32 %v5855, %v5986
        %v5988 = vadd.f32 %v5856, %v5986
        %v5989 = vadd.f32 %v5857, %v5986
        %v5990 = vadd.f32 %v5858, %v5986
        %v5991 = vadd.f32 %v5859, %v5986
        %v5992 = vadd.f32 %v5860, %v5986
        %v5993 = vadd.f32 %v5861, %v5986
        %v5994 = vadd.f32 %v5862, %v5986
        %v5995 = vadd.f32 %v5863, %v5986
        %v5996 = vadd.f32 %v5864, %v5986
        %v5997 = vadd.f32 %v5865, %v5986
        %v5998 = vadd.f32 %v5866, %v5986
        %v5999 = vadd.f32 %v5867, %v5986
        %v6000 = vadd.f32 %v5868, %v5986
        %v6001 = vadd.f32 %v5869, %v5986
        %v6002 = vadd.f32 %v5870, %v5986
        %v6003 = vadd.f32 %v5871, %v5986
        %v6004 = vadd.f32 %v5872, %v5986
        %v6005 = vadd.f32 %v5873, %v5986
        %v6006 = vadd.f32 %v5874, %v5986
        %v6007 = vadd.f32 %v5875, %v5986
        %v6008 = vadd.f32 %v5876, %v5986
        %v6009 = vadd.f32 %v5877, %v5986
        %v6010 = vadd.f32 %v5878, %v5986
        %v6011 = vadd.f32 %v5879, %v5986
        %v6012 = vadd.f32 %v5880, %v5986
        %v6013 = vadd.f32 %v5881, %v5986
        %v6014 = vadd.f32 %v5882, %v5986
        %v6015 = vadd.f32 %v5883, %v5986
        %v6016 = vadd.f32 %v5884, %v5986
        %v6017 = vadd.f32 %v5885, %v5986
        %v6018 = vadd.f32 %v5886, %v5986
        %v6019 = vadd.f32 %v5887, %v5986
        %v6020 = vadd.f32 %v5888, %v5986
        %v6021 = vadd.f32 %v5889, %v5986
        %v6022 = vadd.f32 %v5890, %v5986
        %v6023 = vadd.f32 %v5891, %v5986
        %v6024 = vadd.f32 %v5892, %v5986
        %v6025 = vadd.f32 %v5893, %v5986
        %v6026 = vadd.f32 %v5894, %v5986
        %v6027 = vadd.f32 %v5895, %v5986
        %v6028 = vadd.f32 %v5896, %v5986
        %v6029 = vadd.f32 %v5897, %v5986
        %v6030 = vadd.f32 %v5898, %v5986
        %v6031 = vadd.f32 %v5899, %v5986
        %v6032 = vadd.f32 %v5900, %v5986
        %v6033 = vadd.f32 %v5901, %v5986
        %v6034 = vadd.f32 %v5902, %v5986
        %v6035 = vadd.f32 %v5903, %v5986
        %v6036 = vadd.f32 %v5904, %v5986
        %v6037 = vadd.f32 %v5905, %v5986
        %v6038 = vadd.f32 %v5906, %v5986
        %v6039 = vadd.f32 %v5907, %v5986
        %v6040 = vadd.f32 %v5908, %v5986
        %v6041 = vadd.f32 %v5909, %v5986
        %v6042 = vadd.f32 %v5910, %v5986
        %v6043 = vadd.f32 %v5911, %v5986
        %v6044 = vadd.f32 %v5912, %v5986
        %v6045 = vadd.f32 %v5913, %v5986
        %v6046 = vadd.f32 %v5914, %v5986
        %v6047 = vadd.f32 %v5915, %v5986
        %v6048 = vadd.f32 %v5916, %v5986
        %v6049 = vadd.f32 %v5917, %v5986
        %v6050 = vadd.f32 %v5918, %v5986
        %v6051 = vadd.f32 %v5919, %v5986
        %v6052 = vadd.f32 %v5920, %v5986
        %v6053 = vadd.f32 %v5921, %v5986
        %v6054 = vadd.f32 %v5922, %v5986
        %v6055 = vadd.f32 %v5923, %v5986
        %v6056 = vadd.f32 %v5924, %v5986
        %v6057 = vadd.f32 %v5925, %v5986
        %v6058 = vadd.f32 %v5926, %v5986
        %v6059 = vadd.f32 %v5927, %v5986
        %v6060 = vadd.f32 %v5928, %v5986
        %v6061 = vadd.f32 %v5929, %v5986
        %v6062 = vadd.f32 %v5930, %v5986
        %v6063 = vadd.f32 %v5931, %v5986
        %v6064 = vadd.f32 %v5932, %v5986
        %v6065 = vadd.f32 %v5933, %v5986
        %v6066 = vadd.f32 %v5934, %v5986
        %v6067 = vadd.f32 %v5935, %v5986
        %v6068 = vadd.f32 %v5936, %v5986
        %v6069 = vadd.f32 %v5937, %v5986
        %v6070 = vadd.f32 %v5938, %v5986
        %v6071 = vadd.f32 %v5939, %v5986
        %v6072 = vadd.f32 %v5940, %v5986
        %v6073 = vadd.f32 %v5941, %v5986
        %v6074 = vadd.f32 %v5942, %v5986
        %v6075 = vadd.f32 %v5943, %v5986
        %v6076 = vadd.f32 %v5944, %v5986
        %v6077 = vadd.f32 %v5945, %v5986
        %v6078 = vadd.f32 %v5946, %v5986
        %v6079 = vadd.f32 %v5947, %v5986
        %v6080 = vadd.f32 %v5948, %v5986
        %v6081 = vadd.f32 %v5949, %v5986
        %v6082 = vadd.f32 %v5950, %v5986
        %v6083 = vadd.f32 %v5951, %v5986
        %v6084 = vadd.f32 %v5952, %v5986
        %v6085 = vadd.f32 %v5953, %v5986
        %v6086 = vadd.f32 %v5954, %v5986
        %v6087 = vadd.f32 %v5955, %v5986
        %v6088 = vadd.f32 %v5956, %v5986
        %v6089 = vadd.f32 %v5957, %v5986
        %v6090 = vadd.f32 %v5958, %v5986
        %v6091 = vadd.f32 %v5959, %v5986
        %v6092 = vadd.f32 %v5960, %v5986
        %v6093 = vadd.f32 %v5961, %v5986
        %v6094 = vadd.f32 %v5962, %v5986
        %v6095 = vadd.f32 %v5963, %v5986
        %v6096 = vadd.f32 %v5964, %v5986
        %v6097 = vadd.f32 %v5965, %v5986
        %v6098 = vadd.f32 %v5966, %v5986
        %v6099 = vadd.f32 %v5967, %v5986
        %v6100 = vadd.f32 %v5968, %v5986
        %v6101 = vadd.f32 %v5969, %v5986
        %v6102 = vadd.f32 %v5970, %v5986
        %v6103 = vadd.f32 %v5971, %v5986
        %v6104 = vadd.f32 %v5972, %v5986
        %v6105 = vadd.f32 %v5973, %v5986
        %v6106 = vadd.f32 %v5974, %v5986
        %v6107 = vadd.f32 %v5975, %v5986
        %v6108 = vadd.f32 %v5976, %v5986
        %v6109 = vadd.f32 %v5977, %v5986
        %v6110 = vadd.f32 %v5978, %v5986
        %v6111 = vadd.f32 %v5979, %v5986
        %v6112 = vadd.f32 %v5980, %v5986
        %v6113 = vadd.f32 %v5981, %v5986
        %v6114 = vadd.f32 %v5982, %v5986
        %v6115 = vmax.f32 %v5987, 0.0
        %v6116 = vmax.f32 %v5988, 0.0
        %v6117 = vmax.f32 %v5989, 0.0
        %v6118 = vmax.f32 %v5990, 0.0
        %v6119 = vmax.f32 %v5991, 0.0
        %v6120 = vmax.f32 %v5992, 0.0
        %v6121 = vmax.f32 %v5993, 0.0
        %v6122 = vmax.f32 %v5994, 0.0
        %v6123 = vmax.f32 %v5995, 0.0
        %v6124 = vmax.f32 %v5996, 0.0
        %v6125 = vmax.f32 %v5997, 0.0
        %v6126 = vmax.f32 %v5998, 0.0
        %v6127 = vmax.f32 %v5999, 0.0
        %v6128 = vmax.f32 %v6000, 0.0
        %v6129 = vmax.f32 %v6001, 0.0
        %v6130 = vmax.f32 %v6002, 0.0
        %v6131 = vmax.f32 %v6003, 0.0
        %v6132 = vmax.f32 %v6004, 0.0
        %v6133 = vmax.f32 %v6005, 0.0
        %v6134 = vmax.f32 %v6006, 0.0
        %v6135 = vmax.f32 %v6007, 0.0
        %v6136 = vmax.f32 %v6008, 0.0
        %v6137 = vmax.f32 %v6009, 0.0
        %v6138 = vmax.f32 %v6010, 0.0
        %v6139 = vmax.f32 %v6011, 0.0
        %v6140 = vmax.f32 %v6012, 0.0
        %v6141 = vmax.f32 %v6013, 0.0
        %v6142 = vmax.f32 %v6014, 0.0
        %v6143 = vmax.f32 %v6015, 0.0
        %v6144 = vmax.f32 %v6016, 0.0
        %v6145 = vmax.f32 %v6017, 0.0
        %v6146 = vmax.f32 %v6018, 0.0
        %v6147 = vmax.f32 %v6019, 0.0
        %v6148 = vmax.f32 %v6020, 0.0
        %v6149 = vmax.f32 %v6021, 0.0
        %v6150 = vmax.f32 %v6022, 0.0
        %v6151 = vmax.f32 %v6023, 0.0
        %v6152 = vmax.f32 %v6024, 0.0
        %v6153 = vmax.f32 %v6025, 0.0
        %v6154 = vmax.f32 %v6026, 0.0
        %v6155 = vmax.f32 %v6027, 0.0
        %v6156 = vmax.f32 %v6028, 0.0
        %v6157 = vmax.f32 %v6029, 0.0
        %v6158 = vmax.f32 %v6030, 0.0
        %v6159 = vmax.f32 %v6031, 0.0
        %v6160 = vmax.f32 %v6032, 0.0
        %v6161 = vmax.f32 %v6033, 0.0
        %v6162 = vmax.f32 %v6034, 0.0
        %v6163 = vmax.f32 %v6035, 0.0
        %v6164 = vmax.f32 %v6036, 0.0
        %v6165 = vmax.f32 %v6037, 0.0
        %v6166 = vmax.f32 %v6038, 0.0
        %v6167 = vmax.f32 %v6039, 0.0
        %v6168 = vmax.f32 %v6040, 0.0
        %v6169 = vmax.f32 %v6041, 0.0
        %v6170 = vmax.f32 %v6042, 0.0
        %v6171 = vmax.f32 %v6043, 0.0
        %v6172 = vmax.f32 %v6044, 0.0
        %v6173 = vmax.f32 %v6045, 0.0
        %v6174 = vmax.f32 %v6046, 0.0
        %v6175 = vmax.f32 %v6047, 0.0
        %v6176 = vmax.f32 %v6048, 0.0
        %v6177 = vmax.f32 %v6049, 0.0
        %v6178 = vmax.f32 %v6050, 0.0
        %v6179 = vmax.f32 %v6051, 0.0
        %v6180 = vmax.f32 %v6052, 0.0
        %v6181 = vmax.f32 %v6053, 0.0
        %v6182 = vmax.f32 %v6054, 0.0
        %v6183 = vmax.f32 %v6055, 0.0
        %v6184 = vmax.f32 %v6056, 0.0
        %v6185 = vmax.f32 %v6057, 0.0
        %v6186 = vmax.f32 %v6058, 0.0
        %v6187 = vmax.f32 %v6059, 0.0
        %v6188 = vmax.f32 %v6060, 0.0
        %v6189 = vmax.f32 %v6061, 0.0
        %v6190 = vmax.f32 %v6062, 0.0
        %v6191 = vmax.f32 %v6063, 0.0
        %v6192 = vmax.f32 %v6064, 0.0
        %v6193 = vmax.f32 %v6065, 0.0
        %v6194 = vmax.f32 %v6066, 0.0
        %v6195 = vmax.f32 %v6067, 0.0
        %v6196 = vmax.f32 %v6068, 0.0
        %v6197 = vmax.f32 %v6069, 0.0
        %v6198 = vmax.f32 %v6070, 0.0
        %v6199 = vmax.f32 %v6071, 0.0
        %v6200 = vmax.f32 %v6072, 0.0
        %v6201 = vmax.f32 %v6073, 0.0
        %v6202 = vmax.f32 %v6074, 0.0
        %v6203 = vmax.f32 %v6075, 0.0
        %v6204 = vmax.f32 %v6076, 0.0
        %v6205 = vmax.f32 %v6077, 0.0
        %v6206 = vmax.f32 %v6078, 0.0
        %v6207 = vmax.f32 %v6079, 0.0
        %v6208 = vmax.f32 %v6080, 0.0
        %v6209 = vmax.f32 %v6081, 0.0
        %v6210 = vmax.f32 %v6082, 0.0
        %v6211 = vmax.f32 %v6083, 0.0
        %v6212 = vmax.f32 %v6084, 0.0
        %v6213 = vmax.f32 %v6085, 0.0
        %v6214 = vmax.f32 %v6086, 0.0
        %v6215 = vmax.f32 %v6087, 0.0
        %v6216 = vmax.f32 %v6088, 0.0
        %v6217 = vmax.f32 %v6089, 0.0
        %v6218 = vmax.f32 %v6090, 0.0
        %v6219 = vmax.f32 %v6091, 0.0
        %v6220 = vmax.f32 %v6092, 0.0
        %v6221 = vmax.f32 %v6093, 0.0
        %v6222 = vmax.f32 %v6094, 0.0
        %v6223 = vmax.f32 %v6095, 0.0
        %v6224 = vmax.f32 %v6096, 0.0
        %v6225 = vmax.f32 %v6097, 0.0
        %v6226 = vmax.f32 %v6098, 0.0
        %v6227 = vmax.f32 %v6099, 0.0
        %v6228 = vmax.f32 %v6100, 0.0
        %v6229 = vmax.f32 %v6101, 0.0
        %v6230 = vmax.f32 %v6102, 0.0
        %v6231 = vmax.f32 %v6103, 0.0
        %v6232 = vmax.f32 %v6104, 0.0
        %v6233 = vmax.f32 %v6105, 0.0
        %v6234 = vmax.f32 %v6106, 0.0
        %v6235 = vmax.f32 %v6107, 0.0
        %v6236 = vmax.f32 %v6108, 0.0
        %v6237 = vmax.f32 %v6109, 0.0
        %v6238 = vmax.f32 %v6110, 0.0
        %v6239 = vmax.f32 %v6111, 0.0
        %v6240 = vmax.f32 %v6112, 0.0
        %v6241 = vmax.f32 %v6113, 0.0
        %v6242 = vmax.f32 %v6114, 0.0
        %v6243 = vlaneseq
        %v6244 = vshrl.u32 %v6243, 7
        %v6245 = vsub.s32 0, %v6244
        %v6246 = vrot.slane %v472, %v6245
        %v6247 = vmul.f32 %v6115, %v6246
        %v6248 = vmul.f32 %v6116, %v6246
        %v6249 = vmul.f32 %v6117, %v6246
        %v6250 = vmul.f32 %v6118, %v6246
        %v6251 = vmul.f32 %v6119, %v6246
        %v6252 = vmul.f32 %v6120, %v6246
        %v6253 = vmul.f32 %v6121, %v6246
        %v6254 = vmul.f32 %v6122, %v6246
        %v6255 = vmul.f32 %v6123, %v6246
        %v6256 = vmul.f32 %v6124, %v6246
        %v6257 = vmul.f32 %v6125, %v6246
        %v6258 = vmul.f32 %v6126, %v6246
        %v6259 = vmul.f32 %v6127, %v6246
        %v6260 = vmul.f32 %v6128, %v6246
        %v6261 = vmul.f32 %v6129, %v6246
        %v6262 = vmul.f32 %v6130, %v6246
        %v6263 = vmul.f32 %v6131, %v6246
        %v6264 = vmul.f32 %v6132, %v6246
        %v6265 = vmul.f32 %v6133, %v6246
        %v6266 = vmul.f32 %v6134, %v6246
        %v6267 = vmul.f32 %v6135, %v6246
        %v6268 = vmul.f32 %v6136, %v6246
        %v6269 = vmul.f32 %v6137, %v6246
        %v6270 = vmul.f32 %v6138, %v6246
        %v6271 = vmul.f32 %v6139, %v6246
        %v6272 = vmul.f32 %v6140, %v6246
        %v6273 = vmul.f32 %v6141, %v6246
        %v6274 = vmul.f32 %v6142, %v6246
        %v6275 = vmul.f32 %v6143, %v6246
        %v6276 = vmul.f32 %v6144, %v6246
        %v6277 = vmul.f32 %v6145, %v6246
        %v6278 = vmul.f32 %v6146, %v6246
        %v6279 = vmul.f32 %v6147, %v6246
        %v6280 = vmul.f32 %v6148, %v6246
        %v6281 = vmul.f32 %v6149, %v6246
        %v6282 = vmul.f32 %v6150, %v6246
        %v6283 = vmul.f32 %v6151, %v6246
        %v6284 = vmul.f32 %v6152, %v6246
        %v6285 = vmul.f32 %v6153, %v6246
        %v6286 = vmul.f32 %v6154, %v6246
        %v6287 = vmul.f32 %v6155, %v6246
        %v6288 = vmul.f32 %v6156, %v6246
        %v6289 = vmul.f32 %v6157, %v6246
        %v6290 = vmul.f32 %v6158, %v6246
        %v6291 = vmul.f32 %v6159, %v6246
        %v6292 = vmul.f32 %v6160, %v6246
        %v6293 = vmul.f32 %v6161, %v6246
        %v6294 = vmul.f32 %v6162, %v6246
        %v6295 = vmul.f32 %v6163, %v6246
        %v6296 = vmul.f32 %v6164, %v6246
        %v6297 = vmul.f32 %v6165, %v6246
        %v6298 = vmul.f32 %v6166, %v6246
        %v6299 = vmul.f32 %v6167, %v6246
        %v6300 = vmul.f32 %v6168, %v6246
        %v6301 = vmul.f32 %v6169, %v6246
        %v6302 = vmul.f32 %v6170, %v6246
        %v6303 = vmul.f32 %v6171, %v6246
        %v6304 = vmul.f32 %v6172, %v6246
        %v6305 = vmul.f32 %v6173, %v6246
        %v6306 = vmul.f32 %v6174, %v6246
        %v6307 = vmul.f32 %v6175, %v6246
        %v6308 = vmul.f32 %v6176, %v6246
        %v6309 = vmul.f32 %v6177, %v6246
        %v6310 = vmul.f32 %v6178, %v6246
        %v6311 = vmul.f32 %v6179, %v6246
        %v6312 = vmul.f32 %v6180, %v6246
        %v6313 = vmul.f32 %v6181, %v6246
        %v6314 = vmul.f32 %v6182, %v6246
        %v6315 = vmul.f32 %v6183, %v6246
        %v6316 = vmul.f32 %v6184, %v6246
        %v6317 = vmul.f32 %v6185, %v6246
        %v6318 = vmul.f32 %v6186, %v6246
        %v6319 = vmul.f32 %v6187, %v6246
        %v6320 = vmul.f32 %v6188, %v6246
        %v6321 = vmul.f32 %v6189, %v6246
        %v6322 = vmul.f32 %v6190, %v6246
        %v6323 = vmul.f32 %v6191, %v6246
        %v6324 = vmul.f32 %v6192, %v6246
        %v6325 = vmul.f32 %v6193, %v6246
        %v6326 = vmul.f32 %v6194, %v6246
        %v6327 = vmul.f32 %v6195, %v6246
        %v6328 = vmul.f32 %v6196, %v6246
        %v6329 = vmul.f32 %v6197, %v6246
        %v6330 = vmul.f32 %v6198, %v6246
        %v6331 = vmul.f32 %v6199, %v6246
        %v6332 = vmul.f32 %v6200, %v6246
        %v6333 = vmul.f32 %v6201, %v6246
        %v6334 = vmul.f32 %v6202, %v6246
        %v6335 = vmul.f32 %v6203, %v6246
        %v6336 = vmul.f32 %v6204, %v6246
        %v6337 = vmul.f32 %v6205, %v6246
        %v6338 = vmul.f32 %v6206, %v6246
        %v6339 = vmul.f32 %v6207, %v6246
        %v6340 = vmul.f32 %v6208, %v6246
        %v6341 = vmul.f32 %v6209, %v6246
        %v6342 = vmul.f32 %v6210, %v6246
        %v6343 = vmul.f32 %v6211, %v6246
        %v6344 = vmul.f32 %v6212, %v6246
        %v6345 = vmul.f32 %v6213, %v6246
        %v6346 = vmul.f32 %v6214, %v6246
        %v6347 = vmul.f32 %v6215, %v6246
        %v6348 = vmul.f32 %v6216, %v6246
        %v6349 = vmul.f32 %v6217, %v6246
        %v6350 = vmul.f32 %v6218, %v6246
        %v6351 = vmul.f32 %v6219, %v6246
        %v6352 = vmul.f32 %v6220, %v6246
        %v6353 = vmul.f32 %v6221, %v6246
        %v6354 = vmul.f32 %v6222, %v6246
        %v6355 = vmul.f32 %v6223, %v6246
        %v6356 = vmul.f32 %v6224, %v6246
        %v6357 = vmul.f32 %v6225, %v6246
        %v6358 = vmul.f32 %v6226, %v6246
        %v6359 = vmul.f32 %v6227, %v6246
        %v6360 = vmul.f32 %v6228, %v6246
        %v6361 = vmul.f32 %v6229, %v6246
        %v6362 = vmul.f32 %v6230, %v6246
        %v6363 = vmul.f32 %v6231, %v6246
        %v6364 = vmul.f32 %v6232, %v6246
        %v6365 = vmul.f32 %v6233, %v6246
        %v6366 = vmul.f32 %v6234, %v6246
        %v6367 = vmul.f32 %v6235, %v6246
        %v6368 = vmul.f32 %v6236, %v6246
        %v6369 = vmul.f32 %v6237, %v6246
        %v6370 = vmul.f32 %v6238, %v6246
        %v6371 = vmul.f32 %v6239, %v6246
        %v6372 = vmul.f32 %v6240, %v6246
        %v6373 = vmul.f32 %v6241, %v6246
        %v6374 = vmul.f32 %v6242, %v6246
        %v6375 = vsel %vm508, %v6247, 0.0
        %6376 = vadd.xlane.f32.xlu0 %v6375
        %v6377 = vpop.xlane.xlu0 %6376
        %v6378 = vsel %vm508, %v6248, 0.0
        %6379 = vadd.xlane.f32.xlu0 %v6378
        %v6380 = vpop.xlane.xlu0 %6379
        %v6381 = vsel %vm508, %v6249, 0.0
        %6382 = vadd.xlane.f32.xlu0 %v6381
        %v6383 = vpop.xlane.xlu0 %6382
        %v6384 = vsel %vm508, %v6250, 0.0
        %6385 = vadd.xlane.f32.xlu0 %v6384
        %v6386 = vpop.xlane.xlu0 %6385
        %v6387 = vsel %vm508, %v6251, 0.0
        %6388 = vadd.xlane.f32.xlu0 %v6387
        %v6389 = vpop.xlane.xlu0 %6388
        %v6390 = vsel %vm508, %v6252, 0.0
        %6391 = vadd.xlane.f32.xlu0 %v6390
        %v6392 = vpop.xlane.xlu0 %6391
        %v6393 = vsel %vm508, %v6253, 0.0
        %6394 = vadd.xlane.f32.xlu0 %v6393
        %v6395 = vpop.xlane.xlu0 %6394
        %v6396 = vsel %vm508, %v6254, 0.0
        %6397 = vadd.xlane.f32.xlu0 %v6396
        %v6398 = vpop.xlane.xlu0 %6397
        %v6399 = vsel %vm508, %v6255, 0.0
        %6400 = vadd.xlane.f32.xlu0 %v6399
        %v6401 = vpop.xlane.xlu0 %6400
        %v6402 = vsel %vm508, %v6256, 0.0
        %6403 = vadd.xlane.f32.xlu0 %v6402
        %v6404 = vpop.xlane.xlu0 %6403
        %v6405 = vsel %vm508, %v6257, 0.0
        %6406 = vadd.xlane.f32.xlu0 %v6405
        %v6407 = vpop.xlane.xlu0 %6406
        %v6408 = vsel %vm508, %v6258, 0.0
        %6409 = vadd.xlane.f32.xlu0 %v6408
        %v6410 = vpop.xlane.xlu0 %6409
        %v6411 = vsel %vm508, %v6259, 0.0
        %6412 = vadd.xlane.f32.xlu0 %v6411
        %v6413 = vpop.xlane.xlu0 %6412
        %v6414 = vsel %vm508, %v6260, 0.0
        %6415 = vadd.xlane.f32.xlu0 %v6414
        %v6416 = vpop.xlane.xlu0 %6415
        %v6417 = vsel %vm508, %v6261, 0.0
        %6418 = vadd.xlane.f32.xlu0 %v6417
        %v6419 = vpop.xlane.xlu0 %6418
        %v6420 = vsel %vm508, %v6262, 0.0
        %6421 = vadd.xlane.f32.xlu0 %v6420
        %v6422 = vpop.xlane.xlu0 %6421
        %v6423 = vsel %vm508, %v6263, 0.0
        %6424 = vadd.xlane.f32.xlu0 %v6423
        %v6425 = vpop.xlane.xlu0 %6424
        %v6426 = vsel %vm508, %v6264, 0.0
        %6427 = vadd.xlane.f32.xlu0 %v6426
        %v6428 = vpop.xlane.xlu0 %6427
        %v6429 = vsel %vm508, %v6265, 0.0
        %6430 = vadd.xlane.f32.xlu0 %v6429
        %v6431 = vpop.xlane.xlu0 %6430
        %v6432 = vsel %vm508, %v6266, 0.0
        %6433 = vadd.xlane.f32.xlu0 %v6432
        %v6434 = vpop.xlane.xlu0 %6433
        %v6435 = vsel %vm508, %v6267, 0.0
        %6436 = vadd.xlane.f32.xlu0 %v6435
        %v6437 = vpop.xlane.xlu0 %6436
        %v6438 = vsel %vm508, %v6268, 0.0
        %6439 = vadd.xlane.f32.xlu0 %v6438
        %v6440 = vpop.xlane.xlu0 %6439
        %v6441 = vsel %vm508, %v6269, 0.0
        %6442 = vadd.xlane.f32.xlu0 %v6441
        %v6443 = vpop.xlane.xlu0 %6442
        %v6444 = vsel %vm508, %v6270, 0.0
        %6445 = vadd.xlane.f32.xlu0 %v6444
        %v6446 = vpop.xlane.xlu0 %6445
        %v6447 = vsel %vm508, %v6271, 0.0
        %6448 = vadd.xlane.f32.xlu0 %v6447
        %v6449 = vpop.xlane.xlu0 %6448
        %v6450 = vsel %vm508, %v6272, 0.0
        %6451 = vadd.xlane.f32.xlu0 %v6450
        %v6452 = vpop.xlane.xlu0 %6451
        %v6453 = vsel %vm508, %v6273, 0.0
        %6454 = vadd.xlane.f32.xlu0 %v6453
        %v6455 = vpop.xlane.xlu0 %6454
        %v6456 = vsel %vm508, %v6274, 0.0
        %6457 = vadd.xlane.f32.xlu0 %v6456
        %v6458 = vpop.xlane.xlu0 %6457
        %v6459 = vsel %vm508, %v6275, 0.0
        %6460 = vadd.xlane.f32.xlu0 %v6459
        %v6461 = vpop.xlane.xlu0 %6460
        %v6462 = vsel %vm508, %v6276, 0.0
        %6463 = vadd.xlane.f32.xlu0 %v6462
        %v6464 = vpop.xlane.xlu0 %6463
        %v6465 = vsel %vm508, %v6277, 0.0
        %6466 = vadd.xlane.f32.xlu0 %v6465
        %v6467 = vpop.xlane.xlu0 %6466
        %v6468 = vsel %vm508, %v6278, 0.0
        %6469 = vadd.xlane.f32.xlu0 %v6468
        %v6470 = vpop.xlane.xlu0 %6469
        %v6471 = vsel %vm508, %v6279, 0.0
        %6472 = vadd.xlane.f32.xlu0 %v6471
        %v6473 = vpop.xlane.xlu0 %6472
        %v6474 = vsel %vm508, %v6280, 0.0
        %6475 = vadd.xlane.f32.xlu0 %v6474
        %v6476 = vpop.xlane.xlu0 %6475
        %v6477 = vsel %vm508, %v6281, 0.0
        %6478 = vadd.xlane.f32.xlu0 %v6477
        %v6479 = vpop.xlane.xlu0 %6478
        %v6480 = vsel %vm508, %v6282, 0.0
        %6481 = vadd.xlane.f32.xlu0 %v6480
        %v6482 = vpop.xlane.xlu0 %6481
        %v6483 = vsel %vm508, %v6283, 0.0
        %6484 = vadd.xlane.f32.xlu0 %v6483
        %v6485 = vpop.xlane.xlu0 %6484
        %v6486 = vsel %vm508, %v6284, 0.0
        %6487 = vadd.xlane.f32.xlu0 %v6486
        %v6488 = vpop.xlane.xlu0 %6487
        %v6489 = vsel %vm508, %v6285, 0.0
        %6490 = vadd.xlane.f32.xlu0 %v6489
        %v6491 = vpop.xlane.xlu0 %6490
        %v6492 = vsel %vm508, %v6286, 0.0
        %6493 = vadd.xlane.f32.xlu0 %v6492
        %v6494 = vpop.xlane.xlu0 %6493
        %v6495 = vsel %vm508, %v6287, 0.0
        %6496 = vadd.xlane.f32.xlu0 %v6495
        %v6497 = vpop.xlane.xlu0 %6496
        %v6498 = vsel %vm508, %v6288, 0.0
        %6499 = vadd.xlane.f32.xlu0 %v6498
        %v6500 = vpop.xlane.xlu0 %6499
        %v6501 = vsel %vm508, %v6289, 0.0
        %6502 = vadd.xlane.f32.xlu0 %v6501
        %v6503 = vpop.xlane.xlu0 %6502
        %v6504 = vsel %vm508, %v6290, 0.0
        %6505 = vadd.xlane.f32.xlu0 %v6504
        %v6506 = vpop.xlane.xlu0 %6505
        %v6507 = vsel %vm508, %v6291, 0.0
        %6508 = vadd.xlane.f32.xlu0 %v6507
        %v6509 = vpop.xlane.xlu0 %6508
        %v6510 = vsel %vm508, %v6292, 0.0
        %6511 = vadd.xlane.f32.xlu0 %v6510
        %v6512 = vpop.xlane.xlu0 %6511
        %v6513 = vsel %vm508, %v6293, 0.0
        %6514 = vadd.xlane.f32.xlu0 %v6513
        %v6515 = vpop.xlane.xlu0 %6514
        %v6516 = vsel %vm508, %v6294, 0.0
        %6517 = vadd.xlane.f32.xlu0 %v6516
        %v6518 = vpop.xlane.xlu0 %6517
        %v6519 = vsel %vm508, %v6295, 0.0
        %6520 = vadd.xlane.f32.xlu0 %v6519
        %v6521 = vpop.xlane.xlu0 %6520
        %v6522 = vsel %vm508, %v6296, 0.0
        %6523 = vadd.xlane.f32.xlu0 %v6522
        %v6524 = vpop.xlane.xlu0 %6523
        %v6525 = vsel %vm508, %v6297, 0.0
        %6526 = vadd.xlane.f32.xlu0 %v6525
        %v6527 = vpop.xlane.xlu0 %6526
        %v6528 = vsel %vm508, %v6298, 0.0
        %6529 = vadd.xlane.f32.xlu0 %v6528
        %v6530 = vpop.xlane.xlu0 %6529
        %v6531 = vsel %vm508, %v6299, 0.0
        %6532 = vadd.xlane.f32.xlu0 %v6531
        %v6533 = vpop.xlane.xlu0 %6532
        %v6534 = vsel %vm508, %v6300, 0.0
        %6535 = vadd.xlane.f32.xlu0 %v6534
        %v6536 = vpop.xlane.xlu0 %6535
        %v6537 = vsel %vm508, %v6301, 0.0
        %6538 = vadd.xlane.f32.xlu0 %v6537
        %v6539 = vpop.xlane.xlu0 %6538
        %v6540 = vsel %vm508, %v6302, 0.0
        %6541 = vadd.xlane.f32.xlu0 %v6540
        %v6542 = vpop.xlane.xlu0 %6541
        %v6543 = vsel %vm508, %v6303, 0.0
        %6544 = vadd.xlane.f32.xlu0 %v6543
        %v6545 = vpop.xlane.xlu0 %6544
        %v6546 = vsel %vm508, %v6304, 0.0
        %6547 = vadd.xlane.f32.xlu0 %v6546
        %v6548 = vpop.xlane.xlu0 %6547
        %v6549 = vsel %vm508, %v6305, 0.0
        %6550 = vadd.xlane.f32.xlu0 %v6549
        %v6551 = vpop.xlane.xlu0 %6550
        %v6552 = vsel %vm508, %v6306, 0.0
        %6553 = vadd.xlane.f32.xlu0 %v6552
        %v6554 = vpop.xlane.xlu0 %6553
        %v6555 = vsel %vm508, %v6307, 0.0
        %6556 = vadd.xlane.f32.xlu0 %v6555
        %v6557 = vpop.xlane.xlu0 %6556
        %v6558 = vsel %vm508, %v6308, 0.0
        %6559 = vadd.xlane.f32.xlu0 %v6558
        %v6560 = vpop.xlane.xlu0 %6559
        %v6561 = vsel %vm508, %v6309, 0.0
        %6562 = vadd.xlane.f32.xlu0 %v6561
        %v6563 = vpop.xlane.xlu0 %6562
        %v6564 = vsel %vm508, %v6310, 0.0
        %6565 = vadd.xlane.f32.xlu0 %v6564
        %v6566 = vpop.xlane.xlu0 %6565
        %v6567 = vsel %vm508, %v6311, 0.0
        %6568 = vadd.xlane.f32.xlu0 %v6567
        %v6569 = vpop.xlane.xlu0 %6568
        %v6570 = vsel %vm508, %v6312, 0.0
        %6571 = vadd.xlane.f32.xlu0 %v6570
        %v6572 = vpop.xlane.xlu0 %6571
        %v6573 = vsel %vm508, %v6313, 0.0
        %6574 = vadd.xlane.f32.xlu0 %v6573
        %v6575 = vpop.xlane.xlu0 %6574
        %v6576 = vsel %vm508, %v6314, 0.0
        %6577 = vadd.xlane.f32.xlu0 %v6576
        %v6578 = vpop.xlane.xlu0 %6577
        %v6579 = vsel %vm508, %v6315, 0.0
        %6580 = vadd.xlane.f32.xlu0 %v6579
        %v6581 = vpop.xlane.xlu0 %6580
        %v6582 = vsel %vm508, %v6316, 0.0
        %6583 = vadd.xlane.f32.xlu0 %v6582
        %v6584 = vpop.xlane.xlu0 %6583
        %v6585 = vsel %vm508, %v6317, 0.0
        %6586 = vadd.xlane.f32.xlu0 %v6585
        %v6587 = vpop.xlane.xlu0 %6586
        %v6588 = vsel %vm508, %v6318, 0.0
        %6589 = vadd.xlane.f32.xlu0 %v6588
        %v6590 = vpop.xlane.xlu0 %6589
        %v6591 = vsel %vm508, %v6319, 0.0
        %6592 = vadd.xlane.f32.xlu0 %v6591
        %v6593 = vpop.xlane.xlu0 %6592
        %v6594 = vsel %vm508, %v6320, 0.0
        %6595 = vadd.xlane.f32.xlu0 %v6594
        %v6596 = vpop.xlane.xlu0 %6595
        %v6597 = vsel %vm508, %v6321, 0.0
        %6598 = vadd.xlane.f32.xlu0 %v6597
        %v6599 = vpop.xlane.xlu0 %6598
        %v6600 = vsel %vm508, %v6322, 0.0
        %6601 = vadd.xlane.f32.xlu0 %v6600
        %v6602 = vpop.xlane.xlu0 %6601
        %v6603 = vsel %vm508, %v6323, 0.0
        %6604 = vadd.xlane.f32.xlu0 %v6603
        %v6605 = vpop.xlane.xlu0 %6604
        %v6606 = vsel %vm508, %v6324, 0.0
        %6607 = vadd.xlane.f32.xlu0 %v6606
        %v6608 = vpop.xlane.xlu0 %6607
        %v6609 = vsel %vm508, %v6325, 0.0
        %6610 = vadd.xlane.f32.xlu0 %v6609
        %v6611 = vpop.xlane.xlu0 %6610
        %v6612 = vsel %vm508, %v6326, 0.0
        %6613 = vadd.xlane.f32.xlu0 %v6612
        %v6614 = vpop.xlane.xlu0 %6613
        %v6615 = vsel %vm508, %v6327, 0.0
        %6616 = vadd.xlane.f32.xlu0 %v6615
        %v6617 = vpop.xlane.xlu0 %6616
        %v6618 = vsel %vm508, %v6328, 0.0
        %6619 = vadd.xlane.f32.xlu0 %v6618
        %v6620 = vpop.xlane.xlu0 %6619
        %v6621 = vsel %vm508, %v6329, 0.0
        %6622 = vadd.xlane.f32.xlu0 %v6621
        %v6623 = vpop.xlane.xlu0 %6622
        %v6624 = vsel %vm508, %v6330, 0.0
        %6625 = vadd.xlane.f32.xlu0 %v6624
        %v6626 = vpop.xlane.xlu0 %6625
        %v6627 = vsel %vm508, %v6331, 0.0
        %6628 = vadd.xlane.f32.xlu0 %v6627
        %v6629 = vpop.xlane.xlu0 %6628
        %v6630 = vsel %vm508, %v6332, 0.0
        %6631 = vadd.xlane.f32.xlu0 %v6630
        %v6632 = vpop.xlane.xlu0 %6631
        %v6633 = vsel %vm508, %v6333, 0.0
        %6634 = vadd.xlane.f32.xlu0 %v6633
        %v6635 = vpop.xlane.xlu0 %6634
        %v6636 = vsel %vm508, %v6334, 0.0
        %6637 = vadd.xlane.f32.xlu0 %v6636
        %v6638 = vpop.xlane.xlu0 %6637
        %v6639 = vsel %vm508, %v6335, 0.0
        %6640 = vadd.xlane.f32.xlu0 %v6639
        %v6641 = vpop.xlane.xlu0 %6640
        %v6642 = vsel %vm508, %v6336, 0.0
        %6643 = vadd.xlane.f32.xlu0 %v6642
        %v6644 = vpop.xlane.xlu0 %6643
        %v6645 = vsel %vm508, %v6337, 0.0
        %6646 = vadd.xlane.f32.xlu0 %v6645
        %v6647 = vpop.xlane.xlu0 %6646
        %v6648 = vsel %vm508, %v6338, 0.0
        %6649 = vadd.xlane.f32.xlu0 %v6648
        %v6650 = vpop.xlane.xlu0 %6649
        %v6651 = vsel %vm508, %v6339, 0.0
        %6652 = vadd.xlane.f32.xlu0 %v6651
        %v6653 = vpop.xlane.xlu0 %6652
        %v6654 = vsel %vm508, %v6340, 0.0
        %6655 = vadd.xlane.f32.xlu0 %v6654
        %v6656 = vpop.xlane.xlu0 %6655
        %v6657 = vsel %vm508, %v6341, 0.0
        %6658 = vadd.xlane.f32.xlu0 %v6657
        %v6659 = vpop.xlane.xlu0 %6658
        %v6660 = vsel %vm508, %v6342, 0.0
        %6661 = vadd.xlane.f32.xlu0 %v6660
        %v6662 = vpop.xlane.xlu0 %6661
        %v6663 = vsel %vm508, %v6343, 0.0
        %6664 = vadd.xlane.f32.xlu0 %v6663
        %v6665 = vpop.xlane.xlu0 %6664
        %v6666 = vsel %vm508, %v6344, 0.0
        %6667 = vadd.xlane.f32.xlu0 %v6666
        %v6668 = vpop.xlane.xlu0 %6667
        %v6669 = vsel %vm508, %v6345, 0.0
        %6670 = vadd.xlane.f32.xlu0 %v6669
        %v6671 = vpop.xlane.xlu0 %6670
        %v6672 = vsel %vm508, %v6346, 0.0
        %6673 = vadd.xlane.f32.xlu0 %v6672
        %v6674 = vpop.xlane.xlu0 %6673
        %v6675 = vsel %vm508, %v6347, 0.0
        %6676 = vadd.xlane.f32.xlu0 %v6675
        %v6677 = vpop.xlane.xlu0 %6676
        %v6678 = vsel %vm508, %v6348, 0.0
        %6679 = vadd.xlane.f32.xlu0 %v6678
        %v6680 = vpop.xlane.xlu0 %6679
        %v6681 = vsel %vm508, %v6349, 0.0
        %6682 = vadd.xlane.f32.xlu0 %v6681
        %v6683 = vpop.xlane.xlu0 %6682
        %v6684 = vsel %vm508, %v6350, 0.0
        %6685 = vadd.xlane.f32.xlu0 %v6684
        %v6686 = vpop.xlane.xlu0 %6685
        %v6687 = vsel %vm508, %v6351, 0.0
        %6688 = vadd.xlane.f32.xlu0 %v6687
        %v6689 = vpop.xlane.xlu0 %6688
        %v6690 = vsel %vm508, %v6352, 0.0
        %6691 = vadd.xlane.f32.xlu0 %v6690
        %v6692 = vpop.xlane.xlu0 %6691
        %v6693 = vsel %vm508, %v6353, 0.0
        %6694 = vadd.xlane.f32.xlu0 %v6693
        %v6695 = vpop.xlane.xlu0 %6694
        %v6696 = vsel %vm508, %v6354, 0.0
        %6697 = vadd.xlane.f32.xlu0 %v6696
        %v6698 = vpop.xlane.xlu0 %6697
        %v6699 = vsel %vm508, %v6355, 0.0
        %6700 = vadd.xlane.f32.xlu0 %v6699
        %v6701 = vpop.xlane.xlu0 %6700
        %v6702 = vsel %vm508, %v6356, 0.0
        %6703 = vadd.xlane.f32.xlu0 %v6702
        %v6704 = vpop.xlane.xlu0 %6703
        %v6705 = vsel %vm508, %v6357, 0.0
        %6706 = vadd.xlane.f32.xlu0 %v6705
        %v6707 = vpop.xlane.xlu0 %6706
        %v6708 = vsel %vm508, %v6358, 0.0
        %6709 = vadd.xlane.f32.xlu0 %v6708
        %v6710 = vpop.xlane.xlu0 %6709
        %v6711 = vsel %vm508, %v6359, 0.0
        %6712 = vadd.xlane.f32.xlu0 %v6711
        %v6713 = vpop.xlane.xlu0 %6712
        %v6714 = vsel %vm508, %v6360, 0.0
        %6715 = vadd.xlane.f32.xlu0 %v6714
        %v6716 = vpop.xlane.xlu0 %6715
        %v6717 = vsel %vm508, %v6361, 0.0
        %6718 = vadd.xlane.f32.xlu0 %v6717
        %v6719 = vpop.xlane.xlu0 %6718
        %v6720 = vsel %vm508, %v6362, 0.0
        %6721 = vadd.xlane.f32.xlu0 %v6720
        %v6722 = vpop.xlane.xlu0 %6721
        %v6723 = vsel %vm508, %v6363, 0.0
        %6724 = vadd.xlane.f32.xlu0 %v6723
        %v6725 = vpop.xlane.xlu0 %6724
        %v6726 = vsel %vm508, %v6364, 0.0
        %6727 = vadd.xlane.f32.xlu0 %v6726
        %v6728 = vpop.xlane.xlu0 %6727
        %v6729 = vsel %vm508, %v6365, 0.0
        %6730 = vadd.xlane.f32.xlu0 %v6729
        %v6731 = vpop.xlane.xlu0 %6730
        %v6732 = vsel %vm508, %v6366, 0.0
        %6733 = vadd.xlane.f32.xlu0 %v6732
        %v6734 = vpop.xlane.xlu0 %6733
        %v6735 = vsel %vm508, %v6367, 0.0
        %6736 = vadd.xlane.f32.xlu0 %v6735
        %v6737 = vpop.xlane.xlu0 %6736
        %v6738 = vsel %vm508, %v6368, 0.0
        %6739 = vadd.xlane.f32.xlu0 %v6738
        %v6740 = vpop.xlane.xlu0 %6739
        %v6741 = vsel %vm508, %v6369, 0.0
        %6742 = vadd.xlane.f32.xlu0 %v6741
        %v6743 = vpop.xlane.xlu0 %6742
        %v6744 = vsel %vm508, %v6370, 0.0
        %6745 = vadd.xlane.f32.xlu0 %v6744
        %v6746 = vpop.xlane.xlu0 %6745
        %v6747 = vsel %vm508, %v6371, 0.0
        %6748 = vadd.xlane.f32.xlu0 %v6747
        %v6749 = vpop.xlane.xlu0 %6748
        %v6750 = vsel %vm508, %v6372, 0.0
        %6751 = vadd.xlane.f32.xlu0 %v6750
        %v6752 = vpop.xlane.xlu0 %6751
        %v6753 = vsel %vm508, %v6373, 0.0
        %6754 = vadd.xlane.f32.xlu0 %v6753
        %v6755 = vpop.xlane.xlu0 %6754
        %v6756 = vsel %vm508, %v6374, 0.0
        %6757 = vadd.xlane.f32.xlu0 %v6756
        %v6758 = vpop.xlane.xlu0 %6757
        %v6759 = vstv %s474
        %v6760 = vadd.f32 %v6377, %v6759
        %v6761 = vadd.f32 %v6380, %v6759
        %v6762 = vadd.f32 %v6383, %v6759
        %v6763 = vadd.f32 %v6386, %v6759
        %v6764 = vadd.f32 %v6389, %v6759
        %v6765 = vadd.f32 %v6392, %v6759
        %v6766 = vadd.f32 %v6395, %v6759
        %v6767 = vadd.f32 %v6398, %v6759
        %v6768 = vadd.f32 %v6401, %v6759
        %v6769 = vadd.f32 %v6404, %v6759
        %v6770 = vadd.f32 %v6407, %v6759
        %v6771 = vadd.f32 %v6410, %v6759
        %v6772 = vadd.f32 %v6413, %v6759
        %v6773 = vadd.f32 %v6416, %v6759
        %v6774 = vadd.f32 %v6419, %v6759
        %v6775 = vadd.f32 %v6422, %v6759
        %v6776 = vadd.f32 %v6425, %v6759
        %v6777 = vadd.f32 %v6428, %v6759
        %v6778 = vadd.f32 %v6431, %v6759
        %v6779 = vadd.f32 %v6434, %v6759
        %v6780 = vadd.f32 %v6437, %v6759
        %v6781 = vadd.f32 %v6440, %v6759
        %v6782 = vadd.f32 %v6443, %v6759
        %v6783 = vadd.f32 %v6446, %v6759
        %v6784 = vadd.f32 %v6449, %v6759
        %v6785 = vadd.f32 %v6452, %v6759
        %v6786 = vadd.f32 %v6455, %v6759
        %v6787 = vadd.f32 %v6458, %v6759
        %v6788 = vadd.f32 %v6461, %v6759
        %v6789 = vadd.f32 %v6464, %v6759
        %v6790 = vadd.f32 %v6467, %v6759
        %v6791 = vadd.f32 %v6470, %v6759
        %v6792 = vadd.f32 %v6473, %v6759
        %v6793 = vadd.f32 %v6476, %v6759
        %v6794 = vadd.f32 %v6479, %v6759
        %v6795 = vadd.f32 %v6482, %v6759
        %v6796 = vadd.f32 %v6485, %v6759
        %v6797 = vadd.f32 %v6488, %v6759
        %v6798 = vadd.f32 %v6491, %v6759
        %v6799 = vadd.f32 %v6494, %v6759
        %v6800 = vadd.f32 %v6497, %v6759
        %v6801 = vadd.f32 %v6500, %v6759
        %v6802 = vadd.f32 %v6503, %v6759
        %v6803 = vadd.f32 %v6506, %v6759
        %v6804 = vadd.f32 %v6509, %v6759
        %v6805 = vadd.f32 %v6512, %v6759
        %v6806 = vadd.f32 %v6515, %v6759
        %v6807 = vadd.f32 %v6518, %v6759
        %v6808 = vadd.f32 %v6521, %v6759
        %v6809 = vadd.f32 %v6524, %v6759
        %v6810 = vadd.f32 %v6527, %v6759
        %v6811 = vadd.f32 %v6530, %v6759
        %v6812 = vadd.f32 %v6533, %v6759
        %v6813 = vadd.f32 %v6536, %v6759
        %v6814 = vadd.f32 %v6539, %v6759
        %v6815 = vadd.f32 %v6542, %v6759
        %v6816 = vadd.f32 %v6545, %v6759
        %v6817 = vadd.f32 %v6548, %v6759
        %v6818 = vadd.f32 %v6551, %v6759
        %v6819 = vadd.f32 %v6554, %v6759
        %v6820 = vadd.f32 %v6557, %v6759
        %v6821 = vadd.f32 %v6560, %v6759
        %v6822 = vadd.f32 %v6563, %v6759
        %v6823 = vadd.f32 %v6566, %v6759
        %v6824 = vadd.f32 %v6569, %v6759
        %v6825 = vadd.f32 %v6572, %v6759
        %v6826 = vadd.f32 %v6575, %v6759
        %v6827 = vadd.f32 %v6578, %v6759
        %v6828 = vadd.f32 %v6581, %v6759
        %v6829 = vadd.f32 %v6584, %v6759
        %v6830 = vadd.f32 %v6587, %v6759
        %v6831 = vadd.f32 %v6590, %v6759
        %v6832 = vadd.f32 %v6593, %v6759
        %v6833 = vadd.f32 %v6596, %v6759
        %v6834 = vadd.f32 %v6599, %v6759
        %v6835 = vadd.f32 %v6602, %v6759
        %v6836 = vadd.f32 %v6605, %v6759
        %v6837 = vadd.f32 %v6608, %v6759
        %v6838 = vadd.f32 %v6611, %v6759
        %v6839 = vadd.f32 %v6614, %v6759
        %v6840 = vadd.f32 %v6617, %v6759
        %v6841 = vadd.f32 %v6620, %v6759
        %v6842 = vadd.f32 %v6623, %v6759
        %v6843 = vadd.f32 %v6626, %v6759
        %v6844 = vadd.f32 %v6629, %v6759
        %v6845 = vadd.f32 %v6632, %v6759
        %v6846 = vadd.f32 %v6635, %v6759
        %v6847 = vadd.f32 %v6638, %v6759
        %v6848 = vadd.f32 %v6641, %v6759
        %v6849 = vadd.f32 %v6644, %v6759
        %v6850 = vadd.f32 %v6647, %v6759
        %v6851 = vadd.f32 %v6650, %v6759
        %v6852 = vadd.f32 %v6653, %v6759
        %v6853 = vadd.f32 %v6656, %v6759
        %v6854 = vadd.f32 %v6659, %v6759
        %v6855 = vadd.f32 %v6662, %v6759
        %v6856 = vadd.f32 %v6665, %v6759
        %v6857 = vadd.f32 %v6668, %v6759
        %v6858 = vadd.f32 %v6671, %v6759
        %v6859 = vadd.f32 %v6674, %v6759
        %v6860 = vadd.f32 %v6677, %v6759
        %v6861 = vadd.f32 %v6680, %v6759
        %v6862 = vadd.f32 %v6683, %v6759
        %v6863 = vadd.f32 %v6686, %v6759
        %v6864 = vadd.f32 %v6689, %v6759
        %v6865 = vadd.f32 %v6692, %v6759
        %v6866 = vadd.f32 %v6695, %v6759
        %v6867 = vadd.f32 %v6698, %v6759
        %v6868 = vadd.f32 %v6701, %v6759
        %v6869 = vadd.f32 %v6704, %v6759
        %v6870 = vadd.f32 %v6707, %v6759
        %v6871 = vadd.f32 %v6710, %v6759
        %v6872 = vadd.f32 %v6713, %v6759
        %v6873 = vadd.f32 %v6716, %v6759
        %v6874 = vadd.f32 %v6719, %v6759
        %v6875 = vadd.f32 %v6722, %v6759
        %v6876 = vadd.f32 %v6725, %v6759
        %v6877 = vadd.f32 %v6728, %v6759
        %v6878 = vadd.f32 %v6731, %v6759
        %v6879 = vadd.f32 %v6734, %v6759
        %v6880 = vadd.f32 %v6737, %v6759
        %v6881 = vadd.f32 %v6740, %v6759
        %v6882 = vadd.f32 %v6743, %v6759
        %v6883 = vadd.f32 %v6746, %v6759
        %v6884 = vadd.f32 %v6749, %v6759
        %v6885 = vadd.f32 %v6752, %v6759
        %v6886 = vadd.f32 %v6755, %v6759
        %v6887 = vadd.f32 %v6758, %v6759
        %v6888 = vld [vmem:[%s399] sm:$0xf]
        %v6889 = vld [vmem:[%s408] sm:$0xff]
        %6891 = vset.pattern.permute.xlu0 0
        %6892 = vperm.xlu0 %6891, %v6889
        %v6893 = vpop.permute.xlu0 %6892
        %v6895 = vlaneseq
        %v6896 = vshrl.u32 %v6895, 7
        %v6897 = vsub.s32 1, %v6896
        %v6898 = vrot.slane %v6888, %v6897
        %v6899 = vmul.f32 %v6893, %v6898
        %6900 = vset.pattern.permute.xlu0 1
        %6901 = vperm.xlu0 %6900, %v6889
        %v6902 = vpop.permute.xlu0 %6901
        %v6904 = vlaneseq
        %v6905 = vshrl.u32 %v6904, 7
        %v6906 = vsub.s32 2, %v6905
        %v6907 = vrot.slane %v6888, %v6906
        %v6908 = vmul.f32 %v6902, %v6907
        %v6909 = vadd.f32 %v6899, %v6908
        %6910 = vset.pattern.permute.xlu0 2
        %6911 = vperm.xlu0 %6910, %v6889
        %v6912 = vpop.permute.xlu0 %6911
        %v6914 = vlaneseq
        %v6915 = vshrl.u32 %v6914, 7
        %v6916 = vsub.s32 3, %v6915
        %v6917 = vrot.slane %v6888, %v6916
        %v6918 = vmul.f32 %v6912, %v6917
        %v6919 = vadd.f32 %v6909, %v6918
        %v6920 = vlaneseq
        %v6921 = vshrl.u32 %v6920, 7
        %v6922 = vsub.s32 0, %v6921
        %v6923 = vrot.slane %v6888, %v6922
        %v6924 = vadd.f32 %v6919, %v6923
        %vm6925 = vcmp.gt.f32.partialorder %v6924, 0.0
        %v7054 = vlaneseq
        %v7055 = vshrl.u32 %v7054, 7
        %v7056 = vsub.s32 %v809, %v7055
        %v7057 = vrot.slane %v6760, %v7056
        %v7058 = vlaneseq
        %v7059 = vshrl.u32 %v7058, 7
        %v7060 = vsub.s32 %v814, %v7059
        %v7061 = vrot.slane %v6761, %v7060
        %v7062 = vsel %vm819, %v7061, %v7057
        %v7063 = vlaneseq
        %v7064 = vshrl.u32 %v7063, 7
        %v7065 = vsub.s32 %v821, %v7064
        %v7066 = vrot.slane %v6762, %v7065
        %v7067 = vsel %vm826, %v7066, %v7062
        %v7068 = vlaneseq
        %v7069 = vshrl.u32 %v7068, 7
        %v7070 = vsub.s32 %v828, %v7069
        %v7071 = vrot.slane %v6763, %v7070
        %v7072 = vsel %vm833, %v7071, %v7067
        %v7073 = vlaneseq
        %v7074 = vshrl.u32 %v7073, 7
        %v7075 = vsub.s32 %v835, %v7074
        %v7076 = vrot.slane %v6764, %v7075
        %v7077 = vsel %vm840, %v7076, %v7072
        %v7078 = vlaneseq
        %v7079 = vshrl.u32 %v7078, 7
        %v7080 = vsub.s32 %v842, %v7079
        %v7081 = vrot.slane %v6765, %v7080
        %v7082 = vsel %vm847, %v7081, %v7077
        %v7083 = vlaneseq
        %v7084 = vshrl.u32 %v7083, 7
        %v7085 = vsub.s32 %v849, %v7084
        %v7086 = vrot.slane %v6766, %v7085
        %v7087 = vsel %vm854, %v7086, %v7082
        %v7088 = vlaneseq
        %v7089 = vshrl.u32 %v7088, 7
        %v7090 = vsub.s32 %v856, %v7089
        %v7091 = vrot.slane %v6767, %v7090
        %v7092 = vsel %vm861, %v7091, %v7087
        %v7093 = vlaneseq
        %v7094 = vshrl.u32 %v7093, 7
        %v7095 = vsub.s32 %v863, %v7094
        %v7096 = vrot.slane %v6768, %v7095
        %v7097 = vsel %vm868, %v7096, %v7092
        %v7098 = vlaneseq
        %v7099 = vshrl.u32 %v7098, 7
        %v7100 = vsub.s32 %v870, %v7099
        %v7101 = vrot.slane %v6769, %v7100
        %v7102 = vsel %vm875, %v7101, %v7097
        %v7103 = vlaneseq
        %v7104 = vshrl.u32 %v7103, 7
        %v7105 = vsub.s32 %v877, %v7104
        %v7106 = vrot.slane %v6770, %v7105
        %v7107 = vsel %vm882, %v7106, %v7102
        %v7108 = vlaneseq
        %v7109 = vshrl.u32 %v7108, 7
        %v7110 = vsub.s32 %v884, %v7109
        %v7111 = vrot.slane %v6771, %v7110
        %v7112 = vsel %vm889, %v7111, %v7107
        %v7113 = vlaneseq
        %v7114 = vshrl.u32 %v7113, 7
        %v7115 = vsub.s32 %v891, %v7114
        %v7116 = vrot.slane %v6772, %v7115
        %v7117 = vsel %vm896, %v7116, %v7112
        %v7118 = vlaneseq
        %v7119 = vshrl.u32 %v7118, 7
        %v7120 = vsub.s32 %v898, %v7119
        %v7121 = vrot.slane %v6773, %v7120
        %v7122 = vsel %vm903, %v7121, %v7117
        %v7123 = vlaneseq
        %v7124 = vshrl.u32 %v7123, 7
        %v7125 = vsub.s32 %v905, %v7124
        %v7126 = vrot.slane %v6774, %v7125
        %v7127 = vsel %vm910, %v7126, %v7122
        %v7128 = vlaneseq
        %v7129 = vshrl.u32 %v7128, 7
        %v7130 = vsub.s32 %v912, %v7129
        %v7131 = vrot.slane %v6775, %v7130
        %v7132 = vsel %vm917, %v7131, %v7127
        %v7133 = vlaneseq
        %v7134 = vshrl.u32 %v7133, 7
        %v7135 = vsub.s32 %v809, %v7134
        %v7136 = vrot.slane %v6776, %v7135
        %v7137 = vlaneseq
        %v7138 = vshrl.u32 %v7137, 7
        %v7139 = vsub.s32 %v814, %v7138
        %v7140 = vrot.slane %v6777, %v7139
        %v7141 = vsel %vm819, %v7140, %v7136
        %v7142 = vlaneseq
        %v7143 = vshrl.u32 %v7142, 7
        %v7144 = vsub.s32 %v821, %v7143
        %v7145 = vrot.slane %v6778, %v7144
        %v7146 = vsel %vm826, %v7145, %v7141
        %v7147 = vlaneseq
        %v7148 = vshrl.u32 %v7147, 7
        %v7149 = vsub.s32 %v828, %v7148
        %v7150 = vrot.slane %v6779, %v7149
        %v7151 = vsel %vm833, %v7150, %v7146
        %v7152 = vlaneseq
        %v7153 = vshrl.u32 %v7152, 7
        %v7154 = vsub.s32 %v835, %v7153
        %v7155 = vrot.slane %v6780, %v7154
        %v7156 = vsel %vm840, %v7155, %v7151
        %v7157 = vlaneseq
        %v7158 = vshrl.u32 %v7157, 7
        %v7159 = vsub.s32 %v842, %v7158
        %v7160 = vrot.slane %v6781, %v7159
        %v7161 = vsel %vm847, %v7160, %v7156
        %v7162 = vlaneseq
        %v7163 = vshrl.u32 %v7162, 7
        %v7164 = vsub.s32 %v849, %v7163
        %v7165 = vrot.slane %v6782, %v7164
        %v7166 = vsel %vm854, %v7165, %v7161
        %v7167 = vlaneseq
        %v7168 = vshrl.u32 %v7167, 7
        %v7169 = vsub.s32 %v856, %v7168
        %v7170 = vrot.slane %v6783, %v7169
        %v7171 = vsel %vm861, %v7170, %v7166
        %v7172 = vlaneseq
        %v7173 = vshrl.u32 %v7172, 7
        %v7174 = vsub.s32 %v863, %v7173
        %v7175 = vrot.slane %v6784, %v7174
        %v7176 = vsel %vm868, %v7175, %v7171
        %v7177 = vlaneseq
        %v7178 = vshrl.u32 %v7177, 7
        %v7179 = vsub.s32 %v870, %v7178
        %v7180 = vrot.slane %v6785, %v7179
        %v7181 = vsel %vm875, %v7180, %v7176
        %v7182 = vlaneseq
        %v7183 = vshrl.u32 %v7182, 7
        %v7184 = vsub.s32 %v877, %v7183
        %v7185 = vrot.slane %v6786, %v7184
        %v7186 = vsel %vm882, %v7185, %v7181
        %v7187 = vlaneseq
        %v7188 = vshrl.u32 %v7187, 7
        %v7189 = vsub.s32 %v884, %v7188
        %v7190 = vrot.slane %v6787, %v7189
        %v7191 = vsel %vm889, %v7190, %v7186
        %v7192 = vlaneseq
        %v7193 = vshrl.u32 %v7192, 7
        %v7194 = vsub.s32 %v891, %v7193
        %v7195 = vrot.slane %v6788, %v7194
        %v7196 = vsel %vm896, %v7195, %v7191
        %v7197 = vlaneseq
        %v7198 = vshrl.u32 %v7197, 7
        %v7199 = vsub.s32 %v898, %v7198
        %v7200 = vrot.slane %v6789, %v7199
        %v7201 = vsel %vm903, %v7200, %v7196
        %v7202 = vlaneseq
        %v7203 = vshrl.u32 %v7202, 7
        %v7204 = vsub.s32 %v905, %v7203
        %v7205 = vrot.slane %v6790, %v7204
        %v7206 = vsel %vm910, %v7205, %v7201
        %v7207 = vlaneseq
        %v7208 = vshrl.u32 %v7207, 7
        %v7209 = vsub.s32 %v912, %v7208
        %v7210 = vrot.slane %v6791, %v7209
        %v7211 = vsel %vm917, %v7210, %v7206
        %v7212 = vlaneseq
        %v7213 = vshrl.u32 %v7212, 7
        %v7214 = vsub.s32 %v809, %v7213
        %v7215 = vrot.slane %v6792, %v7214
        %v7216 = vlaneseq
        %v7217 = vshrl.u32 %v7216, 7
        %v7218 = vsub.s32 %v814, %v7217
        %v7219 = vrot.slane %v6793, %v7218
        %v7220 = vsel %vm819, %v7219, %v7215
        %v7221 = vlaneseq
        %v7222 = vshrl.u32 %v7221, 7
        %v7223 = vsub.s32 %v821, %v7222
        %v7224 = vrot.slane %v6794, %v7223
        %v7225 = vsel %vm826, %v7224, %v7220
        %v7226 = vlaneseq
        %v7227 = vshrl.u32 %v7226, 7
        %v7228 = vsub.s32 %v828, %v7227
        %v7229 = vrot.slane %v6795, %v7228
        %v7230 = vsel %vm833, %v7229, %v7225
        %v7231 = vlaneseq
        %v7232 = vshrl.u32 %v7231, 7
        %v7233 = vsub.s32 %v835, %v7232
        %v7234 = vrot.slane %v6796, %v7233
        %v7235 = vsel %vm840, %v7234, %v7230
        %v7236 = vlaneseq
        %v7237 = vshrl.u32 %v7236, 7
        %v7238 = vsub.s32 %v842, %v7237
        %v7239 = vrot.slane %v6797, %v7238
        %v7240 = vsel %vm847, %v7239, %v7235
        %v7241 = vlaneseq
        %v7242 = vshrl.u32 %v7241, 7
        %v7243 = vsub.s32 %v849, %v7242
        %v7244 = vrot.slane %v6798, %v7243
        %v7245 = vsel %vm854, %v7244, %v7240
        %v7246 = vlaneseq
        %v7247 = vshrl.u32 %v7246, 7
        %v7248 = vsub.s32 %v856, %v7247
        %v7249 = vrot.slane %v6799, %v7248
        %v7250 = vsel %vm861, %v7249, %v7245
        %v7251 = vlaneseq
        %v7252 = vshrl.u32 %v7251, 7
        %v7253 = vsub.s32 %v863, %v7252
        %v7254 = vrot.slane %v6800, %v7253
        %v7255 = vsel %vm868, %v7254, %v7250
        %v7256 = vlaneseq
        %v7257 = vshrl.u32 %v7256, 7
        %v7258 = vsub.s32 %v870, %v7257
        %v7259 = vrot.slane %v6801, %v7258
        %v7260 = vsel %vm875, %v7259, %v7255
        %v7261 = vlaneseq
        %v7262 = vshrl.u32 %v7261, 7
        %v7263 = vsub.s32 %v877, %v7262
        %v7264 = vrot.slane %v6802, %v7263
        %v7265 = vsel %vm882, %v7264, %v7260
        %v7266 = vlaneseq
        %v7267 = vshrl.u32 %v7266, 7
        %v7268 = vsub.s32 %v884, %v7267
        %v7269 = vrot.slane %v6803, %v7268
        %v7270 = vsel %vm889, %v7269, %v7265
        %v7271 = vlaneseq
        %v7272 = vshrl.u32 %v7271, 7
        %v7273 = vsub.s32 %v891, %v7272
        %v7274 = vrot.slane %v6804, %v7273
        %v7275 = vsel %vm896, %v7274, %v7270
        %v7276 = vlaneseq
        %v7277 = vshrl.u32 %v7276, 7
        %v7278 = vsub.s32 %v898, %v7277
        %v7279 = vrot.slane %v6805, %v7278
        %v7280 = vsel %vm903, %v7279, %v7275
        %v7281 = vlaneseq
        %v7282 = vshrl.u32 %v7281, 7
        %v7283 = vsub.s32 %v905, %v7282
        %v7284 = vrot.slane %v6806, %v7283
        %v7285 = vsel %vm910, %v7284, %v7280
        %v7286 = vlaneseq
        %v7287 = vshrl.u32 %v7286, 7
        %v7288 = vsub.s32 %v912, %v7287
        %v7289 = vrot.slane %v6807, %v7288
        %v7290 = vsel %vm917, %v7289, %v7285
        %v7291 = vlaneseq
        %v7292 = vshrl.u32 %v7291, 7
        %v7293 = vsub.s32 %v809, %v7292
        %v7294 = vrot.slane %v6808, %v7293
        %v7295 = vlaneseq
        %v7296 = vshrl.u32 %v7295, 7
        %v7297 = vsub.s32 %v814, %v7296
        %v7298 = vrot.slane %v6809, %v7297
        %v7299 = vsel %vm819, %v7298, %v7294
        %v7300 = vlaneseq
        %v7301 = vshrl.u32 %v7300, 7
        %v7302 = vsub.s32 %v821, %v7301
        %v7303 = vrot.slane %v6810, %v7302
        %v7304 = vsel %vm826, %v7303, %v7299
        %v7305 = vlaneseq
        %v7306 = vshrl.u32 %v7305, 7
        %v7307 = vsub.s32 %v828, %v7306
        %v7308 = vrot.slane %v6811, %v7307
        %v7309 = vsel %vm833, %v7308, %v7304
        %v7310 = vlaneseq
        %v7311 = vshrl.u32 %v7310, 7
        %v7312 = vsub.s32 %v835, %v7311
        %v7313 = vrot.slane %v6812, %v7312
        %v7314 = vsel %vm840, %v7313, %v7309
        %v7315 = vlaneseq
        %v7316 = vshrl.u32 %v7315, 7
        %v7317 = vsub.s32 %v842, %v7316
        %v7318 = vrot.slane %v6813, %v7317
        %v7319 = vsel %vm847, %v7318, %v7314
        %v7320 = vlaneseq
        %v7321 = vshrl.u32 %v7320, 7
        %v7322 = vsub.s32 %v849, %v7321
        %v7323 = vrot.slane %v6814, %v7322
        %v7324 = vsel %vm854, %v7323, %v7319
        %v7325 = vlaneseq
        %v7326 = vshrl.u32 %v7325, 7
        %v7327 = vsub.s32 %v856, %v7326
        %v7328 = vrot.slane %v6815, %v7327
        %v7329 = vsel %vm861, %v7328, %v7324
        %v7330 = vlaneseq
        %v7331 = vshrl.u32 %v7330, 7
        %v7332 = vsub.s32 %v863, %v7331
        %v7333 = vrot.slane %v6816, %v7332
        %v7334 = vsel %vm868, %v7333, %v7329
        %v7335 = vlaneseq
        %v7336 = vshrl.u32 %v7335, 7
        %v7337 = vsub.s32 %v870, %v7336
        %v7338 = vrot.slane %v6817, %v7337
        %v7339 = vsel %vm875, %v7338, %v7334
        %v7340 = vlaneseq
        %v7341 = vshrl.u32 %v7340, 7
        %v7342 = vsub.s32 %v877, %v7341
        %v7343 = vrot.slane %v6818, %v7342
        %v7344 = vsel %vm882, %v7343, %v7339
        %v7345 = vlaneseq
        %v7346 = vshrl.u32 %v7345, 7
        %v7347 = vsub.s32 %v884, %v7346
        %v7348 = vrot.slane %v6819, %v7347
        %v7349 = vsel %vm889, %v7348, %v7344
        %v7350 = vlaneseq
        %v7351 = vshrl.u32 %v7350, 7
        %v7352 = vsub.s32 %v891, %v7351
        %v7353 = vrot.slane %v6820, %v7352
        %v7354 = vsel %vm896, %v7353, %v7349
        %v7355 = vlaneseq
        %v7356 = vshrl.u32 %v7355, 7
        %v7357 = vsub.s32 %v898, %v7356
        %v7358 = vrot.slane %v6821, %v7357
        %v7359 = vsel %vm903, %v7358, %v7354
        %v7360 = vlaneseq
        %v7361 = vshrl.u32 %v7360, 7
        %v7362 = vsub.s32 %v905, %v7361
        %v7363 = vrot.slane %v6822, %v7362
        %v7364 = vsel %vm910, %v7363, %v7359
        %v7365 = vlaneseq
        %v7366 = vshrl.u32 %v7365, 7
        %v7367 = vsub.s32 %v912, %v7366
        %v7368 = vrot.slane %v6823, %v7367
        %v7369 = vsel %vm917, %v7368, %v7364
        %v7370 = vlaneseq
        %v7371 = vshrl.u32 %v7370, 7
        %v7372 = vsub.s32 %v809, %v7371
        %v7373 = vrot.slane %v6824, %v7372
        %v7374 = vlaneseq
        %v7375 = vshrl.u32 %v7374, 7
        %v7376 = vsub.s32 %v814, %v7375
        %v7377 = vrot.slane %v6825, %v7376
        %v7378 = vsel %vm819, %v7377, %v7373
        %v7379 = vlaneseq
        %v7380 = vshrl.u32 %v7379, 7
        %v7381 = vsub.s32 %v821, %v7380
        %v7382 = vrot.slane %v6826, %v7381
        %v7383 = vsel %vm826, %v7382, %v7378
        %v7384 = vlaneseq
        %v7385 = vshrl.u32 %v7384, 7
        %v7386 = vsub.s32 %v828, %v7385
        %v7387 = vrot.slane %v6827, %v7386
        %v7388 = vsel %vm833, %v7387, %v7383
        %v7389 = vlaneseq
        %v7390 = vshrl.u32 %v7389, 7
        %v7391 = vsub.s32 %v835, %v7390
        %v7392 = vrot.slane %v6828, %v7391
        %v7393 = vsel %vm840, %v7392, %v7388
        %v7394 = vlaneseq
        %v7395 = vshrl.u32 %v7394, 7
        %v7396 = vsub.s32 %v842, %v7395
        %v7397 = vrot.slane %v6829, %v7396
        %v7398 = vsel %vm847, %v7397, %v7393
        %v7399 = vlaneseq
        %v7400 = vshrl.u32 %v7399, 7
        %v7401 = vsub.s32 %v849, %v7400
        %v7402 = vrot.slane %v6830, %v7401
        %v7403 = vsel %vm854, %v7402, %v7398
        %v7404 = vlaneseq
        %v7405 = vshrl.u32 %v7404, 7
        %v7406 = vsub.s32 %v856, %v7405
        %v7407 = vrot.slane %v6831, %v7406
        %v7408 = vsel %vm861, %v7407, %v7403
        %v7409 = vlaneseq
        %v7410 = vshrl.u32 %v7409, 7
        %v7411 = vsub.s32 %v863, %v7410
        %v7412 = vrot.slane %v6832, %v7411
        %v7413 = vsel %vm868, %v7412, %v7408
        %v7414 = vlaneseq
        %v7415 = vshrl.u32 %v7414, 7
        %v7416 = vsub.s32 %v870, %v7415
        %v7417 = vrot.slane %v6833, %v7416
        %v7418 = vsel %vm875, %v7417, %v7413
        %v7419 = vlaneseq
        %v7420 = vshrl.u32 %v7419, 7
        %v7421 = vsub.s32 %v877, %v7420
        %v7422 = vrot.slane %v6834, %v7421
        %v7423 = vsel %vm882, %v7422, %v7418
        %v7424 = vlaneseq
        %v7425 = vshrl.u32 %v7424, 7
        %v7426 = vsub.s32 %v884, %v7425
        %v7427 = vrot.slane %v6835, %v7426
        %v7428 = vsel %vm889, %v7427, %v7423
        %v7429 = vlaneseq
        %v7430 = vshrl.u32 %v7429, 7
        %v7431 = vsub.s32 %v891, %v7430
        %v7432 = vrot.slane %v6836, %v7431
        %v7433 = vsel %vm896, %v7432, %v7428
        %v7434 = vlaneseq
        %v7435 = vshrl.u32 %v7434, 7
        %v7436 = vsub.s32 %v898, %v7435
        %v7437 = vrot.slane %v6837, %v7436
        %v7438 = vsel %vm903, %v7437, %v7433
        %v7439 = vlaneseq
        %v7440 = vshrl.u32 %v7439, 7
        %v7441 = vsub.s32 %v905, %v7440
        %v7442 = vrot.slane %v6838, %v7441
        %v7443 = vsel %vm910, %v7442, %v7438
        %v7444 = vlaneseq
        %v7445 = vshrl.u32 %v7444, 7
        %v7446 = vsub.s32 %v912, %v7445
        %v7447 = vrot.slane %v6839, %v7446
        %v7448 = vsel %vm917, %v7447, %v7443
        %v7449 = vlaneseq
        %v7450 = vshrl.u32 %v7449, 7
        %v7451 = vsub.s32 %v809, %v7450
        %v7452 = vrot.slane %v6840, %v7451
        %v7453 = vlaneseq
        %v7454 = vshrl.u32 %v7453, 7
        %v7455 = vsub.s32 %v814, %v7454
        %v7456 = vrot.slane %v6841, %v7455
        %v7457 = vsel %vm819, %v7456, %v7452
        %v7458 = vlaneseq
        %v7459 = vshrl.u32 %v7458, 7
        %v7460 = vsub.s32 %v821, %v7459
        %v7461 = vrot.slane %v6842, %v7460
        %v7462 = vsel %vm826, %v7461, %v7457
        %v7463 = vlaneseq
        %v7464 = vshrl.u32 %v7463, 7
        %v7465 = vsub.s32 %v828, %v7464
        %v7466 = vrot.slane %v6843, %v7465
        %v7467 = vsel %vm833, %v7466, %v7462
        %v7468 = vlaneseq
        %v7469 = vshrl.u32 %v7468, 7
        %v7470 = vsub.s32 %v835, %v7469
        %v7471 = vrot.slane %v6844, %v7470
        %v7472 = vsel %vm840, %v7471, %v7467
        %v7473 = vlaneseq
        %v7474 = vshrl.u32 %v7473, 7
        %v7475 = vsub.s32 %v842, %v7474
        %v7476 = vrot.slane %v6845, %v7475
        %v7477 = vsel %vm847, %v7476, %v7472
        %v7478 = vlaneseq
        %v7479 = vshrl.u32 %v7478, 7
        %v7480 = vsub.s32 %v849, %v7479
        %v7481 = vrot.slane %v6846, %v7480
        %v7482 = vsel %vm854, %v7481, %v7477
        %v7483 = vlaneseq
        %v7484 = vshrl.u32 %v7483, 7
        %v7485 = vsub.s32 %v856, %v7484
        %v7486 = vrot.slane %v6847, %v7485
        %v7487 = vsel %vm861, %v7486, %v7482
        %v7488 = vlaneseq
        %v7489 = vshrl.u32 %v7488, 7
        %v7490 = vsub.s32 %v863, %v7489
        %v7491 = vrot.slane %v6848, %v7490
        %v7492 = vsel %vm868, %v7491, %v7487
        %v7493 = vlaneseq
        %v7494 = vshrl.u32 %v7493, 7
        %v7495 = vsub.s32 %v870, %v7494
        %v7496 = vrot.slane %v6849, %v7495
        %v7497 = vsel %vm875, %v7496, %v7492
        %v7498 = vlaneseq
        %v7499 = vshrl.u32 %v7498, 7
        %v7500 = vsub.s32 %v877, %v7499
        %v7501 = vrot.slane %v6850, %v7500
        %v7502 = vsel %vm882, %v7501, %v7497
        %v7503 = vlaneseq
        %v7504 = vshrl.u32 %v7503, 7
        %v7505 = vsub.s32 %v884, %v7504
        %v7506 = vrot.slane %v6851, %v7505
        %v7507 = vsel %vm889, %v7506, %v7502
        %v7508 = vlaneseq
        %v7509 = vshrl.u32 %v7508, 7
        %v7510 = vsub.s32 %v891, %v7509
        %v7511 = vrot.slane %v6852, %v7510
        %v7512 = vsel %vm896, %v7511, %v7507
        %v7513 = vlaneseq
        %v7514 = vshrl.u32 %v7513, 7
        %v7515 = vsub.s32 %v898, %v7514
        %v7516 = vrot.slane %v6853, %v7515
        %v7517 = vsel %vm903, %v7516, %v7512
        %v7518 = vlaneseq
        %v7519 = vshrl.u32 %v7518, 7
        %v7520 = vsub.s32 %v905, %v7519
        %v7521 = vrot.slane %v6854, %v7520
        %v7522 = vsel %vm910, %v7521, %v7517
        %v7523 = vlaneseq
        %v7524 = vshrl.u32 %v7523, 7
        %v7525 = vsub.s32 %v912, %v7524
        %v7526 = vrot.slane %v6855, %v7525
        %v7527 = vsel %vm917, %v7526, %v7522
        %v7528 = vlaneseq
        %v7529 = vshrl.u32 %v7528, 7
        %v7530 = vsub.s32 %v809, %v7529
        %v7531 = vrot.slane %v6856, %v7530
        %v7532 = vlaneseq
        %v7533 = vshrl.u32 %v7532, 7
        %v7534 = vsub.s32 %v814, %v7533
        %v7535 = vrot.slane %v6857, %v7534
        %v7536 = vsel %vm819, %v7535, %v7531
        %v7537 = vlaneseq
        %v7538 = vshrl.u32 %v7537, 7
        %v7539 = vsub.s32 %v821, %v7538
        %v7540 = vrot.slane %v6858, %v7539
        %v7541 = vsel %vm826, %v7540, %v7536
        %v7542 = vlaneseq
        %v7543 = vshrl.u32 %v7542, 7
        %v7544 = vsub.s32 %v828, %v7543
        %v7545 = vrot.slane %v6859, %v7544
        %v7546 = vsel %vm833, %v7545, %v7541
        %v7547 = vlaneseq
        %v7548 = vshrl.u32 %v7547, 7
        %v7549 = vsub.s32 %v835, %v7548
        %v7550 = vrot.slane %v6860, %v7549
        %v7551 = vsel %vm840, %v7550, %v7546
        %v7552 = vlaneseq
        %v7553 = vshrl.u32 %v7552, 7
        %v7554 = vsub.s32 %v842, %v7553
        %v7555 = vrot.slane %v6861, %v7554
        %v7556 = vsel %vm847, %v7555, %v7551
        %v7557 = vlaneseq
        %v7558 = vshrl.u32 %v7557, 7
        %v7559 = vsub.s32 %v849, %v7558
        %v7560 = vrot.slane %v6862, %v7559
        %v7561 = vsel %vm854, %v7560, %v7556
        %v7562 = vlaneseq
        %v7563 = vshrl.u32 %v7562, 7
        %v7564 = vsub.s32 %v856, %v7563
        %v7565 = vrot.slane %v6863, %v7564
        %v7566 = vsel %vm861, %v7565, %v7561
        %v7567 = vlaneseq
        %v7568 = vshrl.u32 %v7567, 7
        %v7569 = vsub.s32 %v863, %v7568
        %v7570 = vrot.slane %v6864, %v7569
        %v7571 = vsel %vm868, %v7570, %v7566
        %v7572 = vlaneseq
        %v7573 = vshrl.u32 %v7572, 7
        %v7574 = vsub.s32 %v870, %v7573
        %v7575 = vrot.slane %v6865, %v7574
        %v7576 = vsel %vm875, %v7575, %v7571
        %v7577 = vlaneseq
        %v7578 = vshrl.u32 %v7577, 7
        %v7579 = vsub.s32 %v877, %v7578
        %v7580 = vrot.slane %v6866, %v7579
        %v7581 = vsel %vm882, %v7580, %v7576
        %v7582 = vlaneseq
        %v7583 = vshrl.u32 %v7582, 7
        %v7584 = vsub.s32 %v884, %v7583
        %v7585 = vrot.slane %v6867, %v7584
        %v7586 = vsel %vm889, %v7585, %v7581
        %v7587 = vlaneseq
        %v7588 = vshrl.u32 %v7587, 7
        %v7589 = vsub.s32 %v891, %v7588
        %v7590 = vrot.slane %v6868, %v7589
        %v7591 = vsel %vm896, %v7590, %v7586
        %v7592 = vlaneseq
        %v7593 = vshrl.u32 %v7592, 7
        %v7594 = vsub.s32 %v898, %v7593
        %v7595 = vrot.slane %v6869, %v7594
        %v7596 = vsel %vm903, %v7595, %v7591
        %v7597 = vlaneseq
        %v7598 = vshrl.u32 %v7597, 7
        %v7599 = vsub.s32 %v905, %v7598
        %v7600 = vrot.slane %v6870, %v7599
        %v7601 = vsel %vm910, %v7600, %v7596
        %v7602 = vlaneseq
        %v7603 = vshrl.u32 %v7602, 7
        %v7604 = vsub.s32 %v912, %v7603
        %v7605 = vrot.slane %v6871, %v7604
        %v7606 = vsel %vm917, %v7605, %v7601
        %v7607 = vlaneseq
        %v7608 = vshrl.u32 %v7607, 7
        %v7609 = vsub.s32 %v809, %v7608
        %v7610 = vrot.slane %v6872, %v7609
        %v7611 = vlaneseq
        %v7612 = vshrl.u32 %v7611, 7
        %v7613 = vsub.s32 %v814, %v7612
        %v7614 = vrot.slane %v6873, %v7613
        %v7615 = vsel %vm819, %v7614, %v7610
        %v7616 = vlaneseq
        %v7617 = vshrl.u32 %v7616, 7
        %v7618 = vsub.s32 %v821, %v7617
        %v7619 = vrot.slane %v6874, %v7618
        %v7620 = vsel %vm826, %v7619, %v7615
        %v7621 = vlaneseq
        %v7622 = vshrl.u32 %v7621, 7
        %v7623 = vsub.s32 %v828, %v7622
        %v7624 = vrot.slane %v6875, %v7623
        %v7625 = vsel %vm833, %v7624, %v7620
        %v7626 = vlaneseq
        %v7627 = vshrl.u32 %v7626, 7
        %v7628 = vsub.s32 %v835, %v7627
        %v7629 = vrot.slane %v6876, %v7628
        %v7630 = vsel %vm840, %v7629, %v7625
        %v7631 = vlaneseq
        %v7632 = vshrl.u32 %v7631, 7
        %v7633 = vsub.s32 %v842, %v7632
        %v7634 = vrot.slane %v6877, %v7633
        %v7635 = vsel %vm847, %v7634, %v7630
        %v7636 = vlaneseq
        %v7637 = vshrl.u32 %v7636, 7
        %v7638 = vsub.s32 %v849, %v7637
        %v7639 = vrot.slane %v6878, %v7638
        %v7640 = vsel %vm854, %v7639, %v7635
        %v7641 = vlaneseq
        %v7642 = vshrl.u32 %v7641, 7
        %v7643 = vsub.s32 %v856, %v7642
        %v7644 = vrot.slane %v6879, %v7643
        %v7645 = vsel %vm861, %v7644, %v7640
        %v7646 = vlaneseq
        %v7647 = vshrl.u32 %v7646, 7
        %v7648 = vsub.s32 %v863, %v7647
        %v7649 = vrot.slane %v6880, %v7648
        %v7650 = vsel %vm868, %v7649, %v7645
        %v7651 = vlaneseq
        %v7652 = vshrl.u32 %v7651, 7
        %v7653 = vsub.s32 %v870, %v7652
        %v7654 = vrot.slane %v6881, %v7653
        %v7655 = vsel %vm875, %v7654, %v7650
        %v7656 = vlaneseq
        %v7657 = vshrl.u32 %v7656, 7
        %v7658 = vsub.s32 %v877, %v7657
        %v7659 = vrot.slane %v6882, %v7658
        %v7660 = vsel %vm882, %v7659, %v7655
        %v7661 = vlaneseq
        %v7662 = vshrl.u32 %v7661, 7
        %v7663 = vsub.s32 %v884, %v7662
        %v7664 = vrot.slane %v6883, %v7663
        %v7665 = vsel %vm889, %v7664, %v7660
        %v7666 = vlaneseq
        %v7667 = vshrl.u32 %v7666, 7
        %v7668 = vsub.s32 %v891, %v7667
        %v7669 = vrot.slane %v6884, %v7668
        %v7670 = vsel %vm896, %v7669, %v7665
        %v7671 = vlaneseq
        %v7672 = vshrl.u32 %v7671, 7
        %v7673 = vsub.s32 %v898, %v7672
        %v7674 = vrot.slane %v6885, %v7673
        %v7675 = vsel %vm903, %v7674, %v7670
        %v7676 = vlaneseq
        %v7677 = vshrl.u32 %v7676, 7
        %v7678 = vsub.s32 %v905, %v7677
        %v7679 = vrot.slane %v6886, %v7678
        %v7680 = vsel %vm910, %v7679, %v7675
        %v7681 = vlaneseq
        %v7682 = vshrl.u32 %v7681, 7
        %v7683 = vsub.s32 %v912, %v7682
        %v7684 = vrot.slane %v6887, %v7683
        %v7685 = vsel %vm917, %v7684, %v7680
        %v7686 = vsel %vm919, %v7211, %v7132
        %v7687 = vsel %vm920, %v7290, %v7686
        %v7688 = vsel %vm922, %v7369, %v7687
        %v7689 = vsel %vm924, %v7448, %v7688
        %v7690 = vsel %vm926, %v7527, %v7689
        %v7691 = vsel %vm928, %v7606, %v7690
        %v7692 = vsel %vm930, %v7685, %v7691
        %v7694 = vsel %vm6925, -inf, %v7692
        %vm7695 = vcmp.gt.f32.partialorder %v6889, 0.0
        %v7696 = vsel %vm7695, 1, 0
        %7697 = vset.pattern.permute.xlu0 3
        %7698 = vperm.xlu0 %7697, %v7696
        %v7699 = vpop.permute.xlu0 %7698
        %vm7700 = vcmp.eq.s32.totalorder %v7699, 1
        %v7701 = vsel %vm7700, %v7694, 0.0
        %vm7702 = vcmp.eq.f32.partialorder %v7701, -inf
        %v7703 = vsel %vm7702, 0.0, 1.0
        %7704 = vmax.xlane.f32.xlu0 %v7703
        %v7705 = vpop.xlane.xlu0 %7704
        %vm7706 = vcmp.gt.f32.partialorder %v7705, 0.0
        %v7707 = vsel %vm7706, 1, 0
        %vm7708 = vcmp.eq.s32.totalorder %v7707, 1
        %v7709 = vsel %vm7708, %v7701, 0.0
        %7710 = vst [vmem:[%s465] sm:$0xff] %v7709
        %s7711 = sand.u32 %s224, 1
        %s7712 = scalar_lea.sflag [#allocation4], %s7711
        %s7713 = sand.u32 %s224, 1
        %s7714 = smul.addr %s7713, 8
        %s7715 = scalar_lea.vmem [#allocation14], %s7714
        // Predicated region
        $region77: #{dest_predictor_forward.1} parent=47 // pred_check
          %p7716 = pneg %p234
        $region78: #{dest_predictor_forward.1} parent=47 // pred_check_branch
          %7718 = sbr.rel (%p7716) target = $region80
        $region79: #{dest_predictor_forward.1} parent=47 // pred_region
          %s7720 = ssub.s32 128, 128
          %7721 = vsyncadd %s7712, %s7720
          %s7722 = sadd.s32 %s36, %s35
          %s7723 = smul.addr %s7722, 128
          %s7724 = scalar_lea.hbm %s7, %s7723
          %s7726 = sshll.u32 %s7715, 4
          %s7727 = int_to_ptr.vmem [resolvable:$true] %s7726
          %7729 = dma.vmem_to_hbm [thread:$0]  %s7727, 128, %s7724, %s7712
        $region80: #{dest_predictor_forward.1} parent=47 // pred_fallthru
          _
      $region48: #{dest_predictor_forward.1} parent=5 // pred_fallthru
        _
      %p7730 = scmp.le.s32.totalorder 2, %s26
      // Predicated region
      $region81: #{dest_predictor_forward.1} parent=5 // pred_check
        %p7731 = pneg %p7730
      $region82: #{dest_predictor_forward.1} parent=5 // pred_check_branch
        %7733 = sbr.rel (%p7731) target = $region84
      $region83: #{dest_predictor_forward.1} parent=5 // pred_region
        %s7734 = ssub.s32 %s26, 2
        // Predicated region
        $region85: #{dest_predictor_forward.1} parent=83 // pred_check
          %p7735 = pneg %p240
        $region86: #{dest_predictor_forward.1} parent=83 // pred_check_branch
          %7737 = sbr.rel (%p7735) target = $region88
        $region87: #{dest_predictor_forward.1} parent=83 // pred_region
          %s7738 = sand.u32 %s225, 1
          %s7739 = scalar_lea.sflag [#allocation4], %s7738
          %s7740 = sand.u32 %s225, 1
          %s7741 = smul.addr %s7740, 8
          %s7742 = scalar_lea.vmem [#allocation14], %s7741
          %7743 = dma.done %s7739, 128
        $region88: #{dest_predictor_forward.1} parent=83 // pred_fallthru
          _
      $region84: #{dest_predictor_forward.1} parent=5 // pred_fallthru
        _
    $region6: #{dest_predictor_forward.1} parent=1 // loop_footer
      %s30 = sadd.s32 1, %s26
    $region7: #{dest_predictor_forward.1} parent=1 // loop_footer_branch
      %25 = sbr.rel target = $region3
    $region8: #{dest_predictor_forward.1} parent=1 // loop_exit
      _
    %7744 = vsyncpa [#allocation3], 1
    %s7745 = scalar_lea.sflag [#allocation3], 1
    %7746 = vsyncpa %s7745, 1
    %7747 = vsyncpa [#allocation6], 1
    %s7748 = scalar_lea.sflag [#allocation6], 1
    %7749 = vsyncpa %s7748, 1
    %7750 = vsyncpa [#allocation9], 1
    %s7751 = scalar_lea.sflag [#allocation9], 1
    %7752 = vsyncpa %s7751, 1
    %7753 = vsyncpa [#allocation12], 1
    %7754 = vsyncpa [#allocation4], 1
    %s7755 = scalar_lea.sflag [#allocation4], 1
    %7756 = vsyncpa %s7755, 1

</llo_original>
